<compile_context>
chip_gen: v7x
topology: tpu7x:2x2x1
jax: 0.10.0
libtpu: 0.0.40
codegen_flags: <defaults>
</compile_context>

<pallas_src>
import jax
import jax.numpy as jnp
from jax import lax
from jax.experimental import pallas as pl
from jax.experimental.pallas import tpu as pltpu

C_PAD = 128                 # channel padding -> full lane width
MXU_DTYPE = jnp.bfloat16    # MXU operand dtype (accumulation stays f32)


def _ds(start, size, stride):
    return pl.ds(start, size) if stride == 1 else pl.ds(start, size, stride)


def _make_network_block_kernel(nb_layers, B, H, W, stride, equal0):
    Ho = (H + 2 - 3) // stride + 1
    Wo = (W + 2 - 3) // stride + 1
    M = B * Ho * Wo
    C = C_PAD

    def conv3x3(a4d, pad_ref, col_ref, w_ref, s, Ho_, Wo_):
        # a4d: (B, Hi, Wi, C) f32 activation (un-padded).  The pad scratch
        # border is already zero, so one interior store suffices; the 9 taps
        # are packed into the bf16 im2col buffer at aligned 128-lane offsets,
        # then a single MXU matmul (K = 9*C) does the whole convolution.
        Hi, Wi = a4d.shape[1], a4d.shape[2]
        pad_ref[:, 1:Hi + 1, 1:Wi + 1, :] = a4d
        for di in range(3):
            for dj in range(3):
                t = di * 3 + dj
                tap = pad_ref[:, _ds(di, Ho_, s), _ds(dj, Wo_, s), :]  # (B,Ho,Wo,C)
                col_ref[:, t * C:(t + 1) * C] = (
                    tap.reshape(B * Ho_ * Wo_, C).astype(MXU_DTYPE))
        return jnp.dot(col_ref[...], w_ref[...],
                       preferred_element_type=jnp.float32)             # (M, C) f32

    def kernel(*refs):
        it = iter(refs)
        x_ref = next(it)
        block_refs = []
        for l in range(nb_layers):
            n = 7 if (l == 0 and not equal0) else 6
            block_refs.append([next(it) for _ in range(n)])
        o_ref = next(it)
        padA = next(it)   # (B, H+2,  W+2,  C) scratch for the first (strided) conv
        padB = next(it)   # (B, Ho+2, Wo+2, C) scratch reused by every other conv
        col = next(it)    # (M, 9*C) bf16 im2col buffer, reused per conv

        # Borders must be zero; interiors are fully overwritten before every
        # use, so zeroing once per grid step is enough (no per-conv zeroing).
        padA[...] = jnp.zeros(padA.shape, jnp.float32)
        padB[...] = jnp.zeros(padB.shape, jnp.float32)

        # ---------------- block 0 (may downsample / change width) ----------
        g1, b1, w1, g2, b2, w2 = block_refs[0][:6]
        x = x_ref[...]                                         # (B, H, W, C) f32
        a1 = jnp.maximum(x * g1[...] + b1[...], 0.0)           # BN1 (folded) + ReLU
        h1 = conv3x3(a1, padA, col, w1, stride, Ho, Wo)        # (M, C)
        a2 = jnp.maximum(h1 * g2[...] + b2[...], 0.0)          # BN2 (folded) + ReLU
        # TODO(synk): F.dropout for dropRate > 0 not implemented (dropRate == 0.0 here).
        out = conv3x3(a2.reshape(B, Ho, Wo, C), padB, col, w2, 1, Ho, Wo)
        if equal0:
            res = x.reshape(M, C)                              # identity shortcut (raw x)
        else:
            ws = block_refs[0][6]
            # 1x1 shortcut conv, stride=stride, applied to relu(bn1(x)).
            a1s = padA[:, _ds(1, Ho, stride), _ds(1, Wo, stride), :]
            res = jnp.dot(a1s.reshape(M, C).astype(MXU_DTYPE), ws[...],
                          preferred_element_type=jnp.float32)
        y = res + out                                          # (M, C) f32

        # -------- blocks 1..nb_layers-1 (stride 1, identity shortcut) ------
        for l in range(1, nb_layers):
            g1, b1, w1, g2, b2, w2 = block_refs[l]
            a1 = jnp.maximum(y * g1[...] + b1[...], 0.0)
            h1 = conv3x3(a1.reshape(B, Ho, Wo, C), padB, col, w1, 1, Ho, Wo)
            a2 = jnp.maximum(h1 * g2[...] + b2[...], 0.0)
            out = conv3x3(a2.reshape(B, Ho, Wo, C), padB, col, w2, 1, Ho, Wo)
            y = y + out

        o_ref[...] = y.astype(o_ref.dtype)                     # lane-dense (M, 128) store

    return kernel, Ho, Wo


def network_block_apply(x_nchw, blocks, stride, *, batch_block=None):
    """NetworkBlock.forward (eval mode).  x_nchw: (N, Cin, H, W) f32 -> NCHW out."""
    N, Cin, H, W = x_nchw.shape
    Cout = blocks[0]["cout"]
    nb_layers = len(blocks)
    equal0 = (Cin == Cout)
    # TODO(synk): for real WRN widths > 128, tile Cout across the grid instead.
    assert max(Cin, Cout) <= C_PAD
    assert not (equal0 and stride != 1), \
        "identity shortcut with stride != 1 is shape-invalid (as in PyTorch)"

    B = N if batch_block is None else batch_block   # whole batch per grid step
    assert N % B == 0

    kernel, Ho, Wo = _make_network_block_kernel(nb_layers, B, H, W, stride, equal0)
    M = B * Ho * Wo

    # NCHW -> channels-last, zero-pad channels to the 128-lane width (wrapper-side).
    x_nhwc = jnp.transpose(x_nchw, (0, 2, 3, 1)).astype(jnp.float32)
    x_pad = jnp.pad(x_nhwc, ((0, 0), (0, 0), (0, 0), (0, C_PAD - Cin)))

    inputs = [x_pad]
    in_specs = [pl.BlockSpec((B, H, W, C_PAD), lambda i: (i, 0, 0, 0))]

    def _param(arr):
        nd = arr.ndim
        inputs.append(arr)
        in_specs.append(pl.BlockSpec(arr.shape, lambda i, nd=nd: (0,) * nd))

    for l, p in enumerate(blocks):
        for name in ("g1", "b1", "w1", "g2", "b2", "w2"):
            _param(p[name])
        if l == 0 and not equal0:
            _param(p["ws"])

    out = pl.pallas_call(
        kernel,
        out_shape=jax.ShapeDtypeStruct((N * Ho * Wo, C_PAD), jnp.float32),
        grid=(N // B,),
        in_specs=in_specs,
        out_specs=pl.BlockSpec((M, C_PAD), lambda i: (i, 0)),
        scratch_shapes=[
            pltpu.VMEM((B, H + 2, W + 2, C_PAD), jnp.float32),
            pltpu.VMEM((B, Ho + 2, Wo + 2, C_PAD), jnp.float32),
            pltpu.VMEM((M, 9 * C_PAD), MXU_DTYPE),
        ],
        compiler_params=pltpu.CompilerParams(
            # Independent batch chunks -> megacore-shardable on v7x.
            dimension_semantics=("parallel",),
        ),
    )(*inputs)

    # (N*Ho*Wo, C_PAD) -> NCHW (N, Cout, Ho, Wo), dropping the zero channel pad.
    out = out.reshape(N, Ho, Wo, C_PAD)[..., :Cout]
    return jnp.transpose(out, (0, 3, 1, 2))


# ---------------- parameter init (deterministic, synthetic) ----------------

def _pad_to(a, shape):
    return jnp.pad(a, [(0, t - s) for s, t in zip(a.shape, shape)])


def _fold_bn(key, c, eps=1e-5):
    k1, k2, k3, k4 = jax.random.split(key, 4)
    gamma = 1.0 + 0.1 * jax.random.normal(k1, (c,), jnp.float32)
    beta = 0.1 * jax.random.normal(k2, (c,), jnp.float32)
    rmean = 0.1 * jax.random.normal(k3, (c,), jnp.float32)
    rvar = jax.random.uniform(k4, (c,), jnp.float32, 0.5, 1.5)
    scale = gamma / jnp.sqrt(rvar + eps)
    bias = beta - rmean * scale
    return scale, bias


def init_basic_block(key, cin, cout):
    k_bn1, k_w1, k_bn2, k_w2, k_ws = jax.random.split(key, 5)
    s1, o1 = _fold_bn(k_bn1, cin)
    s2, o2 = _fold_bn(k_bn2, cout)
    w1 = jax.random.normal(k_w1, (3, 3, cin, cout), jnp.float32) * (2.0 / (9 * cout)) ** 0.5
    w2 = jax.random.normal(k_w2, (3, 3, cout, cout), jnp.float32) * (2.0 / (9 * cout)) ** 0.5
    p = {
        "cout": cout,
        # kernel-side params: channels zero-padded to C_PAD, BN folded, conv
        # weights pre-reshaped to im2col layout (9*C_PAD, C_PAD) in bf16.
        "g1": _pad_to(s1.reshape(1, cin), (1, C_PAD)),
        "b1": _pad_to(o1.reshape(1, cin), (1, C_PAD)),
        "g2": _pad_to(s2.reshape(1, cout), (1, C_PAD)),
        "b2": _pad_to(o2.reshape(1, cout), (1, C_PAD)),
        "w1": _pad_to(w1, (3, 3, C_PAD, C_PAD)).reshape(9 * C_PAD, C_PAD).astype(MXU_DTYPE),
        "w2": _pad_to(w2, (3, 3, C_PAD, C_PAD)).reshape(9 * C_PAD, C_PAD).astype(MXU_DTYPE),
        # f32 HWIO copies for the pure-JAX reference.
        "w1_hwio": w1, "w2_hwio": w2,
    }
    if cin != cout:
        ws = jax.random.normal(k_ws, (1, 1, cin, cout), jnp.float32) * (2.0 / cout) ** 0.5
        p["ws"] = _pad_to(ws.reshape(cin, cout), (C_PAD, C_PAD)).astype(MXU_DTYPE)
        p["ws_hwio"] = ws
    return p


def init_network_block(key, nb_layers, in_planes, out_planes):
    keys = jax.random.split(key, nb_layers)
    return [init_basic_block(keys[i], in_planes if i == 0 else out_planes, out_planes)
            for i in range(nb_layers)]


# ---------------- pure-JAX reference (bf16 MXU operands, f32 accum) ----------

def _ref_conv(x, w_hwio, stride, pad):
    return lax.conv_general_dilated(
        x.astype(MXU_DTYPE), w_hwio.astype(MXU_DTYPE), (stride, stride), pad,
        dimension_numbers=("NCHW", "HWIO", "NCHW"),
        preferred_element_type=jnp.float32)


def ref_basic_block(x, p, stride):
    cin, cout = x.shape[1], p["cout"]
    equal = (cin == cout)
    g1 = p["g1"][0, :cin].reshape(1, cin, 1, 1)
    b1 = p["b1"][0, :cin].reshape(1, cin, 1, 1)
    g2 = p["g2"][0, :cout].reshape(1, cout, 1, 1)
    b2 = p["b2"][0, :cout].reshape(1, cout, 1, 1)
    a1 = jnp.maximum(x * g1 + b1, 0.0)
    h = _ref_conv(a1, p["w1_hwio"], stride, [(1, 1), (1, 1)])
    a2 = jnp.maximum(h * g2 + b2, 0.0)
    out = _ref_conv(a2, p["w2_hwio"], 1, [(1, 1), (1, 1)])
    res = x if equal else _ref_conv(a1, p["ws_hwio"], stride, [(0, 0), (0, 0)])
    return res + out


def ref_network_block(x, blocks, stride):
    for i, p in enumerate(blocks):
        x = ref_basic_block(x, p, stride if i == 0 else 1)
    return x


if __name__ == "__main__":
    key = jax.random.PRNGKey(0)
    k_x, k_p = jax.random.split(key)

    # NetworkBlock(nb_layers=2, in_planes=4, out_planes=8, BasicBlock, stride=2, dropRate=0.0)
    N, in_planes, out_planes, spatial = 2, 4, 8, 16
    nb_layers, stride = 2, 2

    x = jax.random.normal(k_x, (N, in_planes, spatial, spatial), jnp.float32)  # NCHW
    blocks = init_network_block(k_p, nb_layers, in_planes, out_planes)

    y = network_block_apply(x, blocks, stride)
    y = jax.block_until_ready(y)

    y_ref = ref_network_block(x, blocks, stride)
    assert y.shape == (N, out_planes, spatial // stride, spatial // stride), y.shape
    err = float(jnp.max(jnp.abs(y - y_ref)))
    tol = 1e-2 * max(1.0, float(jnp.max(jnp.abs(y_ref))))
    if err < tol:
        print("KERNEL_OK")
    else:
        print(f"MISMATCH max_abs_err={err}")
</pallas_src>

<mosaic_0001>
module attributes {stable_mosaic.version = 11 : i64} {
  func.func @kernel(%arg0: i32, %arg1: memref<2x16x16x128xf32, #tpu.memory_space<vmem>>, %arg2: memref<1x128xf32, #tpu.memory_space<vmem>>, %arg3: memref<1x128xf32, #tpu.memory_space<vmem>>, %arg4: memref<1152x128xbf16, #tpu.memory_space<vmem>>, %arg5: memref<1x128xf32, #tpu.memory_space<vmem>>, %arg6: memref<1x128xf32, #tpu.memory_space<vmem>>, %arg7: memref<1152x128xbf16, #tpu.memory_space<vmem>>, %arg8: memref<128x128xbf16, #tpu.memory_space<vmem>>, %arg9: memref<1x128xf32, #tpu.memory_space<vmem>>, %arg10: memref<1x128xf32, #tpu.memory_space<vmem>>, %arg11: memref<1152x128xbf16, #tpu.memory_space<vmem>>, %arg12: memref<1x128xf32, #tpu.memory_space<vmem>>, %arg13: memref<1x128xf32, #tpu.memory_space<vmem>>, %arg14: memref<1152x128xbf16, #tpu.memory_space<vmem>>, %arg15: memref<128x128xf32, #tpu.memory_space<vmem>>, %arg16: memref<2x18x18x128xf32, #tpu.memory_space<vmem>>, %arg17: memref<2x10x10x128xf32, #tpu.memory_space<vmem>>, %arg18: memref<128x1152xbf16, #tpu.memory_space<vmem>>) attributes {dimension_semantics = [#tpu.dimension_semantics<parallel>], iteration_bounds = array<i64: 1>, scalar_prefetch = 0 : i64, scratch_operands = 3 : i64, tpu.core_type = #tpu.core_type<tc>, window_params = [{transform_indices = @transform_0, window_bounds = array<i64: 2, 16, 16, 128>}, {pipeline_mode = #tpu.pipeline_mode<synchronous>, transform_indices = @transform_1, window_bounds = array<i64: 1, 128>}, {pipeline_mode = #tpu.pipeline_mode<synchronous>, transform_indices = @transform_2, window_bounds = array<i64: 1, 128>}, {pipeline_mode = #tpu.pipeline_mode<synchronous>, transform_indices = @transform_3, window_bounds = array<i64: 1152, 128>}, {pipeline_mode = #tpu.pipeline_mode<synchronous>, transform_indices = @transform_4, window_bounds = array<i64: 1, 128>}, {pipeline_mode = #tpu.pipeline_mode<synchronous>, transform_indices = @transform_5, window_bounds = array<i64: 1, 128>}, {pipeline_mode = #tpu.pipeline_mode<synchronous>, transform_indices = @transform_6, window_bounds = array<i64: 1152, 128>}, {pipeline_mode = #tpu.pipeline_mode<synchronous>, transform_indices = @transform_7, window_bounds = array<i64: 128, 128>}, {pipeline_mode = #tpu.pipeline_mode<synchronous>, transform_indices = @transform_8, window_bounds = array<i64: 1, 128>}, {pipeline_mode = #tpu.pipeline_mode<synchronous>, transform_indices = @transform_9, window_bounds = array<i64: 1, 128>}, {pipeline_mode = #tpu.pipeline_mode<synchronous>, transform_indices = @transform_10, window_bounds = array<i64: 1152, 128>}, {pipeline_mode = #tpu.pipeline_mode<synchronous>, transform_indices = @transform_11, window_bounds = array<i64: 1, 128>}, {pipeline_mode = #tpu.pipeline_mode<synchronous>, transform_indices = @transform_12, window_bounds = array<i64: 1, 128>}, {pipeline_mode = #tpu.pipeline_mode<synchronous>, transform_indices = @transform_13, window_bounds = array<i64: 1152, 128>}, {transform_indices = @transform_14, window_bounds = array<i64: 128, 128>}]} {
    %cst = arith.constant 0.000000e+00 : f32
    %0 = vector.broadcast %cst : f32 to vector<2x18x18x128xf32>
    %c0 = arith.constant 0 : index
    %c0_0 = arith.constant 0 : index
    %c0_1 = arith.constant 0 : index
    %c0_2 = arith.constant 0 : index
    %1 = vector.load %arg16[%c0, %c0_0, %c0_1, %c0_2] : memref<2x18x18x128xf32, #tpu.memory_space<vmem>>, vector<2x18x18x128xf32>
    tpu.vector_store %arg16[%c0, %c0_0, %c0_1, %c0_2], %0 {strides = array<i32>} : memref<2x18x18x128xf32, #tpu.memory_space<vmem>>, vector<2x18x18x128xf32>,
    %cst_3 = arith.constant 0.000000e+00 : f32
    %2 = vector.broadcast %cst_3 : f32 to vector<2x10x10x128xf32>
    %c0_4 = arith.constant 0 : index
    %c0_5 = arith.constant 0 : index
    %c0_6 = arith.constant 0 : index
    %c0_7 = arith.constant 0 : index
    %3 = vector.load %arg17[%c0_4, %c0_5, %c0_6, %c0_7] : memref<2x10x10x128xf32, #tpu.memory_space<vmem>>, vector<2x10x10x128xf32>
    tpu.vector_store %arg17[%c0_4, %c0_5, %c0_6, %c0_7], %2 {strides = array<i32>} : memref<2x10x10x128xf32, #tpu.memory_space<vmem>>, vector<2x10x10x128xf32>,
    %c0_8 = arith.constant 0 : index
    %c0_9 = arith.constant 0 : index
    %c0_10 = arith.constant 0 : index
    %c0_11 = arith.constant 0 : index
    %4 = vector.load %arg1[%c0_8, %c0_9, %c0_10, %c0_11] : memref<2x16x16x128xf32, #tpu.memory_space<vmem>>, vector<2x16x16x128xf32>
    %c0_12 = arith.constant 0 : index
    %c0_13 = arith.constant 0 : index
    %5 = vector.load %arg2[%c0_12, %c0_13] : memref<1x128xf32, #tpu.memory_space<vmem>>, vector<1x128xf32>
    %6 = vector.shape_cast %5 : vector<1x128xf32> to vector<1x1x1x128xf32>
    %7 = vector.broadcast %6 : vector<1x1x1x128xf32> to vector<2x16x16x128xf32>
    %8 = arith.mulf %4, %7 : vector<2x16x16x128xf32>
    %c0_14 = arith.constant 0 : index
    %c0_15 = arith.constant 0 : index
    %9 = vector.load %arg3[%c0_14, %c0_15] : memref<1x128xf32, #tpu.memory_space<vmem>>, vector<1x128xf32>
    %10 = vector.shape_cast %9 : vector<1x128xf32> to vector<1x1x1x128xf32>
    %11 = vector.broadcast %10 : vector<1x1x1x128xf32> to vector<2x16x16x128xf32>
    %12 = arith.addf %8, %11 : vector<2x16x16x128xf32>
    %cst_16 = arith.constant 0.000000e+00 : f32
    %13 = vector.broadcast %cst_16 : f32 to vector<2x16x16x128xf32>
    %14 = arith.maximumf %12, %13 : vector<2x16x16x128xf32>
    %c0_17 = arith.constant 0 : index
    %c1 = arith.constant 1 : index
    %c1_18 = arith.constant 1 : index
    %c0_19 = arith.constant 0 : index
    %15 = vector.load %arg16[%c0_17, %c1, %c1_18, %c0_19] : memref<2x18x18x128xf32, #tpu.memory_space<vmem>>, vector<2x16x16x128xf32>
    tpu.vector_store %arg16[%c0_17, %c1, %c1_18, %c0_19], %14 {strides = array<i32>} : memref<2x18x18x128xf32, #tpu.memory_space<vmem>>, vector<2x16x16x128xf32>,
    %c0_20 = arith.constant 0 : index
    %c0_21 = arith.constant 0 : index
    %c0_22 = arith.constant 0 : index
    %c0_23 = arith.constant 0 : index
    %16 = tpu.strided_load %arg16[%c0_20, %c0_21, %c0_22, %c0_23] {strides = array<i32: 1, 2, 2, 1>} : memref<2x18x18x128xf32, #tpu.memory_space<vmem>>, vector<2x8x8x128xf32>
    %17 = vector.shape_cast %16 : vector<2x8x8x128xf32> to vector<128x128xf32>
    %18 = arith.truncf %17 : vector<128x128xf32> to vector<128x128xbf16>
    %c0_24 = arith.constant 0 : index
    %c0_25 = arith.constant 0 : index
    %19 = vector.load %arg18[%c0_24, %c0_25] : memref<128x1152xbf16, #tpu.memory_space<vmem>>, vector<128x128xbf16>
    tpu.vector_store %arg18[%c0_24, %c0_25], %18 {strides = array<i32>} : memref<128x1152xbf16, #tpu.memory_space<vmem>>, vector<128x128xbf16>,
    %c0_26 = arith.constant 0 : index
    %c0_27 = arith.constant 0 : index
    %c1_28 = arith.constant 1 : index
    %c0_29 = arith.constant 0 : index
    %20 = tpu.strided_load %arg16[%c0_26, %c0_27, %c1_28, %c0_29] {strides = array<i32: 1, 2, 2, 1>} : memref<2x18x18x128xf32, #tpu.memory_space<vmem>>, vector<2x8x8x128xf32>
    %21 = vector.shape_cast %20 : vector<2x8x8x128xf32> to vector<128x128xf32>
    %22 = arith.truncf %21 : vector<128x128xf32> to vector<128x128xbf16>
    %c0_30 = arith.constant 0 : index
    %c128 = arith.constant 128 : index
    %23 = vector.load %arg18[%c0_30, %c128] : memref<128x1152xbf16, #tpu.memory_space<vmem>>, vector<128x128xbf16>
    tpu.vector_store %arg18[%c0_30, %c128], %22 {strides = array<i32>} : memref<128x1152xbf16, #tpu.memory_space<vmem>>, vector<128x128xbf16>,
    %c0_31 = arith.constant 0 : index
    %c0_32 = arith.constant 0 : index
    %c2 = arith.constant 2 : index
    %c0_33 = arith.constant 0 : index
    %24 = tpu.strided_load %arg16[%c0_31, %c0_32, %c2, %c0_33] {strides = array<i32: 1, 2, 2, 1>} : memref<2x18x18x128xf32, #tpu.memory_space<vmem>>, vector<2x8x8x128xf32>
    %25 = vector.shape_cast %24 : vector<2x8x8x128xf32> to vector<128x128xf32>
    %26 = arith.truncf %25 : vector<128x128xf32> to vector<128x128xbf16>
    %c0_34 = arith.constant 0 : index
    %c256 = arith.constant 256 : index
    %27 = vector.load %arg18[%c0_34, %c256] : memref<128x1152xbf16, #tpu.memory_space<vmem>>, vector<128x128xbf16>
    tpu.vector_store %arg18[%c0_34, %c256], %26 {strides = array<i32>} : memref<128x1152xbf16, #tpu.memory_space<vmem>>, vector<128x128xbf16>,
    %c0_35 = arith.constant 0 : index
    %c1_36 = arith.constant 1 : index
    %c0_37 = arith.constant 0 : index
    %c0_38 = arith.constant 0 : index
    %28 = tpu.strided_load %arg16[%c0_35, %c1_36, %c0_37, %c0_38] {strides = array<i32: 1, 2, 2, 1>} : memref<2x18x18x128xf32, #tpu.memory_space<vmem>>, vector<2x8x8x128xf32>
    %29 = vector.shape_cast %28 : vector<2x8x8x128xf32> to vector<128x128xf32>
    %30 = arith.truncf %29 : vector<128x128xf32> to vector<128x128xbf16>
    %c0_39 = arith.constant 0 : index
    %c384 = arith.constant 384 : index
    %31 = vector.load %arg18[%c0_39, %c384] : memref<128x1152xbf16, #tpu.memory_space<vmem>>, vector<128x128xbf16>
    tpu.vector_store %arg18[%c0_39, %c384], %30 {strides = array<i32>} : memref<128x1152xbf16, #tpu.memory_space<vmem>>, vector<128x128xbf16>,
    %c0_40 = arith.constant 0 : index
    %c1_41 = arith.constant 1 : index
    %c1_42 = arith.constant 1 : index
    %c0_43 = arith.constant 0 : index
    %32 = tpu.strided_load %arg16[%c0_40, %c1_41, %c1_42, %c0_43] {strides = array<i32: 1, 2, 2, 1>} : memref<2x18x18x128xf32, #tpu.memory_space<vmem>>, vector<2x8x8x128xf32>
    %33 = vector.shape_cast %32 : vector<2x8x8x128xf32> to vector<128x128xf32>
    %34 = arith.truncf %33 : vector<128x128xf32> to vector<128x128xbf16>
    %c0_44 = arith.constant 0 : index
    %c512 = arith.constant 512 : index
    %35 = vector.load %arg18[%c0_44, %c512] : memref<128x1152xbf16, #tpu.memory_space<vmem>>, vector<128x128xbf16>
    tpu.vector_store %arg18[%c0_44, %c512], %34 {strides = array<i32>} : memref<128x1152xbf16, #tpu.memory_space<vmem>>, vector<128x128xbf16>,
    %c0_45 = arith.constant 0 : index
    %c1_46 = arith.constant 1 : index
    %c2_47 = arith.constant 2 : index
    %c0_48 = arith.constant 0 : index
    %36 = tpu.strided_load %arg16[%c0_45, %c1_46, %c2_47, %c0_48] {strides = array<i32: 1, 2, 2, 1>} : memref<2x18x18x128xf32, #tpu.memory_space<vmem>>, vector<2x8x8x128xf32>
    %37 = vector.shape_cast %36 : vector<2x8x8x128xf32> to vector<128x128xf32>
    %38 = arith.truncf %37 : vector<128x128xf32> to vector<128x128xbf16>
    %c0_49 = arith.constant 0 : index
    %c640 = arith.constant 640 : index
    %39 = vector.load %arg18[%c0_49, %c640] : memref<128x1152xbf16, #tpu.memory_space<vmem>>, vector<128x128xbf16>
    tpu.vector_store %arg18[%c0_49, %c640], %38 {strides = array<i32>} : memref<128x1152xbf16, #tpu.memory_space<vmem>>, vector<128x128xbf16>,
    %c0_50 = arith.constant 0 : index
    %c2_51 = arith.constant 2 : index
    %c0_52 = arith.constant 0 : index
    %c0_53 = arith.constant 0 : index
    %40 = tpu.strided_load %arg16[%c0_50, %c2_51, %c0_52, %c0_53] {strides = array<i32: 1, 2, 2, 1>} : memref<2x18x18x128xf32, #tpu.memory_space<vmem>>, vector<2x8x8x128xf32>
    %41 = vector.shape_cast %40 : vector<2x8x8x128xf32> to vector<128x128xf32>
    %42 = arith.truncf %41 : vector<128x128xf32> to vector<128x128xbf16>
    %c0_54 = arith.constant 0 : index
    %c768 = arith.constant 768 : index
    %43 = vector.load %arg18[%c0_54, %c768] : memref<128x1152xbf16, #tpu.memory_space<vmem>>, vector<128x128xbf16>
    tpu.vector_store %arg18[%c0_54, %c768], %42 {strides = array<i32>} : memref<128x1152xbf16, #tpu.memory_space<vmem>>, vector<128x128xbf16>,
    %c0_55 = arith.constant 0 : index
    %c2_56 = arith.constant 2 : index
    %c1_57 = arith.constant 1 : index
    %c0_58 = arith.constant 0 : index
    %44 = tpu.strided_load %arg16[%c0_55, %c2_56, %c1_57, %c0_58] {strides = array<i32: 1, 2, 2, 1>} : memref<2x18x18x128xf32, #tpu.memory_space<vmem>>, vector<2x8x8x128xf32>
    %45 = vector.shape_cast %44 : vector<2x8x8x128xf32> to vector<128x128xf32>
    %46 = arith.truncf %45 : vector<128x128xf32> to vector<128x128xbf16>
    %c0_59 = arith.constant 0 : index
    %c896 = arith.constant 896 : index
    %47 = vector.load %arg18[%c0_59, %c896] : memref<128x1152xbf16, #tpu.memory_space<vmem>>, vector<128x128xbf16>
    tpu.vector_store %arg18[%c0_59, %c896], %46 {strides = array<i32>} : memref<128x1152xbf16, #tpu.memory_space<vmem>>, vector<128x128xbf16>,
    %c0_60 = arith.constant 0 : index
    %c2_61 = arith.constant 2 : index
    %c2_62 = arith.constant 2 : index
    %c0_63 = arith.constant 0 : index
    %48 = tpu.strided_load %arg16[%c0_60, %c2_61, %c2_62, %c0_63] {strides = array<i32: 1, 2, 2, 1>} : memref<2x18x18x128xf32, #tpu.memory_space<vmem>>, vector<2x8x8x128xf32>
    %49 = vector.shape_cast %48 : vector<2x8x8x128xf32> to vector<128x128xf32>
    %50 = arith.truncf %49 : vector<128x128xf32> to vector<128x128xbf16>
    %c0_64 = arith.constant 0 : index
    %c1024 = arith.constant 1024 : index
    %51 = vector.load %arg18[%c0_64, %c1024] : memref<128x1152xbf16, #tpu.memory_space<vmem>>, vector<128x128xbf16>
    tpu.vector_store %arg18[%c0_64, %c1024], %50 {strides = array<i32>} : memref<128x1152xbf16, #tpu.memory_space<vmem>>, vector<128x128xbf16>,
    %c0_65 = arith.constant 0 : index
    %c0_66 = arith.constant 0 : index
    %52 = vector.load %arg18[%c0_65, %c0_66] : memref<128x1152xbf16, #tpu.memory_space<vmem>>, vector<128x1152xbf16>
    %c0_67 = arith.constant 0 : index
    %c0_68 = arith.constant 0 : index
    %53 = vector.load %arg4[%c0_67, %c0_68] : memref<1152x128xbf16, #tpu.memory_space<vmem>>, vector<1152x128xbf16>
    %cst_69 = arith.constant dense<0.000000e+00> : vector<128x128xf32>
    %54 = tpu.matmul %52, %53, %cst_69 {dimension_numbers = #tpu.dot_dimension_numbers<[1], [0], [0], [1], [0, 0, 1, 1], [], []>} : vector<128x1152xbf16>, vector<1152x128xbf16>, vector<128x128xf32> -> vector<128x128xf32>
    %c0_70 = arith.constant 0 : index
    %c0_71 = arith.constant 0 : index
    %55 = vector.load %arg5[%c0_70, %c0_71] : memref<1x128xf32, #tpu.memory_space<vmem>>, vector<1x128xf32>
    %56 = vector.broadcast %55 : vector<1x128xf32> to vector<128x128xf32>
    %57 = arith.mulf %54, %56 : vector<128x128xf32>
    %c0_72 = arith.constant 0 : index
    %c0_73 = arith.constant 0 : index
    %58 = vector.load %arg6[%c0_72, %c0_73] : memref<1x128xf32, #tpu.memory_space<vmem>>, vector<1x128xf32>
    %59 = vector.broadcast %58 : vector<1x128xf32> to vector<128x128xf32>
    %60 = arith.addf %57, %59 : vector<128x128xf32>
    %cst_74 = arith.constant 0.000000e+00 : f32
    %61 = vector.broadcast %cst_74 : f32 to vector<128x128xf32>
    %62 = arith.maximumf %60, %61 : vector<128x128xf32>
    %63 = vector.shape_cast %62 : vector<128x128xf32> to vector<2x8x8x128xf32>
    %c0_75 = arith.constant 0 : index
    %c1_76 = arith.constant 1 : index
    %c1_77 = arith.constant 1 : index
    %c0_78 = arith.constant 0 : index
    %64 = vector.load %arg17[%c0_75, %c1_76, %c1_77, %c0_78] : memref<2x10x10x128xf32, #tpu.memory_space<vmem>>, vector<2x8x8x128xf32>
    tpu.vector_store %arg17[%c0_75, %c1_76, %c1_77, %c0_78], %63 {strides = array<i32>} : memref<2x10x10x128xf32, #tpu.memory_space<vmem>>, vector<2x8x8x128xf32>,
    %c0_79 = arith.constant 0 : index
    %c0_80 = arith.constant 0 : index
    %c0_81 = arith.constant 0 : index
    %c0_82 = arith.constant 0 : index
    %65 = vector.load %arg17[%c0_79, %c0_80, %c0_81, %c0_82] : memref<2x10x10x128xf32, #tpu.memory_space<vmem>>, vector<2x8x8x128xf32>
    %66 = vector.shape_cast %65 : vector<2x8x8x128xf32> to vector<128x128xf32>
    %67 = arith.truncf %66 : vector<128x128xf32> to vector<128x128xbf16>
    %c0_83 = arith.constant 0 : index
    %c0_84 = arith.constant 0 : index
    %68 = vector.load %arg18[%c0_83, %c0_84] : memref<128x1152xbf16, #tpu.memory_space<vmem>>, vector<128x128xbf16>
    tpu.vector_store %arg18[%c0_83, %c0_84], %67 {strides = array<i32>} : memref<128x1152xbf16, #tpu.memory_space<vmem>>, vector<128x128xbf16>,
    %c0_85 = arith.constant 0 : index
    %c0_86 = arith.constant 0 : index
    %c1_87 = arith.constant 1 : index
    %c0_88 = arith.constant 0 : index
    %69 = vector.load %arg17[%c0_85, %c0_86, %c1_87, %c0_88] : memref<2x10x10x128xf32, #tpu.memory_space<vmem>>, vector<2x8x8x128xf32>
    %70 = vector.shape_cast %69 : vector<2x8x8x128xf32> to vector<128x128xf32>
    %71 = arith.truncf %70 : vector<128x128xf32> to vector<128x128xbf16>
    %c0_89 = arith.constant 0 : index
    %c128_90 = arith.constant 128 : index
    %72 = vector.load %arg18[%c0_89, %c128_90] : memref<128x1152xbf16, #tpu.memory_space<vmem>>, vector<128x128xbf16>
    tpu.vector_store %arg18[%c0_89, %c128_90], %71 {strides = array<i32>} : memref<128x1152xbf16, #tpu.memory_space<vmem>>, vector<128x128xbf16>,
    %c0_91 = arith.constant 0 : index
    %c0_92 = arith.constant 0 : index
    %c2_93 = arith.constant 2 : index
    %c0_94 = arith.constant 0 : index
    %73 = vector.load %arg17[%c0_91, %c0_92, %c2_93, %c0_94] : memref<2x10x10x128xf32, #tpu.memory_space<vmem>>, vector<2x8x8x128xf32>
    %74 = vector.shape_cast %73 : vector<2x8x8x128xf32> to vector<128x128xf32>
    %75 = arith.truncf %74 : vector<128x128xf32> to vector<128x128xbf16>
    %c0_95 = arith.constant 0 : index
    %c256_96 = arith.constant 256 : index
    %76 = vector.load %arg18[%c0_95, %c256_96] : memref<128x1152xbf16, #tpu.memory_space<vmem>>, vector<128x128xbf16>
    tpu.vector_store %arg18[%c0_95, %c256_96], %75 {strides = array<i32>} : memref<128x1152xbf16, #tpu.memory_space<vmem>>, vector<128x128xbf16>,
    %c0_97 = arith.constant 0 : index
    %c1_98 = arith.constant 1 : index
    %c0_99 = arith.constant 0 : index
    %c0_100 = arith.constant 0 : index
    %77 = vector.load %arg17[%c0_97, %c1_98, %c0_99, %c0_100] : memref<2x10x10x128xf32, #tpu.memory_space<vmem>>, vector<2x8x8x128xf32>
    %78 = vector.shape_cast %77 : vector<2x8x8x128xf32> to vector<128x128xf32>
    %79 = arith.truncf %78 : vector<128x128xf32> to vector<128x128xbf16>
    %c0_101 = arith.constant 0 : index
    %c384_102 = arith.constant 384 : index
    %80 = vector.load %arg18[%c0_101, %c384_102] : memref<128x1152xbf16, #tpu.memory_space<vmem>>, vector<128x128xbf16>
    tpu.vector_store %arg18[%c0_101, %c384_102], %79 {strides = array<i32>} : memref<128x1152xbf16, #tpu.memory_space<vmem>>, vector<128x128xbf16>,
    %c0_103 = arith.constant 0 : index
    %c1_104 = arith.constant 1 : index
    %c1_105 = arith.constant 1 : index
    %c0_106 = arith.constant 0 : index
    %81 = vector.load %arg17[%c0_103, %c1_104, %c1_105, %c0_106] : memref<2x10x10x128xf32, #tpu.memory_space<vmem>>, vector<2x8x8x128xf32>
    %82 = vector.shape_cast %81 : vector<2x8x8x128xf32> to vector<128x128xf32>
    %83 = arith.truncf %82 : vector<128x128xf32> to vector<128x128xbf16>
    %c0_107 = arith.constant 0 : index
    %c512_108 = arith.constant 512 : index
    %84 = vector.load %arg18[%c0_107, %c512_108] : memref<128x1152xbf16, #tpu.memory_space<vmem>>, vector<128x128xbf16>
    tpu.vector_store %arg18[%c0_107, %c512_108], %83 {strides = array<i32>} : memref<128x1152xbf16, #tpu.memory_space<vmem>>, vector<128x128xbf16>,
    %c0_109 = arith.constant 0 : index
    %c1_110 = arith.constant 1 : index
    %c2_111 = arith.constant 2 : index
    %c0_112 = arith.constant 0 : index
    %85 = vector.load %arg17[%c0_109, %c1_110, %c2_111, %c0_112] : memref<2x10x10x128xf32, #tpu.memory_space<vmem>>, vector<2x8x8x128xf32>
    %86 = vector.shape_cast %85 : vector<2x8x8x128xf32> to vector<128x128xf32>
    %87 = arith.truncf %86 : vector<128x128xf32> to vector<128x128xbf16>
    %c0_113 = arith.constant 0 : index
    %c640_114 = arith.constant 640 : index
    %88 = vector.load %arg18[%c0_113, %c640_114] : memref<128x1152xbf16, #tpu.memory_space<vmem>>, vector<128x128xbf16>
    tpu.vector_store %arg18[%c0_113, %c640_114], %87 {strides = array<i32>} : memref<128x1152xbf16, #tpu.memory_space<vmem>>, vector<128x128xbf16>,
    %c0_115 = arith.constant 0 : index
    %c2_116 = arith.constant 2 : index
    %c0_117 = arith.constant 0 : index
    %c0_118 = arith.constant 0 : index
    %89 = vector.load %arg17[%c0_115, %c2_116, %c0_117, %c0_118] : memref<2x10x10x128xf32, #tpu.memory_space<vmem>>, vector<2x8x8x128xf32>
    %90 = vector.shape_cast %89 : vector<2x8x8x128xf32> to vector<128x128xf32>
    %91 = arith.truncf %90 : vector<128x128xf32> to vector<128x128xbf16>
    %c0_119 = arith.constant 0 : index
    %c768_120 = arith.constant 768 : index
    %92 = vector.load %arg18[%c0_119, %c768_120] : memref<128x1152xbf16, #tpu.memory_space<vmem>>, vector<128x128xbf16>
    tpu.vector_store %arg18[%c0_119, %c768_120], %91 {strides = array<i32>} : memref<128x1152xbf16, #tpu.memory_space<vmem>>, vector<128x128xbf16>,
    %c0_121 = arith.constant 0 : index
    %c2_122 = arith.constant 2 : index
    %c1_123 = arith.constant 1 : index
    %c0_124 = arith.constant 0 : index
    %93 = vector.load %arg17[%c0_121, %c2_122, %c1_123, %c0_124] : memref<2x10x10x128xf32, #tpu.memory_space<vmem>>, vector<2x8x8x128xf32>
    %94 = vector.shape_cast %93 : vector<2x8x8x128xf32> to vector<128x128xf32>
    %95 = arith.truncf %94 : vector<128x128xf32> to vector<128x128xbf16>
    %c0_125 = arith.constant 0 : index
    %c896_126 = arith.constant 896 : index
    %96 = vector.load %arg18[%c0_125, %c896_126] : memref<128x1152xbf16, #tpu.memory_space<vmem>>, vector<128x128xbf16>
    tpu.vector_store %arg18[%c0_125, %c896_126], %95 {strides = array<i32>} : memref<128x1152xbf16, #tpu.memory_space<vmem>>, vector<128x128xbf16>,
    %c0_127 = arith.constant 0 : index
    %c2_128 = arith.constant 2 : index
    %c2_129 = arith.constant 2 : index
    %c0_130 = arith.constant 0 : index
    %97 = vector.load %arg17[%c0_127, %c2_128, %c2_129, %c0_130] : memref<2x10x10x128xf32, #tpu.memory_space<vmem>>, vector<2x8x8x128xf32>
    %98 = vector.shape_cast %97 : vector<2x8x8x128xf32> to vector<128x128xf32>
    %99 = arith.truncf %98 : vector<128x128xf32> to vector<128x128xbf16>
    %c0_131 = arith.constant 0 : index
    %c1024_132 = arith.constant 1024 : index
    %100 = vector.load %arg18[%c0_131, %c1024_132] : memref<128x1152xbf16, #tpu.memory_space<vmem>>, vector<128x128xbf16>
    tpu.vector_store %arg18[%c0_131, %c1024_132], %99 {strides = array<i32>} : memref<128x1152xbf16, #tpu.memory_space<vmem>>, vector<128x128xbf16>,
    %c0_133 = arith.constant 0 : index
    %c0_134 = arith.constant 0 : index
    %101 = vector.load %arg18[%c0_133, %c0_134] : memref<128x1152xbf16, #tpu.memory_space<vmem>>, vector<128x1152xbf16>
    %c0_135 = arith.constant 0 : index
    %c0_136 = arith.constant 0 : index
    %102 = vector.load %arg7[%c0_135, %c0_136] : memref<1152x128xbf16, #tpu.memory_space<vmem>>, vector<1152x128xbf16>
    %cst_137 = arith.constant dense<0.000000e+00> : vector<128x128xf32>
    %103 = tpu.matmul %101, %102, %cst_137 {dimension_numbers = #tpu.dot_dimension_numbers<[1], [0], [0], [1], [0, 0, 1, 1], [], []>} : vector<128x1152xbf16>, vector<1152x128xbf16>, vector<128x128xf32> -> vector<128x128xf32>
    %c0_138 = arith.constant 0 : index
    %c1_139 = arith.constant 1 : index
    %c1_140 = arith.constant 1 : index
    %c0_141 = arith.constant 0 : index
    %104 = tpu.strided_load %arg16[%c0_138, %c1_139, %c1_140, %c0_141] {strides = array<i32: 1, 2, 2, 1>} : memref<2x18x18x128xf32, #tpu.memory_space<vmem>>, vector<2x8x8x128xf32>
    %105 = vector.shape_cast %104 : vector<2x8x8x128xf32> to vector<128x128xf32>
    %106 = arith.truncf %105 : vector<128x128xf32> to vector<128x128xbf16>
    %c0_142 = arith.constant 0 : index
    %c0_143 = arith.constant 0 : index
    %107 = vector.load %arg8[%c0_142, %c0_143] : memref<128x128xbf16, #tpu.memory_space<vmem>>, vector<128x128xbf16>
    %cst_144 = arith.constant dense<0.000000e+00> : vector<128x128xf32>
    %108 = tpu.matmul %106, %107, %cst_144 {dimension_numbers = #tpu.dot_dimension_numbers<[1], [0], [0], [1], [0, 0, 1, 1], [], []>} : vector<128x128xbf16>, vector<128x128xbf16>, vector<128x128xf32> -> vector<128x128xf32>
    %109 = arith.addf %108, %103 : vector<128x128xf32>
    %c0_145 = arith.constant 0 : index
    %c0_146 = arith.constant 0 : index
    %110 = vector.load %arg9[%c0_145, %c0_146] : memref<1x128xf32, #tpu.memory_space<vmem>>, vector<1x128xf32>
    %111 = vector.broadcast %110 : vector<1x128xf32> to vector<128x128xf32>
    %112 = arith.mulf %109, %111 : vector<128x128xf32>
    %c0_147 = arith.constant 0 : index
    %c0_148 = arith.constant 0 : index
    %113 = vector.load %arg10[%c0_147, %c0_148] : memref<1x128xf32, #tpu.memory_space<vmem>>, vector<1x128xf32>
    %114 = vector.broadcast %113 : vector<1x128xf32> to vector<128x128xf32>
    %115 = arith.addf %112, %114 : vector<128x128xf32>
    %cst_149 = arith.constant 0.000000e+00 : f32
    %116 = vector.broadcast %cst_149 : f32 to vector<128x128xf32>
    %117 = arith.maximumf %115, %116 : vector<128x128xf32>
    %118 = vector.shape_cast %117 : vector<128x128xf32> to vector<2x8x8x128xf32>
    %c0_150 = arith.constant 0 : index
    %c1_151 = arith.constant 1 : index
    %c1_152 = arith.constant 1 : index
    %c0_153 = arith.constant 0 : index
    %119 = vector.load %arg17[%c0_150, %c1_151, %c1_152, %c0_153] : memref<2x10x10x128xf32, #tpu.memory_space<vmem>>, vector<2x8x8x128xf32>
    tpu.vector_store %arg17[%c0_150, %c1_151, %c1_152, %c0_153], %118 {strides = array<i32>} : memref<2x10x10x128xf32, #tpu.memory_space<vmem>>, vector<2x8x8x128xf32>,
    %c0_154 = arith.constant 0 : index
    %c0_155 = arith.constant 0 : index
    %c0_156 = arith.constant 0 : index
    %c0_157 = arith.constant 0 : index
    %120 = vector.load %arg17[%c0_154, %c0_155, %c0_156, %c0_157] : memref<2x10x10x128xf32, #tpu.memory_space<vmem>>, vector<2x8x8x128xf32>
    %121 = vector.shape_cast %120 : vector<2x8x8x128xf32> to vector<128x128xf32>
    %122 = arith.truncf %121 : vector<128x128xf32> to vector<128x128xbf16>
    %c0_158 = arith.constant 0 : index
    %c0_159 = arith.constant 0 : index
    %123 = vector.load %arg18[%c0_158, %c0_159] : memref<128x1152xbf16, #tpu.memory_space<vmem>>, vector<128x128xbf16>
    tpu.vector_store %arg18[%c0_158, %c0_159], %122 {strides = array<i32>} : memref<128x1152xbf16, #tpu.memory_space<vmem>>, vector<128x128xbf16>,
    %c0_160 = arith.constant 0 : index
    %c0_161 = arith.constant 0 : index
    %c1_162 = arith.constant 1 : index
    %c0_163 = arith.constant 0 : index
    %124 = vector.load %arg17[%c0_160, %c0_161, %c1_162, %c0_163] : memref<2x10x10x128xf32, #tpu.memory_space<vmem>>, vector<2x8x8x128xf32>
    %125 = vector.shape_cast %124 : vector<2x8x8x128xf32> to vector<128x128xf32>
    %126 = arith.truncf %125 : vector<128x128xf32> to vector<128x128xbf16>
    %c0_164 = arith.constant 0 : index
    %c128_165 = arith.constant 128 : index
    %127 = vector.load %arg18[%c0_164, %c128_165] : memref<128x1152xbf16, #tpu.memory_space<vmem>>, vector<128x128xbf16>
    tpu.vector_store %arg18[%c0_164, %c128_165], %126 {strides = array<i32>} : memref<128x1152xbf16, #tpu.memory_space<vmem>>, vector<128x128xbf16>,
    %c0_166 = arith.constant 0 : index
    %c0_167 = arith.constant 0 : index
    %c2_168 = arith.constant 2 : index
    %c0_169 = arith.constant 0 : index
    %128 = vector.load %arg17[%c0_166, %c0_167, %c2_168, %c0_169] : memref<2x10x10x128xf32, #tpu.memory_space<vmem>>, vector<2x8x8x128xf32>
    %129 = vector.shape_cast %128 : vector<2x8x8x128xf32> to vector<128x128xf32>
    %130 = arith.truncf %129 : vector<128x128xf32> to vector<128x128xbf16>
    %c0_170 = arith.constant 0 : index
    %c256_171 = arith.constant 256 : index
    %131 = vector.load %arg18[%c0_170, %c256_171] : memref<128x1152xbf16, #tpu.memory_space<vmem>>, vector<128x128xbf16>
    tpu.vector_store %arg18[%c0_170, %c256_171], %130 {strides = array<i32>} : memref<128x1152xbf16, #tpu.memory_space<vmem>>, vector<128x128xbf16>,
    %c0_172 = arith.constant 0 : index
    %c1_173 = arith.constant 1 : index
    %c0_174 = arith.constant 0 : index
    %c0_175 = arith.constant 0 : index
    %132 = vector.load %arg17[%c0_172, %c1_173, %c0_174, %c0_175] : memref<2x10x10x128xf32, #tpu.memory_space<vmem>>, vector<2x8x8x128xf32>
    %133 = vector.shape_cast %132 : vector<2x8x8x128xf32> to vector<128x128xf32>
    %134 = arith.truncf %133 : vector<128x128xf32> to vector<128x128xbf16>
    %c0_176 = arith.constant 0 : index
    %c384_177 = arith.constant 384 : index
    %135 = vector.load %arg18[%c0_176, %c384_177] : memref<128x1152xbf16, #tpu.memory_space<vmem>>, vector<128x128xbf16>
    tpu.vector_store %arg18[%c0_176, %c384_177], %134 {strides = array<i32>} : memref<128x1152xbf16, #tpu.memory_space<vmem>>, vector<128x128xbf16>,
    %c0_178 = arith.constant 0 : index
    %c1_179 = arith.constant 1 : index
    %c1_180 = arith.constant 1 : index
    %c0_181 = arith.constant 0 : index
    %136 = vector.load %arg17[%c0_178, %c1_179, %c1_180, %c0_181] : memref<2x10x10x128xf32, #tpu.memory_space<vmem>>, vector<2x8x8x128xf32>
    %137 = vector.shape_cast %136 : vector<2x8x8x128xf32> to vector<128x128xf32>
    %138 = arith.truncf %137 : vector<128x128xf32> to vector<128x128xbf16>
    %c0_182 = arith.constant 0 : index
    %c512_183 = arith.constant 512 : index
    %139 = vector.load %arg18[%c0_182, %c512_183] : memref<128x1152xbf16, #tpu.memory_space<vmem>>, vector<128x128xbf16>
    tpu.vector_store %arg18[%c0_182, %c512_183], %138 {strides = array<i32>} : memref<128x1152xbf16, #tpu.memory_space<vmem>>, vector<128x128xbf16>,
    %c0_184 = arith.constant 0 : index
    %c1_185 = arith.constant 1 : index
    %c2_186 = arith.constant 2 : index
    %c0_187 = arith.constant 0 : index
    %140 = vector.load %arg17[%c0_184, %c1_185, %c2_186, %c0_187] : memref<2x10x10x128xf32, #tpu.memory_space<vmem>>, vector<2x8x8x128xf32>
    %141 = vector.shape_cast %140 : vector<2x8x8x128xf32> to vector<128x128xf32>
    %142 = arith.truncf %141 : vector<128x128xf32> to vector<128x128xbf16>
    %c0_188 = arith.constant 0 : index
    %c640_189 = arith.constant 640 : index
    %143 = vector.load %arg18[%c0_188, %c640_189] : memref<128x1152xbf16, #tpu.memory_space<vmem>>, vector<128x128xbf16>
    tpu.vector_store %arg18[%c0_188, %c640_189], %142 {strides = array<i32>} : memref<128x1152xbf16, #tpu.memory_space<vmem>>, vector<128x128xbf16>,
    %c0_190 = arith.constant 0 : index
    %c2_191 = arith.constant 2 : index
    %c0_192 = arith.constant 0 : index
    %c0_193 = arith.constant 0 : index
    %144 = vector.load %arg17[%c0_190, %c2_191, %c0_192, %c0_193] : memref<2x10x10x128xf32, #tpu.memory_space<vmem>>, vector<2x8x8x128xf32>
    %145 = vector.shape_cast %144 : vector<2x8x8x128xf32> to vector<128x128xf32>
    %146 = arith.truncf %145 : vector<128x128xf32> to vector<128x128xbf16>
    %c0_194 = arith.constant 0 : index
    %c768_195 = arith.constant 768 : index
    %147 = vector.load %arg18[%c0_194, %c768_195] : memref<128x1152xbf16, #tpu.memory_space<vmem>>, vector<128x128xbf16>
    tpu.vector_store %arg18[%c0_194, %c768_195], %146 {strides = array<i32>} : memref<128x1152xbf16, #tpu.memory_space<vmem>>, vector<128x128xbf16>,
    %c0_196 = arith.constant 0 : index
    %c2_197 = arith.constant 2 : index
    %c1_198 = arith.constant 1 : index
    %c0_199 = arith.constant 0 : index
    %148 = vector.load %arg17[%c0_196, %c2_197, %c1_198, %c0_199] : memref<2x10x10x128xf32, #tpu.memory_space<vmem>>, vector<2x8x8x128xf32>
    %149 = vector.shape_cast %148 : vector<2x8x8x128xf32> to vector<128x128xf32>
    %150 = arith.truncf %149 : vector<128x128xf32> to vector<128x128xbf16>
    %c0_200 = arith.constant 0 : index
    %c896_201 = arith.constant 896 : index
    %151 = vector.load %arg18[%c0_200, %c896_201] : memref<128x1152xbf16, #tpu.memory_space<vmem>>, vector<128x128xbf16>
    tpu.vector_store %arg18[%c0_200, %c896_201], %150 {strides = array<i32>} : memref<128x1152xbf16, #tpu.memory_space<vmem>>, vector<128x128xbf16>,
    %c0_202 = arith.constant 0 : index
    %c2_203 = arith.constant 2 : index
    %c2_204 = arith.constant 2 : index
    %c0_205 = arith.constant 0 : index
    %152 = vector.load %arg17[%c0_202, %c2_203, %c2_204, %c0_205] : memref<2x10x10x128xf32, #tpu.memory_space<vmem>>, vector<2x8x8x128xf32>
    %153 = vector.shape_cast %152 : vector<2x8x8x128xf32> to vector<128x128xf32>
    %154 = arith.truncf %153 : vector<128x128xf32> to vector<128x128xbf16>
    %c0_206 = arith.constant 0 : index
    %c1024_207 = arith.constant 1024 : index
    %155 = vector.load %arg18[%c0_206, %c1024_207] : memref<128x1152xbf16, #tpu.memory_space<vmem>>, vector<128x128xbf16>
    tpu.vector_store %arg18[%c0_206, %c1024_207], %154 {strides = array<i32>} : memref<128x1152xbf16, #tpu.memory_space<vmem>>, vector<128x128xbf16>,
    %c0_208 = arith.constant 0 : index
    %c0_209 = arith.constant 0 : index
    %156 = vector.load %arg18[%c0_208, %c0_209] : memref<128x1152xbf16, #tpu.memory_space<vmem>>, vector<128x1152xbf16>
    %c0_210 = arith.constant 0 : index
    %c0_211 = arith.constant 0 : index
    %157 = vector.load %arg11[%c0_210, %c0_211] : memref<1152x128xbf16, #tpu.memory_space<vmem>>, vector<1152x128xbf16>
    %cst_212 = arith.constant dense<0.000000e+00> : vector<128x128xf32>
    %158 = tpu.matmul %156, %157, %cst_212 {dimension_numbers = #tpu.dot_dimension_numbers<[1], [0], [0], [1], [0, 0, 1, 1], [], []>} : vector<128x1152xbf16>, vector<1152x128xbf16>, vector<128x128xf32> -> vector<128x128xf32>
    %c0_213 = arith.constant 0 : index
    %c0_214 = arith.constant 0 : index
    %159 = vector.load %arg12[%c0_213, %c0_214] : memref<1x128xf32, #tpu.memory_space<vmem>>, vector<1x128xf32>
    %160 = vector.broadcast %159 : vector<1x128xf32> to vector<128x128xf32>
    %161 = arith.mulf %158, %160 : vector<128x128xf32>
    %c0_215 = arith.constant 0 : index
    %c0_216 = arith.constant 0 : index
    %162 = vector.load %arg13[%c0_215, %c0_216] : memref<1x128xf32, #tpu.memory_space<vmem>>, vector<1x128xf32>
    %163 = vector.broadcast %162 : vector<1x128xf32> to vector<128x128xf32>
    %164 = arith.addf %161, %163 : vector<128x128xf32>
    %cst_217 = arith.constant 0.000000e+00 : f32
    %165 = vector.broadcast %cst_217 : f32 to vector<128x128xf32>
    %166 = arith.maximumf %164, %165 : vector<128x128xf32>
    %167 = vector.shape_cast %166 : vector<128x128xf32> to vector<2x8x8x128xf32>
    %c0_218 = arith.constant 0 : index
    %c1_219 = arith.constant 1 : index
    %c1_220 = arith.constant 1 : index
    %c0_221 = arith.constant 0 : index
    %168 = vector.load %arg17[%c0_218, %c1_219, %c1_220, %c0_221] : memref<2x10x10x128xf32, #tpu.memory_space<vmem>>, vector<2x8x8x128xf32>
    tpu.vector_store %arg17[%c0_218, %c1_219, %c1_220, %c0_221], %167 {strides = array<i32>} : memref<2x10x10x128xf32, #tpu.memory_space<vmem>>, vector<2x8x8x128xf32>,
    %c0_222 = arith.constant 0 : index
    %c0_223 = arith.constant 0 : index
    %c0_224 = arith.constant 0 : index
    %c0_225 = arith.constant 0 : index
    %169 = vector.load %arg17[%c0_222, %c0_223, %c0_224, %c0_225] : memref<2x10x10x128xf32, #tpu.memory_space<vmem>>, vector<2x8x8x128xf32>
    %170 = vector.shape_cast %169 : vector<2x8x8x128xf32> to vector<128x128xf32>
    %171 = arith.truncf %170 : vector<128x128xf32> to vector<128x128xbf16>
    %c0_226 = arith.constant 0 : index
    %c0_227 = arith.constant 0 : index
    %172 = vector.load %arg18[%c0_226, %c0_227] : memref<128x1152xbf16, #tpu.memory_space<vmem>>, vector<128x128xbf16>
    tpu.vector_store %arg18[%c0_226, %c0_227], %171 {strides = array<i32>} : memref<128x1152xbf16, #tpu.memory_space<vmem>>, vector<128x128xbf16>,
    %c0_228 = arith.constant 0 : index
    %c0_229 = arith.constant 0 : index
    %c1_230 = arith.constant 1 : index
    %c0_231 = arith.constant 0 : index
    %173 = vector.load %arg17[%c0_228, %c0_229, %c1_230, %c0_231] : memref<2x10x10x128xf32, #tpu.memory_space<vmem>>, vector<2x8x8x128xf32>
    %174 = vector.shape_cast %173 : vector<2x8x8x128xf32> to vector<128x128xf32>
    %175 = arith.truncf %174 : vector<128x128xf32> to vector<128x128xbf16>
    %c0_232 = arith.constant 0 : index
    %c128_233 = arith.constant 128 : index
    %176 = vector.load %arg18[%c0_232, %c128_233] : memref<128x1152xbf16, #tpu.memory_space<vmem>>, vector<128x128xbf16>
    tpu.vector_store %arg18[%c0_232, %c128_233], %175 {strides = array<i32>} : memref<128x1152xbf16, #tpu.memory_space<vmem>>, vector<128x128xbf16>,
    %c0_234 = arith.constant 0 : index
    %c0_235 = arith.constant 0 : index
    %c2_236 = arith.constant 2 : index
    %c0_237 = arith.constant 0 : index
    %177 = vector.load %arg17[%c0_234, %c0_235, %c2_236, %c0_237] : memref<2x10x10x128xf32, #tpu.memory_space<vmem>>, vector<2x8x8x128xf32>
    %178 = vector.shape_cast %177 : vector<2x8x8x128xf32> to vector<128x128xf32>
    %179 = arith.truncf %178 : vector<128x128xf32> to vector<128x128xbf16>
    %c0_238 = arith.constant 0 : index
    %c256_239 = arith.constant 256 : index
    %180 = vector.load %arg18[%c0_238, %c256_239] : memref<128x1152xbf16, #tpu.memory_space<vmem>>, vector<128x128xbf16>
    tpu.vector_store %arg18[%c0_238, %c256_239], %179 {strides = array<i32>} : memref<128x1152xbf16, #tpu.memory_space<vmem>>, vector<128x128xbf16>,
    %c0_240 = arith.constant 0 : index
    %c1_241 = arith.constant 1 : index
    %c0_242 = arith.constant 0 : index
    %c0_243 = arith.constant 0 : index
    %181 = vector.load %arg17[%c0_240, %c1_241, %c0_242, %c0_243] : memref<2x10x10x128xf32, #tpu.memory_space<vmem>>, vector<2x8x8x128xf32>
    %182 = vector.shape_cast %181 : vector<2x8x8x128xf32> to vector<128x128xf32>
    %183 = arith.truncf %182 : vector<128x128xf32> to vector<128x128xbf16>
    %c0_244 = arith.constant 0 : index
    %c384_245 = arith.constant 384 : index
    %184 = vector.load %arg18[%c0_244, %c384_245] : memref<128x1152xbf16, #tpu.memory_space<vmem>>, vector<128x128xbf16>
    tpu.vector_store %arg18[%c0_244, %c384_245], %183 {strides = array<i32>} : memref<128x1152xbf16, #tpu.memory_space<vmem>>, vector<128x128xbf16>,
    %c0_246 = arith.constant 0 : index
    %c1_247 = arith.constant 1 : index
    %c1_248 = arith.constant 1 : index
    %c0_249 = arith.constant 0 : index
    %185 = vector.load %arg17[%c0_246, %c1_247, %c1_248, %c0_249] : memref<2x10x10x128xf32, #tpu.memory_space<vmem>>, vector<2x8x8x128xf32>
    %186 = vector.shape_cast %185 : vector<2x8x8x128xf32> to vector<128x128xf32>
    %187 = arith.truncf %186 : vector<128x128xf32> to vector<128x128xbf16>
    %c0_250 = arith.constant 0 : index
    %c512_251 = arith.constant 512 : index
    %188 = vector.load %arg18[%c0_250, %c512_251] : memref<128x1152xbf16, #tpu.memory_space<vmem>>, vector<128x128xbf16>
    tpu.vector_store %arg18[%c0_250, %c512_251], %187 {strides = array<i32>} : memref<128x1152xbf16, #tpu.memory_space<vmem>>, vector<128x128xbf16>,
    %c0_252 = arith.constant 0 : index
    %c1_253 = arith.constant 1 : index
    %c2_254 = arith.constant 2 : index
    %c0_255 = arith.constant 0 : index
    %189 = vector.load %arg17[%c0_252, %c1_253, %c2_254, %c0_255] : memref<2x10x10x128xf32, #tpu.memory_space<vmem>>, vector<2x8x8x128xf32>
    %190 = vector.shape_cast %189 : vector<2x8x8x128xf32> to vector<128x128xf32>
    %191 = arith.truncf %190 : vector<128x128xf32> to vector<128x128xbf16>
    %c0_256 = arith.constant 0 : index
    %c640_257 = arith.constant 640 : index
    %192 = vector.load %arg18[%c0_256, %c640_257] : memref<128x1152xbf16, #tpu.memory_space<vmem>>, vector<128x128xbf16>
    tpu.vector_store %arg18[%c0_256, %c640_257], %191 {strides = array<i32>} : memref<128x1152xbf16, #tpu.memory_space<vmem>>, vector<128x128xbf16>,
    %c0_258 = arith.constant 0 : index
    %c2_259 = arith.constant 2 : index
    %c0_260 = arith.constant 0 : index
    %c0_261 = arith.constant 0 : index
    %193 = vector.load %arg17[%c0_258, %c2_259, %c0_260, %c0_261] : memref<2x10x10x128xf32, #tpu.memory_space<vmem>>, vector<2x8x8x128xf32>
    %194 = vector.shape_cast %193 : vector<2x8x8x128xf32> to vector<128x128xf32>
    %195 = arith.truncf %194 : vector<128x128xf32> to vector<128x128xbf16>
    %c0_262 = arith.constant 0 : index
    %c768_263 = arith.constant 768 : index
    %196 = vector.load %arg18[%c0_262, %c768_263] : memref<128x1152xbf16, #tpu.memory_space<vmem>>, vector<128x128xbf16>
    tpu.vector_store %arg18[%c0_262, %c768_263], %195 {strides = array<i32>} : memref<128x1152xbf16, #tpu.memory_space<vmem>>, vector<128x128xbf16>,
    %c0_264 = arith.constant 0 : index
    %c2_265 = arith.constant 2 : index
    %c1_266 = arith.constant 1 : index
    %c0_267 = arith.constant 0 : index
    %197 = vector.load %arg17[%c0_264, %c2_265, %c1_266, %c0_267] : memref<2x10x10x128xf32, #tpu.memory_space<vmem>>, vector<2x8x8x128xf32>
    %198 = vector.shape_cast %197 : vector<2x8x8x128xf32> to vector<128x128xf32>
    %199 = arith.truncf %198 : vector<128x128xf32> to vector<128x128xbf16>
    %c0_268 = arith.constant 0 : index
    %c896_269 = arith.constant 896 : index
    %200 = vector.load %arg18[%c0_268, %c896_269] : memref<128x1152xbf16, #tpu.memory_space<vmem>>, vector<128x128xbf16>
    tpu.vector_store %arg18[%c0_268, %c896_269], %199 {strides = array<i32>} : memref<128x1152xbf16, #tpu.memory_space<vmem>>, vector<128x128xbf16>,
    %c0_270 = arith.constant 0 : index
    %c2_271 = arith.constant 2 : index
    %c2_272 = arith.constant 2 : index
    %c0_273 = arith.constant 0 : index
    %201 = vector.load %arg17[%c0_270, %c2_271, %c2_272, %c0_273] : memref<2x10x10x128xf32, #tpu.memory_space<vmem>>, vector<2x8x8x128xf32>
    %202 = vector.shape_cast %201 : vector<2x8x8x128xf32> to vector<128x128xf32>
    %203 = arith.truncf %202 : vector<128x128xf32> to vector<128x128xbf16>
    %c0_274 = arith.constant 0 : index
    %c1024_275 = arith.constant 1024 : index
    %204 = vector.load %arg18[%c0_274, %c1024_275] : memref<128x1152xbf16, #tpu.memory_space<vmem>>, vector<128x128xbf16>
    tpu.vector_store %arg18[%c0_274, %c1024_275], %203 {strides = array<i32>} : memref<128x1152xbf16, #tpu.memory_space<vmem>>, vector<128x128xbf16>,
    %c0_276 = arith.constant 0 : index
    %c0_277 = arith.constant 0 : index
    %205 = vector.load %arg18[%c0_276, %c0_277] : memref<128x1152xbf16, #tpu.memory_space<vmem>>, vector<128x1152xbf16>
    %c0_278 = arith.constant 0 : index
    %c0_279 = arith.constant 0 : index
    %206 = vector.load %arg14[%c0_278, %c0_279] : memref<1152x128xbf16, #tpu.memory_space<vmem>>, vector<1152x128xbf16>
    %cst_280 = arith.constant dense<0.000000e+00> : vector<128x128xf32>
    %207 = tpu.matmul %205, %206, %cst_280 {dimension_numbers = #tpu.dot_dimension_numbers<[1], [0], [0], [1], [0, 0, 1, 1], [], []>} : vector<128x1152xbf16>, vector<1152x128xbf16>, vector<128x128xf32> -> vector<128x128xf32>
    %208 = arith.addf %109, %207 : vector<128x128xf32>
    %c0_281 = arith.constant 0 : index
    %c0_282 = arith.constant 0 : index
    %209 = vector.load %arg15[%c0_281, %c0_282] : memref<128x128xf32, #tpu.memory_space<vmem>>, vector<128x128xf32>
    tpu.vector_store %arg15[%c0_281, %c0_282], %208 {strides = array<i32>} : memref<128x128xf32, #tpu.memory_space<vmem>>, vector<128x128xf32>,
    return
  }
  func.func @transform_0(%arg0: i32) -> (i32, i32, i32, i32) {
    %c0_i32 = arith.constant 0 : i32
    %c0_i32_0 = arith.constant 0 : i32
    %c0_i32_1 = arith.constant 0 : i32
    %c0_i32_2 = arith.constant 0 : i32
    return %arg0, %c0_i32, %c0_i32_0, %c0_i32_1 : i32, i32, i32, i32
  }
  func.func @transform_1(%arg0: i32) -> (i32, i32) {
    %c0_i32 = arith.constant 0 : i32
    %c0_i32_0 = arith.constant 0 : i32
    %c0_i32_1 = arith.constant 0 : i32
    return %c0_i32, %c0_i32_0 : i32, i32
  }
  func.func @transform_2(%arg0: i32) -> (i32, i32) {
    %c0_i32 = arith.constant 0 : i32
    %c0_i32_0 = arith.constant 0 : i32
    %c0_i32_1 = arith.constant 0 : i32
    return %c0_i32, %c0_i32_0 : i32, i32
  }
  func.func @transform_3(%arg0: i32) -> (i32, i32) {
    %c0_i32 = arith.constant 0 : i32
    %c0_i32_0 = arith.constant 0 : i32
    %c0_i32_1 = arith.constant 0 : i32
    return %c0_i32, %c0_i32_0 : i32, i32
  }
  func.func @transform_4(%arg0: i32) -> (i32, i32) {
    %c0_i32 = arith.constant 0 : i32
    %c0_i32_0 = arith.constant 0 : i32
    %c0_i32_1 = arith.constant 0 : i32
    return %c0_i32, %c0_i32_0 : i32, i32
  }
  func.func @transform_5(%arg0: i32) -> (i32, i32) {
    %c0_i32 = arith.constant 0 : i32
    %c0_i32_0 = arith.constant 0 : i32
    %c0_i32_1 = arith.constant 0 : i32
    return %c0_i32, %c0_i32_0 : i32, i32
  }
  func.func @transform_6(%arg0: i32) -> (i32, i32) {
    %c0_i32 = arith.constant 0 : i32
    %c0_i32_0 = arith.constant 0 : i32
    %c0_i32_1 = arith.constant 0 : i32
    return %c0_i32, %c0_i32_0 : i32, i32
  }
  func.func @transform_7(%arg0: i32) -> (i32, i32) {
    %c0_i32 = arith.constant 0 : i32
    %c0_i32_0 = arith.constant 0 : i32
    %c0_i32_1 = arith.constant 0 : i32
    return %c0_i32, %c0_i32_0 : i32, i32
  }
  func.func @transform_8(%arg0: i32) -> (i32, i32) {
    %c0_i32 = arith.constant 0 : i32
    %c0_i32_0 = arith.constant 0 : i32
    %c0_i32_1 = arith.constant 0 : i32
    return %c0_i32, %c0_i32_0 : i32, i32
  }
  func.func @transform_9(%arg0: i32) -> (i32, i32) {
    %c0_i32 = arith.constant 0 : i32
    %c0_i32_0 = arith.constant 0 : i32
    %c0_i32_1 = arith.constant 0 : i32
    return %c0_i32, %c0_i32_0 : i32, i32
  }
  func.func @transform_10(%arg0: i32) -> (i32, i32) {
    %c0_i32 = arith.constant 0 : i32
    %c0_i32_0 = arith.constant 0 : i32
    %c0_i32_1 = arith.constant 0 : i32
    return %c0_i32, %c0_i32_0 : i32, i32
  }
  func.func @transform_11(%arg0: i32) -> (i32, i32) {
    %c0_i32 = arith.constant 0 : i32
    %c0_i32_0 = arith.constant 0 : i32
    %c0_i32_1 = arith.constant 0 : i32
    return %c0_i32, %c0_i32_0 : i32, i32
  }
  func.func @transform_12(%arg0: i32) -> (i32, i32) {
    %c0_i32 = arith.constant 0 : i32
    %c0_i32_0 = arith.constant 0 : i32
    %c0_i32_1 = arith.constant 0 : i32
    return %c0_i32, %c0_i32_0 : i32, i32
  }
  func.func @transform_13(%arg0: i32) -> (i32, i32) {
    %c0_i32 = arith.constant 0 : i32
    %c0_i32_0 = arith.constant 0 : i32
    %c0_i32_1 = arith.constant 0 : i32
    return %c0_i32, %c0_i32_0 : i32, i32
  }
  func.func @transform_14(%arg0: i32) -> (i32, i32) {
    %c0_i32 = arith.constant 0 : i32
    %c0_i32_0 = arith.constant 0 : i32
    return %arg0, %c0_i32 : i32, i32
  }
}

</mosaic_0001>

<llo_original>
// kernel: tpu_custom_call.1
$region0: #{tpu_custom_call.1}
  #allocation0 [shape = 'u32[]', space=smem, size = 0x4, offset = 0x4, fixed_abs, tag = 'smem constant byte address 0x4 - core index']
  #allocation1 [shape = 'u32[144,128]{1,0:T(1,128)}', space=vmem, size = 0x12000, scoped, tag = 'internal scratch']
  #allocation2 [shape = 'f32[2,18,18,128]{3,2,1,0:T(8,128)}', space=vmem, size = 0x6c000, scoped, tag = 'scratch operand']
  #allocation3 [shape = 'f32[2,10,10,128]{3,2,1,0:T(8,128)}', space=vmem, size = 0x28000, scoped, tag = 'scratch operand']
  #allocation4 [shape = 'bf16[128,1152]{1,0:T(16,128)(2,1)}', space=vmem, size = 0x48000, scoped, tag = 'scratch operand']
  %s0 = inlined_call_operand.hbm [shape: f32[2,16,16,128], index: 0, kind: input, shape index: {}]
  %s1 = inlined_call_operand.vmem [shape: f32[1,128], index: 1, kind: input, shape index: {}]
  %s2 = inlined_call_operand.vmem [shape: f32[1,128], index: 2, kind: input, shape index: {}]
  %s3 = inlined_call_operand.hbm [shape: bf16[1152,128], index: 3, kind: input, shape index: {}]
  %s4 = inlined_call_operand.vmem [shape: f32[1,128], index: 4, kind: input, shape index: {}]
  %s5 = inlined_call_operand.vmem [shape: f32[1,128], index: 5, kind: input, shape index: {}]
  %s6 = inlined_call_operand.hbm [shape: bf16[1152,128], index: 6, kind: input, shape index: {}]
  %s7 = inlined_call_operand.hbm [shape: bf16[128,128], index: 7, kind: input, shape index: {}]
  %s8 = inlined_call_operand.vmem [shape: f32[1,128], index: 8, kind: input, shape index: {}]
  %s9 = inlined_call_operand.vmem [shape: f32[1,128], index: 9, kind: input, shape index: {}]
  %s10 = inlined_call_operand.hbm [shape: bf16[1152,128], index: 10, kind: input, shape index: {}]
  %s11 = inlined_call_operand.vmem [shape: f32[1,128], index: 11, kind: input, shape index: {}]
  %s12 = inlined_call_operand.vmem [shape: f32[1,128], index: 12, kind: input, shape index: {}]
  %s13 = inlined_call_operand.hbm [shape: bf16[1152,128], index: 13, kind: input, shape index: {}]
  %s14 = inlined_call_operand.hbm [shape: f32[128,128], index: 14, kind: output, shape index: {}]
  %s15 = sld [smem:[#allocation0]]
  $region90: #{tpu_custom_call.1} parent=0
    _
  %s17 = ssub.s32 1, %s15
  %s18 = scalar_select 0, %s17, %s15
  $region1: #{tpu_custom_call.1} parent=0
    #allocation5 [shape = 'u8[262144]{0}', space=vmem, size = 0x40000, scoped, tag = 'input window, operand 0, single buffered']
    #allocation6 [shape = 's32[1]{0}', space=sflag, size = 0x4, scoped, tag = 'scoped memory for tpu_custom_call.1']
    #allocation7 [shape = 's32[1]{0}', space=sflag, size = 0x4, scoped, tag = 'scoped memory for tpu_custom_call.1']
    #allocation8 [shape = 'u8[294912]{0}', space=vmem, size = 0x48000, scoped, tag = 'input window, operand 3, single buffered']
    #allocation9 [shape = 's32[1]{0}', space=sflag, size = 0x4, scoped, tag = 'scoped memory for tpu_custom_call.1']
    #allocation10 [shape = 'u8[294912]{0}', space=vmem, size = 0x48000, scoped, tag = 'input window, operand 6, single buffered']
    #allocation11 [shape = 'u8[32768]{0}', space=vmem, size = 0x8000, scoped, tag = 'input window, operand 7, single buffered']
    #allocation12 [shape = 's32[1]{0}', space=sflag, size = 0x4, scoped, tag = 'scoped memory for tpu_custom_call.1']
    #allocation13 [shape = 'u8[294912]{0}', space=vmem, size = 0x48000, scoped, tag = 'input window, operand 10, single buffered']
    #allocation14 [shape = 'u8[294912]{0}', space=vmem, size = 0x48000, scoped, tag = 'input window, operand 13, single buffered']
    #allocation15 [shape = 's32[1]{0}', space=sflag, size = 0x4, scoped, tag = 'scoped memory for tpu_custom_call.1']
    #allocation16 [shape = 'u8[65536]{0}', space=vmem, size = 0x10000, scoped, tag = 'output window, operand 0, single buffered']
    %19 = vsyncpa [#allocation6], 0
    %20 = vsyncpa [#allocation9], 0
    %21 = vsyncpa [#allocation12], 0
    %22 = vsyncpa [#allocation15], 0
    %23 = vsyncpa [#allocation7], 0
    // Predicated region
    $region2: #{tpu_custom_call.1} parent=1 // pred_check
      _
    $region3: #{tpu_custom_call.1} parent=1 // pred_check_branch
      %25 = sbr.rel (0) target = $region5
    $region4: #{tpu_custom_call.1} parent=1 // pred_region
      %s27 = ssub.s32 8192, 8192
      %28 = vsyncadd [#allocation6], %s27
      %s29 = sshll.u32 [#allocation5], 4
      %s30 = int_to_ptr.vmem [resolvable:$true] %s29
      %35 = dma.hbm_to_vmem [thread:$0]  %s0, 8192, %s30, [#allocation6], 128, 128, 8
    $region5: #{tpu_custom_call.1} parent=1 // pred_fallthru
      _
    // Predicated region
    $region6: #{tpu_custom_call.1} parent=1 // pred_check
      _
    $region7: #{tpu_custom_call.1} parent=1 // pred_check_branch
      %37 = sbr.rel (0) target = $region9
    $region8: #{tpu_custom_call.1} parent=1 // pred_region
      _
    $region9: #{tpu_custom_call.1} parent=1 // pred_fallthru
      _
    // Predicated region
    $region10: #{tpu_custom_call.1} parent=1 // pred_check
      _
    $region11: #{tpu_custom_call.1} parent=1 // pred_check_branch
      %39 = sbr.rel (0) target = $region13
    $region12: #{tpu_custom_call.1} parent=1 // pred_region
      _
    $region13: #{tpu_custom_call.1} parent=1 // pred_fallthru
      _
    // Predicated region
    $region14: #{tpu_custom_call.1} parent=1 // pred_check
      _
    $region15: #{tpu_custom_call.1} parent=1 // pred_check_branch
      %41 = sbr.rel (0) target = $region17
    $region16: #{tpu_custom_call.1} parent=1 // pred_region
      %s43 = ssub.s32 9216, 9216
      %44 = vsyncadd [#allocation9], %s43
      %s45 = sshll.u32 [#allocation8], 4
      %s46 = int_to_ptr.vmem [resolvable:$true] %s45
      %51 = dma.hbm_to_vmem [thread:$0]  %s3, 9216, %s46, [#allocation9], 64, 64, 4
    $region17: #{tpu_custom_call.1} parent=1 // pred_fallthru
      _
    // Predicated region
    $region18: #{tpu_custom_call.1} parent=1 // pred_check
      _
    $region19: #{tpu_custom_call.1} parent=1 // pred_check_branch
      %53 = sbr.rel (0) target = $region21
    $region20: #{tpu_custom_call.1} parent=1 // pred_region
      _
    $region21: #{tpu_custom_call.1} parent=1 // pred_fallthru
      _
    // Predicated region
    $region22: #{tpu_custom_call.1} parent=1 // pred_check
      _
    $region23: #{tpu_custom_call.1} parent=1 // pred_check_branch
      %55 = sbr.rel (0) target = $region25
    $region24: #{tpu_custom_call.1} parent=1 // pred_region
      _
    $region25: #{tpu_custom_call.1} parent=1 // pred_fallthru
      _
    // Predicated region
    $region26: #{tpu_custom_call.1} parent=1 // pred_check
      _
    $region27: #{tpu_custom_call.1} parent=1 // pred_check_branch
      %57 = sbr.rel (0) target = $region29
    $region28: #{tpu_custom_call.1} parent=1 // pred_region
      %s59 = ssub.s32 9216, 9216
      %60 = vsyncadd [#allocation9], %s59
      %s61 = sshll.u32 [#allocation10], 4
      %s62 = int_to_ptr.vmem [resolvable:$true] %s61
      %67 = dma.hbm_to_vmem [thread:$0]  %s6, 9216, %s62, [#allocation9], 64, 64, 4
    $region29: #{tpu_custom_call.1} parent=1 // pred_fallthru
      _
    // Predicated region
    $region30: #{tpu_custom_call.1} parent=1 // pred_check
      _
    $region31: #{tpu_custom_call.1} parent=1 // pred_check_branch
      %69 = sbr.rel (0) target = $region33
    $region32: #{tpu_custom_call.1} parent=1 // pred_region
      %s71 = ssub.s32 1024, 1024
      %72 = vsyncadd [#allocation12], %s71
      %s73 = sshll.u32 [#allocation11], 4
      %s74 = int_to_ptr.vmem [resolvable:$true] %s73
      %79 = dma.hbm_to_vmem [thread:$0]  %s7, 1024, %s74, [#allocation12], 64, 64, 4
    $region33: #{tpu_custom_call.1} parent=1 // pred_fallthru
      _
    // Predicated region
    $region34: #{tpu_custom_call.1} parent=1 // pred_check
      _
    $region35: #{tpu_custom_call.1} parent=1 // pred_check_branch
      %81 = sbr.rel (0) target = $region37
    $region36: #{tpu_custom_call.1} parent=1 // pred_region
      _
    $region37: #{tpu_custom_call.1} parent=1 // pred_fallthru
      _
    // Predicated region
    $region38: #{tpu_custom_call.1} parent=1 // pred_check
      _
    $region39: #{tpu_custom_call.1} parent=1 // pred_check_branch
      %83 = sbr.rel (0) target = $region41
    $region40: #{tpu_custom_call.1} parent=1 // pred_region
      _
    $region41: #{tpu_custom_call.1} parent=1 // pred_fallthru
      _
    // Predicated region
    $region42: #{tpu_custom_call.1} parent=1 // pred_check
      _
    $region43: #{tpu_custom_call.1} parent=1 // pred_check_branch
      %85 = sbr.rel (0) target = $region45
    $region44: #{tpu_custom_call.1} parent=1 // pred_region
      %s87 = ssub.s32 9216, 9216
      %88 = vsyncadd [#allocation12], %s87
      %s89 = sshll.u32 [#allocation13], 4
      %s90 = int_to_ptr.vmem [resolvable:$true] %s89
      %95 = dma.hbm_to_vmem [thread:$0]  %s10, 9216, %s90, [#allocation12], 64, 64, 4
    $region45: #{tpu_custom_call.1} parent=1 // pred_fallthru
      _
    // Predicated region
    $region46: #{tpu_custom_call.1} parent=1 // pred_check
      _
    $region47: #{tpu_custom_call.1} parent=1 // pred_check_branch
      %97 = sbr.rel (0) target = $region49
    $region48: #{tpu_custom_call.1} parent=1 // pred_region
      _
    $region49: #{tpu_custom_call.1} parent=1 // pred_fallthru
      _
    // Predicated region
    $region50: #{tpu_custom_call.1} parent=1 // pred_check
      _
    $region51: #{tpu_custom_call.1} parent=1 // pred_check_branch
      %99 = sbr.rel (0) target = $region53
    $region52: #{tpu_custom_call.1} parent=1 // pred_region
      _
    $region53: #{tpu_custom_call.1} parent=1 // pred_fallthru
      _
    // Predicated region
    $region54: #{tpu_custom_call.1} parent=1 // pred_check
      _
    $region55: #{tpu_custom_call.1} parent=1 // pred_check_branch
      %101 = sbr.rel (0) target = $region57
    $region56: #{tpu_custom_call.1} parent=1 // pred_region
      %s103 = ssub.s32 9216, 9216
      %104 = vsyncadd [#allocation15], %s103
      %s105 = sshll.u32 [#allocation14], 4
      %s106 = int_to_ptr.vmem [resolvable:$true] %s105
      %111 = dma.hbm_to_vmem [thread:$0]  %s13, 9216, %s106, [#allocation15], 64, 64, 4
    $region57: #{tpu_custom_call.1} parent=1 // pred_fallthru
      _
    // Predicated region
    $region58: #{tpu_custom_call.1} parent=1 // pred_check
      _
    $region59: #{tpu_custom_call.1} parent=1 // pred_check_branch
      %113 = sbr.rel (0) target = $region61
    $region60: #{tpu_custom_call.1} parent=1 // pred_region
      %114 = dma.done [#allocation6], 8192
    $region61: #{tpu_custom_call.1} parent=1 // pred_fallthru
      _
    // Predicated region
    $region62: #{tpu_custom_call.1} parent=1 // pred_check
      _
    $region63: #{tpu_custom_call.1} parent=1 // pred_check_branch
      %116 = sbr.rel (0) target = $region65
    $region64: #{tpu_custom_call.1} parent=1 // pred_region
      %117 = dma.done [#allocation9], 9216
    $region65: #{tpu_custom_call.1} parent=1 // pred_fallthru
      _
    // Predicated region
    $region66: #{tpu_custom_call.1} parent=1 // pred_check
      _
    $region67: #{tpu_custom_call.1} parent=1 // pred_check_branch
      %119 = sbr.rel (0) target = $region69
    $region68: #{tpu_custom_call.1} parent=1 // pred_region
      %120 = dma.done [#allocation9], 9216
    $region69: #{tpu_custom_call.1} parent=1 // pred_fallthru
      _
    // Predicated region
    $region70: #{tpu_custom_call.1} parent=1 // pred_check
      _
    $region71: #{tpu_custom_call.1} parent=1 // pred_check_branch
      %122 = sbr.rel (0) target = $region73
    $region72: #{tpu_custom_call.1} parent=1 // pred_region
      %123 = dma.done [#allocation12], 1024
    $region73: #{tpu_custom_call.1} parent=1 // pred_fallthru
      _
    // Predicated region
    $region74: #{tpu_custom_call.1} parent=1 // pred_check
      _
    $region75: #{tpu_custom_call.1} parent=1 // pred_check_branch
      %125 = sbr.rel (0) target = $region77
    $region76: #{tpu_custom_call.1} parent=1 // pred_region
      %126 = dma.done [#allocation12], 9216
    $region77: #{tpu_custom_call.1} parent=1 // pred_fallthru
      _
    // Predicated region
    $region78: #{tpu_custom_call.1} parent=1 // pred_check
      _
    $region79: #{tpu_custom_call.1} parent=1 // pred_check_branch
      %128 = sbr.rel (0) target = $region81
    $region80: #{tpu_custom_call.1} parent=1 // pred_region
      %129 = dma.done [#allocation15], 9216
    $region81: #{tpu_custom_call.1} parent=1 // pred_fallthru
      _
    %131 = vst [vmem:[#allocation2] sm:$0xff] 0.0
    %132 = vst [vmem:[#allocation2 + $0x8] sm:$0xff] 0.0
    %133 = vst [vmem:[#allocation2 + $0x10] sm:$0x3] 0.0
    %134 = vst [vmem:[#allocation2 + $0x18] sm:$0xff] 0.0
    %135 = vst [vmem:[#allocation2 + $0x20] sm:$0xff] 0.0
    %136 = vst [vmem:[#allocation2 + $0x28] sm:$0x3] 0.0
    %137 = vst [vmem:[#allocation2 + $0x30] sm:$0xff] 0.0
    %138 = vst [vmem:[#allocation2 + $0x38] sm:$0xff] 0.0
    %139 = vst [vmem:[#allocation2 + $0x40] sm:$0x3] 0.0
    %140 = vst [vmem:[#allocation2 + $0x48] sm:$0xff] 0.0
    %141 = vst [vmem:[#allocation2 + $0x50] sm:$0xff] 0.0
    %142 = vst [vmem:[#allocation2 + $0x58] sm:$0x3] 0.0
    %143 = vst [vmem:[#allocation2 + $0x60] sm:$0xff] 0.0
    %144 = vst [vmem:[#allocation2 + $0x68] sm:$0xff] 0.0
    %145 = vst [vmem:[#allocation2 + $0x70] sm:$0x3] 0.0
    %146 = vst [vmem:[#allocation2 + $0x78] sm:$0xff] 0.0
    %147 = vst [vmem:[#allocation2 + $0x80] sm:$0xff] 0.0
    %148 = vst [vmem:[#allocation2 + $0x88] sm:$0x3] 0.0
    %149 = vst [vmem:[#allocation2 + $0x90] sm:$0xff] 0.0
    %150 = vst [vmem:[#allocation2 + $0x98] sm:$0xff] 0.0
    %151 = vst [vmem:[#allocation2 + $0xa0] sm:$0x3] 0.0
    %152 = vst [vmem:[#allocation2 + $0xa8] sm:$0xff] 0.0
    %153 = vst [vmem:[#allocation2 + $0xb0] sm:$0xff] 0.0
    %154 = vst [vmem:[#allocation2 + $0xb8] sm:$0x3] 0.0
    %155 = vst [vmem:[#allocation2 + $0xc0] sm:$0xff] 0.0
    %156 = vst [vmem:[#allocation2 + $0xc8] sm:$0xff] 0.0
    %157 = vst [vmem:[#allocation2 + $0xd0] sm:$0x3] 0.0
    %158 = vst [vmem:[#allocation2 + $0xd8] sm:$0xff] 0.0
    %159 = vst [vmem:[#allocation2 + $0xe0] sm:$0xff] 0.0
    %160 = vst [vmem:[#allocation2 + $0xe8] sm:$0x3] 0.0
    %161 = vst [vmem:[#allocation2 + $0xf0] sm:$0xff] 0.0
    %162 = vst [vmem:[#allocation2 + $0xf8] sm:$0xff] 0.0
    %163 = vst [vmem:[#allocation2 + $0x100] sm:$0x3] 0.0
    %164 = vst [vmem:[#allocation2 + $0x108] sm:$0xff] 0.0
    %165 = vst [vmem:[#allocation2 + $0x110] sm:$0xff] 0.0
    %166 = vst [vmem:[#allocation2 + $0x118] sm:$0x3] 0.0
    %167 = vst [vmem:[#allocation2 + $0x120] sm:$0xff] 0.0
    %168 = vst [vmem:[#allocation2 + $0x128] sm:$0xff] 0.0
    %169 = vst [vmem:[#allocation2 + $0x130] sm:$0x3] 0.0
    %170 = vst [vmem:[#allocation2 + $0x138] sm:$0xff] 0.0
    %171 = vst [vmem:[#allocation2 + $0x140] sm:$0xff] 0.0
    %172 = vst [vmem:[#allocation2 + $0x148] sm:$0x3] 0.0
    %173 = vst [vmem:[#allocation2 + $0x150] sm:$0xff] 0.0
    %174 = vst [vmem:[#allocation2 + $0x158] sm:$0xff] 0.0
    %175 = vst [vmem:[#allocation2 + $0x160] sm:$0x3] 0.0
    %176 = vst [vmem:[#allocation2 + $0x168] sm:$0xff] 0.0
    %177 = vst [vmem:[#allocation2 + $0x170] sm:$0xff] 0.0
    %178 = vst [vmem:[#allocation2 + $0x178] sm:$0x3] 0.0
    %179 = vst [vmem:[#allocation2 + $0x180] sm:$0xff] 0.0
    %180 = vst [vmem:[#allocation2 + $0x188] sm:$0xff] 0.0
    %181 = vst [vmem:[#allocation2 + $0x190] sm:$0x3] 0.0
    %182 = vst [vmem:[#allocation2 + $0x198] sm:$0xff] 0.0
    %183 = vst [vmem:[#allocation2 + $0x1a0] sm:$0xff] 0.0
    %184 = vst [vmem:[#allocation2 + $0x1a8] sm:$0x3] 0.0
    %185 = vst [vmem:[#allocation2 + $0x1b0] sm:$0xff] 0.0
    %186 = vst [vmem:[#allocation2 + $0x1b8] sm:$0xff] 0.0
    %187 = vst [vmem:[#allocation2 + $0x1c0] sm:$0x3] 0.0
    %188 = vst [vmem:[#allocation2 + $0x1c8] sm:$0xff] 0.0
    %189 = vst [vmem:[#allocation2 + $0x1d0] sm:$0xff] 0.0
    %190 = vst [vmem:[#allocation2 + $0x1d8] sm:$0x3] 0.0
    %191 = vst [vmem:[#allocation2 + $0x1e0] sm:$0xff] 0.0
    %192 = vst [vmem:[#allocation2 + $0x1e8] sm:$0xff] 0.0
    %193 = vst [vmem:[#allocation2 + $0x1f0] sm:$0x3] 0.0
    %194 = vst [vmem:[#allocation2 + $0x1f8] sm:$0xff] 0.0
    %195 = vst [vmem:[#allocation2 + $0x200] sm:$0xff] 0.0
    %196 = vst [vmem:[#allocation2 + $0x208] sm:$0x3] 0.0
    %197 = vst [vmem:[#allocation2 + $0x210] sm:$0xff] 0.0
    %198 = vst [vmem:[#allocation2 + $0x218] sm:$0xff] 0.0
    %199 = vst [vmem:[#allocation2 + $0x220] sm:$0x3] 0.0
    %200 = vst [vmem:[#allocation2 + $0x228] sm:$0xff] 0.0
    %201 = vst [vmem:[#allocation2 + $0x230] sm:$0xff] 0.0
    %202 = vst [vmem:[#allocation2 + $0x238] sm:$0x3] 0.0
    %203 = vst [vmem:[#allocation2 + $0x240] sm:$0xff] 0.0
    %204 = vst [vmem:[#allocation2 + $0x248] sm:$0xff] 0.0
    %205 = vst [vmem:[#allocation2 + $0x250] sm:$0x3] 0.0
    %206 = vst [vmem:[#allocation2 + $0x258] sm:$0xff] 0.0
    %207 = vst [vmem:[#allocation2 + $0x260] sm:$0xff] 0.0
    %208 = vst [vmem:[#allocation2 + $0x268] sm:$0x3] 0.0
    %209 = vst [vmem:[#allocation2 + $0x270] sm:$0xff] 0.0
    %210 = vst [vmem:[#allocation2 + $0x278] sm:$0xff] 0.0
    %211 = vst [vmem:[#allocation2 + $0x280] sm:$0x3] 0.0
    %212 = vst [vmem:[#allocation2 + $0x288] sm:$0xff] 0.0
    %213 = vst [vmem:[#allocation2 + $0x290] sm:$0xff] 0.0
    %214 = vst [vmem:[#allocation2 + $0x298] sm:$0x3] 0.0
    %215 = vst [vmem:[#allocation2 + $0x2a0] sm:$0xff] 0.0
    %216 = vst [vmem:[#allocation2 + $0x2a8] sm:$0xff] 0.0
    %217 = vst [vmem:[#allocation2 + $0x2b0] sm:$0x3] 0.0
    %218 = vst [vmem:[#allocation2 + $0x2b8] sm:$0xff] 0.0
    %219 = vst [vmem:[#allocation2 + $0x2c0] sm:$0xff] 0.0
    %220 = vst [vmem:[#allocation2 + $0x2c8] sm:$0x3] 0.0
    %221 = vst [vmem:[#allocation2 + $0x2d0] sm:$0xff] 0.0
    %222 = vst [vmem:[#allocation2 + $0x2d8] sm:$0xff] 0.0
    %223 = vst [vmem:[#allocation2 + $0x2e0] sm:$0x3] 0.0
    %224 = vst [vmem:[#allocation2 + $0x2e8] sm:$0xff] 0.0
    %225 = vst [vmem:[#allocation2 + $0x2f0] sm:$0xff] 0.0
    %226 = vst [vmem:[#allocation2 + $0x2f8] sm:$0x3] 0.0
    %227 = vst [vmem:[#allocation2 + $0x300] sm:$0xff] 0.0
    %228 = vst [vmem:[#allocation2 + $0x308] sm:$0xff] 0.0
    %229 = vst [vmem:[#allocation2 + $0x310] sm:$0x3] 0.0
    %230 = vst [vmem:[#allocation2 + $0x318] sm:$0xff] 0.0
    %231 = vst [vmem:[#allocation2 + $0x320] sm:$0xff] 0.0
    %232 = vst [vmem:[#allocation2 + $0x328] sm:$0x3] 0.0
    %233 = vst [vmem:[#allocation2 + $0x330] sm:$0xff] 0.0
    %234 = vst [vmem:[#allocation2 + $0x338] sm:$0xff] 0.0
    %235 = vst [vmem:[#allocation2 + $0x340] sm:$0x3] 0.0
    %236 = vst [vmem:[#allocation2 + $0x348] sm:$0xff] 0.0
    %237 = vst [vmem:[#allocation2 + $0x350] sm:$0xff] 0.0
    %238 = vst [vmem:[#allocation2 + $0x358] sm:$0x3] 0.0
    %239 = vst [vmem:[#allocation3] sm:$0xff] 0.0
    %240 = vst [vmem:[#allocation3 + $0x8] sm:$0x3] 0.0
    %241 = vst [vmem:[#allocation3 + $0x10] sm:$0xff] 0.0
    %242 = vst [vmem:[#allocation3 + $0x18] sm:$0x3] 0.0
    %243 = vst [vmem:[#allocation3 + $0x20] sm:$0xff] 0.0
    %244 = vst [vmem:[#allocation3 + $0x28] sm:$0x3] 0.0
    %245 = vst [vmem:[#allocation3 + $0x30] sm:$0xff] 0.0
    %246 = vst [vmem:[#allocation3 + $0x38] sm:$0x3] 0.0
    %247 = vst [vmem:[#allocation3 + $0x40] sm:$0xff] 0.0
    %248 = vst [vmem:[#allocation3 + $0x48] sm:$0x3] 0.0
    %249 = vst [vmem:[#allocation3 + $0x50] sm:$0xff] 0.0
    %250 = vst [vmem:[#allocation3 + $0x58] sm:$0x3] 0.0
    %251 = vst [vmem:[#allocation3 + $0x60] sm:$0xff] 0.0
    %252 = vst [vmem:[#allocation3 + $0x68] sm:$0x3] 0.0
    %253 = vst [vmem:[#allocation3 + $0x70] sm:$0xff] 0.0
    %254 = vst [vmem:[#allocation3 + $0x78] sm:$0x3] 0.0
    %255 = vst [vmem:[#allocation3 + $0x80] sm:$0xff] 0.0
    %256 = vst [vmem:[#allocation3 + $0x88] sm:$0x3] 0.0
    %257 = vst [vmem:[#allocation3 + $0x90] sm:$0xff] 0.0
    %258 = vst [vmem:[#allocation3 + $0x98] sm:$0x3] 0.0
    %259 = vst [vmem:[#allocation3 + $0xa0] sm:$0xff] 0.0
    %260 = vst [vmem:[#allocation3 + $0xa8] sm:$0x3] 0.0
    %261 = vst [vmem:[#allocation3 + $0xb0] sm:$0xff] 0.0
    %262 = vst [vmem:[#allocation3 + $0xb8] sm:$0x3] 0.0
    %263 = vst [vmem:[#allocation3 + $0xc0] sm:$0xff] 0.0
    %264 = vst [vmem:[#allocation3 + $0xc8] sm:$0x3] 0.0
    %265 = vst [vmem:[#allocation3 + $0xd0] sm:$0xff] 0.0
    %266 = vst [vmem:[#allocation3 + $0xd8] sm:$0x3] 0.0
    %267 = vst [vmem:[#allocation3 + $0xe0] sm:$0xff] 0.0
    %268 = vst [vmem:[#allocation3 + $0xe8] sm:$0x3] 0.0
    %269 = vst [vmem:[#allocation3 + $0xf0] sm:$0xff] 0.0
    %270 = vst [vmem:[#allocation3 + $0xf8] sm:$0x3] 0.0
    %271 = vst [vmem:[#allocation3 + $0x100] sm:$0xff] 0.0
    %272 = vst [vmem:[#allocation3 + $0x108] sm:$0x3] 0.0
    %273 = vst [vmem:[#allocation3 + $0x110] sm:$0xff] 0.0
    %274 = vst [vmem:[#allocation3 + $0x118] sm:$0x3] 0.0
    %275 = vst [vmem:[#allocation3 + $0x120] sm:$0xff] 0.0
    %276 = vst [vmem:[#allocation3 + $0x128] sm:$0x3] 0.0
    %277 = vst [vmem:[#allocation3 + $0x130] sm:$0xff] 0.0
    %278 = vst [vmem:[#allocation3 + $0x138] sm:$0x3] 0.0
    %v279 = vld [vmem:[#allocation5] sm:$0xff]
    %v280 = vld [vmem:[#allocation5 + $0x8] sm:$0xff]
    %v281 = vld [vmem:[#allocation5 + $0x10] sm:$0xff]
    %v282 = vld [vmem:[#allocation5 + $0x18] sm:$0xff]
    %v283 = vld [vmem:[#allocation5 + $0x20] sm:$0xff]
    %v284 = vld [vmem:[#allocation5 + $0x28] sm:$0xff]
    %v285 = vld [vmem:[#allocation5 + $0x30] sm:$0xff]
    %v286 = vld [vmem:[#allocation5 + $0x38] sm:$0xff]
    %v287 = vld [vmem:[#allocation5 + $0x40] sm:$0xff]
    %v288 = vld [vmem:[#allocation5 + $0x48] sm:$0xff]
    %v289 = vld [vmem:[#allocation5 + $0x50] sm:$0xff]
    %v290 = vld [vmem:[#allocation5 + $0x58] sm:$0xff]
    %v291 = vld [vmem:[#allocation5 + $0x60] sm:$0xff]
    %v292 = vld [vmem:[#allocation5 + $0x68] sm:$0xff]
    %v293 = vld [vmem:[#allocation5 + $0x70] sm:$0xff]
    %v294 = vld [vmem:[#allocation5 + $0x78] sm:$0xff]
    %v295 = vld [vmem:[#allocation5 + $0x80] sm:$0xff]
    %v296 = vld [vmem:[#allocation5 + $0x88] sm:$0xff]
    %v297 = vld [vmem:[#allocation5 + $0x90] sm:$0xff]
    %v298 = vld [vmem:[#allocation5 + $0x98] sm:$0xff]
    %v299 = vld [vmem:[#allocation5 + $0xa0] sm:$0xff]
    %v300 = vld [vmem:[#allocation5 + $0xa8] sm:$0xff]
    %v301 = vld [vmem:[#allocation5 + $0xb0] sm:$0xff]
    %v302 = vld [vmem:[#allocation5 + $0xb8] sm:$0xff]
    %v303 = vld [vmem:[#allocation5 + $0xc0] sm:$0xff]
    %v304 = vld [vmem:[#allocation5 + $0xc8] sm:$0xff]
    %v305 = vld [vmem:[#allocation5 + $0xd0] sm:$0xff]
    %v306 = vld [vmem:[#allocation5 + $0xd8] sm:$0xff]
    %v307 = vld [vmem:[#allocation5 + $0xe0] sm:$0xff]
    %v308 = vld [vmem:[#allocation5 + $0xe8] sm:$0xff]
    %v309 = vld [vmem:[#allocation5 + $0xf0] sm:$0xff]
    %v310 = vld [vmem:[#allocation5 + $0xf8] sm:$0xff]
    %v311 = vld [vmem:[#allocation5 + $0x100] sm:$0xff]
    %v312 = vld [vmem:[#allocation5 + $0x108] sm:$0xff]
    %v313 = vld [vmem:[#allocation5 + $0x110] sm:$0xff]
    %v314 = vld [vmem:[#allocation5 + $0x118] sm:$0xff]
    %v315 = vld [vmem:[#allocation5 + $0x120] sm:$0xff]
    %v316 = vld [vmem:[#allocation5 + $0x128] sm:$0xff]
    %v317 = vld [vmem:[#allocation5 + $0x130] sm:$0xff]
    %v318 = vld [vmem:[#allocation5 + $0x138] sm:$0xff]
    %v319 = vld [vmem:[#allocation5 + $0x140] sm:$0xff]
    %v320 = vld [vmem:[#allocation5 + $0x148] sm:$0xff]
    %v321 = vld [vmem:[#allocation5 + $0x150] sm:$0xff]
    %v322 = vld [vmem:[#allocation5 + $0x158] sm:$0xff]
    %v323 = vld [vmem:[#allocation5 + $0x160] sm:$0xff]
    %v324 = vld [vmem:[#allocation5 + $0x168] sm:$0xff]
    %v325 = vld [vmem:[#allocation5 + $0x170] sm:$0xff]
    %v326 = vld [vmem:[#allocation5 + $0x178] sm:$0xff]
    %v327 = vld [vmem:[#allocation5 + $0x180] sm:$0xff]
    %v328 = vld [vmem:[#allocation5 + $0x188] sm:$0xff]
    %v329 = vld [vmem:[#allocation5 + $0x190] sm:$0xff]
    %v330 = vld [vmem:[#allocation5 + $0x198] sm:$0xff]
    %v331 = vld [vmem:[#allocation5 + $0x1a0] sm:$0xff]
    %v332 = vld [vmem:[#allocation5 + $0x1a8] sm:$0xff]
    %v333 = vld [vmem:[#allocation5 + $0x1b0] sm:$0xff]
    %v334 = vld [vmem:[#allocation5 + $0x1b8] sm:$0xff]
    %v335 = vld [vmem:[#allocation5 + $0x1c0] sm:$0xff]
    %v336 = vld [vmem:[#allocation5 + $0x1c8] sm:$0xff]
    %v337 = vld [vmem:[#allocation5 + $0x1d0] sm:$0xff]
    %v338 = vld [vmem:[#allocation5 + $0x1d8] sm:$0xff]
    %v339 = vld [vmem:[#allocation5 + $0x1e0] sm:$0xff]
    %v340 = vld [vmem:[#allocation5 + $0x1e8] sm:$0xff]
    %v341 = vld [vmem:[#allocation5 + $0x1f0] sm:$0xff]
    %v342 = vld [vmem:[#allocation5 + $0x1f8] sm:$0xff]
    %v343 = vld [vmem:[%s1] sm:$0x1]
    %v345 = vlaneseq
    %v346 = vshrl.u32 %v345, 7
    %v347 = vsub.s32 0, %v346
    %v348 = vrot.slane %v343, %v347
    %v350 = vmul.f32 %v279, %v348
    %v351 = vmul.f32 %v280, %v348
    %v352 = vmul.f32 %v281, %v348
    %v353 = vmul.f32 %v282, %v348
    %v354 = vmul.f32 %v283, %v348
    %v355 = vmul.f32 %v284, %v348
    %v356 = vmul.f32 %v285, %v348
    %v357 = vmul.f32 %v286, %v348
    %v358 = vmul.f32 %v287, %v348
    %v359 = vmul.f32 %v288, %v348
    %v360 = vmul.f32 %v289, %v348
    %v361 = vmul.f32 %v290, %v348
    %v362 = vmul.f32 %v291, %v348
    %v363 = vmul.f32 %v292, %v348
    %v364 = vmul.f32 %v293, %v348
    %v365 = vmul.f32 %v294, %v348
    %v366 = vmul.f32 %v295, %v348
    %v367 = vmul.f32 %v296, %v348
    %v368 = vmul.f32 %v297, %v348
    %v369 = vmul.f32 %v298, %v348
    %v370 = vmul.f32 %v299, %v348
    %v371 = vmul.f32 %v300, %v348
    %v372 = vmul.f32 %v301, %v348
    %v373 = vmul.f32 %v302, %v348
    %v374 = vmul.f32 %v303, %v348
    %v375 = vmul.f32 %v304, %v348
    %v376 = vmul.f32 %v305, %v348
    %v377 = vmul.f32 %v306, %v348
    %v378 = vmul.f32 %v307, %v348
    %v379 = vmul.f32 %v308, %v348
    %v380 = vmul.f32 %v309, %v348
    %v381 = vmul.f32 %v310, %v348
    %v382 = vmul.f32 %v311, %v348
    %v383 = vmul.f32 %v312, %v348
    %v384 = vmul.f32 %v313, %v348
    %v385 = vmul.f32 %v314, %v348
    %v386 = vmul.f32 %v315, %v348
    %v387 = vmul.f32 %v316, %v348
    %v388 = vmul.f32 %v317, %v348
    %v389 = vmul.f32 %v318, %v348
    %v390 = vmul.f32 %v319, %v348
    %v391 = vmul.f32 %v320, %v348
    %v392 = vmul.f32 %v321, %v348
    %v393 = vmul.f32 %v322, %v348
    %v394 = vmul.f32 %v323, %v348
    %v395 = vmul.f32 %v324, %v348
    %v396 = vmul.f32 %v325, %v348
    %v397 = vmul.f32 %v326, %v348
    %v398 = vmul.f32 %v327, %v348
    %v399 = vmul.f32 %v328, %v348
    %v400 = vmul.f32 %v329, %v348
    %v401 = vmul.f32 %v330, %v348
    %v402 = vmul.f32 %v331, %v348
    %v403 = vmul.f32 %v332, %v348
    %v404 = vmul.f32 %v333, %v348
    %v405 = vmul.f32 %v334, %v348
    %v406 = vmul.f32 %v335, %v348
    %v407 = vmul.f32 %v336, %v348
    %v408 = vmul.f32 %v337, %v348
    %v409 = vmul.f32 %v338, %v348
    %v410 = vmul.f32 %v339, %v348
    %v411 = vmul.f32 %v340, %v348
    %v412 = vmul.f32 %v341, %v348
    %v413 = vmul.f32 %v342, %v348
    %v414 = vld [vmem:[%s2] sm:$0x1]
    %v416 = vlaneseq
    %v417 = vshrl.u32 %v416, 7
    %v418 = vsub.s32 0, %v417
    %v419 = vrot.slane %v414, %v418
    %v421 = vadd.f32 %v350, %v419
    %v422 = vadd.f32 %v351, %v419
    %v423 = vadd.f32 %v352, %v419
    %v424 = vadd.f32 %v353, %v419
    %v425 = vadd.f32 %v354, %v419
    %v426 = vadd.f32 %v355, %v419
    %v427 = vadd.f32 %v356, %v419
    %v428 = vadd.f32 %v357, %v419
    %v429 = vadd.f32 %v358, %v419
    %v430 = vadd.f32 %v359, %v419
    %v431 = vadd.f32 %v360, %v419
    %v432 = vadd.f32 %v361, %v419
    %v433 = vadd.f32 %v362, %v419
    %v434 = vadd.f32 %v363, %v419
    %v435 = vadd.f32 %v364, %v419
    %v436 = vadd.f32 %v365, %v419
    %v437 = vadd.f32 %v366, %v419
    %v438 = vadd.f32 %v367, %v419
    %v439 = vadd.f32 %v368, %v419
    %v440 = vadd.f32 %v369, %v419
    %v441 = vadd.f32 %v370, %v419
    %v442 = vadd.f32 %v371, %v419
    %v443 = vadd.f32 %v372, %v419
    %v444 = vadd.f32 %v373, %v419
    %v445 = vadd.f32 %v374, %v419
    %v446 = vadd.f32 %v375, %v419
    %v447 = vadd.f32 %v376, %v419
    %v448 = vadd.f32 %v377, %v419
    %v449 = vadd.f32 %v378, %v419
    %v450 = vadd.f32 %v379, %v419
    %v451 = vadd.f32 %v380, %v419
    %v452 = vadd.f32 %v381, %v419
    %v453 = vadd.f32 %v382, %v419
    %v454 = vadd.f32 %v383, %v419
    %v455 = vadd.f32 %v384, %v419
    %v456 = vadd.f32 %v385, %v419
    %v457 = vadd.f32 %v386, %v419
    %v458 = vadd.f32 %v387, %v419
    %v459 = vadd.f32 %v388, %v419
    %v460 = vadd.f32 %v389, %v419
    %v461 = vadd.f32 %v390, %v419
    %v462 = vadd.f32 %v391, %v419
    %v463 = vadd.f32 %v392, %v419
    %v464 = vadd.f32 %v393, %v419
    %v465 = vadd.f32 %v394, %v419
    %v466 = vadd.f32 %v395, %v419
    %v467 = vadd.f32 %v396, %v419
    %v468 = vadd.f32 %v397, %v419
    %v469 = vadd.f32 %v398, %v419
    %v470 = vadd.f32 %v399, %v419
    %v471 = vadd.f32 %v400, %v419
    %v472 = vadd.f32 %v401, %v419
    %v473 = vadd.f32 %v402, %v419
    %v474 = vadd.f32 %v403, %v419
    %v475 = vadd.f32 %v404, %v419
    %v476 = vadd.f32 %v405, %v419
    %v477 = vadd.f32 %v406, %v419
    %v478 = vadd.f32 %v407, %v419
    %v479 = vadd.f32 %v408, %v419
    %v480 = vadd.f32 %v409, %v419
    %v481 = vadd.f32 %v410, %v419
    %v482 = vadd.f32 %v411, %v419
    %v483 = vadd.f32 %v412, %v419
    %v484 = vadd.f32 %v413, %v419
    %v485 = vmax.f32 %v421, 0.0
    %v486 = vmax.f32 %v422, 0.0
    %v487 = vmax.f32 %v423, 0.0
    %v488 = vmax.f32 %v424, 0.0
    %v489 = vmax.f32 %v425, 0.0
    %v490 = vmax.f32 %v426, 0.0
    %v491 = vmax.f32 %v427, 0.0
    %v492 = vmax.f32 %v428, 0.0
    %v493 = vmax.f32 %v429, 0.0
    %v494 = vmax.f32 %v430, 0.0
    %v495 = vmax.f32 %v431, 0.0
    %v496 = vmax.f32 %v432, 0.0
    %v497 = vmax.f32 %v433, 0.0
    %v498 = vmax.f32 %v434, 0.0
    %v499 = vmax.f32 %v435, 0.0
    %v500 = vmax.f32 %v436, 0.0
    %v501 = vmax.f32 %v437, 0.0
    %v502 = vmax.f32 %v438, 0.0
    %v503 = vmax.f32 %v439, 0.0
    %v504 = vmax.f32 %v440, 0.0
    %v505 = vmax.f32 %v441, 0.0
    %v506 = vmax.f32 %v442, 0.0
    %v507 = vmax.f32 %v443, 0.0
    %v508 = vmax.f32 %v444, 0.0
    %v509 = vmax.f32 %v445, 0.0
    %v510 = vmax.f32 %v446, 0.0
    %v511 = vmax.f32 %v447, 0.0
    %v512 = vmax.f32 %v448, 0.0
    %v513 = vmax.f32 %v449, 0.0
    %v514 = vmax.f32 %v450, 0.0
    %v515 = vmax.f32 %v451, 0.0
    %v516 = vmax.f32 %v452, 0.0
    %v517 = vmax.f32 %v453, 0.0
    %v518 = vmax.f32 %v454, 0.0
    %v519 = vmax.f32 %v455, 0.0
    %v520 = vmax.f32 %v456, 0.0
    %v521 = vmax.f32 %v457, 0.0
    %v522 = vmax.f32 %v458, 0.0
    %v523 = vmax.f32 %v459, 0.0
    %v524 = vmax.f32 %v460, 0.0
    %v525 = vmax.f32 %v461, 0.0
    %v526 = vmax.f32 %v462, 0.0
    %v527 = vmax.f32 %v463, 0.0
    %v528 = vmax.f32 %v464, 0.0
    %v529 = vmax.f32 %v465, 0.0
    %v530 = vmax.f32 %v466, 0.0
    %v531 = vmax.f32 %v467, 0.0
    %v532 = vmax.f32 %v468, 0.0
    %v533 = vmax.f32 %v469, 0.0
    %v534 = vmax.f32 %v470, 0.0
    %v535 = vmax.f32 %v471, 0.0
    %v536 = vmax.f32 %v472, 0.0
    %v537 = vmax.f32 %v473, 0.0
    %v538 = vmax.f32 %v474, 0.0
    %v539 = vmax.f32 %v475, 0.0
    %v540 = vmax.f32 %v476, 0.0
    %v541 = vmax.f32 %v477, 0.0
    %v542 = vmax.f32 %v478, 0.0
    %v543 = vmax.f32 %v479, 0.0
    %v544 = vmax.f32 %v480, 0.0
    %v545 = vmax.f32 %v481, 0.0
    %v546 = vmax.f32 %v482, 0.0
    %v547 = vmax.f32 %v483, 0.0
    %v548 = vmax.f32 %v484, 0.0
    %s549 = scalar_lea.vmem [#allocation2], 24
    %550 = vst [vmem:[%s549 + $0x1] sm:$0xff] %v485
    %551 = vst [vmem:[%s549 + $0x9] sm:$0xff] %v486
    %552 = vst [vmem:[%s549 + $0x19] sm:$0xff] %v487
    %553 = vst [vmem:[%s549 + $0x21] sm:$0xff] %v488
    %554 = vst [vmem:[%s549 + $0x31] sm:$0xff] %v489
    %555 = vst [vmem:[%s549 + $0x39] sm:$0xff] %v490
    %556 = vst [vmem:[%s549 + $0x49] sm:$0xff] %v491
    %557 = vst [vmem:[%s549 + $0x51] sm:$0xff] %v492
    %558 = vst [vmem:[%s549 + $0x61] sm:$0xff] %v493
    %559 = vst [vmem:[%s549 + $0x69] sm:$0xff] %v494
    %560 = vst [vmem:[%s549 + $0x79] sm:$0xff] %v495
    %561 = vst [vmem:[%s549 + $0x81] sm:$0xff] %v496
    %562 = vst [vmem:[%s549 + $0x91] sm:$0xff] %v497
    %563 = vst [vmem:[%s549 + $0x99] sm:$0xff] %v498
    %564 = vst [vmem:[%s549 + $0xa9] sm:$0xff] %v499
    %565 = vst [vmem:[%s549 + $0xb1] sm:$0xff] %v500
    %566 = vst [vmem:[%s549 + $0xc1] sm:$0xff] %v501
    %567 = vst [vmem:[%s549 + $0xc9] sm:$0xff] %v502
    %568 = vst [vmem:[%s549 + $0xd9] sm:$0xff] %v503
    %569 = vst [vmem:[%s549 + $0xe1] sm:$0xff] %v504
    %570 = vst [vmem:[%s549 + $0xf1] sm:$0xff] %v505
    %571 = vst [vmem:[%s549 + $0xf9] sm:$0xff] %v506
    %572 = vst [vmem:[%s549 + $0x109] sm:$0xff] %v507
    %573 = vst [vmem:[%s549 + $0x111] sm:$0xff] %v508
    %574 = vst [vmem:[%s549 + $0x121] sm:$0xff] %v509
    %575 = vst [vmem:[%s549 + $0x129] sm:$0xff] %v510
    %576 = vst [vmem:[%s549 + $0x139] sm:$0xff] %v511
    %577 = vst [vmem:[%s549 + $0x141] sm:$0xff] %v512
    %578 = vst [vmem:[%s549 + $0x151] sm:$0xff] %v513
    %579 = vst [vmem:[%s549 + $0x159] sm:$0xff] %v514
    %580 = vst [vmem:[%s549 + $0x169] sm:$0xff] %v515
    %581 = vst [vmem:[%s549 + $0x171] sm:$0xff] %v516
    %582 = vst [vmem:[%s549 + $0x1b1] sm:$0xff] %v517
    %583 = vst [vmem:[%s549 + $0x1b9] sm:$0xff] %v518
    %584 = vst [vmem:[%s549 + $0x1c9] sm:$0xff] %v519
    %585 = vst [vmem:[%s549 + $0x1d1] sm:$0xff] %v520
    %586 = vst [vmem:[%s549 + $0x1e1] sm:$0xff] %v521
    %587 = vst [vmem:[%s549 + $0x1e9] sm:$0xff] %v522
    %588 = vst [vmem:[%s549 + $0x1f9] sm:$0xff] %v523
    %589 = vst [vmem:[%s549 + $0x201] sm:$0xff] %v524
    %590 = vst [vmem:[%s549 + $0x211] sm:$0xff] %v525
    %591 = vst [vmem:[%s549 + $0x219] sm:$0xff] %v526
    %592 = vst [vmem:[%s549 + $0x229] sm:$0xff] %v527
    %593 = vst [vmem:[%s549 + $0x231] sm:$0xff] %v528
    %594 = vst [vmem:[%s549 + $0x241] sm:$0xff] %v529
    %595 = vst [vmem:[%s549 + $0x249] sm:$0xff] %v530
    %596 = vst [vmem:[%s549 + $0x259] sm:$0xff] %v531
    %597 = vst [vmem:[%s549 + $0x261] sm:$0xff] %v532
    %598 = vst [vmem:[%s549 + $0x271] sm:$0xff] %v533
    %599 = vst [vmem:[%s549 + $0x279] sm:$0xff] %v534
    %600 = vst [vmem:[%s549 + $0x289] sm:$0xff] %v535
    %601 = vst [vmem:[%s549 + $0x291] sm:$0xff] %v536
    %602 = vst [vmem:[%s549 + $0x2a1] sm:$0xff] %v537
    %603 = vst [vmem:[%s549 + $0x2a9] sm:$0xff] %v538
    %604 = vst [vmem:[%s549 + $0x2b9] sm:$0xff] %v539
    %605 = vst [vmem:[%s549 + $0x2c1] sm:$0xff] %v540
    %606 = vst [vmem:[%s549 + $0x2d1] sm:$0xff] %v541
    %607 = vst [vmem:[%s549 + $0x2d9] sm:$0xff] %v542
    %608 = vst [vmem:[%s549 + $0x2e9] sm:$0xff] %v543
    %609 = vst [vmem:[%s549 + $0x2f1] sm:$0xff] %v544
    %610 = vst [vmem:[%s549 + $0x301] sm:$0xff] %v545
    %611 = vst [vmem:[%s549 + $0x309] sm:$0xff] %v546
    %612 = vst [vmem:[%s549 + $0x319] sm:$0xff] %v547
    %613 = vst [vmem:[%s549 + $0x321] sm:$0xff] %v548
    %v614 = vld [vmem:[#allocation2] ss:$2 sm:$0xff]
    %s615 = scalar_lea.vmem [#allocation2], 48
    %v616 = vld [vmem:[%s615] ss:$2 sm:$0xff]
    %s617 = scalar_lea.vmem [#allocation2], 96
    %v618 = vld [vmem:[%s617] ss:$2 sm:$0xff]
    %s619 = scalar_lea.vmem [#allocation2], 144
    %v620 = vld [vmem:[%s619] ss:$2 sm:$0xff]
    %s621 = scalar_lea.vmem [#allocation2], 192
    %v622 = vld [vmem:[%s621] ss:$2 sm:$0xff]
    %s623 = scalar_lea.vmem [#allocation2], 240
    %v624 = vld [vmem:[%s623] ss:$2 sm:$0xff]
    %s625 = scalar_lea.vmem [#allocation2], 288
    %v626 = vld [vmem:[%s625] ss:$2 sm:$0xff]
    %s627 = scalar_lea.vmem [#allocation2], 336
    %v628 = vld [vmem:[%s627] ss:$2 sm:$0xff]
    %s629 = scalar_lea.vmem [#allocation2], 432
    %v630 = vld [vmem:[%s629] ss:$2 sm:$0xff]
    %s631 = scalar_lea.vmem [#allocation2], 480
    %v632 = vld [vmem:[%s631] ss:$2 sm:$0xff]
    %s633 = scalar_lea.vmem [#allocation2], 528
    %v634 = vld [vmem:[%s633] ss:$2 sm:$0xff]
    %s635 = scalar_lea.vmem [#allocation2], 576
    %v636 = vld [vmem:[%s635] ss:$2 sm:$0xff]
    %s637 = scalar_lea.vmem [#allocation2], 624
    %v638 = vld [vmem:[%s637] ss:$2 sm:$0xff]
    %s639 = scalar_lea.vmem [#allocation2], 672
    %v640 = vld [vmem:[%s639] ss:$2 sm:$0xff]
    %s641 = scalar_lea.vmem [#allocation2], 720
    %v642 = vld [vmem:[%s641] ss:$2 sm:$0xff]
    %s643 = scalar_lea.vmem [#allocation2], 768
    %v644 = vld [vmem:[%s643] ss:$2 sm:$0xff]
    %v645 = vpack.c.bf16 %v616, %v614
    %v646 = vpack.c.bf16 %v620, %v618
    %v647 = vpack.c.bf16 %v624, %v622
    %v648 = vpack.c.bf16 %v628, %v626
    %v649 = vpack.c.bf16 %v632, %v630
    %v650 = vpack.c.bf16 %v636, %v634
    %v651 = vpack.c.bf16 %v640, %v638
    %v652 = vpack.c.bf16 %v644, %v642
    %653 = vst [vmem:[#allocation4] sm:$0xff] %v645
    %654 = vst [vmem:[#allocation4 + $0x48] sm:$0xff] %v646
    %655 = vst [vmem:[#allocation4 + $0x90] sm:$0xff] %v647
    %656 = vst [vmem:[#allocation4 + $0xd8] sm:$0xff] %v648
    %657 = vst [vmem:[#allocation4 + $0x120] sm:$0xff] %v649
    %658 = vst [vmem:[#allocation4 + $0x168] sm:$0xff] %v650
    %659 = vst [vmem:[#allocation4 + $0x1b0] sm:$0xff] %v651
    %660 = vst [vmem:[#allocation4 + $0x1f8] sm:$0xff] %v652
    %s661 = scalar_lea.vmem [#allocation2], 1
    %v662 = vld [vmem:[%s661] ss:$2 sm:$0xff]
    %s663 = scalar_lea.vmem [#allocation2], 49
    %v664 = vld [vmem:[%s663] ss:$2 sm:$0xff]
    %s665 = scalar_lea.vmem [#allocation2], 97
    %v666 = vld [vmem:[%s665] ss:$2 sm:$0xff]
    %s667 = scalar_lea.vmem [#allocation2], 145
    %v668 = vld [vmem:[%s667] ss:$2 sm:$0xff]
    %s669 = scalar_lea.vmem [#allocation2], 193
    %v670 = vld [vmem:[%s669] ss:$2 sm:$0xff]
    %s671 = scalar_lea.vmem [#allocation2], 241
    %v672 = vld [vmem:[%s671] ss:$2 sm:$0xff]
    %s673 = scalar_lea.vmem [#allocation2], 289
    %v674 = vld [vmem:[%s673] ss:$2 sm:$0xff]
    %s675 = scalar_lea.vmem [#allocation2], 337
    %v676 = vld [vmem:[%s675] ss:$2 sm:$0xff]
    %s677 = scalar_lea.vmem [#allocation2], 433
    %v678 = vld [vmem:[%s677] ss:$2 sm:$0xff]
    %s679 = scalar_lea.vmem [#allocation2], 481
    %v680 = vld [vmem:[%s679] ss:$2 sm:$0xff]
    %s681 = scalar_lea.vmem [#allocation2], 529
    %v682 = vld [vmem:[%s681] ss:$2 sm:$0xff]
    %s683 = scalar_lea.vmem [#allocation2], 577
    %v684 = vld [vmem:[%s683] ss:$2 sm:$0xff]
    %s685 = scalar_lea.vmem [#allocation2], 625
    %v686 = vld [vmem:[%s685] ss:$2 sm:$0xff]
    %s687 = scalar_lea.vmem [#allocation2], 673
    %v688 = vld [vmem:[%s687] ss:$2 sm:$0xff]
    %s689 = scalar_lea.vmem [#allocation2], 721
    %v690 = vld [vmem:[%s689] ss:$2 sm:$0xff]
    %s691 = scalar_lea.vmem [#allocation2], 769
    %v692 = vld [vmem:[%s691] ss:$2 sm:$0xff]
    %v693 = vpack.c.bf16 %v664, %v662
    %v694 = vpack.c.bf16 %v668, %v666
    %v695 = vpack.c.bf16 %v672, %v670
    %v696 = vpack.c.bf16 %v676, %v674
    %v697 = vpack.c.bf16 %v680, %v678
    %v698 = vpack.c.bf16 %v684, %v682
    %v699 = vpack.c.bf16 %v688, %v686
    %v700 = vpack.c.bf16 %v692, %v690
    %701 = vst [vmem:[#allocation4 + $0x8] sm:$0xff] %v693
    %702 = vst [vmem:[#allocation4 + $0x50] sm:$0xff] %v694
    %703 = vst [vmem:[#allocation4 + $0x98] sm:$0xff] %v695
    %704 = vst [vmem:[#allocation4 + $0xe0] sm:$0xff] %v696
    %705 = vst [vmem:[#allocation4 + $0x128] sm:$0xff] %v697
    %706 = vst [vmem:[#allocation4 + $0x170] sm:$0xff] %v698
    %707 = vst [vmem:[#allocation4 + $0x1b8] sm:$0xff] %v699
    %708 = vst [vmem:[#allocation4 + $0x200] sm:$0xff] %v700
    %s709 = scalar_lea.vmem [#allocation2], 2
    %v710 = vld [vmem:[%s709] ss:$2 sm:$0xff]
    %s711 = scalar_lea.vmem [#allocation2], 50
    %v712 = vld [vmem:[%s711] ss:$2 sm:$0xff]
    %s713 = scalar_lea.vmem [#allocation2], 98
    %v714 = vld [vmem:[%s713] ss:$2 sm:$0xff]
    %s715 = scalar_lea.vmem [#allocation2], 146
    %v716 = vld [vmem:[%s715] ss:$2 sm:$0xff]
    %s717 = scalar_lea.vmem [#allocation2], 194
    %v718 = vld [vmem:[%s717] ss:$2 sm:$0xff]
    %s719 = scalar_lea.vmem [#allocation2], 242
    %v720 = vld [vmem:[%s719] ss:$2 sm:$0xff]
    %s721 = scalar_lea.vmem [#allocation2], 290
    %v722 = vld [vmem:[%s721] ss:$2 sm:$0xff]
    %s723 = scalar_lea.vmem [#allocation2], 338
    %v724 = vld [vmem:[%s723] ss:$2 sm:$0xff]
    %s725 = scalar_lea.vmem [#allocation2], 434
    %v726 = vld [vmem:[%s725] ss:$2 sm:$0xff]
    %s727 = scalar_lea.vmem [#allocation2], 482
    %v728 = vld [vmem:[%s727] ss:$2 sm:$0xff]
    %s729 = scalar_lea.vmem [#allocation2], 530
    %v730 = vld [vmem:[%s729] ss:$2 sm:$0xff]
    %s731 = scalar_lea.vmem [#allocation2], 578
    %v732 = vld [vmem:[%s731] ss:$2 sm:$0xff]
    %s733 = scalar_lea.vmem [#allocation2], 626
    %v734 = vld [vmem:[%s733] ss:$2 sm:$0xff]
    %s735 = scalar_lea.vmem [#allocation2], 674
    %v736 = vld [vmem:[%s735] ss:$2 sm:$0xff]
    %s737 = scalar_lea.vmem [#allocation2], 722
    %v738 = vld [vmem:[%s737] ss:$2 sm:$0xff]
    %s739 = scalar_lea.vmem [#allocation2], 770
    %v740 = vld [vmem:[%s739] ss:$2 sm:$0xff]
    %v741 = vpack.c.bf16 %v712, %v710
    %v742 = vpack.c.bf16 %v716, %v714
    %v743 = vpack.c.bf16 %v720, %v718
    %v744 = vpack.c.bf16 %v724, %v722
    %v745 = vpack.c.bf16 %v728, %v726
    %v746 = vpack.c.bf16 %v732, %v730
    %v747 = vpack.c.bf16 %v736, %v734
    %v748 = vpack.c.bf16 %v740, %v738
    %749 = vst [vmem:[#allocation4 + $0x10] sm:$0xff] %v741
    %750 = vst [vmem:[#allocation4 + $0x58] sm:$0xff] %v742
    %751 = vst [vmem:[#allocation4 + $0xa0] sm:$0xff] %v743
    %752 = vst [vmem:[#allocation4 + $0xe8] sm:$0xff] %v744
    %753 = vst [vmem:[#allocation4 + $0x130] sm:$0xff] %v745
    %754 = vst [vmem:[#allocation4 + $0x178] sm:$0xff] %v746
    %755 = vst [vmem:[#allocation4 + $0x1c0] sm:$0xff] %v747
    %756 = vst [vmem:[#allocation4 + $0x208] sm:$0xff] %v748
    %v757 = vld [vmem:[%s549] ss:$2 sm:$0xff]
    %s758 = scalar_lea.vmem %s549, 48 [#allocation2]
    %v759 = vld [vmem:[%s758] ss:$2 sm:$0xff]
    %s760 = scalar_lea.vmem %s549, 96 [#allocation2]
    %v761 = vld [vmem:[%s760] ss:$2 sm:$0xff]
    %s762 = scalar_lea.vmem %s549, 144 [#allocation2]
    %v763 = vld [vmem:[%s762] ss:$2 sm:$0xff]
    %s764 = scalar_lea.vmem %s549, 192 [#allocation2]
    %v765 = vld [vmem:[%s764] ss:$2 sm:$0xff]
    %s766 = scalar_lea.vmem %s549, 240 [#allocation2]
    %v767 = vld [vmem:[%s766] ss:$2 sm:$0xff]
    %s768 = scalar_lea.vmem %s549, 288 [#allocation2]
    %v769 = vld [vmem:[%s768] ss:$2 sm:$0xff]
    %s770 = scalar_lea.vmem %s549, 336 [#allocation2]
    %v771 = vld [vmem:[%s770] ss:$2 sm:$0xff]
    %s772 = scalar_lea.vmem %s549, 432 [#allocation2]
    %v773 = vld [vmem:[%s772] ss:$2 sm:$0xff]
    %s774 = scalar_lea.vmem %s549, 480 [#allocation2]
    %v775 = vld [vmem:[%s774] ss:$2 sm:$0xff]
    %s776 = scalar_lea.vmem %s549, 528 [#allocation2]
    %v777 = vld [vmem:[%s776] ss:$2 sm:$0xff]
    %s778 = scalar_lea.vmem %s549, 576 [#allocation2]
    %v779 = vld [vmem:[%s778] ss:$2 sm:$0xff]
    %s780 = scalar_lea.vmem %s549, 624 [#allocation2]
    %v781 = vld [vmem:[%s780] ss:$2 sm:$0xff]
    %s782 = scalar_lea.vmem %s549, 672 [#allocation2]
    %v783 = vld [vmem:[%s782] ss:$2 sm:$0xff]
    %s784 = scalar_lea.vmem %s549, 720 [#allocation2]
    %v785 = vld [vmem:[%s784] ss:$2 sm:$0xff]
    %s786 = scalar_lea.vmem %s549, 768 [#allocation2]
    %v787 = vld [vmem:[%s786] ss:$2 sm:$0xff]
    %v788 = vpack.c.bf16 %v759, %v757
    %v789 = vpack.c.bf16 %v763, %v761
    %v790 = vpack.c.bf16 %v767, %v765
    %v791 = vpack.c.bf16 %v771, %v769
    %v792 = vpack.c.bf16 %v775, %v773
    %v793 = vpack.c.bf16 %v779, %v777
    %v794 = vpack.c.bf16 %v783, %v781
    %v795 = vpack.c.bf16 %v787, %v785
    %796 = vst [vmem:[#allocation4 + $0x18] sm:$0xff] %v788
    %797 = vst [vmem:[#allocation4 + $0x60] sm:$0xff] %v789
    %798 = vst [vmem:[#allocation4 + $0xa8] sm:$0xff] %v790
    %799 = vst [vmem:[#allocation4 + $0xf0] sm:$0xff] %v791
    %800 = vst [vmem:[#allocation4 + $0x138] sm:$0xff] %v792
    %801 = vst [vmem:[#allocation4 + $0x180] sm:$0xff] %v793
    %802 = vst [vmem:[#allocation4 + $0x1c8] sm:$0xff] %v794
    %803 = vst [vmem:[#allocation4 + $0x210] sm:$0xff] %v795
    %s804 = scalar_lea.vmem %s549, 1 [#allocation2]
    %v805 = vld [vmem:[%s804] ss:$2 sm:$0xff]
    %s806 = scalar_lea.vmem %s549, 49 [#allocation2]
    %v807 = vld [vmem:[%s806] ss:$2 sm:$0xff]
    %s808 = scalar_lea.vmem %s549, 97 [#allocation2]
    %v809 = vld [vmem:[%s808] ss:$2 sm:$0xff]
    %s810 = scalar_lea.vmem %s549, 145 [#allocation2]
    %v811 = vld [vmem:[%s810] ss:$2 sm:$0xff]
    %s812 = scalar_lea.vmem %s549, 193 [#allocation2]
    %v813 = vld [vmem:[%s812] ss:$2 sm:$0xff]
    %s814 = scalar_lea.vmem %s549, 241 [#allocation2]
    %v815 = vld [vmem:[%s814] ss:$2 sm:$0xff]
    %s816 = scalar_lea.vmem %s549, 289 [#allocation2]
    %v817 = vld [vmem:[%s816] ss:$2 sm:$0xff]
    %s818 = scalar_lea.vmem %s549, 337 [#allocation2]
    %v819 = vld [vmem:[%s818] ss:$2 sm:$0xff]
    %s820 = scalar_lea.vmem %s549, 433 [#allocation2]
    %v821 = vld [vmem:[%s820] ss:$2 sm:$0xff]
    %s822 = scalar_lea.vmem %s549, 481 [#allocation2]
    %v823 = vld [vmem:[%s822] ss:$2 sm:$0xff]
    %s824 = scalar_lea.vmem %s549, 529 [#allocation2]
    %v825 = vld [vmem:[%s824] ss:$2 sm:$0xff]
    %s826 = scalar_lea.vmem %s549, 577 [#allocation2]
    %v827 = vld [vmem:[%s826] ss:$2 sm:$0xff]
    %s828 = scalar_lea.vmem %s549, 625 [#allocation2]
    %v829 = vld [vmem:[%s828] ss:$2 sm:$0xff]
    %s830 = scalar_lea.vmem %s549, 673 [#allocation2]
    %v831 = vld [vmem:[%s830] ss:$2 sm:$0xff]
    %s832 = scalar_lea.vmem %s549, 721 [#allocation2]
    %v833 = vld [vmem:[%s832] ss:$2 sm:$0xff]
    %s834 = scalar_lea.vmem %s549, 769 [#allocation2]
    %v835 = vld [vmem:[%s834] ss:$2 sm:$0xff]
    %v836 = vpack.c.bf16 %v807, %v805
    %v837 = vpack.c.bf16 %v811, %v809
    %v838 = vpack.c.bf16 %v815, %v813
    %v839 = vpack.c.bf16 %v819, %v817
    %v840 = vpack.c.bf16 %v823, %v821
    %v841 = vpack.c.bf16 %v827, %v825
    %v842 = vpack.c.bf16 %v831, %v829
    %v843 = vpack.c.bf16 %v835, %v833
    %844 = vst [vmem:[#allocation4 + $0x20] sm:$0xff] %v836
    %845 = vst [vmem:[#allocation4 + $0x68] sm:$0xff] %v837
    %846 = vst [vmem:[#allocation4 + $0xb0] sm:$0xff] %v838
    %847 = vst [vmem:[#allocation4 + $0xf8] sm:$0xff] %v839
    %848 = vst [vmem:[#allocation4 + $0x140] sm:$0xff] %v840
    %849 = vst [vmem:[#allocation4 + $0x188] sm:$0xff] %v841
    %850 = vst [vmem:[#allocation4 + $0x1d0] sm:$0xff] %v842
    %851 = vst [vmem:[#allocation4 + $0x218] sm:$0xff] %v843
    %s852 = scalar_lea.vmem %s549, 2 [#allocation2]
    %v853 = vld [vmem:[%s852] ss:$2 sm:$0xff]
    %s854 = scalar_lea.vmem %s549, 50 [#allocation2]
    %v855 = vld [vmem:[%s854] ss:$2 sm:$0xff]
    %s856 = scalar_lea.vmem %s549, 98 [#allocation2]
    %v857 = vld [vmem:[%s856] ss:$2 sm:$0xff]
    %s858 = scalar_lea.vmem %s549, 146 [#allocation2]
    %v859 = vld [vmem:[%s858] ss:$2 sm:$0xff]
    %s860 = scalar_lea.vmem %s549, 194 [#allocation2]
    %v861 = vld [vmem:[%s860] ss:$2 sm:$0xff]
    %s862 = scalar_lea.vmem %s549, 242 [#allocation2]
    %v863 = vld [vmem:[%s862] ss:$2 sm:$0xff]
    %s864 = scalar_lea.vmem %s549, 290 [#allocation2]
    %v865 = vld [vmem:[%s864] ss:$2 sm:$0xff]
    %s866 = scalar_lea.vmem %s549, 338 [#allocation2]
    %v867 = vld [vmem:[%s866] ss:$2 sm:$0xff]
    %s868 = scalar_lea.vmem %s549, 434 [#allocation2]
    %v869 = vld [vmem:[%s868] ss:$2 sm:$0xff]
    %s870 = scalar_lea.vmem %s549, 482 [#allocation2]
    %v871 = vld [vmem:[%s870] ss:$2 sm:$0xff]
    %s872 = scalar_lea.vmem %s549, 530 [#allocation2]
    %v873 = vld [vmem:[%s872] ss:$2 sm:$0xff]
    %s874 = scalar_lea.vmem %s549, 578 [#allocation2]
    %v875 = vld [vmem:[%s874] ss:$2 sm:$0xff]
    %s876 = scalar_lea.vmem %s549, 626 [#allocation2]
    %v877 = vld [vmem:[%s876] ss:$2 sm:$0xff]
    %s878 = scalar_lea.vmem %s549, 674 [#allocation2]
    %v879 = vld [vmem:[%s878] ss:$2 sm:$0xff]
    %s880 = scalar_lea.vmem %s549, 722 [#allocation2]
    %v881 = vld [vmem:[%s880] ss:$2 sm:$0xff]
    %s882 = scalar_lea.vmem %s549, 770 [#allocation2]
    %v883 = vld [vmem:[%s882] ss:$2 sm:$0xff]
    %v884 = vpack.c.bf16 %v855, %v853
    %v885 = vpack.c.bf16 %v859, %v857
    %v886 = vpack.c.bf16 %v863, %v861
    %v887 = vpack.c.bf16 %v867, %v865
    %v888 = vpack.c.bf16 %v871, %v869
    %v889 = vpack.c.bf16 %v875, %v873
    %v890 = vpack.c.bf16 %v879, %v877
    %v891 = vpack.c.bf16 %v883, %v881
    %892 = vst [vmem:[#allocation4 + $0x28] sm:$0xff] %v884
    %893 = vst [vmem:[#allocation4 + $0x70] sm:$0xff] %v885
    %894 = vst [vmem:[#allocation4 + $0xb8] sm:$0xff] %v886
    %895 = vst [vmem:[#allocation4 + $0x100] sm:$0xff] %v887
    %896 = vst [vmem:[#allocation4 + $0x148] sm:$0xff] %v888
    %897 = vst [vmem:[#allocation4 + $0x190] sm:$0xff] %v889
    %898 = vst [vmem:[#allocation4 + $0x1d8] sm:$0xff] %v890
    %899 = vst [vmem:[#allocation4 + $0x220] sm:$0xff] %v891
    %s900 = scalar_lea.vmem [#allocation2], 48
    %v901 = vld [vmem:[%s900] ss:$2 sm:$0xff]
    %s902 = scalar_lea.vmem %s900, 48 [#allocation2]
    %v903 = vld [vmem:[%s902] ss:$2 sm:$0xff]
    %s904 = scalar_lea.vmem %s900, 96 [#allocation2]
    %v905 = vld [vmem:[%s904] ss:$2 sm:$0xff]
    %s906 = scalar_lea.vmem %s900, 144 [#allocation2]
    %v907 = vld [vmem:[%s906] ss:$2 sm:$0xff]
    %s908 = scalar_lea.vmem %s900, 192 [#allocation2]
    %v909 = vld [vmem:[%s908] ss:$2 sm:$0xff]
    %s910 = scalar_lea.vmem %s900, 240 [#allocation2]
    %v911 = vld [vmem:[%s910] ss:$2 sm:$0xff]
    %s912 = scalar_lea.vmem %s900, 288 [#allocation2]
    %v913 = vld [vmem:[%s912] ss:$2 sm:$0xff]
    %s914 = scalar_lea.vmem %s900, 336 [#allocation2]
    %v915 = vld [vmem:[%s914] ss:$2 sm:$0xff]
    %s916 = scalar_lea.vmem %s900, 432 [#allocation2]
    %v917 = vld [vmem:[%s916] ss:$2 sm:$0xff]
    %s918 = scalar_lea.vmem %s900, 480 [#allocation2]
    %v919 = vld [vmem:[%s918] ss:$2 sm:$0xff]
    %s920 = scalar_lea.vmem %s900, 528 [#allocation2]
    %v921 = vld [vmem:[%s920] ss:$2 sm:$0xff]
    %s922 = scalar_lea.vmem %s900, 576 [#allocation2]
    %v923 = vld [vmem:[%s922] ss:$2 sm:$0xff]
    %s924 = scalar_lea.vmem %s900, 624 [#allocation2]
    %v925 = vld [vmem:[%s924] ss:$2 sm:$0xff]
    %s926 = scalar_lea.vmem %s900, 672 [#allocation2]
    %v927 = vld [vmem:[%s926] ss:$2 sm:$0xff]
    %s928 = scalar_lea.vmem %s900, 720 [#allocation2]
    %v929 = vld [vmem:[%s928] ss:$2 sm:$0xff]
    %s930 = scalar_lea.vmem %s900, 768 [#allocation2]
    %v931 = vld [vmem:[%s930] ss:$2 sm:$0xff]
    %v932 = vpack.c.bf16 %v903, %v901
    %v933 = vpack.c.bf16 %v907, %v905
    %v934 = vpack.c.bf16 %v911, %v909
    %v935 = vpack.c.bf16 %v915, %v913
    %v936 = vpack.c.bf16 %v919, %v917
    %v937 = vpack.c.bf16 %v923, %v921
    %v938 = vpack.c.bf16 %v927, %v925
    %v939 = vpack.c.bf16 %v931, %v929
    %940 = vst [vmem:[#allocation4 + $0x30] sm:$0xff] %v932
    %941 = vst [vmem:[#allocation4 + $0x78] sm:$0xff] %v933
    %942 = vst [vmem:[#allocation4 + $0xc0] sm:$0xff] %v934
    %943 = vst [vmem:[#allocation4 + $0x108] sm:$0xff] %v935
    %944 = vst [vmem:[#allocation4 + $0x150] sm:$0xff] %v936
    %945 = vst [vmem:[#allocation4 + $0x198] sm:$0xff] %v937
    %946 = vst [vmem:[#allocation4 + $0x1e0] sm:$0xff] %v938
    %947 = vst [vmem:[#allocation4 + $0x228] sm:$0xff] %v939
    %s948 = scalar_lea.vmem %s900, 1 [#allocation2]
    %v949 = vld [vmem:[%s948] ss:$2 sm:$0xff]
    %s950 = scalar_lea.vmem %s900, 49 [#allocation2]
    %v951 = vld [vmem:[%s950] ss:$2 sm:$0xff]
    %s952 = scalar_lea.vmem %s900, 97 [#allocation2]
    %v953 = vld [vmem:[%s952] ss:$2 sm:$0xff]
    %s954 = scalar_lea.vmem %s900, 145 [#allocation2]
    %v955 = vld [vmem:[%s954] ss:$2 sm:$0xff]
    %s956 = scalar_lea.vmem %s900, 193 [#allocation2]
    %v957 = vld [vmem:[%s956] ss:$2 sm:$0xff]
    %s958 = scalar_lea.vmem %s900, 241 [#allocation2]
    %v959 = vld [vmem:[%s958] ss:$2 sm:$0xff]
    %s960 = scalar_lea.vmem %s900, 289 [#allocation2]
    %v961 = vld [vmem:[%s960] ss:$2 sm:$0xff]
    %s962 = scalar_lea.vmem %s900, 337 [#allocation2]
    %v963 = vld [vmem:[%s962] ss:$2 sm:$0xff]
    %s964 = scalar_lea.vmem %s900, 433 [#allocation2]
    %v965 = vld [vmem:[%s964] ss:$2 sm:$0xff]
    %s966 = scalar_lea.vmem %s900, 481 [#allocation2]
    %v967 = vld [vmem:[%s966] ss:$2 sm:$0xff]
    %s968 = scalar_lea.vmem %s900, 529 [#allocation2]
    %v969 = vld [vmem:[%s968] ss:$2 sm:$0xff]
    %s970 = scalar_lea.vmem %s900, 577 [#allocation2]
    %v971 = vld [vmem:[%s970] ss:$2 sm:$0xff]
    %s972 = scalar_lea.vmem %s900, 625 [#allocation2]
    %v973 = vld [vmem:[%s972] ss:$2 sm:$0xff]
    %s974 = scalar_lea.vmem %s900, 673 [#allocation2]
    %v975 = vld [vmem:[%s974] ss:$2 sm:$0xff]
    %s976 = scalar_lea.vmem %s900, 721 [#allocation2]
    %v977 = vld [vmem:[%s976] ss:$2 sm:$0xff]
    %s978 = scalar_lea.vmem %s900, 769 [#allocation2]
    %v979 = vld [vmem:[%s978] ss:$2 sm:$0xff]
    %v980 = vpack.c.bf16 %v951, %v949
    %v981 = vpack.c.bf16 %v955, %v953
    %v982 = vpack.c.bf16 %v959, %v957
    %v983 = vpack.c.bf16 %v963, %v961
    %v984 = vpack.c.bf16 %v967, %v965
    %v985 = vpack.c.bf16 %v971, %v969
    %v986 = vpack.c.bf16 %v975, %v973
    %v987 = vpack.c.bf16 %v979, %v977
    %988 = vst [vmem:[#allocation4 + $0x38] sm:$0xff] %v980
    %989 = vst [vmem:[#allocation4 + $0x80] sm:$0xff] %v981
    %990 = vst [vmem:[#allocation4 + $0xc8] sm:$0xff] %v982
    %991 = vst [vmem:[#allocation4 + $0x110] sm:$0xff] %v983
    %992 = vst [vmem:[#allocation4 + $0x158] sm:$0xff] %v984
    %993 = vst [vmem:[#allocation4 + $0x1a0] sm:$0xff] %v985
    %994 = vst [vmem:[#allocation4 + $0x1e8] sm:$0xff] %v986
    %995 = vst [vmem:[#allocation4 + $0x230] sm:$0xff] %v987
    %s996 = scalar_lea.vmem %s900, 2 [#allocation2]
    %v997 = vld [vmem:[%s996] ss:$2 sm:$0xff]
    %s998 = scalar_lea.vmem %s900, 50 [#allocation2]
    %v999 = vld [vmem:[%s998] ss:$2 sm:$0xff]
    %s1000 = scalar_lea.vmem %s900, 98 [#allocation2]
    %v1001 = vld [vmem:[%s1000] ss:$2 sm:$0xff]
    %s1002 = scalar_lea.vmem %s900, 146 [#allocation2]
    %v1003 = vld [vmem:[%s1002] ss:$2 sm:$0xff]
    %s1004 = scalar_lea.vmem %s900, 194 [#allocation2]
    %v1005 = vld [vmem:[%s1004] ss:$2 sm:$0xff]
    %s1006 = scalar_lea.vmem %s900, 242 [#allocation2]
    %v1007 = vld [vmem:[%s1006] ss:$2 sm:$0xff]
    %s1008 = scalar_lea.vmem %s900, 290 [#allocation2]
    %v1009 = vld [vmem:[%s1008] ss:$2 sm:$0xff]
    %s1010 = scalar_lea.vmem %s900, 338 [#allocation2]
    %v1011 = vld [vmem:[%s1010] ss:$2 sm:$0xff]
    %s1012 = scalar_lea.vmem %s900, 434 [#allocation2]
    %v1013 = vld [vmem:[%s1012] ss:$2 sm:$0xff]
    %s1014 = scalar_lea.vmem %s900, 482 [#allocation2]
    %v1015 = vld [vmem:[%s1014] ss:$2 sm:$0xff]
    %s1016 = scalar_lea.vmem %s900, 530 [#allocation2]
    %v1017 = vld [vmem:[%s1016] ss:$2 sm:$0xff]
    %s1018 = scalar_lea.vmem %s900, 578 [#allocation2]
    %v1019 = vld [vmem:[%s1018] ss:$2 sm:$0xff]
    %s1020 = scalar_lea.vmem %s900, 626 [#allocation2]
    %v1021 = vld [vmem:[%s1020] ss:$2 sm:$0xff]
    %s1022 = scalar_lea.vmem %s900, 674 [#allocation2]
    %v1023 = vld [vmem:[%s1022] ss:$2 sm:$0xff]
    %s1024 = scalar_lea.vmem %s900, 722 [#allocation2]
    %v1025 = vld [vmem:[%s1024] ss:$2 sm:$0xff]
    %s1026 = scalar_lea.vmem %s900, 770 [#allocation2]
    %v1027 = vld [vmem:[%s1026] ss:$2 sm:$0xff]
    %v1028 = vpack.c.bf16 %v999, %v997
    %v1029 = vpack.c.bf16 %v1003, %v1001
    %v1030 = vpack.c.bf16 %v1007, %v1005
    %v1031 = vpack.c.bf16 %v1011, %v1009
    %v1032 = vpack.c.bf16 %v1015, %v1013
    %v1033 = vpack.c.bf16 %v1019, %v1017
    %v1034 = vpack.c.bf16 %v1023, %v1021
    %v1035 = vpack.c.bf16 %v1027, %v1025
    %1036 = vst [vmem:[#allocation4 + $0x40] sm:$0xff] %v1028
    %1037 = vst [vmem:[#allocation4 + $0x88] sm:$0xff] %v1029
    %1038 = vst [vmem:[#allocation4 + $0xd0] sm:$0xff] %v1030
    %1039 = vst [vmem:[#allocation4 + $0x118] sm:$0xff] %v1031
    %1040 = vst [vmem:[#allocation4 + $0x160] sm:$0xff] %v1032
    %1041 = vst [vmem:[#allocation4 + $0x1a8] sm:$0xff] %v1033
    %1042 = vst [vmem:[#allocation4 + $0x1f0] sm:$0xff] %v1034
    %1043 = vst [vmem:[#allocation4 + $0x238] sm:$0xff] %v1035
    %v1044 = vld [vmem:[#allocation4] sm:$0xff]
    %v1045 = vld [vmem:[#allocation4 + $0x8] sm:$0xff]
    %v1046 = vld [vmem:[#allocation4 + $0x10] sm:$0xff]
    %v1047 = vld [vmem:[#allocation4 + $0x18] sm:$0xff]
    %v1048 = vld [vmem:[#allocation4 + $0x20] sm:$0xff]
    %v1049 = vld [vmem:[#allocation4 + $0x28] sm:$0xff]
    %v1050 = vld [vmem:[#allocation4 + $0x30] sm:$0xff]
    %v1051 = vld [vmem:[#allocation4 + $0x38] sm:$0xff]
    %v1052 = vld [vmem:[#allocation4 + $0x40] sm:$0xff]
    %v1053 = vld [vmem:[#allocation4 + $0x48] sm:$0xff]
    %v1054 = vld [vmem:[#allocation4 + $0x50] sm:$0xff]
    %v1055 = vld [vmem:[#allocation4 + $0x58] sm:$0xff]
    %v1056 = vld [vmem:[#allocation4 + $0x60] sm:$0xff]
    %v1057 = vld [vmem:[#allocation4 + $0x68] sm:$0xff]
    %v1058 = vld [vmem:[#allocation4 + $0x70] sm:$0xff]
    %v1059 = vld [vmem:[#allocation4 + $0x78] sm:$0xff]
    %v1060 = vld [vmem:[#allocation4 + $0x80] sm:$0xff]
    %v1061 = vld [vmem:[#allocation4 + $0x88] sm:$0xff]
    %v1062 = vld [vmem:[#allocation4 + $0x90] sm:$0xff]
    %v1063 = vld [vmem:[#allocation4 + $0x98] sm:$0xff]
    %v1064 = vld [vmem:[#allocation4 + $0xa0] sm:$0xff]
    %v1065 = vld [vmem:[#allocation4 + $0xa8] sm:$0xff]
    %v1066 = vld [vmem:[#allocation4 + $0xb0] sm:$0xff]
    %v1067 = vld [vmem:[#allocation4 + $0xb8] sm:$0xff]
    %v1068 = vld [vmem:[#allocation4 + $0xc0] sm:$0xff]
    %v1069 = vld [vmem:[#allocation4 + $0xc8] sm:$0xff]
    %v1070 = vld [vmem:[#allocation4 + $0xd0] sm:$0xff]
    %v1071 = vld [vmem:[#allocation4 + $0xd8] sm:$0xff]
    %v1072 = vld [vmem:[#allocation4 + $0xe0] sm:$0xff]
    %v1073 = vld [vmem:[#allocation4 + $0xe8] sm:$0xff]
    %v1074 = vld [vmem:[#allocation4 + $0xf0] sm:$0xff]
    %v1075 = vld [vmem:[#allocation4 + $0xf8] sm:$0xff]
    %v1076 = vld [vmem:[#allocation4 + $0x100] sm:$0xff]
    %v1077 = vld [vmem:[#allocation4 + $0x108] sm:$0xff]
    %v1078 = vld [vmem:[#allocation4 + $0x110] sm:$0xff]
    %v1079 = vld [vmem:[#allocation4 + $0x118] sm:$0xff]
    %v1080 = vld [vmem:[#allocation4 + $0x120] sm:$0xff]
    %v1081 = vld [vmem:[#allocation4 + $0x128] sm:$0xff]
    %v1082 = vld [vmem:[#allocation4 + $0x130] sm:$0xff]
    %v1083 = vld [vmem:[#allocation4 + $0x138] sm:$0xff]
    %v1084 = vld [vmem:[#allocation4 + $0x140] sm:$0xff]
    %v1085 = vld [vmem:[#allocation4 + $0x148] sm:$0xff]
    %v1086 = vld [vmem:[#allocation4 + $0x150] sm:$0xff]
    %v1087 = vld [vmem:[#allocation4 + $0x158] sm:$0xff]
    %v1088 = vld [vmem:[#allocation4 + $0x160] sm:$0xff]
    %v1089 = vld [vmem:[#allocation4 + $0x168] sm:$0xff]
    %v1090 = vld [vmem:[#allocation4 + $0x170] sm:$0xff]
    %v1091 = vld [vmem:[#allocation4 + $0x178] sm:$0xff]
    %v1092 = vld [vmem:[#allocation4 + $0x180] sm:$0xff]
    %v1093 = vld [vmem:[#allocation4 + $0x188] sm:$0xff]
    %v1094 = vld [vmem:[#allocation4 + $0x190] sm:$0xff]
    %v1095 = vld [vmem:[#allocation4 + $0x198] sm:$0xff]
    %v1096 = vld [vmem:[#allocation4 + $0x1a0] sm:$0xff]
    %v1097 = vld [vmem:[#allocation4 + $0x1a8] sm:$0xff]
    %v1098 = vld [vmem:[#allocation4 + $0x1b0] sm:$0xff]
    %v1099 = vld [vmem:[#allocation4 + $0x1b8] sm:$0xff]
    %v1100 = vld [vmem:[#allocation4 + $0x1c0] sm:$0xff]
    %v1101 = vld [vmem:[#allocation4 + $0x1c8] sm:$0xff]
    %v1102 = vld [vmem:[#allocation4 + $0x1d0] sm:$0xff]
    %v1103 = vld [vmem:[#allocation4 + $0x1d8] sm:$0xff]
    %v1104 = vld [vmem:[#allocation4 + $0x1e0] sm:$0xff]
    %v1105 = vld [vmem:[#allocation4 + $0x1e8] sm:$0xff]
    %v1106 = vld [vmem:[#allocation4 + $0x1f0] sm:$0xff]
    %v1107 = vld [vmem:[#allocation4 + $0x1f8] sm:$0xff]
    %v1108 = vld [vmem:[#allocation4 + $0x200] sm:$0xff]
    %v1109 = vld [vmem:[#allocation4 + $0x208] sm:$0xff]
    %v1110 = vld [vmem:[#allocation4 + $0x210] sm:$0xff]
    %v1111 = vld [vmem:[#allocation4 + $0x218] sm:$0xff]
    %v1112 = vld [vmem:[#allocation4 + $0x220] sm:$0xff]
    %v1113 = vld [vmem:[#allocation4 + $0x228] sm:$0xff]
    %v1114 = vld [vmem:[#allocation4 + $0x230] sm:$0xff]
    %v1115 = vld [vmem:[#allocation4 + $0x238] sm:$0xff]
    %v1116 = vld [vmem:[#allocation8] sm:$0xf]
    %v1117 = vld [vmem:[#allocation8 + $0x4] sm:$0xf]
    %v1118 = vld [vmem:[#allocation8 + $0x8] sm:$0xf]
    %v1119 = vld [vmem:[#allocation8 + $0xc] sm:$0xf]
    %v1120 = vld [vmem:[#allocation8 + $0x10] sm:$0xf]
    %v1121 = vld [vmem:[#allocation8 + $0x14] sm:$0xf]
    %v1122 = vld [vmem:[#allocation8 + $0x18] sm:$0xf]
    %v1123 = vld [vmem:[#allocation8 + $0x1c] sm:$0xf]
    %v1124 = vld [vmem:[#allocation8 + $0x20] sm:$0xf]
    %v1125 = vld [vmem:[#allocation8 + $0x24] sm:$0xf]
    %v1126 = vld [vmem:[#allocation8 + $0x28] sm:$0xf]
    %v1127 = vld [vmem:[#allocation8 + $0x2c] sm:$0xf]
    %v1128 = vld [vmem:[#allocation8 + $0x30] sm:$0xf]
    %v1129 = vld [vmem:[#allocation8 + $0x34] sm:$0xf]
    %v1130 = vld [vmem:[#allocation8 + $0x38] sm:$0xf]
    %v1131 = vld [vmem:[#allocation8 + $0x3c] sm:$0xf]
    %v1132 = vld [vmem:[#allocation8 + $0x40] sm:$0xf]
    %v1133 = vld [vmem:[#allocation8 + $0x44] sm:$0xf]
    %v1134 = vld [vmem:[#allocation8 + $0x48] sm:$0xf]
    %v1135 = vld [vmem:[#allocation8 + $0x4c] sm:$0xf]
    %v1136 = vld [vmem:[#allocation8 + $0x50] sm:$0xf]
    %v1137 = vld [vmem:[#allocation8 + $0x54] sm:$0xf]
    %v1138 = vld [vmem:[#allocation8 + $0x58] sm:$0xf]
    %v1139 = vld [vmem:[#allocation8 + $0x5c] sm:$0xf]
    %v1140 = vld [vmem:[#allocation8 + $0x60] sm:$0xf]
    %v1141 = vld [vmem:[#allocation8 + $0x64] sm:$0xf]
    %v1142 = vld [vmem:[#allocation8 + $0x68] sm:$0xf]
    %v1143 = vld [vmem:[#allocation8 + $0x6c] sm:$0xf]
    %v1144 = vld [vmem:[#allocation8 + $0x70] sm:$0xf]
    %v1145 = vld [vmem:[#allocation8 + $0x74] sm:$0xf]
    %v1146 = vld [vmem:[#allocation8 + $0x78] sm:$0xf]
    %v1147 = vld [vmem:[#allocation8 + $0x7c] sm:$0xf]
    %v1148 = vld [vmem:[#allocation8 + $0x80] sm:$0xf]
    %v1149 = vld [vmem:[#allocation8 + $0x84] sm:$0xf]
    %v1150 = vld [vmem:[#allocation8 + $0x88] sm:$0xf]
    %v1151 = vld [vmem:[#allocation8 + $0x8c] sm:$0xf]
    %v1152 = vld [vmem:[#allocation8 + $0x90] sm:$0xf]
    %v1153 = vld [vmem:[#allocation8 + $0x94] sm:$0xf]
    %v1154 = vld [vmem:[#allocation8 + $0x98] sm:$0xf]
    %v1155 = vld [vmem:[#allocation8 + $0x9c] sm:$0xf]
    %v1156 = vld [vmem:[#allocation8 + $0xa0] sm:$0xf]
    %v1157 = vld [vmem:[#allocation8 + $0xa4] sm:$0xf]
    %v1158 = vld [vmem:[#allocation8 + $0xa8] sm:$0xf]
    %v1159 = vld [vmem:[#allocation8 + $0xac] sm:$0xf]
    %v1160 = vld [vmem:[#allocation8 + $0xb0] sm:$0xf]
    %v1161 = vld [vmem:[#allocation8 + $0xb4] sm:$0xf]
    %v1162 = vld [vmem:[#allocation8 + $0xb8] sm:$0xf]
    %v1163 = vld [vmem:[#allocation8 + $0xbc] sm:$0xf]
    %v1164 = vld [vmem:[#allocation8 + $0xc0] sm:$0xf]
    %v1165 = vld [vmem:[#allocation8 + $0xc4] sm:$0xf]
    %v1166 = vld [vmem:[#allocation8 + $0xc8] sm:$0xf]
    %v1167 = vld [vmem:[#allocation8 + $0xcc] sm:$0xf]
    %v1168 = vld [vmem:[#allocation8 + $0xd0] sm:$0xf]
    %v1169 = vld [vmem:[#allocation8 + $0xd4] sm:$0xf]
    %v1170 = vld [vmem:[#allocation8 + $0xd8] sm:$0xf]
    %v1171 = vld [vmem:[#allocation8 + $0xdc] sm:$0xf]
    %v1172 = vld [vmem:[#allocation8 + $0xe0] sm:$0xf]
    %v1173 = vld [vmem:[#allocation8 + $0xe4] sm:$0xf]
    %v1174 = vld [vmem:[#allocation8 + $0xe8] sm:$0xf]
    %v1175 = vld [vmem:[#allocation8 + $0xec] sm:$0xf]
    %v1176 = vld [vmem:[#allocation8 + $0xf0] sm:$0xf]
    %v1177 = vld [vmem:[#allocation8 + $0xf4] sm:$0xf]
    %v1178 = vld [vmem:[#allocation8 + $0xf8] sm:$0xf]
    %v1179 = vld [vmem:[#allocation8 + $0xfc] sm:$0xf]
    %v1180 = vld [vmem:[#allocation8 + $0x100] sm:$0xf]
    %v1181 = vld [vmem:[#allocation8 + $0x104] sm:$0xf]
    %v1182 = vld [vmem:[#allocation8 + $0x108] sm:$0xf]
    %v1183 = vld [vmem:[#allocation8 + $0x10c] sm:$0xf]
    %v1184 = vld [vmem:[#allocation8 + $0x110] sm:$0xf]
    %v1185 = vld [vmem:[#allocation8 + $0x114] sm:$0xf]
    %v1186 = vld [vmem:[#allocation8 + $0x118] sm:$0xf]
    %v1187 = vld [vmem:[#allocation8 + $0x11c] sm:$0xf]
    %v1188 = vld [vmem:[#allocation8 + $0x120] sm:$0xf]
    %v1189 = vld [vmem:[#allocation8 + $0x124] sm:$0xf]
    %v1190 = vld [vmem:[#allocation8 + $0x128] sm:$0xf]
    %v1191 = vld [vmem:[#allocation8 + $0x12c] sm:$0xf]
    %v1192 = vld [vmem:[#allocation8 + $0x130] sm:$0xf]
    %v1193 = vld [vmem:[#allocation8 + $0x134] sm:$0xf]
    %v1194 = vld [vmem:[#allocation8 + $0x138] sm:$0xf]
    %v1195 = vld [vmem:[#allocation8 + $0x13c] sm:$0xf]
    %v1196 = vld [vmem:[#allocation8 + $0x140] sm:$0xf]
    %v1197 = vld [vmem:[#allocation8 + $0x144] sm:$0xf]
    %v1198 = vld [vmem:[#allocation8 + $0x148] sm:$0xf]
    %v1199 = vld [vmem:[#allocation8 + $0x14c] sm:$0xf]
    %v1200 = vld [vmem:[#allocation8 + $0x150] sm:$0xf]
    %v1201 = vld [vmem:[#allocation8 + $0x154] sm:$0xf]
    %v1202 = vld [vmem:[#allocation8 + $0x158] sm:$0xf]
    %v1203 = vld [vmem:[#allocation8 + $0x15c] sm:$0xf]
    %v1204 = vld [vmem:[#allocation8 + $0x160] sm:$0xf]
    %v1205 = vld [vmem:[#allocation8 + $0x164] sm:$0xf]
    %v1206 = vld [vmem:[#allocation8 + $0x168] sm:$0xf]
    %v1207 = vld [vmem:[#allocation8 + $0x16c] sm:$0xf]
    %v1208 = vld [vmem:[#allocation8 + $0x170] sm:$0xf]
    %v1209 = vld [vmem:[#allocation8 + $0x174] sm:$0xf]
    %v1210 = vld [vmem:[#allocation8 + $0x178] sm:$0xf]
    %v1211 = vld [vmem:[#allocation8 + $0x17c] sm:$0xf]
    %v1212 = vld [vmem:[#allocation8 + $0x180] sm:$0xf]
    %v1213 = vld [vmem:[#allocation8 + $0x184] sm:$0xf]
    %v1214 = vld [vmem:[#allocation8 + $0x188] sm:$0xf]
    %v1215 = vld [vmem:[#allocation8 + $0x18c] sm:$0xf]
    %v1216 = vld [vmem:[#allocation8 + $0x190] sm:$0xf]
    %v1217 = vld [vmem:[#allocation8 + $0x194] sm:$0xf]
    %v1218 = vld [vmem:[#allocation8 + $0x198] sm:$0xf]
    %v1219 = vld [vmem:[#allocation8 + $0x19c] sm:$0xf]
    %v1220 = vld [vmem:[#allocation8 + $0x1a0] sm:$0xf]
    %v1221 = vld [vmem:[#allocation8 + $0x1a4] sm:$0xf]
    %v1222 = vld [vmem:[#allocation8 + $0x1a8] sm:$0xf]
    %v1223 = vld [vmem:[#allocation8 + $0x1ac] sm:$0xf]
    %v1224 = vld [vmem:[#allocation8 + $0x1b0] sm:$0xf]
    %v1225 = vld [vmem:[#allocation8 + $0x1b4] sm:$0xf]
    %v1226 = vld [vmem:[#allocation8 + $0x1b8] sm:$0xf]
    %v1227 = vld [vmem:[#allocation8 + $0x1bc] sm:$0xf]
    %v1228 = vld [vmem:[#allocation8 + $0x1c0] sm:$0xf]
    %v1229 = vld [vmem:[#allocation8 + $0x1c4] sm:$0xf]
    %v1230 = vld [vmem:[#allocation8 + $0x1c8] sm:$0xf]
    %v1231 = vld [vmem:[#allocation8 + $0x1cc] sm:$0xf]
    %v1232 = vld [vmem:[#allocation8 + $0x1d0] sm:$0xf]
    %v1233 = vld [vmem:[#allocation8 + $0x1d4] sm:$0xf]
    %v1234 = vld [vmem:[#allocation8 + $0x1d8] sm:$0xf]
    %v1235 = vld [vmem:[#allocation8 + $0x1dc] sm:$0xf]
    %v1236 = vld [vmem:[#allocation8 + $0x1e0] sm:$0xf]
    %v1237 = vld [vmem:[#allocation8 + $0x1e4] sm:$0xf]
    %v1238 = vld [vmem:[#allocation8 + $0x1e8] sm:$0xf]
    %v1239 = vld [vmem:[#allocation8 + $0x1ec] sm:$0xf]
    %v1240 = vld [vmem:[#allocation8 + $0x1f0] sm:$0xf]
    %v1241 = vld [vmem:[#allocation8 + $0x1f4] sm:$0xf]
    %v1242 = vld [vmem:[#allocation8 + $0x1f8] sm:$0xf]
    %v1243 = vld [vmem:[#allocation8 + $0x1fc] sm:$0xf]
    %v1244 = vld [vmem:[#allocation8 + $0x200] sm:$0xf]
    %v1245 = vld [vmem:[#allocation8 + $0x204] sm:$0xf]
    %v1246 = vld [vmem:[#allocation8 + $0x208] sm:$0xf]
    %v1247 = vld [vmem:[#allocation8 + $0x20c] sm:$0xf]
    %v1248 = vld [vmem:[#allocation8 + $0x210] sm:$0xf]
    %v1249 = vld [vmem:[#allocation8 + $0x214] sm:$0xf]
    %v1250 = vld [vmem:[#allocation8 + $0x218] sm:$0xf]
    %v1251 = vld [vmem:[#allocation8 + $0x21c] sm:$0xf]
    %v1252 = vld [vmem:[#allocation8 + $0x220] sm:$0xf]
    %v1253 = vld [vmem:[#allocation8 + $0x224] sm:$0xf]
    %v1254 = vld [vmem:[#allocation8 + $0x228] sm:$0xf]
    %v1255 = vld [vmem:[#allocation8 + $0x22c] sm:$0xf]
    %v1256 = vld [vmem:[#allocation8 + $0x230] sm:$0xf]
    %v1257 = vld [vmem:[#allocation8 + $0x234] sm:$0xf]
    %v1258 = vld [vmem:[#allocation8 + $0x238] sm:$0xf]
    %v1259 = vld [vmem:[#allocation8 + $0x23c] sm:$0xf]
    %v1404 = vunpack.c.l.b16 %v1116
    %v1405 = vunpack.c.l.b16 %v1117
    %v1406 = vunpack.c.l.b16 %v1118
    %v1407 = vunpack.c.l.b16 %v1119
    %v1408 = vunpack.c.l.b16 %v1120
    %v1409 = vunpack.c.l.b16 %v1121
    %v1410 = vunpack.c.l.b16 %v1122
    %v1411 = vunpack.c.l.b16 %v1123
    %v1412 = vunpack.c.l.b16 %v1124
    %v1413 = vunpack.c.l.b16 %v1125
    %v1414 = vunpack.c.l.b16 %v1126
    %v1415 = vunpack.c.l.b16 %v1127
    %v1416 = vunpack.c.l.b16 %v1128
    %v1417 = vunpack.c.l.b16 %v1129
    %v1418 = vunpack.c.l.b16 %v1130
    %v1419 = vunpack.c.l.b16 %v1131
    %v1420 = vunpack.c.l.b16 %v1132
    %v1421 = vunpack.c.l.b16 %v1133
    %v1422 = vunpack.c.l.b16 %v1134
    %v1423 = vunpack.c.l.b16 %v1135
    %v1424 = vunpack.c.l.b16 %v1136
    %v1425 = vunpack.c.l.b16 %v1137
    %v1426 = vunpack.c.l.b16 %v1138
    %v1427 = vunpack.c.l.b16 %v1139
    %v1428 = vunpack.c.l.b16 %v1140
    %v1429 = vunpack.c.l.b16 %v1141
    %v1430 = vunpack.c.l.b16 %v1142
    %v1431 = vunpack.c.l.b16 %v1143
    %v1432 = vunpack.c.l.b16 %v1144
    %v1433 = vunpack.c.l.b16 %v1145
    %v1434 = vunpack.c.l.b16 %v1146
    %v1435 = vunpack.c.l.b16 %v1147
    %v1436 = vunpack.c.l.b16 %v1148
    %v1437 = vunpack.c.l.b16 %v1149
    %v1438 = vunpack.c.l.b16 %v1150
    %v1439 = vunpack.c.l.b16 %v1151
    %v1440 = vunpack.c.l.b16 %v1152
    %v1441 = vunpack.c.l.b16 %v1153
    %v1442 = vunpack.c.l.b16 %v1154
    %v1443 = vunpack.c.l.b16 %v1155
    %v1444 = vunpack.c.l.b16 %v1156
    %v1445 = vunpack.c.l.b16 %v1157
    %v1446 = vunpack.c.l.b16 %v1158
    %v1447 = vunpack.c.l.b16 %v1159
    %v1448 = vunpack.c.l.b16 %v1160
    %v1449 = vunpack.c.l.b16 %v1161
    %v1450 = vunpack.c.l.b16 %v1162
    %v1451 = vunpack.c.l.b16 %v1163
    %v1452 = vunpack.c.l.b16 %v1164
    %v1453 = vunpack.c.l.b16 %v1165
    %v1454 = vunpack.c.l.b16 %v1166
    %v1455 = vunpack.c.l.b16 %v1167
    %v1456 = vunpack.c.l.b16 %v1168
    %v1457 = vunpack.c.l.b16 %v1169
    %v1458 = vunpack.c.l.b16 %v1170
    %v1459 = vunpack.c.l.b16 %v1171
    %v1460 = vunpack.c.l.b16 %v1172
    %v1461 = vunpack.c.l.b16 %v1173
    %v1462 = vunpack.c.l.b16 %v1174
    %v1463 = vunpack.c.l.b16 %v1175
    %v1464 = vunpack.c.l.b16 %v1176
    %v1465 = vunpack.c.l.b16 %v1177
    %v1466 = vunpack.c.l.b16 %v1178
    %v1467 = vunpack.c.l.b16 %v1179
    %v1468 = vunpack.c.l.b16 %v1180
    %v1469 = vunpack.c.l.b16 %v1181
    %v1470 = vunpack.c.l.b16 %v1182
    %v1471 = vunpack.c.l.b16 %v1183
    %v1472 = vunpack.c.l.b16 %v1184
    %v1473 = vunpack.c.l.b16 %v1185
    %v1474 = vunpack.c.l.b16 %v1186
    %v1475 = vunpack.c.l.b16 %v1187
    %v1476 = vunpack.c.l.b16 %v1188
    %v1477 = vunpack.c.l.b16 %v1189
    %v1478 = vunpack.c.l.b16 %v1190
    %v1479 = vunpack.c.l.b16 %v1191
    %v1480 = vunpack.c.l.b16 %v1192
    %v1481 = vunpack.c.l.b16 %v1193
    %v1482 = vunpack.c.l.b16 %v1194
    %v1483 = vunpack.c.l.b16 %v1195
    %v1484 = vunpack.c.l.b16 %v1196
    %v1485 = vunpack.c.l.b16 %v1197
    %v1486 = vunpack.c.l.b16 %v1198
    %v1487 = vunpack.c.l.b16 %v1199
    %v1488 = vunpack.c.l.b16 %v1200
    %v1489 = vunpack.c.l.b16 %v1201
    %v1490 = vunpack.c.l.b16 %v1202
    %v1491 = vunpack.c.l.b16 %v1203
    %v1492 = vunpack.c.l.b16 %v1204
    %v1493 = vunpack.c.l.b16 %v1205
    %v1494 = vunpack.c.l.b16 %v1206
    %v1495 = vunpack.c.l.b16 %v1207
    %v1496 = vunpack.c.l.b16 %v1208
    %v1497 = vunpack.c.l.b16 %v1209
    %v1498 = vunpack.c.l.b16 %v1210
    %v1499 = vunpack.c.l.b16 %v1211
    %v1500 = vunpack.c.l.b16 %v1212
    %v1501 = vunpack.c.l.b16 %v1213
    %v1502 = vunpack.c.l.b16 %v1214
    %v1503 = vunpack.c.l.b16 %v1215
    %v1504 = vunpack.c.l.b16 %v1216
    %v1505 = vunpack.c.l.b16 %v1217
    %v1506 = vunpack.c.l.b16 %v1218
    %v1507 = vunpack.c.l.b16 %v1219
    %v1508 = vunpack.c.l.b16 %v1220
    %v1509 = vunpack.c.l.b16 %v1221
    %v1510 = vunpack.c.l.b16 %v1222
    %v1511 = vunpack.c.l.b16 %v1223
    %v1512 = vunpack.c.l.b16 %v1224
    %v1513 = vunpack.c.l.b16 %v1225
    %v1514 = vunpack.c.l.b16 %v1226
    %v1515 = vunpack.c.l.b16 %v1227
    %v1516 = vunpack.c.l.b16 %v1228
    %v1517 = vunpack.c.l.b16 %v1229
    %v1518 = vunpack.c.l.b16 %v1230
    %v1519 = vunpack.c.l.b16 %v1231
    %v1520 = vunpack.c.l.b16 %v1232
    %v1521 = vunpack.c.l.b16 %v1233
    %v1522 = vunpack.c.l.b16 %v1234
    %v1523 = vunpack.c.l.b16 %v1235
    %v1524 = vunpack.c.l.b16 %v1236
    %v1525 = vunpack.c.l.b16 %v1237
    %v1526 = vunpack.c.l.b16 %v1238
    %v1527 = vunpack.c.l.b16 %v1239
    %v1528 = vunpack.c.l.b16 %v1240
    %v1529 = vunpack.c.l.b16 %v1241
    %v1530 = vunpack.c.l.b16 %v1242
    %v1531 = vunpack.c.l.b16 %v1243
    %v1532 = vunpack.c.l.b16 %v1244
    %v1533 = vunpack.c.l.b16 %v1245
    %v1534 = vunpack.c.l.b16 %v1246
    %v1535 = vunpack.c.l.b16 %v1247
    %v1536 = vunpack.c.l.b16 %v1248
    %v1537 = vunpack.c.l.b16 %v1249
    %v1538 = vunpack.c.l.b16 %v1250
    %v1539 = vunpack.c.l.b16 %v1251
    %v1540 = vunpack.c.l.b16 %v1252
    %v1541 = vunpack.c.l.b16 %v1253
    %v1542 = vunpack.c.l.b16 %v1254
    %v1543 = vunpack.c.l.b16 %v1255
    %v1544 = vunpack.c.l.b16 %v1256
    %v1545 = vunpack.c.l.b16 %v1257
    %v1546 = vunpack.c.l.b16 %v1258
    %v1547 = vunpack.c.l.b16 %v1259
    %v1548 = vpack.c.b16 %v1405, %v1404
    %v1549 = vpack.c.b16 %v1407, %v1406
    %v1550 = vpack.c.b16 %v1409, %v1408
    %v1551 = vpack.c.b16 %v1411, %v1410
    %v1552 = vpack.c.b16 %v1413, %v1412
    %v1553 = vpack.c.b16 %v1415, %v1414
    %v1554 = vpack.c.b16 %v1417, %v1416
    %v1555 = vpack.c.b16 %v1419, %v1418
    %v1556 = vpack.c.b16 %v1421, %v1420
    %v1557 = vpack.c.b16 %v1423, %v1422
    %v1558 = vpack.c.b16 %v1425, %v1424
    %v1559 = vpack.c.b16 %v1427, %v1426
    %v1560 = vpack.c.b16 %v1429, %v1428
    %v1561 = vpack.c.b16 %v1431, %v1430
    %v1562 = vpack.c.b16 %v1433, %v1432
    %v1563 = vpack.c.b16 %v1435, %v1434
    %v1564 = vpack.c.b16 %v1437, %v1436
    %v1565 = vpack.c.b16 %v1439, %v1438
    %v1566 = vpack.c.b16 %v1441, %v1440
    %v1567 = vpack.c.b16 %v1443, %v1442
    %v1568 = vpack.c.b16 %v1445, %v1444
    %v1569 = vpack.c.b16 %v1447, %v1446
    %v1570 = vpack.c.b16 %v1449, %v1448
    %v1571 = vpack.c.b16 %v1451, %v1450
    %v1572 = vpack.c.b16 %v1453, %v1452
    %v1573 = vpack.c.b16 %v1455, %v1454
    %v1574 = vpack.c.b16 %v1457, %v1456
    %v1575 = vpack.c.b16 %v1459, %v1458
    %v1576 = vpack.c.b16 %v1461, %v1460
    %v1577 = vpack.c.b16 %v1463, %v1462
    %v1578 = vpack.c.b16 %v1465, %v1464
    %v1579 = vpack.c.b16 %v1467, %v1466
    %v1580 = vpack.c.b16 %v1469, %v1468
    %v1581 = vpack.c.b16 %v1471, %v1470
    %v1582 = vpack.c.b16 %v1473, %v1472
    %v1583 = vpack.c.b16 %v1475, %v1474
    %v1584 = vpack.c.b16 %v1477, %v1476
    %v1585 = vpack.c.b16 %v1479, %v1478
    %v1586 = vpack.c.b16 %v1481, %v1480
    %v1587 = vpack.c.b16 %v1483, %v1482
    %v1588 = vpack.c.b16 %v1485, %v1484
    %v1589 = vpack.c.b16 %v1487, %v1486
    %v1590 = vpack.c.b16 %v1489, %v1488
    %v1591 = vpack.c.b16 %v1491, %v1490
    %v1592 = vpack.c.b16 %v1493, %v1492
    %v1593 = vpack.c.b16 %v1495, %v1494
    %v1594 = vpack.c.b16 %v1497, %v1496
    %v1595 = vpack.c.b16 %v1499, %v1498
    %v1596 = vpack.c.b16 %v1501, %v1500
    %v1597 = vpack.c.b16 %v1503, %v1502
    %v1598 = vpack.c.b16 %v1505, %v1504
    %v1599 = vpack.c.b16 %v1507, %v1506
    %v1600 = vpack.c.b16 %v1509, %v1508
    %v1601 = vpack.c.b16 %v1511, %v1510
    %v1602 = vpack.c.b16 %v1513, %v1512
    %v1603 = vpack.c.b16 %v1515, %v1514
    %v1604 = vpack.c.b16 %v1517, %v1516
    %v1605 = vpack.c.b16 %v1519, %v1518
    %v1606 = vpack.c.b16 %v1521, %v1520
    %v1607 = vpack.c.b16 %v1523, %v1522
    %v1608 = vpack.c.b16 %v1525, %v1524
    %v1609 = vpack.c.b16 %v1527, %v1526
    %v1610 = vpack.c.b16 %v1529, %v1528
    %v1611 = vpack.c.b16 %v1531, %v1530
    %v1612 = vpack.c.b16 %v1533, %v1532
    %v1613 = vpack.c.b16 %v1535, %v1534
    %v1614 = vpack.c.b16 %v1537, %v1536
    %v1615 = vpack.c.b16 %v1539, %v1538
    %v1616 = vpack.c.b16 %v1541, %v1540
    %v1617 = vpack.c.b16 %v1543, %v1542
    %v1618 = vpack.c.b16 %v1545, %v1544
    %v1619 = vpack.c.b16 %v1547, %v1546
    %1692 = vmatprep.subr.bf16.mxu0 0
    %1693 = vmatpush1.bf16.msra.mxu0 %v1548
    %1694 = vmatprep.subr.bf16.mxu0 0
    %1695 = vmatpush1.bf16.msra.mxu0 %v1549
    %1696 = vmatprep.subr.bf16.mxu0 0
    %1697 = vmatpush1.bf16.msra.mxu0 %v1550
    %1698 = vmatprep.subr.bf16.mxu0 0
    %1699 = vmatpush1.bf16.msra.mxu0 %v1551
    %1700 = vmatprep.subr.bf16.mxu0 0
    %1701 = vmatpush1.bf16.msra.mxu0 %v1552
    %1702 = vmatprep.subr.bf16.mxu0 0
    %1703 = vmatpush1.bf16.msra.mxu0 %v1553
    %1704 = vmatprep.subr.bf16.mxu0 0
    %1705 = vmatpush1.bf16.msra.mxu0 %v1554
    %1706 = vmatprep.subr.bf16.mxu0 0
    %1707 = vmatpush1.bf16.msra.mxu0 %v1555
    %1708 = vmatprep.subr.bf16.mxu0 0
    %1709 = vmatpush1.bf16.msra.mxu0 %v1556
    %1710 = vmatprep.subr.bf16.mxu0 0
    %1711 = vmatpush1.bf16.msra.mxu0 %v1557
    %1712 = vmatprep.subr.bf16.mxu0 0
    %1713 = vmatpush1.bf16.msra.mxu0 %v1558
    %1714 = vmatprep.subr.bf16.mxu0 0
    %1715 = vmatpush1.bf16.msra.mxu0 %v1559
    %1716 = vmatprep.subr.bf16.mxu0 0
    %1717 = vmatpush1.bf16.msra.mxu0 %v1560
    %1718 = vmatprep.subr.bf16.mxu0 0
    %1719 = vmatpush1.bf16.msra.mxu0 %v1561
    %1720 = vmatprep.subr.bf16.mxu0 0
    %1721 = vmatpush1.bf16.msra.mxu0 %v1562
    %1722 = vmatprep.subr.bf16.mxu0 0
    %1723 = vmatpush1.bf16.msra.mxu0 %v1563
    %1724 = vmatprep.mubr.bf16.mxu0 %v1045
    %1725 = vmatmul.mubr.bf16.gmra.mrb[0].mxu0 %v1044
    %v1726 = vpop.f32.mrb[0].mxu0
    %v1727 = vadd.f32 0.0, %v1726
    %v1728 = vpop.f32.mrb[0].mxu0
    %v1729 = vpop.f32.mrb[0].mxu0
    %v1730 = vadd.f32 0.0, %v1729
    %v1731 = vpop.f32.mrb[0].mxu0
    %1732 = vmatprep.mubr.bf16.mxu0 %v1054
    %1733 = vmatmul.mubr.bf16.gmra.mrb[0].mxu0 %v1053
    %v1734 = vpop.f32.mrb[0].mxu0
    %v1735 = vadd.f32 0.0, %v1734
    %v1736 = vpop.f32.mrb[0].mxu0
    %v1737 = vpop.f32.mrb[0].mxu0
    %v1738 = vadd.f32 0.0, %v1737
    %v1739 = vpop.f32.mrb[0].mxu0
    %1740 = vmatprep.mubr.bf16.mxu0 %v1063
    %1741 = vmatmul.mubr.bf16.gmra.mrb[0].mxu0 %v1062
    %v1742 = vpop.f32.mrb[0].mxu0
    %v1743 = vadd.f32 0.0, %v1742
    %v1744 = vpop.f32.mrb[0].mxu0
    %v1745 = vpop.f32.mrb[0].mxu0
    %v1746 = vadd.f32 0.0, %v1745
    %v1747 = vpop.f32.mrb[0].mxu0
    %1748 = vmatprep.mubr.bf16.mxu0 %v1072
    %1749 = vmatmul.mubr.bf16.gmra.mrb[0].mxu0 %v1071
    %v1750 = vpop.f32.mrb[0].mxu0
    %v1751 = vadd.f32 0.0, %v1750
    %v1752 = vpop.f32.mrb[0].mxu0
    %v1753 = vpop.f32.mrb[0].mxu0
    %v1754 = vadd.f32 0.0, %v1753
    %v1755 = vpop.f32.mrb[0].mxu0
    %1756 = vmatprep.mubr.bf16.mxu0 %v1081
    %1757 = vmatmul.mubr.bf16.gmra.mrb[0].mxu0 %v1080
    %v1758 = vpop.f32.mrb[0].mxu0
    %v1759 = vadd.f32 0.0, %v1758
    %v1760 = vpop.f32.mrb[0].mxu0
    %v1761 = vpop.f32.mrb[0].mxu0
    %v1762 = vadd.f32 0.0, %v1761
    %v1763 = vpop.f32.mrb[0].mxu0
    %1764 = vmatprep.mubr.bf16.mxu0 %v1090
    %1765 = vmatmul.mubr.bf16.gmra.mrb[0].mxu0 %v1089
    %v1766 = vpop.f32.mrb[0].mxu0
    %v1767 = vadd.f32 0.0, %v1766
    %v1768 = vpop.f32.mrb[0].mxu0
    %v1769 = vpop.f32.mrb[0].mxu0
    %v1770 = vadd.f32 0.0, %v1769
    %v1771 = vpop.f32.mrb[0].mxu0
    %1772 = vmatprep.mubr.bf16.mxu0 %v1099
    %1773 = vmatmul.mubr.bf16.gmra.mrb[0].mxu0 %v1098
    %v1774 = vpop.f32.mrb[0].mxu0
    %v1775 = vadd.f32 0.0, %v1774
    %v1776 = vpop.f32.mrb[0].mxu0
    %v1777 = vpop.f32.mrb[0].mxu0
    %v1778 = vadd.f32 0.0, %v1777
    %v1779 = vpop.f32.mrb[0].mxu0
    %1780 = vmatprep.mubr.bf16.mxu0 %v1108
    %1781 = vmatmul.mubr.bf16.gmra.mrb[0].mxu0 %v1107
    %v1782 = vpop.f32.mrb[0].mxu0
    %v1783 = vadd.f32 0.0, %v1782
    %v1784 = vpop.f32.mrb[0].mxu0
    %v1785 = vpop.f32.mrb[0].mxu0
    %v1786 = vadd.f32 0.0, %v1785
    %v1787 = vpop.f32.mrb[0].mxu0
    %1788 = vdwg.mxu0
    %1789 = vmatprep.subr.bf16.mxu0 0
    %1790 = vmatpush1.bf16.msra.mxu0 %v1564
    %1791 = vmatprep.subr.bf16.mxu0 0
    %1792 = vmatpush1.bf16.msra.mxu0 %v1565
    %1793 = vmatprep.subr.bf16.mxu0 0
    %1794 = vmatpush1.bf16.msra.mxu0 %v1566
    %1795 = vmatprep.subr.bf16.mxu0 0
    %1796 = vmatpush1.bf16.msra.mxu0 %v1567
    %1797 = vmatprep.subr.bf16.mxu0 0
    %1798 = vmatpush1.bf16.msra.mxu0 %v1568
    %1799 = vmatprep.subr.bf16.mxu0 0
    %1800 = vmatpush1.bf16.msra.mxu0 %v1569
    %1801 = vmatprep.subr.bf16.mxu0 0
    %1802 = vmatpush1.bf16.msra.mxu0 %v1570
    %1803 = vmatprep.subr.bf16.mxu0 0
    %1804 = vmatpush1.bf16.msra.mxu0 %v1571
    %1805 = vmatprep.subr.bf16.mxu0 0
    %1806 = vmatpush1.bf16.msra.mxu0 %v1572
    %1807 = vmatprep.subr.bf16.mxu0 0
    %1808 = vmatpush1.bf16.msra.mxu0 %v1573
    %1809 = vmatprep.subr.bf16.mxu0 0
    %1810 = vmatpush1.bf16.msra.mxu0 %v1574
    %1811 = vmatprep.subr.bf16.mxu0 0
    %1812 = vmatpush1.bf16.msra.mxu0 %v1575
    %1813 = vmatprep.subr.bf16.mxu0 0
    %1814 = vmatpush1.bf16.msra.mxu0 %v1576
    %1815 = vmatprep.subr.bf16.mxu0 0
    %1816 = vmatpush1.bf16.msra.mxu0 %v1577
    %1817 = vmatprep.subr.bf16.mxu0 0
    %1818 = vmatpush1.bf16.msra.mxu0 %v1578
    %1819 = vmatprep.subr.bf16.mxu0 0
    %1820 = vmatpush1.bf16.msra.mxu0 %v1579
    %1821 = vmatprep.mubr.bf16.mxu0 %v1047
    %1822 = vmatmul.mubr.bf16.gmra.mrb[0].mxu0 %v1046
    %v1823 = vpop.f32.mrb[0].mxu0
    %v1824 = vadd.f32 %v1727, %v1823
    %v1825 = vpop.f32.mrb[0].mxu0
    %v1826 = vpop.f32.mrb[0].mxu0
    %v1827 = vadd.f32 %v1730, %v1826
    %v1828 = vpop.f32.mrb[0].mxu0
    %1829 = vmatprep.mubr.bf16.mxu0 %v1056
    %1830 = vmatmul.mubr.bf16.gmra.mrb[0].mxu0 %v1055
    %v1831 = vpop.f32.mrb[0].mxu0
    %v1832 = vadd.f32 %v1735, %v1831
    %v1833 = vpop.f32.mrb[0].mxu0
    %v1834 = vpop.f32.mrb[0].mxu0
    %v1835 = vadd.f32 %v1738, %v1834
    %v1836 = vpop.f32.mrb[0].mxu0
    %1837 = vmatprep.mubr.bf16.mxu0 %v1065
    %1838 = vmatmul.mubr.bf16.gmra.mrb[0].mxu0 %v1064
    %v1839 = vpop.f32.mrb[0].mxu0
    %v1840 = vadd.f32 %v1743, %v1839
    %v1841 = vpop.f32.mrb[0].mxu0
    %v1842 = vpop.f32.mrb[0].mxu0
    %v1843 = vadd.f32 %v1746, %v1842
    %v1844 = vpop.f32.mrb[0].mxu0
    %1845 = vmatprep.mubr.bf16.mxu0 %v1074
    %1846 = vmatmul.mubr.bf16.gmra.mrb[0].mxu0 %v1073
    %v1847 = vpop.f32.mrb[0].mxu0
    %v1848 = vadd.f32 %v1751, %v1847
    %v1849 = vpop.f32.mrb[0].mxu0
    %v1850 = vpop.f32.mrb[0].mxu0
    %v1851 = vadd.f32 %v1754, %v1850
    %v1852 = vpop.f32.mrb[0].mxu0
    %1853 = vmatprep.mubr.bf16.mxu0 %v1083
    %1854 = vmatmul.mubr.bf16.gmra.mrb[0].mxu0 %v1082
    %v1855 = vpop.f32.mrb[0].mxu0
    %v1856 = vadd.f32 %v1759, %v1855
    %v1857 = vpop.f32.mrb[0].mxu0
    %v1858 = vpop.f32.mrb[0].mxu0
    %v1859 = vadd.f32 %v1762, %v1858
    %v1860 = vpop.f32.mrb[0].mxu0
    %1861 = vmatprep.mubr.bf16.mxu0 %v1092
    %1862 = vmatmul.mubr.bf16.gmra.mrb[0].mxu0 %v1091
    %v1863 = vpop.f32.mrb[0].mxu0
    %v1864 = vadd.f32 %v1767, %v1863
    %v1865 = vpop.f32.mrb[0].mxu0
    %v1866 = vpop.f32.mrb[0].mxu0
    %v1867 = vadd.f32 %v1770, %v1866
    %v1868 = vpop.f32.mrb[0].mxu0
    %1869 = vmatprep.mubr.bf16.mxu0 %v1101
    %1870 = vmatmul.mubr.bf16.gmra.mrb[0].mxu0 %v1100
    %v1871 = vpop.f32.mrb[0].mxu0
    %v1872 = vadd.f32 %v1775, %v1871
    %v1873 = vpop.f32.mrb[0].mxu0
    %v1874 = vpop.f32.mrb[0].mxu0
    %v1875 = vadd.f32 %v1778, %v1874
    %v1876 = vpop.f32.mrb[0].mxu0
    %1877 = vmatprep.mubr.bf16.mxu0 %v1110
    %1878 = vmatmul.mubr.bf16.gmra.mrb[0].mxu0 %v1109
    %v1879 = vpop.f32.mrb[0].mxu0
    %v1880 = vadd.f32 %v1783, %v1879
    %v1881 = vpop.f32.mrb[0].mxu0
    %v1882 = vpop.f32.mrb[0].mxu0
    %v1883 = vadd.f32 %v1786, %v1882
    %v1884 = vpop.f32.mrb[0].mxu0
    %1885 = vdwg.mxu0
    %1886 = vmatprep.subr.bf16.mxu0 0
    %1887 = vmatpush1.bf16.msra.mxu0 %v1580
    %1888 = vmatprep.subr.bf16.mxu0 0
    %1889 = vmatpush1.bf16.msra.mxu0 %v1581
    %1890 = vmatprep.subr.bf16.mxu0 0
    %1891 = vmatpush1.bf16.msra.mxu0 %v1582
    %1892 = vmatprep.subr.bf16.mxu0 0
    %1893 = vmatpush1.bf16.msra.mxu0 %v1583
    %1894 = vmatprep.subr.bf16.mxu0 0
    %1895 = vmatpush1.bf16.msra.mxu0 %v1584
    %1896 = vmatprep.subr.bf16.mxu0 0
    %1897 = vmatpush1.bf16.msra.mxu0 %v1585
    %1898 = vmatprep.subr.bf16.mxu0 0
    %1899 = vmatpush1.bf16.msra.mxu0 %v1586
    %1900 = vmatprep.subr.bf16.mxu0 0
    %1901 = vmatpush1.bf16.msra.mxu0 %v1587
    %1902 = vmatprep.subr.bf16.mxu0 0
    %1903 = vmatpush1.bf16.msra.mxu0 %v1588
    %1904 = vmatprep.subr.bf16.mxu0 0
    %1905 = vmatpush1.bf16.msra.mxu0 %v1589
    %1906 = vmatprep.subr.bf16.mxu0 0
    %1907 = vmatpush1.bf16.msra.mxu0 %v1590
    %1908 = vmatprep.subr.bf16.mxu0 0
    %1909 = vmatpush1.bf16.msra.mxu0 %v1591
    %1910 = vmatprep.subr.bf16.mxu0 0
    %1911 = vmatpush1.bf16.msra.mxu0 %v1592
    %1912 = vmatprep.subr.bf16.mxu0 0
    %1913 = vmatpush1.bf16.msra.mxu0 %v1593
    %1914 = vmatprep.subr.bf16.mxu0 0
    %1915 = vmatpush1.bf16.msra.mxu0 %v1594
    %1916 = vmatprep.subr.bf16.mxu0 0
    %1917 = vmatpush1.bf16.msra.mxu0 %v1595
    %1918 = vmatprep.mubr.bf16.mxu0 %v1049
    %1919 = vmatmul.mubr.bf16.gmra.mrb[0].mxu0 %v1048
    %v1920 = vpop.f32.mrb[0].mxu0
    %v1921 = vadd.f32 %v1824, %v1920
    %v1922 = vpop.f32.mrb[0].mxu0
    %v1923 = vpop.f32.mrb[0].mxu0
    %v1924 = vadd.f32 %v1827, %v1923
    %v1925 = vpop.f32.mrb[0].mxu0
    %1926 = vmatprep.mubr.bf16.mxu0 %v1058
    %1927 = vmatmul.mubr.bf16.gmra.mrb[0].mxu0 %v1057
    %v1928 = vpop.f32.mrb[0].mxu0
    %v1929 = vadd.f32 %v1832, %v1928
    %v1930 = vpop.f32.mrb[0].mxu0
    %v1931 = vpop.f32.mrb[0].mxu0
    %v1932 = vadd.f32 %v1835, %v1931
    %v1933 = vpop.f32.mrb[0].mxu0
    %1934 = vmatprep.mubr.bf16.mxu0 %v1067
    %1935 = vmatmul.mubr.bf16.gmra.mrb[0].mxu0 %v1066
    %v1936 = vpop.f32.mrb[0].mxu0
    %v1937 = vadd.f32 %v1840, %v1936
    %v1938 = vpop.f32.mrb[0].mxu0
    %v1939 = vpop.f32.mrb[0].mxu0
    %v1940 = vadd.f32 %v1843, %v1939
    %v1941 = vpop.f32.mrb[0].mxu0
    %1942 = vmatprep.mubr.bf16.mxu0 %v1076
    %1943 = vmatmul.mubr.bf16.gmra.mrb[0].mxu0 %v1075
    %v1944 = vpop.f32.mrb[0].mxu0
    %v1945 = vadd.f32 %v1848, %v1944
    %v1946 = vpop.f32.mrb[0].mxu0
    %v1947 = vpop.f32.mrb[0].mxu0
    %v1948 = vadd.f32 %v1851, %v1947
    %v1949 = vpop.f32.mrb[0].mxu0
    %1950 = vmatprep.mubr.bf16.mxu0 %v1085
    %1951 = vmatmul.mubr.bf16.gmra.mrb[0].mxu0 %v1084
    %v1952 = vpop.f32.mrb[0].mxu0
    %v1953 = vadd.f32 %v1856, %v1952
    %v1954 = vpop.f32.mrb[0].mxu0
    %v1955 = vpop.f32.mrb[0].mxu0
    %v1956 = vadd.f32 %v1859, %v1955
    %v1957 = vpop.f32.mrb[0].mxu0
    %1958 = vmatprep.mubr.bf16.mxu0 %v1094
    %1959 = vmatmul.mubr.bf16.gmra.mrb[0].mxu0 %v1093
    %v1960 = vpop.f32.mrb[0].mxu0
    %v1961 = vadd.f32 %v1864, %v1960
    %v1962 = vpop.f32.mrb[0].mxu0
    %v1963 = vpop.f32.mrb[0].mxu0
    %v1964 = vadd.f32 %v1867, %v1963
    %v1965 = vpop.f32.mrb[0].mxu0
    %1966 = vmatprep.mubr.bf16.mxu0 %v1103
    %1967 = vmatmul.mubr.bf16.gmra.mrb[0].mxu0 %v1102
    %v1968 = vpop.f32.mrb[0].mxu0
    %v1969 = vadd.f32 %v1872, %v1968
    %v1970 = vpop.f32.mrb[0].mxu0
    %v1971 = vpop.f32.mrb[0].mxu0
    %v1972 = vadd.f32 %v1875, %v1971
    %v1973 = vpop.f32.mrb[0].mxu0
    %1974 = vmatprep.mubr.bf16.mxu0 %v1112
    %1975 = vmatmul.mubr.bf16.gmra.mrb[0].mxu0 %v1111
    %v1976 = vpop.f32.mrb[0].mxu0
    %v1977 = vadd.f32 %v1880, %v1976
    %v1978 = vpop.f32.mrb[0].mxu0
    %v1979 = vpop.f32.mrb[0].mxu0
    %v1980 = vadd.f32 %v1883, %v1979
    %v1981 = vpop.f32.mrb[0].mxu0
    %1982 = vdwg.mxu0
    %1983 = vmatprep.subr.bf16.mxu0 0
    %1984 = vmatpush1.bf16.msra.mxu0 %v1596
    %1985 = vmatprep.subr.bf16.mxu0 0
    %1986 = vmatpush1.bf16.msra.mxu0 %v1597
    %1987 = vmatprep.subr.bf16.mxu0 0
    %1988 = vmatpush1.bf16.msra.mxu0 %v1598
    %1989 = vmatprep.subr.bf16.mxu0 0
    %1990 = vmatpush1.bf16.msra.mxu0 %v1599
    %1991 = vmatprep.subr.bf16.mxu0 0
    %1992 = vmatpush1.bf16.msra.mxu0 %v1600
    %1993 = vmatprep.subr.bf16.mxu0 0
    %1994 = vmatpush1.bf16.msra.mxu0 %v1601
    %1995 = vmatprep.subr.bf16.mxu0 0
    %1996 = vmatpush1.bf16.msra.mxu0 %v1602
    %1997 = vmatprep.subr.bf16.mxu0 0
    %1998 = vmatpush1.bf16.msra.mxu0 %v1603
    %1999 = vmatprep.subr.bf16.mxu0 0
    %2000 = vmatpush1.bf16.msra.mxu0 %v1604
    %2001 = vmatprep.subr.bf16.mxu0 0
    %2002 = vmatpush1.bf16.msra.mxu0 %v1605
    %2003 = vmatprep.subr.bf16.mxu0 0
    %2004 = vmatpush1.bf16.msra.mxu0 %v1606
    %2005 = vmatprep.subr.bf16.mxu0 0
    %2006 = vmatpush1.bf16.msra.mxu0 %v1607
    %2007 = vmatprep.subr.bf16.mxu0 0
    %2008 = vmatpush1.bf16.msra.mxu0 %v1608
    %2009 = vmatprep.subr.bf16.mxu0 0
    %2010 = vmatpush1.bf16.msra.mxu0 %v1609
    %2011 = vmatprep.subr.bf16.mxu0 0
    %2012 = vmatpush1.bf16.msra.mxu0 %v1610
    %2013 = vmatprep.subr.bf16.mxu0 0
    %2014 = vmatpush1.bf16.msra.mxu0 %v1611
    %2015 = vmatprep.mubr.bf16.mxu0 %v1051
    %2016 = vmatmul.mubr.bf16.gmra.mrb[0].mxu0 %v1050
    %v2017 = vpop.f32.mrb[0].mxu0
    %v2018 = vadd.f32 %v1921, %v2017
    %v2019 = vpop.f32.mrb[0].mxu0
    %v2020 = vpop.f32.mrb[0].mxu0
    %v2021 = vadd.f32 %v1924, %v2020
    %v2022 = vpop.f32.mrb[0].mxu0
    %2023 = vmatprep.mubr.bf16.mxu0 %v1060
    %2024 = vmatmul.mubr.bf16.gmra.mrb[0].mxu0 %v1059
    %v2025 = vpop.f32.mrb[0].mxu0
    %v2026 = vadd.f32 %v1929, %v2025
    %v2027 = vpop.f32.mrb[0].mxu0
    %v2028 = vpop.f32.mrb[0].mxu0
    %v2029 = vadd.f32 %v1932, %v2028
    %v2030 = vpop.f32.mrb[0].mxu0
    %2031 = vmatprep.mubr.bf16.mxu0 %v1069
    %2032 = vmatmul.mubr.bf16.gmra.mrb[0].mxu0 %v1068
    %v2033 = vpop.f32.mrb[0].mxu0
    %v2034 = vadd.f32 %v1937, %v2033
    %v2035 = vpop.f32.mrb[0].mxu0
    %v2036 = vpop.f32.mrb[0].mxu0
    %v2037 = vadd.f32 %v1940, %v2036
    %v2038 = vpop.f32.mrb[0].mxu0
    %2039 = vmatprep.mubr.bf16.mxu0 %v1078
    %2040 = vmatmul.mubr.bf16.gmra.mrb[0].mxu0 %v1077
    %v2041 = vpop.f32.mrb[0].mxu0
    %v2042 = vadd.f32 %v1945, %v2041
    %v2043 = vpop.f32.mrb[0].mxu0
    %v2044 = vpop.f32.mrb[0].mxu0
    %v2045 = vadd.f32 %v1948, %v2044
    %v2046 = vpop.f32.mrb[0].mxu0
    %2047 = vmatprep.mubr.bf16.mxu0 %v1087
    %2048 = vmatmul.mubr.bf16.gmra.mrb[0].mxu0 %v1086
    %v2049 = vpop.f32.mrb[0].mxu0
    %v2050 = vadd.f32 %v1953, %v2049
    %v2051 = vpop.f32.mrb[0].mxu0
    %v2052 = vpop.f32.mrb[0].mxu0
    %v2053 = vadd.f32 %v1956, %v2052
    %v2054 = vpop.f32.mrb[0].mxu0
    %2055 = vmatprep.mubr.bf16.mxu0 %v1096
    %2056 = vmatmul.mubr.bf16.gmra.mrb[0].mxu0 %v1095
    %v2057 = vpop.f32.mrb[0].mxu0
    %v2058 = vadd.f32 %v1961, %v2057
    %v2059 = vpop.f32.mrb[0].mxu0
    %v2060 = vpop.f32.mrb[0].mxu0
    %v2061 = vadd.f32 %v1964, %v2060
    %v2062 = vpop.f32.mrb[0].mxu0
    %2063 = vmatprep.mubr.bf16.mxu0 %v1105
    %2064 = vmatmul.mubr.bf16.gmra.mrb[0].mxu0 %v1104
    %v2065 = vpop.f32.mrb[0].mxu0
    %v2066 = vadd.f32 %v1969, %v2065
    %v2067 = vpop.f32.mrb[0].mxu0
    %v2068 = vpop.f32.mrb[0].mxu0
    %v2069 = vadd.f32 %v1972, %v2068
    %v2070 = vpop.f32.mrb[0].mxu0
    %2071 = vmatprep.mubr.bf16.mxu0 %v1114
    %2072 = vmatmul.mubr.bf16.gmra.mrb[0].mxu0 %v1113
    %v2073 = vpop.f32.mrb[0].mxu0
    %v2074 = vadd.f32 %v1977, %v2073
    %v2075 = vpop.f32.mrb[0].mxu0
    %v2076 = vpop.f32.mrb[0].mxu0
    %v2077 = vadd.f32 %v1980, %v2076
    %v2078 = vpop.f32.mrb[0].mxu0
    %2079 = vdwg.mxu0
    %2080 = vmatprep.subr.bf16.mxu0 0
    %2081 = vmatpush1.bf16.msra.mxu0 %v1612
    %2082 = vmatprep.subr.bf16.mxu0 0
    %2083 = vmatpush1.bf16.msra.mxu0 %v1613
    %2084 = vmatprep.subr.bf16.mxu0 0
    %2085 = vmatpush1.bf16.msra.mxu0 %v1614
    %2086 = vmatprep.subr.bf16.mxu0 0
    %2087 = vmatpush1.bf16.msra.mxu0 %v1615
    %2088 = vmatprep.subr.bf16.mxu0 0
    %2089 = vmatpush1.bf16.msra.mxu0 %v1616
    %2090 = vmatprep.subr.bf16.mxu0 0
    %2091 = vmatpush1.bf16.msra.mxu0 %v1617
    %2092 = vmatprep.subr.bf16.mxu0 0
    %2093 = vmatpush1.bf16.msra.mxu0 %v1618
    %2094 = vmatprep.subr.bf16.mxu0 0
    %2095 = vmatpush1.bf16.msra.mxu0 %v1619
    %2096 = vmatprep.subr.bf16.mxu0 0
    %2097 = vmatpush1.bf16.msra.mxu0 0
    %2098 = vmatprep.subr.bf16.mxu0 0
    %2099 = vmatpush1.bf16.msra.mxu0 0
    %2100 = vmatprep.subr.bf16.mxu0 0
    %2101 = vmatpush1.bf16.msra.mxu0 0
    %2102 = vmatprep.subr.bf16.mxu0 0
    %2103 = vmatpush1.bf16.msra.mxu0 0
    %2104 = vmatprep.subr.bf16.mxu0 0
    %2105 = vmatpush1.bf16.msra.mxu0 0
    %2106 = vmatprep.subr.bf16.mxu0 0
    %2107 = vmatpush1.bf16.msra.mxu0 0
    %2108 = vmatprep.subr.bf16.mxu0 0
    %2109 = vmatpush1.bf16.msra.mxu0 0
    %2110 = vmatprep.subr.bf16.mxu0 0
    %2111 = vmatpush1.bf16.msra.mxu0 0
    %2112 = vmatprep.mubr.bf16.mxu0 0
    %2113 = vmatmul.mubr.bf16.gmra.mrb[0].mxu0 %v1052
    %v2114 = vpop.f32.mrb[0].mxu0
    %v2115 = vadd.f32 %v2018, %v2114
    %v2116 = vpop.f32.mrb[0].mxu0
    %v2117 = vpop.f32.mrb[0].mxu0
    %v2118 = vadd.f32 %v2021, %v2117
    %v2119 = vpop.f32.mrb[0].mxu0
    %2120 = vmatprep.mubr.bf16.mxu0 0
    %2121 = vmatmul.mubr.bf16.gmra.mrb[0].mxu0 %v1061
    %v2122 = vpop.f32.mrb[0].mxu0
    %v2123 = vadd.f32 %v2026, %v2122
    %v2124 = vpop.f32.mrb[0].mxu0
    %v2125 = vpop.f32.mrb[0].mxu0
    %v2126 = vadd.f32 %v2029, %v2125
    %v2127 = vpop.f32.mrb[0].mxu0
    %2128 = vmatprep.mubr.bf16.mxu0 0
    %2129 = vmatmul.mubr.bf16.gmra.mrb[0].mxu0 %v1070
    %v2130 = vpop.f32.mrb[0].mxu0
    %v2131 = vadd.f32 %v2034, %v2130
    %v2132 = vpop.f32.mrb[0].mxu0
    %v2133 = vpop.f32.mrb[0].mxu0
    %v2134 = vadd.f32 %v2037, %v2133
    %v2135 = vpop.f32.mrb[0].mxu0
    %2136 = vmatprep.mubr.bf16.mxu0 0
    %2137 = vmatmul.mubr.bf16.gmra.mrb[0].mxu0 %v1079
    %v2138 = vpop.f32.mrb[0].mxu0
    %v2139 = vadd.f32 %v2042, %v2138
    %v2140 = vpop.f32.mrb[0].mxu0
    %v2141 = vpop.f32.mrb[0].mxu0
    %v2142 = vadd.f32 %v2045, %v2141
    %v2143 = vpop.f32.mrb[0].mxu0
    %2144 = vmatprep.mubr.bf16.mxu0 0
    %2145 = vmatmul.mubr.bf16.gmra.mrb[0].mxu0 %v1088
    %v2146 = vpop.f32.mrb[0].mxu0
    %v2147 = vadd.f32 %v2050, %v2146
    %v2148 = vpop.f32.mrb[0].mxu0
    %v2149 = vpop.f32.mrb[0].mxu0
    %v2150 = vadd.f32 %v2053, %v2149
    %v2151 = vpop.f32.mrb[0].mxu0
    %2152 = vmatprep.mubr.bf16.mxu0 0
    %2153 = vmatmul.mubr.bf16.gmra.mrb[0].mxu0 %v1097
    %v2154 = vpop.f32.mrb[0].mxu0
    %v2155 = vadd.f32 %v2058, %v2154
    %v2156 = vpop.f32.mrb[0].mxu0
    %v2157 = vpop.f32.mrb[0].mxu0
    %v2158 = vadd.f32 %v2061, %v2157
    %v2159 = vpop.f32.mrb[0].mxu0
    %2160 = vmatprep.mubr.bf16.mxu0 0
    %2161 = vmatmul.mubr.bf16.gmra.mrb[0].mxu0 %v1106
    %v2162 = vpop.f32.mrb[0].mxu0
    %v2163 = vadd.f32 %v2066, %v2162
    %v2164 = vpop.f32.mrb[0].mxu0
    %v2165 = vpop.f32.mrb[0].mxu0
    %v2166 = vadd.f32 %v2069, %v2165
    %v2167 = vpop.f32.mrb[0].mxu0
    %2168 = vmatprep.mubr.bf16.mxu0 0
    %2169 = vmatmul.mubr.bf16.gmra.mrb[0].mxu0 %v1115
    %v2170 = vpop.f32.mrb[0].mxu0
    %v2171 = vadd.f32 %v2074, %v2170
    %v2172 = vpop.f32.mrb[0].mxu0
    %v2173 = vpop.f32.mrb[0].mxu0
    %v2174 = vadd.f32 %v2077, %v2173
    %v2175 = vpop.f32.mrb[0].mxu0
    %2176 = vdwg.mxu0
    %v2177 = vld [vmem:[%s4] sm:$0x1]
    %v2179 = vlaneseq
    %v2180 = vshrl.u32 %v2179, 7
    %v2181 = vsub.s32 0, %v2180
    %v2182 = vrot.slane %v2177, %v2181
    %v2184 = vmul.f32 %v2115, %v2182
    %v2185 = vmul.f32 %v2118, %v2182
    %v2186 = vmul.f32 %v2123, %v2182
    %v2187 = vmul.f32 %v2126, %v2182
    %v2188 = vmul.f32 %v2131, %v2182
    %v2189 = vmul.f32 %v2134, %v2182
    %v2190 = vmul.f32 %v2139, %v2182
    %v2191 = vmul.f32 %v2142, %v2182
    %v2192 = vmul.f32 %v2147, %v2182
    %v2193 = vmul.f32 %v2150, %v2182
    %v2194 = vmul.f32 %v2155, %v2182
    %v2195 = vmul.f32 %v2158, %v2182
    %v2196 = vmul.f32 %v2163, %v2182
    %v2197 = vmul.f32 %v2166, %v2182
    %v2198 = vmul.f32 %v2171, %v2182
    %v2199 = vmul.f32 %v2174, %v2182
    %v2200 = vld [vmem:[%s5] sm:$0x1]
    %v2202 = vlaneseq
    %v2203 = vshrl.u32 %v2202, 7
    %v2204 = vsub.s32 0, %v2203
    %v2205 = vrot.slane %v2200, %v2204
    %v2207 = vadd.f32 %v2184, %v2205
    %v2208 = vadd.f32 %v2185, %v2205
    %v2209 = vadd.f32 %v2186, %v2205
    %v2210 = vadd.f32 %v2187, %v2205
    %v2211 = vadd.f32 %v2188, %v2205
    %v2212 = vadd.f32 %v2189, %v2205
    %v2213 = vadd.f32 %v2190, %v2205
    %v2214 = vadd.f32 %v2191, %v2205
    %v2215 = vadd.f32 %v2192, %v2205
    %v2216 = vadd.f32 %v2193, %v2205
    %v2217 = vadd.f32 %v2194, %v2205
    %v2218 = vadd.f32 %v2195, %v2205
    %v2219 = vadd.f32 %v2196, %v2205
    %v2220 = vadd.f32 %v2197, %v2205
    %v2221 = vadd.f32 %v2198, %v2205
    %v2222 = vadd.f32 %v2199, %v2205
    %v2223 = vmax.f32 %v2207, 0.0
    %v2224 = vmax.f32 %v2208, 0.0
    %v2225 = vmax.f32 %v2209, 0.0
    %v2226 = vmax.f32 %v2210, 0.0
    %v2227 = vmax.f32 %v2211, 0.0
    %v2228 = vmax.f32 %v2212, 0.0
    %v2229 = vmax.f32 %v2213, 0.0
    %v2230 = vmax.f32 %v2214, 0.0
    %v2231 = vmax.f32 %v2215, 0.0
    %v2232 = vmax.f32 %v2216, 0.0
    %v2233 = vmax.f32 %v2217, 0.0
    %v2234 = vmax.f32 %v2218, 0.0
    %v2235 = vmax.f32 %v2219, 0.0
    %v2236 = vmax.f32 %v2220, 0.0
    %v2237 = vmax.f32 %v2221, 0.0
    %v2238 = vmax.f32 %v2222, 0.0
    %s2239 = scalar_lea.vmem [#allocation3], 16
    %2240 = vst [vmem:[%s2239 + $0x1] sm:$0xff] %v2223
    %2241 = vst [vmem:[%s2239 + $0x11] sm:$0xff] %v2224
    %2242 = vst [vmem:[%s2239 + $0x21] sm:$0xff] %v2225
    %2243 = vst [vmem:[%s2239 + $0x31] sm:$0xff] %v2226
    %2244 = vst [vmem:[%s2239 + $0x41] sm:$0xff] %v2227
    %2245 = vst [vmem:[%s2239 + $0x51] sm:$0xff] %v2228
    %2246 = vst [vmem:[%s2239 + $0x61] sm:$0xff] %v2229
    %2247 = vst [vmem:[%s2239 + $0x71] sm:$0xff] %v2230
    %2248 = vst [vmem:[%s2239 + $0xa1] sm:$0xff] %v2231
    %2249 = vst [vmem:[%s2239 + $0xb1] sm:$0xff] %v2232
    %2250 = vst [vmem:[%s2239 + $0xc1] sm:$0xff] %v2233
    %2251 = vst [vmem:[%s2239 + $0xd1] sm:$0xff] %v2234
    %2252 = vst [vmem:[%s2239 + $0xe1] sm:$0xff] %v2235
    %2253 = vst [vmem:[%s2239 + $0xf1] sm:$0xff] %v2236
    %2254 = vst [vmem:[%s2239 + $0x101] sm:$0xff] %v2237
    %2255 = vst [vmem:[%s2239 + $0x111] sm:$0xff] %v2238
    %v2256 = vld [vmem:[#allocation3] sm:$0xff]
    %v2257 = vld [vmem:[#allocation3 + $0x10] sm:$0xff]
    %v2258 = vld [vmem:[#allocation3 + $0x20] sm:$0xff]
    %v2259 = vld [vmem:[#allocation3 + $0x30] sm:$0xff]
    %v2260 = vld [vmem:[#allocation3 + $0x40] sm:$0xff]
    %v2261 = vld [vmem:[#allocation3 + $0x50] sm:$0xff]
    %v2262 = vld [vmem:[#allocation3 + $0x60] sm:$0xff]
    %v2263 = vld [vmem:[#allocation3 + $0x70] sm:$0xff]
    %v2264 = vld [vmem:[#allocation3 + $0xa0] sm:$0xff]
    %v2265 = vld [vmem:[#allocation3 + $0xb0] sm:$0xff]
    %v2266 = vld [vmem:[#allocation3 + $0xc0] sm:$0xff]
    %v2267 = vld [vmem:[#allocation3 + $0xd0] sm:$0xff]
    %v2268 = vld [vmem:[#allocation3 + $0xe0] sm:$0xff]
    %v2269 = vld [vmem:[#allocation3 + $0xf0] sm:$0xff]
    %v2270 = vld [vmem:[#allocation3 + $0x100] sm:$0xff]
    %v2271 = vld [vmem:[#allocation3 + $0x110] sm:$0xff]
    %v2272 = vpack.c.bf16 %v2257, %v2256
    %v2273 = vpack.c.bf16 %v2259, %v2258
    %v2274 = vpack.c.bf16 %v2261, %v2260
    %v2275 = vpack.c.bf16 %v2263, %v2262
    %v2276 = vpack.c.bf16 %v2265, %v2264
    %v2277 = vpack.c.bf16 %v2267, %v2266
    %v2278 = vpack.c.bf16 %v2269, %v2268
    %v2279 = vpack.c.bf16 %v2271, %v2270
    %2280 = vst [vmem:[#allocation4] sm:$0xff] %v2272
    %2281 = vst [vmem:[#allocation4 + $0x48] sm:$0xff] %v2273
    %2282 = vst [vmem:[#allocation4 + $0x90] sm:$0xff] %v2274
    %2283 = vst [vmem:[#allocation4 + $0xd8] sm:$0xff] %v2275
    %2284 = vst [vmem:[#allocation4 + $0x120] sm:$0xff] %v2276
    %2285 = vst [vmem:[#allocation4 + $0x168] sm:$0xff] %v2277
    %2286 = vst [vmem:[#allocation4 + $0x1b0] sm:$0xff] %v2278
    %2287 = vst [vmem:[#allocation4 + $0x1f8] sm:$0xff] %v2279
    %v2288 = vld [vmem:[#allocation3 + $0x1] sm:$0xff]
    %v2289 = vld [vmem:[#allocation3 + $0x11] sm:$0xff]
    %v2290 = vld [vmem:[#allocation3 + $0x21] sm:$0xff]
    %v2291 = vld [vmem:[#allocation3 + $0x31] sm:$0xff]
    %v2292 = vld [vmem:[#allocation3 + $0x41] sm:$0xff]
    %v2293 = vld [vmem:[#allocation3 + $0x51] sm:$0xff]
    %v2294 = vld [vmem:[#allocation3 + $0x61] sm:$0xff]
    %v2295 = vld [vmem:[#allocation3 + $0x71] sm:$0xff]
    %v2296 = vld [vmem:[#allocation3 + $0xa1] sm:$0xff]
    %v2297 = vld [vmem:[#allocation3 + $0xb1] sm:$0xff]
    %v2298 = vld [vmem:[#allocation3 + $0xc1] sm:$0xff]
    %v2299 = vld [vmem:[#allocation3 + $0xd1] sm:$0xff]
    %v2300 = vld [vmem:[#allocation3 + $0xe1] sm:$0xff]
    %v2301 = vld [vmem:[#allocation3 + $0xf1] sm:$0xff]
    %v2302 = vld [vmem:[#allocation3 + $0x101] sm:$0xff]
    %v2303 = vld [vmem:[#allocation3 + $0x111] sm:$0xff]
    %v2304 = vpack.c.bf16 %v2289, %v2288
    %v2305 = vpack.c.bf16 %v2291, %v2290
    %v2306 = vpack.c.bf16 %v2293, %v2292
    %v2307 = vpack.c.bf16 %v2295, %v2294
    %v2308 = vpack.c.bf16 %v2297, %v2296
    %v2309 = vpack.c.bf16 %v2299, %v2298
    %v2310 = vpack.c.bf16 %v2301, %v2300
    %v2311 = vpack.c.bf16 %v2303, %v2302
    %2312 = vst [vmem:[#allocation4 + $0x8] sm:$0xff] %v2304
    %2313 = vst [vmem:[#allocation4 + $0x50] sm:$0xff] %v2305
    %2314 = vst [vmem:[#allocation4 + $0x98] sm:$0xff] %v2306
    %2315 = vst [vmem:[#allocation4 + $0xe0] sm:$0xff] %v2307
    %2316 = vst [vmem:[#allocation4 + $0x128] sm:$0xff] %v2308
    %2317 = vst [vmem:[#allocation4 + $0x170] sm:$0xff] %v2309
    %2318 = vst [vmem:[#allocation4 + $0x1b8] sm:$0xff] %v2310
    %2319 = vst [vmem:[#allocation4 + $0x200] sm:$0xff] %v2311
    %v2320 = vld [vmem:[#allocation3 + $0x2] sm:$0xff]
    %v2321 = vld [vmem:[#allocation3 + $0x12] sm:$0xff]
    %v2322 = vld [vmem:[#allocation3 + $0x22] sm:$0xff]
    %v2323 = vld [vmem:[#allocation3 + $0x32] sm:$0xff]
    %v2324 = vld [vmem:[#allocation3 + $0x42] sm:$0xff]
    %v2325 = vld [vmem:[#allocation3 + $0x52] sm:$0xff]
    %v2326 = vld [vmem:[#allocation3 + $0x62] sm:$0xff]
    %v2327 = vld [vmem:[#allocation3 + $0x72] sm:$0xff]
    %v2328 = vld [vmem:[#allocation3 + $0xa2] sm:$0xff]
    %v2329 = vld [vmem:[#allocation3 + $0xb2] sm:$0xff]
    %v2330 = vld [vmem:[#allocation3 + $0xc2] sm:$0xff]
    %v2331 = vld [vmem:[#allocation3 + $0xd2] sm:$0xff]
    %v2332 = vld [vmem:[#allocation3 + $0xe2] sm:$0xff]
    %v2333 = vld [vmem:[#allocation3 + $0xf2] sm:$0xff]
    %v2334 = vld [vmem:[#allocation3 + $0x102] sm:$0xff]
    %v2335 = vld [vmem:[#allocation3 + $0x112] sm:$0xff]
    %v2336 = vpack.c.bf16 %v2321, %v2320
    %v2337 = vpack.c.bf16 %v2323, %v2322
    %v2338 = vpack.c.bf16 %v2325, %v2324
    %v2339 = vpack.c.bf16 %v2327, %v2326
    %v2340 = vpack.c.bf16 %v2329, %v2328
    %v2341 = vpack.c.bf16 %v2331, %v2330
    %v2342 = vpack.c.bf16 %v2333, %v2332
    %v2343 = vpack.c.bf16 %v2335, %v2334
    %2344 = vst [vmem:[#allocation4 + $0x10] sm:$0xff] %v2336
    %2345 = vst [vmem:[#allocation4 + $0x58] sm:$0xff] %v2337
    %2346 = vst [vmem:[#allocation4 + $0xa0] sm:$0xff] %v2338
    %2347 = vst [vmem:[#allocation4 + $0xe8] sm:$0xff] %v2339
    %2348 = vst [vmem:[#allocation4 + $0x130] sm:$0xff] %v2340
    %2349 = vst [vmem:[#allocation4 + $0x178] sm:$0xff] %v2341
    %2350 = vst [vmem:[#allocation4 + $0x1c0] sm:$0xff] %v2342
    %2351 = vst [vmem:[#allocation4 + $0x208] sm:$0xff] %v2343
    %v2352 = vld [vmem:[%s2239] sm:$0xff]
    %v2353 = vld [vmem:[%s2239 + $0x10] sm:$0xff]
    %v2354 = vld [vmem:[%s2239 + $0x20] sm:$0xff]
    %v2355 = vld [vmem:[%s2239 + $0x30] sm:$0xff]
    %v2356 = vld [vmem:[%s2239 + $0x40] sm:$0xff]
    %v2357 = vld [vmem:[%s2239 + $0x50] sm:$0xff]
    %v2358 = vld [vmem:[%s2239 + $0x60] sm:$0xff]
    %v2359 = vld [vmem:[%s2239 + $0x70] sm:$0xff]
    %v2360 = vld [vmem:[%s2239 + $0xa0] sm:$0xff]
    %v2361 = vld [vmem:[%s2239 + $0xb0] sm:$0xff]
    %v2362 = vld [vmem:[%s2239 + $0xc0] sm:$0xff]
    %v2363 = vld [vmem:[%s2239 + $0xd0] sm:$0xff]
    %v2364 = vld [vmem:[%s2239 + $0xe0] sm:$0xff]
    %v2365 = vld [vmem:[%s2239 + $0xf0] sm:$0xff]
    %v2366 = vld [vmem:[%s2239 + $0x100] sm:$0xff]
    %v2367 = vld [vmem:[%s2239 + $0x110] sm:$0xff]
    %v2368 = vpack.c.bf16 %v2353, %v2352
    %v2369 = vpack.c.bf16 %v2355, %v2354
    %v2370 = vpack.c.bf16 %v2357, %v2356
    %v2371 = vpack.c.bf16 %v2359, %v2358
    %v2372 = vpack.c.bf16 %v2361, %v2360
    %v2373 = vpack.c.bf16 %v2363, %v2362
    %v2374 = vpack.c.bf16 %v2365, %v2364
    %v2375 = vpack.c.bf16 %v2367, %v2366
    %2376 = vst [vmem:[#allocation4 + $0x18] sm:$0xff] %v2368
    %2377 = vst [vmem:[#allocation4 + $0x60] sm:$0xff] %v2369
    %2378 = vst [vmem:[#allocation4 + $0xa8] sm:$0xff] %v2370
    %2379 = vst [vmem:[#allocation4 + $0xf0] sm:$0xff] %v2371
    %2380 = vst [vmem:[#allocation4 + $0x138] sm:$0xff] %v2372
    %2381 = vst [vmem:[#allocation4 + $0x180] sm:$0xff] %v2373
    %2382 = vst [vmem:[#allocation4 + $0x1c8] sm:$0xff] %v2374
    %2383 = vst [vmem:[#allocation4 + $0x210] sm:$0xff] %v2375
    %v2384 = vld [vmem:[%s2239 + $0x1] sm:$0xff]
    %v2385 = vld [vmem:[%s2239 + $0x11] sm:$0xff]
    %v2386 = vld [vmem:[%s2239 + $0x21] sm:$0xff]
    %v2387 = vld [vmem:[%s2239 + $0x31] sm:$0xff]
    %v2388 = vld [vmem:[%s2239 + $0x41] sm:$0xff]
    %v2389 = vld [vmem:[%s2239 + $0x51] sm:$0xff]
    %v2390 = vld [vmem:[%s2239 + $0x61] sm:$0xff]
    %v2391 = vld [vmem:[%s2239 + $0x71] sm:$0xff]
    %v2392 = vld [vmem:[%s2239 + $0xa1] sm:$0xff]
    %v2393 = vld [vmem:[%s2239 + $0xb1] sm:$0xff]
    %v2394 = vld [vmem:[%s2239 + $0xc1] sm:$0xff]
    %v2395 = vld [vmem:[%s2239 + $0xd1] sm:$0xff]
    %v2396 = vld [vmem:[%s2239 + $0xe1] sm:$0xff]
    %v2397 = vld [vmem:[%s2239 + $0xf1] sm:$0xff]
    %v2398 = vld [vmem:[%s2239 + $0x101] sm:$0xff]
    %v2399 = vld [vmem:[%s2239 + $0x111] sm:$0xff]
    %v2400 = vpack.c.bf16 %v2385, %v2384
    %v2401 = vpack.c.bf16 %v2387, %v2386
    %v2402 = vpack.c.bf16 %v2389, %v2388
    %v2403 = vpack.c.bf16 %v2391, %v2390
    %v2404 = vpack.c.bf16 %v2393, %v2392
    %v2405 = vpack.c.bf16 %v2395, %v2394
    %v2406 = vpack.c.bf16 %v2397, %v2396
    %v2407 = vpack.c.bf16 %v2399, %v2398
    %2408 = vst [vmem:[#allocation4 + $0x20] sm:$0xff] %v2400
    %2409 = vst [vmem:[#allocation4 + $0x68] sm:$0xff] %v2401
    %2410 = vst [vmem:[#allocation4 + $0xb0] sm:$0xff] %v2402
    %2411 = vst [vmem:[#allocation4 + $0xf8] sm:$0xff] %v2403
    %2412 = vst [vmem:[#allocation4 + $0x140] sm:$0xff] %v2404
    %2413 = vst [vmem:[#allocation4 + $0x188] sm:$0xff] %v2405
    %2414 = vst [vmem:[#allocation4 + $0x1d0] sm:$0xff] %v2406
    %2415 = vst [vmem:[#allocation4 + $0x218] sm:$0xff] %v2407
    %v2416 = vld [vmem:[%s2239 + $0x2] sm:$0xff]
    %v2417 = vld [vmem:[%s2239 + $0x12] sm:$0xff]
    %v2418 = vld [vmem:[%s2239 + $0x22] sm:$0xff]
    %v2419 = vld [vmem:[%s2239 + $0x32] sm:$0xff]
    %v2420 = vld [vmem:[%s2239 + $0x42] sm:$0xff]
    %v2421 = vld [vmem:[%s2239 + $0x52] sm:$0xff]
    %v2422 = vld [vmem:[%s2239 + $0x62] sm:$0xff]
    %v2423 = vld [vmem:[%s2239 + $0x72] sm:$0xff]
    %v2424 = vld [vmem:[%s2239 + $0xa2] sm:$0xff]
    %v2425 = vld [vmem:[%s2239 + $0xb2] sm:$0xff]
    %v2426 = vld [vmem:[%s2239 + $0xc2] sm:$0xff]
    %v2427 = vld [vmem:[%s2239 + $0xd2] sm:$0xff]
    %v2428 = vld [vmem:[%s2239 + $0xe2] sm:$0xff]
    %v2429 = vld [vmem:[%s2239 + $0xf2] sm:$0xff]
    %v2430 = vld [vmem:[%s2239 + $0x102] sm:$0xff]
    %v2431 = vld [vmem:[%s2239 + $0x112] sm:$0xff]
    %v2432 = vpack.c.bf16 %v2417, %v2416
    %v2433 = vpack.c.bf16 %v2419, %v2418
    %v2434 = vpack.c.bf16 %v2421, %v2420
    %v2435 = vpack.c.bf16 %v2423, %v2422
    %v2436 = vpack.c.bf16 %v2425, %v2424
    %v2437 = vpack.c.bf16 %v2427, %v2426
    %v2438 = vpack.c.bf16 %v2429, %v2428
    %v2439 = vpack.c.bf16 %v2431, %v2430
    %2440 = vst [vmem:[#allocation4 + $0x28] sm:$0xff] %v2432
    %2441 = vst [vmem:[#allocation4 + $0x70] sm:$0xff] %v2433
    %2442 = vst [vmem:[#allocation4 + $0xb8] sm:$0xff] %v2434
    %2443 = vst [vmem:[#allocation4 + $0x100] sm:$0xff] %v2435
    %2444 = vst [vmem:[#allocation4 + $0x148] sm:$0xff] %v2436
    %2445 = vst [vmem:[#allocation4 + $0x190] sm:$0xff] %v2437
    %2446 = vst [vmem:[#allocation4 + $0x1d8] sm:$0xff] %v2438
    %2447 = vst [vmem:[#allocation4 + $0x220] sm:$0xff] %v2439
    %s2448 = scalar_lea.vmem [#allocation3], 32
    %v2449 = vld [vmem:[%s2448] sm:$0xff]
    %v2450 = vld [vmem:[%s2448 + $0x10] sm:$0xff]
    %v2451 = vld [vmem:[%s2448 + $0x20] sm:$0xff]
    %v2452 = vld [vmem:[%s2448 + $0x30] sm:$0xff]
    %v2453 = vld [vmem:[%s2448 + $0x40] sm:$0xff]
    %v2454 = vld [vmem:[%s2448 + $0x50] sm:$0xff]
    %v2455 = vld [vmem:[%s2448 + $0x60] sm:$0xff]
    %v2456 = vld [vmem:[%s2448 + $0x70] sm:$0xff]
    %v2457 = vld [vmem:[%s2448 + $0xa0] sm:$0xff]
    %v2458 = vld [vmem:[%s2448 + $0xb0] sm:$0xff]
    %v2459 = vld [vmem:[%s2448 + $0xc0] sm:$0xff]
    %v2460 = vld [vmem:[%s2448 + $0xd0] sm:$0xff]
    %v2461 = vld [vmem:[%s2448 + $0xe0] sm:$0xff]
    %v2462 = vld [vmem:[%s2448 + $0xf0] sm:$0xff]
    %v2463 = vld [vmem:[%s2448 + $0x100] sm:$0xff]
    %v2464 = vld [vmem:[%s2448 + $0x110] sm:$0xff]
    %v2465 = vpack.c.bf16 %v2450, %v2449
    %v2466 = vpack.c.bf16 %v2452, %v2451
    %v2467 = vpack.c.bf16 %v2454, %v2453
    %v2468 = vpack.c.bf16 %v2456, %v2455
    %v2469 = vpack.c.bf16 %v2458, %v2457
    %v2470 = vpack.c.bf16 %v2460, %v2459
    %v2471 = vpack.c.bf16 %v2462, %v2461
    %v2472 = vpack.c.bf16 %v2464, %v2463
    %2473 = vst [vmem:[#allocation4 + $0x30] sm:$0xff] %v2465
    %2474 = vst [vmem:[#allocation4 + $0x78] sm:$0xff] %v2466
    %2475 = vst [vmem:[#allocation4 + $0xc0] sm:$0xff] %v2467
    %2476 = vst [vmem:[#allocation4 + $0x108] sm:$0xff] %v2468
    %2477 = vst [vmem:[#allocation4 + $0x150] sm:$0xff] %v2469
    %2478 = vst [vmem:[#allocation4 + $0x198] sm:$0xff] %v2470
    %2479 = vst [vmem:[#allocation4 + $0x1e0] sm:$0xff] %v2471
    %2480 = vst [vmem:[#allocation4 + $0x228] sm:$0xff] %v2472
    %v2481 = vld [vmem:[%s2448 + $0x1] sm:$0xff]
    %v2482 = vld [vmem:[%s2448 + $0x11] sm:$0xff]
    %v2483 = vld [vmem:[%s2448 + $0x21] sm:$0xff]
    %v2484 = vld [vmem:[%s2448 + $0x31] sm:$0xff]
    %v2485 = vld [vmem:[%s2448 + $0x41] sm:$0xff]
    %v2486 = vld [vmem:[%s2448 + $0x51] sm:$0xff]
    %v2487 = vld [vmem:[%s2448 + $0x61] sm:$0xff]
    %v2488 = vld [vmem:[%s2448 + $0x71] sm:$0xff]
    %v2489 = vld [vmem:[%s2448 + $0xa1] sm:$0xff]
    %v2490 = vld [vmem:[%s2448 + $0xb1] sm:$0xff]
    %v2491 = vld [vmem:[%s2448 + $0xc1] sm:$0xff]
    %v2492 = vld [vmem:[%s2448 + $0xd1] sm:$0xff]
    %v2493 = vld [vmem:[%s2448 + $0xe1] sm:$0xff]
    %v2494 = vld [vmem:[%s2448 + $0xf1] sm:$0xff]
    %v2495 = vld [vmem:[%s2448 + $0x101] sm:$0xff]
    %v2496 = vld [vmem:[%s2448 + $0x111] sm:$0xff]
    %v2497 = vpack.c.bf16 %v2482, %v2481
    %v2498 = vpack.c.bf16 %v2484, %v2483
    %v2499 = vpack.c.bf16 %v2486, %v2485
    %v2500 = vpack.c.bf16 %v2488, %v2487
    %v2501 = vpack.c.bf16 %v2490, %v2489
    %v2502 = vpack.c.bf16 %v2492, %v2491
    %v2503 = vpack.c.bf16 %v2494, %v2493
    %v2504 = vpack.c.bf16 %v2496, %v2495
    %2505 = vst [vmem:[#allocation4 + $0x38] sm:$0xff] %v2497
    %2506 = vst [vmem:[#allocation4 + $0x80] sm:$0xff] %v2498
    %2507 = vst [vmem:[#allocation4 + $0xc8] sm:$0xff] %v2499
    %2508 = vst [vmem:[#allocation4 + $0x110] sm:$0xff] %v2500
    %2509 = vst [vmem:[#allocation4 + $0x158] sm:$0xff] %v2501
    %2510 = vst [vmem:[#allocation4 + $0x1a0] sm:$0xff] %v2502
    %2511 = vst [vmem:[#allocation4 + $0x1e8] sm:$0xff] %v2503
    %2512 = vst [vmem:[#allocation4 + $0x230] sm:$0xff] %v2504
    %v2513 = vld [vmem:[%s2448 + $0x2] sm:$0xff]
    %v2514 = vld [vmem:[%s2448 + $0x12] sm:$0xff]
    %v2515 = vld [vmem:[%s2448 + $0x22] sm:$0xff]
    %v2516 = vld [vmem:[%s2448 + $0x32] sm:$0xff]
    %v2517 = vld [vmem:[%s2448 + $0x42] sm:$0xff]
    %v2518 = vld [vmem:[%s2448 + $0x52] sm:$0xff]
    %v2519 = vld [vmem:[%s2448 + $0x62] sm:$0xff]
    %v2520 = vld [vmem:[%s2448 + $0x72] sm:$0xff]
    %v2521 = vld [vmem:[%s2448 + $0xa2] sm:$0xff]
    %v2522 = vld [vmem:[%s2448 + $0xb2] sm:$0xff]
    %v2523 = vld [vmem:[%s2448 + $0xc2] sm:$0xff]
    %v2524 = vld [vmem:[%s2448 + $0xd2] sm:$0xff]
    %v2525 = vld [vmem:[%s2448 + $0xe2] sm:$0xff]
    %v2526 = vld [vmem:[%s2448 + $0xf2] sm:$0xff]
    %v2527 = vld [vmem:[%s2448 + $0x102] sm:$0xff]
    %v2528 = vld [vmem:[%s2448 + $0x112] sm:$0xff]
    %v2529 = vpack.c.bf16 %v2514, %v2513
    %v2530 = vpack.c.bf16 %v2516, %v2515
    %v2531 = vpack.c.bf16 %v2518, %v2517
    %v2532 = vpack.c.bf16 %v2520, %v2519
    %v2533 = vpack.c.bf16 %v2522, %v2521
    %v2534 = vpack.c.bf16 %v2524, %v2523
    %v2535 = vpack.c.bf16 %v2526, %v2525
    %v2536 = vpack.c.bf16 %v2528, %v2527
    %2537 = vst [vmem:[#allocation4 + $0x40] sm:$0xff] %v2529
    %2538 = vst [vmem:[#allocation4 + $0x88] sm:$0xff] %v2530
    %2539 = vst [vmem:[#allocation4 + $0xd0] sm:$0xff] %v2531
    %2540 = vst [vmem:[#allocation4 + $0x118] sm:$0xff] %v2532
    %2541 = vst [vmem:[#allocation4 + $0x160] sm:$0xff] %v2533
    %2542 = vst [vmem:[#allocation4 + $0x1a8] sm:$0xff] %v2534
    %2543 = vst [vmem:[#allocation4 + $0x1f0] sm:$0xff] %v2535
    %2544 = vst [vmem:[#allocation4 + $0x238] sm:$0xff] %v2536
    %v2545 = vld [vmem:[#allocation4] sm:$0xff]
    %v2546 = vld [vmem:[#allocation4 + $0x8] sm:$0xff]
    %v2547 = vld [vmem:[#allocation4 + $0x10] sm:$0xff]
    %v2548 = vld [vmem:[#allocation4 + $0x18] sm:$0xff]
    %v2549 = vld [vmem:[#allocation4 + $0x20] sm:$0xff]
    %v2550 = vld [vmem:[#allocation4 + $0x28] sm:$0xff]
    %v2551 = vld [vmem:[#allocation4 + $0x30] sm:$0xff]
    %v2552 = vld [vmem:[#allocation4 + $0x38] sm:$0xff]
    %v2553 = vld [vmem:[#allocation4 + $0x40] sm:$0xff]
    %v2554 = vld [vmem:[#allocation4 + $0x48] sm:$0xff]
    %v2555 = vld [vmem:[#allocation4 + $0x50] sm:$0xff]
    %v2556 = vld [vmem:[#allocation4 + $0x58] sm:$0xff]
    %v2557 = vld [vmem:[#allocation4 + $0x60] sm:$0xff]
    %v2558 = vld [vmem:[#allocation4 + $0x68] sm:$0xff]
    %v2559 = vld [vmem:[#allocation4 + $0x70] sm:$0xff]
    %v2560 = vld [vmem:[#allocation4 + $0x78] sm:$0xff]
    %v2561 = vld [vmem:[#allocation4 + $0x80] sm:$0xff]
    %v2562 = vld [vmem:[#allocation4 + $0x88] sm:$0xff]
    %v2563 = vld [vmem:[#allocation4 + $0x90] sm:$0xff]
    %v2564 = vld [vmem:[#allocation4 + $0x98] sm:$0xff]
    %v2565 = vld [vmem:[#allocation4 + $0xa0] sm:$0xff]
    %v2566 = vld [vmem:[#allocation4 + $0xa8] sm:$0xff]
    %v2567 = vld [vmem:[#allocation4 + $0xb0] sm:$0xff]
    %v2568 = vld [vmem:[#allocation4 + $0xb8] sm:$0xff]
    %v2569 = vld [vmem:[#allocation4 + $0xc0] sm:$0xff]
    %v2570 = vld [vmem:[#allocation4 + $0xc8] sm:$0xff]
    %v2571 = vld [vmem:[#allocation4 + $0xd0] sm:$0xff]
    %v2572 = vld [vmem:[#allocation4 + $0xd8] sm:$0xff]
    %v2573 = vld [vmem:[#allocation4 + $0xe0] sm:$0xff]
    %v2574 = vld [vmem:[#allocation4 + $0xe8] sm:$0xff]
    %v2575 = vld [vmem:[#allocation4 + $0xf0] sm:$0xff]
    %v2576 = vld [vmem:[#allocation4 + $0xf8] sm:$0xff]
    %v2577 = vld [vmem:[#allocation4 + $0x100] sm:$0xff]
    %v2578 = vld [vmem:[#allocation4 + $0x108] sm:$0xff]
    %v2579 = vld [vmem:[#allocation4 + $0x110] sm:$0xff]
    %v2580 = vld [vmem:[#allocation4 + $0x118] sm:$0xff]
    %v2581 = vld [vmem:[#allocation4 + $0x120] sm:$0xff]
    %v2582 = vld [vmem:[#allocation4 + $0x128] sm:$0xff]
    %v2583 = vld [vmem:[#allocation4 + $0x130] sm:$0xff]
    %v2584 = vld [vmem:[#allocation4 + $0x138] sm:$0xff]
    %v2585 = vld [vmem:[#allocation4 + $0x140] sm:$0xff]
    %v2586 = vld [vmem:[#allocation4 + $0x148] sm:$0xff]
    %v2587 = vld [vmem:[#allocation4 + $0x150] sm:$0xff]
    %v2588 = vld [vmem:[#allocation4 + $0x158] sm:$0xff]
    %v2589 = vld [vmem:[#allocation4 + $0x160] sm:$0xff]
    %v2590 = vld [vmem:[#allocation4 + $0x168] sm:$0xff]
    %v2591 = vld [vmem:[#allocation4 + $0x170] sm:$0xff]
    %v2592 = vld [vmem:[#allocation4 + $0x178] sm:$0xff]
    %v2593 = vld [vmem:[#allocation4 + $0x180] sm:$0xff]
    %v2594 = vld [vmem:[#allocation4 + $0x188] sm:$0xff]
    %v2595 = vld [vmem:[#allocation4 + $0x190] sm:$0xff]
    %v2596 = vld [vmem:[#allocation4 + $0x198] sm:$0xff]
    %v2597 = vld [vmem:[#allocation4 + $0x1a0] sm:$0xff]
    %v2598 = vld [vmem:[#allocation4 + $0x1a8] sm:$0xff]
    %v2599 = vld [vmem:[#allocation4 + $0x1b0] sm:$0xff]
    %v2600 = vld [vmem:[#allocation4 + $0x1b8] sm:$0xff]
    %v2601 = vld [vmem:[#allocation4 + $0x1c0] sm:$0xff]
    %v2602 = vld [vmem:[#allocation4 + $0x1c8] sm:$0xff]
    %v2603 = vld [vmem:[#allocation4 + $0x1d0] sm:$0xff]
    %v2604 = vld [vmem:[#allocation4 + $0x1d8] sm:$0xff]
    %v2605 = vld [vmem:[#allocation4 + $0x1e0] sm:$0xff]
    %v2606 = vld [vmem:[#allocation4 + $0x1e8] sm:$0xff]
    %v2607 = vld [vmem:[#allocation4 + $0x1f0] sm:$0xff]
    %v2608 = vld [vmem:[#allocation4 + $0x1f8] sm:$0xff]
    %v2609 = vld [vmem:[#allocation4 + $0x200] sm:$0xff]
    %v2610 = vld [vmem:[#allocation4 + $0x208] sm:$0xff]
    %v2611 = vld [vmem:[#allocation4 + $0x210] sm:$0xff]
    %v2612 = vld [vmem:[#allocation4 + $0x218] sm:$0xff]
    %v2613 = vld [vmem:[#allocation4 + $0x220] sm:$0xff]
    %v2614 = vld [vmem:[#allocation4 + $0x228] sm:$0xff]
    %v2615 = vld [vmem:[#allocation4 + $0x230] sm:$0xff]
    %v2616 = vld [vmem:[#allocation4 + $0x238] sm:$0xff]
    %v2617 = vld [vmem:[#allocation10] sm:$0xf]
    %v2618 = vld [vmem:[#allocation10 + $0x4] sm:$0xf]
    %v2619 = vld [vmem:[#allocation10 + $0x8] sm:$0xf]
    %v2620 = vld [vmem:[#allocation10 + $0xc] sm:$0xf]
    %v2621 = vld [vmem:[#allocation10 + $0x10] sm:$0xf]
    %v2622 = vld [vmem:[#allocation10 + $0x14] sm:$0xf]
    %v2623 = vld [vmem:[#allocation10 + $0x18] sm:$0xf]
    %v2624 = vld [vmem:[#allocation10 + $0x1c] sm:$0xf]
    %v2625 = vld [vmem:[#allocation10 + $0x20] sm:$0xf]
    %v2626 = vld [vmem:[#allocation10 + $0x24] sm:$0xf]
    %v2627 = vld [vmem:[#allocation10 + $0x28] sm:$0xf]
    %v2628 = vld [vmem:[#allocation10 + $0x2c] sm:$0xf]
    %v2629 = vld [vmem:[#allocation10 + $0x30] sm:$0xf]
    %v2630 = vld [vmem:[#allocation10 + $0x34] sm:$0xf]
    %v2631 = vld [vmem:[#allocation10 + $0x38] sm:$0xf]
    %v2632 = vld [vmem:[#allocation10 + $0x3c] sm:$0xf]
    %v2633 = vld [vmem:[#allocation10 + $0x40] sm:$0xf]
    %v2634 = vld [vmem:[#allocation10 + $0x44] sm:$0xf]
    %v2635 = vld [vmem:[#allocation10 + $0x48] sm:$0xf]
    %v2636 = vld [vmem:[#allocation10 + $0x4c] sm:$0xf]
    %v2637 = vld [vmem:[#allocation10 + $0x50] sm:$0xf]
    %v2638 = vld [vmem:[#allocation10 + $0x54] sm:$0xf]
    %v2639 = vld [vmem:[#allocation10 + $0x58] sm:$0xf]
    %v2640 = vld [vmem:[#allocation10 + $0x5c] sm:$0xf]
    %v2641 = vld [vmem:[#allocation10 + $0x60] sm:$0xf]
    %v2642 = vld [vmem:[#allocation10 + $0x64] sm:$0xf]
    %v2643 = vld [vmem:[#allocation10 + $0x68] sm:$0xf]
    %v2644 = vld [vmem:[#allocation10 + $0x6c] sm:$0xf]
    %v2645 = vld [vmem:[#allocation10 + $0x70] sm:$0xf]
    %v2646 = vld [vmem:[#allocation10 + $0x74] sm:$0xf]
    %v2647 = vld [vmem:[#allocation10 + $0x78] sm:$0xf]
    %v2648 = vld [vmem:[#allocation10 + $0x7c] sm:$0xf]
    %v2649 = vld [vmem:[#allocation10 + $0x80] sm:$0xf]
    %v2650 = vld [vmem:[#allocation10 + $0x84] sm:$0xf]
    %v2651 = vld [vmem:[#allocation10 + $0x88] sm:$0xf]
    %v2652 = vld [vmem:[#allocation10 + $0x8c] sm:$0xf]
    %v2653 = vld [vmem:[#allocation10 + $0x90] sm:$0xf]
    %v2654 = vld [vmem:[#allocation10 + $0x94] sm:$0xf]
    %v2655 = vld [vmem:[#allocation10 + $0x98] sm:$0xf]
    %v2656 = vld [vmem:[#allocation10 + $0x9c] sm:$0xf]
    %v2657 = vld [vmem:[#allocation10 + $0xa0] sm:$0xf]
    %v2658 = vld [vmem:[#allocation10 + $0xa4] sm:$0xf]
    %v2659 = vld [vmem:[#allocation10 + $0xa8] sm:$0xf]
    %v2660 = vld [vmem:[#allocation10 + $0xac] sm:$0xf]
    %v2661 = vld [vmem:[#allocation10 + $0xb0] sm:$0xf]
    %v2662 = vld [vmem:[#allocation10 + $0xb4] sm:$0xf]
    %v2663 = vld [vmem:[#allocation10 + $0xb8] sm:$0xf]
    %v2664 = vld [vmem:[#allocation10 + $0xbc] sm:$0xf]
    %v2665 = vld [vmem:[#allocation10 + $0xc0] sm:$0xf]
    %v2666 = vld [vmem:[#allocation10 + $0xc4] sm:$0xf]
    %v2667 = vld [vmem:[#allocation10 + $0xc8] sm:$0xf]
    %v2668 = vld [vmem:[#allocation10 + $0xcc] sm:$0xf]
    %v2669 = vld [vmem:[#allocation10 + $0xd0] sm:$0xf]
    %v2670 = vld [vmem:[#allocation10 + $0xd4] sm:$0xf]
    %v2671 = vld [vmem:[#allocation10 + $0xd8] sm:$0xf]
    %v2672 = vld [vmem:[#allocation10 + $0xdc] sm:$0xf]
    %v2673 = vld [vmem:[#allocation10 + $0xe0] sm:$0xf]
    %v2674 = vld [vmem:[#allocation10 + $0xe4] sm:$0xf]
    %v2675 = vld [vmem:[#allocation10 + $0xe8] sm:$0xf]
    %v2676 = vld [vmem:[#allocation10 + $0xec] sm:$0xf]
    %v2677 = vld [vmem:[#allocation10 + $0xf0] sm:$0xf]
    %v2678 = vld [vmem:[#allocation10 + $0xf4] sm:$0xf]
    %v2679 = vld [vmem:[#allocation10 + $0xf8] sm:$0xf]
    %v2680 = vld [vmem:[#allocation10 + $0xfc] sm:$0xf]
    %v2681 = vld [vmem:[#allocation10 + $0x100] sm:$0xf]
    %v2682 = vld [vmem:[#allocation10 + $0x104] sm:$0xf]
    %v2683 = vld [vmem:[#allocation10 + $0x108] sm:$0xf]
    %v2684 = vld [vmem:[#allocation10 + $0x10c] sm:$0xf]
    %v2685 = vld [vmem:[#allocation10 + $0x110] sm:$0xf]
    %v2686 = vld [vmem:[#allocation10 + $0x114] sm:$0xf]
    %v2687 = vld [vmem:[#allocation10 + $0x118] sm:$0xf]
    %v2688 = vld [vmem:[#allocation10 + $0x11c] sm:$0xf]
    %v2689 = vld [vmem:[#allocation10 + $0x120] sm:$0xf]
    %v2690 = vld [vmem:[#allocation10 + $0x124] sm:$0xf]
    %v2691 = vld [vmem:[#allocation10 + $0x128] sm:$0xf]
    %v2692 = vld [vmem:[#allocation10 + $0x12c] sm:$0xf]
    %v2693 = vld [vmem:[#allocation10 + $0x130] sm:$0xf]
    %v2694 = vld [vmem:[#allocation10 + $0x134] sm:$0xf]
    %v2695 = vld [vmem:[#allocation10 + $0x138] sm:$0xf]
    %v2696 = vld [vmem:[#allocation10 + $0x13c] sm:$0xf]
    %v2697 = vld [vmem:[#allocation10 + $0x140] sm:$0xf]
    %v2698 = vld [vmem:[#allocation10 + $0x144] sm:$0xf]
    %v2699 = vld [vmem:[#allocation10 + $0x148] sm:$0xf]
    %v2700 = vld [vmem:[#allocation10 + $0x14c] sm:$0xf]
    %v2701 = vld [vmem:[#allocation10 + $0x150] sm:$0xf]
    %v2702 = vld [vmem:[#allocation10 + $0x154] sm:$0xf]
    %v2703 = vld [vmem:[#allocation10 + $0x158] sm:$0xf]
    %v2704 = vld [vmem:[#allocation10 + $0x15c] sm:$0xf]
    %v2705 = vld [vmem:[#allocation10 + $0x160] sm:$0xf]
    %v2706 = vld [vmem:[#allocation10 + $0x164] sm:$0xf]
    %v2707 = vld [vmem:[#allocation10 + $0x168] sm:$0xf]
    %v2708 = vld [vmem:[#allocation10 + $0x16c] sm:$0xf]
    %v2709 = vld [vmem:[#allocation10 + $0x170] sm:$0xf]
    %v2710 = vld [vmem:[#allocation10 + $0x174] sm:$0xf]
    %v2711 = vld [vmem:[#allocation10 + $0x178] sm:$0xf]
    %v2712 = vld [vmem:[#allocation10 + $0x17c] sm:$0xf]
    %v2713 = vld [vmem:[#allocation10 + $0x180] sm:$0xf]
    %v2714 = vld [vmem:[#allocation10 + $0x184] sm:$0xf]
    %v2715 = vld [vmem:[#allocation10 + $0x188] sm:$0xf]
    %v2716 = vld [vmem:[#allocation10 + $0x18c] sm:$0xf]
    %v2717 = vld [vmem:[#allocation10 + $0x190] sm:$0xf]
    %v2718 = vld [vmem:[#allocation10 + $0x194] sm:$0xf]
    %v2719 = vld [vmem:[#allocation10 + $0x198] sm:$0xf]
    %v2720 = vld [vmem:[#allocation10 + $0x19c] sm:$0xf]
    %v2721 = vld [vmem:[#allocation10 + $0x1a0] sm:$0xf]
    %v2722 = vld [vmem:[#allocation10 + $0x1a4] sm:$0xf]
    %v2723 = vld [vmem:[#allocation10 + $0x1a8] sm:$0xf]
    %v2724 = vld [vmem:[#allocation10 + $0x1ac] sm:$0xf]
    %v2725 = vld [vmem:[#allocation10 + $0x1b0] sm:$0xf]
    %v2726 = vld [vmem:[#allocation10 + $0x1b4] sm:$0xf]
    %v2727 = vld [vmem:[#allocation10 + $0x1b8] sm:$0xf]
    %v2728 = vld [vmem:[#allocation10 + $0x1bc] sm:$0xf]
    %v2729 = vld [vmem:[#allocation10 + $0x1c0] sm:$0xf]
    %v2730 = vld [vmem:[#allocation10 + $0x1c4] sm:$0xf]
    %v2731 = vld [vmem:[#allocation10 + $0x1c8] sm:$0xf]
    %v2732 = vld [vmem:[#allocation10 + $0x1cc] sm:$0xf]
    %v2733 = vld [vmem:[#allocation10 + $0x1d0] sm:$0xf]
    %v2734 = vld [vmem:[#allocation10 + $0x1d4] sm:$0xf]
    %v2735 = vld [vmem:[#allocation10 + $0x1d8] sm:$0xf]
    %v2736 = vld [vmem:[#allocation10 + $0x1dc] sm:$0xf]
    %v2737 = vld [vmem:[#allocation10 + $0x1e0] sm:$0xf]
    %v2738 = vld [vmem:[#allocation10 + $0x1e4] sm:$0xf]
    %v2739 = vld [vmem:[#allocation10 + $0x1e8] sm:$0xf]
    %v2740 = vld [vmem:[#allocation10 + $0x1ec] sm:$0xf]
    %v2741 = vld [vmem:[#allocation10 + $0x1f0] sm:$0xf]
    %v2742 = vld [vmem:[#allocation10 + $0x1f4] sm:$0xf]
    %v2743 = vld [vmem:[#allocation10 + $0x1f8] sm:$0xf]
    %v2744 = vld [vmem:[#allocation10 + $0x1fc] sm:$0xf]
    %v2745 = vld [vmem:[#allocation10 + $0x200] sm:$0xf]
    %v2746 = vld [vmem:[#allocation10 + $0x204] sm:$0xf]
    %v2747 = vld [vmem:[#allocation10 + $0x208] sm:$0xf]
    %v2748 = vld [vmem:[#allocation10 + $0x20c] sm:$0xf]
    %v2749 = vld [vmem:[#allocation10 + $0x210] sm:$0xf]
    %v2750 = vld [vmem:[#allocation10 + $0x214] sm:$0xf]
    %v2751 = vld [vmem:[#allocation10 + $0x218] sm:$0xf]
    %v2752 = vld [vmem:[#allocation10 + $0x21c] sm:$0xf]
    %v2753 = vld [vmem:[#allocation10 + $0x220] sm:$0xf]
    %v2754 = vld [vmem:[#allocation10 + $0x224] sm:$0xf]
    %v2755 = vld [vmem:[#allocation10 + $0x228] sm:$0xf]
    %v2756 = vld [vmem:[#allocation10 + $0x22c] sm:$0xf]
    %v2757 = vld [vmem:[#allocation10 + $0x230] sm:$0xf]
    %v2758 = vld [vmem:[#allocation10 + $0x234] sm:$0xf]
    %v2759 = vld [vmem:[#allocation10 + $0x238] sm:$0xf]
    %v2760 = vld [vmem:[#allocation10 + $0x23c] sm:$0xf]
    %v2905 = vunpack.c.l.b16 %v2617
    %v2906 = vunpack.c.l.b16 %v2618
    %v2907 = vunpack.c.l.b16 %v2619
    %v2908 = vunpack.c.l.b16 %v2620
    %v2909 = vunpack.c.l.b16 %v2621
    %v2910 = vunpack.c.l.b16 %v2622
    %v2911 = vunpack.c.l.b16 %v2623
    %v2912 = vunpack.c.l.b16 %v2624
    %v2913 = vunpack.c.l.b16 %v2625
    %v2914 = vunpack.c.l.b16 %v2626
    %v2915 = vunpack.c.l.b16 %v2627
    %v2916 = vunpack.c.l.b16 %v2628
    %v2917 = vunpack.c.l.b16 %v2629
    %v2918 = vunpack.c.l.b16 %v2630
    %v2919 = vunpack.c.l.b16 %v2631
    %v2920 = vunpack.c.l.b16 %v2632
    %v2921 = vunpack.c.l.b16 %v2633
    %v2922 = vunpack.c.l.b16 %v2634
    %v2923 = vunpack.c.l.b16 %v2635
    %v2924 = vunpack.c.l.b16 %v2636
    %v2925 = vunpack.c.l.b16 %v2637
    %v2926 = vunpack.c.l.b16 %v2638
    %v2927 = vunpack.c.l.b16 %v2639
    %v2928 = vunpack.c.l.b16 %v2640
    %v2929 = vunpack.c.l.b16 %v2641
    %v2930 = vunpack.c.l.b16 %v2642
    %v2931 = vunpack.c.l.b16 %v2643
    %v2932 = vunpack.c.l.b16 %v2644
    %v2933 = vunpack.c.l.b16 %v2645
    %v2934 = vunpack.c.l.b16 %v2646
    %v2935 = vunpack.c.l.b16 %v2647
    %v2936 = vunpack.c.l.b16 %v2648
    %v2937 = vunpack.c.l.b16 %v2649
    %v2938 = vunpack.c.l.b16 %v2650
    %v2939 = vunpack.c.l.b16 %v2651
    %v2940 = vunpack.c.l.b16 %v2652
    %v2941 = vunpack.c.l.b16 %v2653
    %v2942 = vunpack.c.l.b16 %v2654
    %v2943 = vunpack.c.l.b16 %v2655
    %v2944 = vunpack.c.l.b16 %v2656
    %v2945 = vunpack.c.l.b16 %v2657
    %v2946 = vunpack.c.l.b16 %v2658
    %v2947 = vunpack.c.l.b16 %v2659
    %v2948 = vunpack.c.l.b16 %v2660
    %v2949 = vunpack.c.l.b16 %v2661
    %v2950 = vunpack.c.l.b16 %v2662
    %v2951 = vunpack.c.l.b16 %v2663
    %v2952 = vunpack.c.l.b16 %v2664
    %v2953 = vunpack.c.l.b16 %v2665
    %v2954 = vunpack.c.l.b16 %v2666
    %v2955 = vunpack.c.l.b16 %v2667
    %v2956 = vunpack.c.l.b16 %v2668
    %v2957 = vunpack.c.l.b16 %v2669
    %v2958 = vunpack.c.l.b16 %v2670
    %v2959 = vunpack.c.l.b16 %v2671
    %v2960 = vunpack.c.l.b16 %v2672
    %v2961 = vunpack.c.l.b16 %v2673
    %v2962 = vunpack.c.l.b16 %v2674
    %v2963 = vunpack.c.l.b16 %v2675
    %v2964 = vunpack.c.l.b16 %v2676
    %v2965 = vunpack.c.l.b16 %v2677
    %v2966 = vunpack.c.l.b16 %v2678
    %v2967 = vunpack.c.l.b16 %v2679
    %v2968 = vunpack.c.l.b16 %v2680
    %v2969 = vunpack.c.l.b16 %v2681
    %v2970 = vunpack.c.l.b16 %v2682
    %v2971 = vunpack.c.l.b16 %v2683
    %v2972 = vunpack.c.l.b16 %v2684
    %v2973 = vunpack.c.l.b16 %v2685
    %v2974 = vunpack.c.l.b16 %v2686
    %v2975 = vunpack.c.l.b16 %v2687
    %v2976 = vunpack.c.l.b16 %v2688
    %v2977 = vunpack.c.l.b16 %v2689
    %v2978 = vunpack.c.l.b16 %v2690
    %v2979 = vunpack.c.l.b16 %v2691
    %v2980 = vunpack.c.l.b16 %v2692
    %v2981 = vunpack.c.l.b16 %v2693
    %v2982 = vunpack.c.l.b16 %v2694
    %v2983 = vunpack.c.l.b16 %v2695
    %v2984 = vunpack.c.l.b16 %v2696
    %v2985 = vunpack.c.l.b16 %v2697
    %v2986 = vunpack.c.l.b16 %v2698
    %v2987 = vunpack.c.l.b16 %v2699
    %v2988 = vunpack.c.l.b16 %v2700
    %v2989 = vunpack.c.l.b16 %v2701
    %v2990 = vunpack.c.l.b16 %v2702
    %v2991 = vunpack.c.l.b16 %v2703
    %v2992 = vunpack.c.l.b16 %v2704
    %v2993 = vunpack.c.l.b16 %v2705
    %v2994 = vunpack.c.l.b16 %v2706
    %v2995 = vunpack.c.l.b16 %v2707
    %v2996 = vunpack.c.l.b16 %v2708
    %v2997 = vunpack.c.l.b16 %v2709
    %v2998 = vunpack.c.l.b16 %v2710
    %v2999 = vunpack.c.l.b16 %v2711
    %v3000 = vunpack.c.l.b16 %v2712
    %v3001 = vunpack.c.l.b16 %v2713
    %v3002 = vunpack.c.l.b16 %v2714
    %v3003 = vunpack.c.l.b16 %v2715
    %v3004 = vunpack.c.l.b16 %v2716
    %v3005 = vunpack.c.l.b16 %v2717
    %v3006 = vunpack.c.l.b16 %v2718
    %v3007 = vunpack.c.l.b16 %v2719
    %v3008 = vunpack.c.l.b16 %v2720
    %v3009 = vunpack.c.l.b16 %v2721
    %v3010 = vunpack.c.l.b16 %v2722
    %v3011 = vunpack.c.l.b16 %v2723
    %v3012 = vunpack.c.l.b16 %v2724
    %v3013 = vunpack.c.l.b16 %v2725
    %v3014 = vunpack.c.l.b16 %v2726
    %v3015 = vunpack.c.l.b16 %v2727
    %v3016 = vunpack.c.l.b16 %v2728
    %v3017 = vunpack.c.l.b16 %v2729
    %v3018 = vunpack.c.l.b16 %v2730
    %v3019 = vunpack.c.l.b16 %v2731
    %v3020 = vunpack.c.l.b16 %v2732
    %v3021 = vunpack.c.l.b16 %v2733
    %v3022 = vunpack.c.l.b16 %v2734
    %v3023 = vunpack.c.l.b16 %v2735
    %v3024 = vunpack.c.l.b16 %v2736
    %v3025 = vunpack.c.l.b16 %v2737
    %v3026 = vunpack.c.l.b16 %v2738
    %v3027 = vunpack.c.l.b16 %v2739
    %v3028 = vunpack.c.l.b16 %v2740
    %v3029 = vunpack.c.l.b16 %v2741
    %v3030 = vunpack.c.l.b16 %v2742
    %v3031 = vunpack.c.l.b16 %v2743
    %v3032 = vunpack.c.l.b16 %v2744
    %v3033 = vunpack.c.l.b16 %v2745
    %v3034 = vunpack.c.l.b16 %v2746
    %v3035 = vunpack.c.l.b16 %v2747
    %v3036 = vunpack.c.l.b16 %v2748
    %v3037 = vunpack.c.l.b16 %v2749
    %v3038 = vunpack.c.l.b16 %v2750
    %v3039 = vunpack.c.l.b16 %v2751
    %v3040 = vunpack.c.l.b16 %v2752
    %v3041 = vunpack.c.l.b16 %v2753
    %v3042 = vunpack.c.l.b16 %v2754
    %v3043 = vunpack.c.l.b16 %v2755
    %v3044 = vunpack.c.l.b16 %v2756
    %v3045 = vunpack.c.l.b16 %v2757
    %v3046 = vunpack.c.l.b16 %v2758
    %v3047 = vunpack.c.l.b16 %v2759
    %v3048 = vunpack.c.l.b16 %v2760
    %v3049 = vpack.c.b16 %v2906, %v2905
    %v3050 = vpack.c.b16 %v2908, %v2907
    %v3051 = vpack.c.b16 %v2910, %v2909
    %v3052 = vpack.c.b16 %v2912, %v2911
    %v3053 = vpack.c.b16 %v2914, %v2913
    %v3054 = vpack.c.b16 %v2916, %v2915
    %v3055 = vpack.c.b16 %v2918, %v2917
    %v3056 = vpack.c.b16 %v2920, %v2919
    %v3057 = vpack.c.b16 %v2922, %v2921
    %v3058 = vpack.c.b16 %v2924, %v2923
    %v3059 = vpack.c.b16 %v2926, %v2925
    %v3060 = vpack.c.b16 %v2928, %v2927
    %v3061 = vpack.c.b16 %v2930, %v2929
    %v3062 = vpack.c.b16 %v2932, %v2931
    %v3063 = vpack.c.b16 %v2934, %v2933
    %v3064 = vpack.c.b16 %v2936, %v2935
    %v3065 = vpack.c.b16 %v2938, %v2937
    %v3066 = vpack.c.b16 %v2940, %v2939
    %v3067 = vpack.c.b16 %v2942, %v2941
    %v3068 = vpack.c.b16 %v2944, %v2943
    %v3069 = vpack.c.b16 %v2946, %v2945
    %v3070 = vpack.c.b16 %v2948, %v2947
    %v3071 = vpack.c.b16 %v2950, %v2949
    %v3072 = vpack.c.b16 %v2952, %v2951
    %v3073 = vpack.c.b16 %v2954, %v2953
    %v3074 = vpack.c.b16 %v2956, %v2955
    %v3075 = vpack.c.b16 %v2958, %v2957
    %v3076 = vpack.c.b16 %v2960, %v2959
    %v3077 = vpack.c.b16 %v2962, %v2961
    %v3078 = vpack.c.b16 %v2964, %v2963
    %v3079 = vpack.c.b16 %v2966, %v2965
    %v3080 = vpack.c.b16 %v2968, %v2967
    %v3081 = vpack.c.b16 %v2970, %v2969
    %v3082 = vpack.c.b16 %v2972, %v2971
    %v3083 = vpack.c.b16 %v2974, %v2973
    %v3084 = vpack.c.b16 %v2976, %v2975
    %v3085 = vpack.c.b16 %v2978, %v2977
    %v3086 = vpack.c.b16 %v2980, %v2979
    %v3087 = vpack.c.b16 %v2982, %v2981
    %v3088 = vpack.c.b16 %v2984, %v2983
    %v3089 = vpack.c.b16 %v2986, %v2985
    %v3090 = vpack.c.b16 %v2988, %v2987
    %v3091 = vpack.c.b16 %v2990, %v2989
    %v3092 = vpack.c.b16 %v2992, %v2991
    %v3093 = vpack.c.b16 %v2994, %v2993
    %v3094 = vpack.c.b16 %v2996, %v2995
    %v3095 = vpack.c.b16 %v2998, %v2997
    %v3096 = vpack.c.b16 %v3000, %v2999
    %v3097 = vpack.c.b16 %v3002, %v3001
    %v3098 = vpack.c.b16 %v3004, %v3003
    %v3099 = vpack.c.b16 %v3006, %v3005
    %v3100 = vpack.c.b16 %v3008, %v3007
    %v3101 = vpack.c.b16 %v3010, %v3009
    %v3102 = vpack.c.b16 %v3012, %v3011
    %v3103 = vpack.c.b16 %v3014, %v3013
    %v3104 = vpack.c.b16 %v3016, %v3015
    %v3105 = vpack.c.b16 %v3018, %v3017
    %v3106 = vpack.c.b16 %v3020, %v3019
    %v3107 = vpack.c.b16 %v3022, %v3021
    %v3108 = vpack.c.b16 %v3024, %v3023
    %v3109 = vpack.c.b16 %v3026, %v3025
    %v3110 = vpack.c.b16 %v3028, %v3027
    %v3111 = vpack.c.b16 %v3030, %v3029
    %v3112 = vpack.c.b16 %v3032, %v3031
    %v3113 = vpack.c.b16 %v3034, %v3033
    %v3114 = vpack.c.b16 %v3036, %v3035
    %v3115 = vpack.c.b16 %v3038, %v3037
    %v3116 = vpack.c.b16 %v3040, %v3039
    %v3117 = vpack.c.b16 %v3042, %v3041
    %v3118 = vpack.c.b16 %v3044, %v3043
    %v3119 = vpack.c.b16 %v3046, %v3045
    %v3120 = vpack.c.b16 %v3048, %v3047
    %3193 = vmatprep.subr.bf16.mxu0 0
    %3194 = vmatpush1.bf16.msra.mxu0 %v3049
    %3195 = vmatprep.subr.bf16.mxu0 0
    %3196 = vmatpush1.bf16.msra.mxu0 %v3050
    %3197 = vmatprep.subr.bf16.mxu0 0
    %3198 = vmatpush1.bf16.msra.mxu0 %v3051
    %3199 = vmatprep.subr.bf16.mxu0 0
    %3200 = vmatpush1.bf16.msra.mxu0 %v3052
    %3201 = vmatprep.subr.bf16.mxu0 0
    %3202 = vmatpush1.bf16.msra.mxu0 %v3053
    %3203 = vmatprep.subr.bf16.mxu0 0
    %3204 = vmatpush1.bf16.msra.mxu0 %v3054
    %3205 = vmatprep.subr.bf16.mxu0 0
    %3206 = vmatpush1.bf16.msra.mxu0 %v3055
    %3207 = vmatprep.subr.bf16.mxu0 0
    %3208 = vmatpush1.bf16.msra.mxu0 %v3056
    %3209 = vmatprep.subr.bf16.mxu0 0
    %3210 = vmatpush1.bf16.msra.mxu0 %v3057
    %3211 = vmatprep.subr.bf16.mxu0 0
    %3212 = vmatpush1.bf16.msra.mxu0 %v3058
    %3213 = vmatprep.subr.bf16.mxu0 0
    %3214 = vmatpush1.bf16.msra.mxu0 %v3059
    %3215 = vmatprep.subr.bf16.mxu0 0
    %3216 = vmatpush1.bf16.msra.mxu0 %v3060
    %3217 = vmatprep.subr.bf16.mxu0 0
    %3218 = vmatpush1.bf16.msra.mxu0 %v3061
    %3219 = vmatprep.subr.bf16.mxu0 0
    %3220 = vmatpush1.bf16.msra.mxu0 %v3062
    %3221 = vmatprep.subr.bf16.mxu0 0
    %3222 = vmatpush1.bf16.msra.mxu0 %v3063
    %3223 = vmatprep.subr.bf16.mxu0 0
    %3224 = vmatpush1.bf16.msra.mxu0 %v3064
    %3225 = vmatprep.mubr.bf16.mxu0 %v2546
    %3226 = vmatmul.mubr.bf16.gmra.mrb[0].mxu0 %v2545
    %v3227 = vpop.f32.mrb[0].mxu0
    %v3228 = vadd.f32 0.0, %v3227
    %v3229 = vpop.f32.mrb[0].mxu0
    %v3230 = vpop.f32.mrb[0].mxu0
    %v3231 = vadd.f32 0.0, %v3230
    %v3232 = vpop.f32.mrb[0].mxu0
    %3233 = vmatprep.mubr.bf16.mxu0 %v2555
    %3234 = vmatmul.mubr.bf16.gmra.mrb[0].mxu0 %v2554
    %v3235 = vpop.f32.mrb[0].mxu0
    %v3236 = vadd.f32 0.0, %v3235
    %v3237 = vpop.f32.mrb[0].mxu0
    %v3238 = vpop.f32.mrb[0].mxu0
    %v3239 = vadd.f32 0.0, %v3238
    %v3240 = vpop.f32.mrb[0].mxu0
    %3241 = vmatprep.mubr.bf16.mxu0 %v2564
    %3242 = vmatmul.mubr.bf16.gmra.mrb[0].mxu0 %v2563
    %v3243 = vpop.f32.mrb[0].mxu0
    %v3244 = vadd.f32 0.0, %v3243
    %v3245 = vpop.f32.mrb[0].mxu0
    %v3246 = vpop.f32.mrb[0].mxu0
    %v3247 = vadd.f32 0.0, %v3246
    %v3248 = vpop.f32.mrb[0].mxu0
    %3249 = vmatprep.mubr.bf16.mxu0 %v2573
    %3250 = vmatmul.mubr.bf16.gmra.mrb[0].mxu0 %v2572
    %v3251 = vpop.f32.mrb[0].mxu0
    %v3252 = vadd.f32 0.0, %v3251
    %v3253 = vpop.f32.mrb[0].mxu0
    %v3254 = vpop.f32.mrb[0].mxu0
    %v3255 = vadd.f32 0.0, %v3254
    %v3256 = vpop.f32.mrb[0].mxu0
    %3257 = vmatprep.mubr.bf16.mxu0 %v2582
    %3258 = vmatmul.mubr.bf16.gmra.mrb[0].mxu0 %v2581
    %v3259 = vpop.f32.mrb[0].mxu0
    %v3260 = vadd.f32 0.0, %v3259
    %v3261 = vpop.f32.mrb[0].mxu0
    %v3262 = vpop.f32.mrb[0].mxu0
    %v3263 = vadd.f32 0.0, %v3262
    %v3264 = vpop.f32.mrb[0].mxu0
    %3265 = vmatprep.mubr.bf16.mxu0 %v2591
    %3266 = vmatmul.mubr.bf16.gmra.mrb[0].mxu0 %v2590
    %v3267 = vpop.f32.mrb[0].mxu0
    %v3268 = vadd.f32 0.0, %v3267
    %v3269 = vpop.f32.mrb[0].mxu0
    %v3270 = vpop.f32.mrb[0].mxu0
    %v3271 = vadd.f32 0.0, %v3270
    %v3272 = vpop.f32.mrb[0].mxu0
    %3273 = vmatprep.mubr.bf16.mxu0 %v2600
    %3274 = vmatmul.mubr.bf16.gmra.mrb[0].mxu0 %v2599
    %v3275 = vpop.f32.mrb[0].mxu0
    %v3276 = vadd.f32 0.0, %v3275
    %v3277 = vpop.f32.mrb[0].mxu0
    %v3278 = vpop.f32.mrb[0].mxu0
    %v3279 = vadd.f32 0.0, %v3278
    %v3280 = vpop.f32.mrb[0].mxu0
    %3281 = vmatprep.mubr.bf16.mxu0 %v2609
    %3282 = vmatmul.mubr.bf16.gmra.mrb[0].mxu0 %v2608
    %v3283 = vpop.f32.mrb[0].mxu0
    %v3284 = vadd.f32 0.0, %v3283
    %v3285 = vpop.f32.mrb[0].mxu0
    %v3286 = vpop.f32.mrb[0].mxu0
    %v3287 = vadd.f32 0.0, %v3286
    %v3288 = vpop.f32.mrb[0].mxu0
    %3289 = vdwg.mxu0
    %3290 = vmatprep.subr.bf16.mxu0 0
    %3291 = vmatpush1.bf16.msra.mxu0 %v3065
    %3292 = vmatprep.subr.bf16.mxu0 0
    %3293 = vmatpush1.bf16.msra.mxu0 %v3066
    %3294 = vmatprep.subr.bf16.mxu0 0
    %3295 = vmatpush1.bf16.msra.mxu0 %v3067
    %3296 = vmatprep.subr.bf16.mxu0 0
    %3297 = vmatpush1.bf16.msra.mxu0 %v3068
    %3298 = vmatprep.subr.bf16.mxu0 0
    %3299 = vmatpush1.bf16.msra.mxu0 %v3069
    %3300 = vmatprep.subr.bf16.mxu0 0
    %3301 = vmatpush1.bf16.msra.mxu0 %v3070
    %3302 = vmatprep.subr.bf16.mxu0 0
    %3303 = vmatpush1.bf16.msra.mxu0 %v3071
    %3304 = vmatprep.subr.bf16.mxu0 0
    %3305 = vmatpush1.bf16.msra.mxu0 %v3072
    %3306 = vmatprep.subr.bf16.mxu0 0
    %3307 = vmatpush1.bf16.msra.mxu0 %v3073
    %3308 = vmatprep.subr.bf16.mxu0 0
    %3309 = vmatpush1.bf16.msra.mxu0 %v3074
    %3310 = vmatprep.subr.bf16.mxu0 0
    %3311 = vmatpush1.bf16.msra.mxu0 %v3075
    %3312 = vmatprep.subr.bf16.mxu0 0
    %3313 = vmatpush1.bf16.msra.mxu0 %v3076
    %3314 = vmatprep.subr.bf16.mxu0 0
    %3315 = vmatpush1.bf16.msra.mxu0 %v3077
    %3316 = vmatprep.subr.bf16.mxu0 0
    %3317 = vmatpush1.bf16.msra.mxu0 %v3078
    %3318 = vmatprep.subr.bf16.mxu0 0
    %3319 = vmatpush1.bf16.msra.mxu0 %v3079
    %3320 = vmatprep.subr.bf16.mxu0 0
    %3321 = vmatpush1.bf16.msra.mxu0 %v3080
    %3322 = vmatprep.mubr.bf16.mxu0 %v2548
    %3323 = vmatmul.mubr.bf16.gmra.mrb[0].mxu0 %v2547
    %v3324 = vpop.f32.mrb[0].mxu0
    %v3325 = vadd.f32 %v3228, %v3324
    %v3326 = vpop.f32.mrb[0].mxu0
    %v3327 = vpop.f32.mrb[0].mxu0
    %v3328 = vadd.f32 %v3231, %v3327
    %v3329 = vpop.f32.mrb[0].mxu0
    %3330 = vmatprep.mubr.bf16.mxu0 %v2557
    %3331 = vmatmul.mubr.bf16.gmra.mrb[0].mxu0 %v2556
    %v3332 = vpop.f32.mrb[0].mxu0
    %v3333 = vadd.f32 %v3236, %v3332
    %v3334 = vpop.f32.mrb[0].mxu0
    %v3335 = vpop.f32.mrb[0].mxu0
    %v3336 = vadd.f32 %v3239, %v3335
    %v3337 = vpop.f32.mrb[0].mxu0
    %3338 = vmatprep.mubr.bf16.mxu0 %v2566
    %3339 = vmatmul.mubr.bf16.gmra.mrb[0].mxu0 %v2565
    %v3340 = vpop.f32.mrb[0].mxu0
    %v3341 = vadd.f32 %v3244, %v3340
    %v3342 = vpop.f32.mrb[0].mxu0
    %v3343 = vpop.f32.mrb[0].mxu0
    %v3344 = vadd.f32 %v3247, %v3343
    %v3345 = vpop.f32.mrb[0].mxu0
    %3346 = vmatprep.mubr.bf16.mxu0 %v2575
    %3347 = vmatmul.mubr.bf16.gmra.mrb[0].mxu0 %v2574
    %v3348 = vpop.f32.mrb[0].mxu0
    %v3349 = vadd.f32 %v3252, %v3348
    %v3350 = vpop.f32.mrb[0].mxu0
    %v3351 = vpop.f32.mrb[0].mxu0
    %v3352 = vadd.f32 %v3255, %v3351
    %v3353 = vpop.f32.mrb[0].mxu0
    %3354 = vmatprep.mubr.bf16.mxu0 %v2584
    %3355 = vmatmul.mubr.bf16.gmra.mrb[0].mxu0 %v2583
    %v3356 = vpop.f32.mrb[0].mxu0
    %v3357 = vadd.f32 %v3260, %v3356
    %v3358 = vpop.f32.mrb[0].mxu0
    %v3359 = vpop.f32.mrb[0].mxu0
    %v3360 = vadd.f32 %v3263, %v3359
    %v3361 = vpop.f32.mrb[0].mxu0
    %3362 = vmatprep.mubr.bf16.mxu0 %v2593
    %3363 = vmatmul.mubr.bf16.gmra.mrb[0].mxu0 %v2592
    %v3364 = vpop.f32.mrb[0].mxu0
    %v3365 = vadd.f32 %v3268, %v3364
    %v3366 = vpop.f32.mrb[0].mxu0
    %v3367 = vpop.f32.mrb[0].mxu0
    %v3368 = vadd.f32 %v3271, %v3367
    %v3369 = vpop.f32.mrb[0].mxu0
    %3370 = vmatprep.mubr.bf16.mxu0 %v2602
    %3371 = vmatmul.mubr.bf16.gmra.mrb[0].mxu0 %v2601
    %v3372 = vpop.f32.mrb[0].mxu0
    %v3373 = vadd.f32 %v3276, %v3372
    %v3374 = vpop.f32.mrb[0].mxu0
    %v3375 = vpop.f32.mrb[0].mxu0
    %v3376 = vadd.f32 %v3279, %v3375
    %v3377 = vpop.f32.mrb[0].mxu0
    %3378 = vmatprep.mubr.bf16.mxu0 %v2611
    %3379 = vmatmul.mubr.bf16.gmra.mrb[0].mxu0 %v2610
    %v3380 = vpop.f32.mrb[0].mxu0
    %v3381 = vadd.f32 %v3284, %v3380
    %v3382 = vpop.f32.mrb[0].mxu0
    %v3383 = vpop.f32.mrb[0].mxu0
    %v3384 = vadd.f32 %v3287, %v3383
    %v3385 = vpop.f32.mrb[0].mxu0
    %3386 = vdwg.mxu0
    %3387 = vmatprep.subr.bf16.mxu0 0
    %3388 = vmatpush1.bf16.msra.mxu0 %v3081
    %3389 = vmatprep.subr.bf16.mxu0 0
    %3390 = vmatpush1.bf16.msra.mxu0 %v3082
    %3391 = vmatprep.subr.bf16.mxu0 0
    %3392 = vmatpush1.bf16.msra.mxu0 %v3083
    %3393 = vmatprep.subr.bf16.mxu0 0
    %3394 = vmatpush1.bf16.msra.mxu0 %v3084
    %3395 = vmatprep.subr.bf16.mxu0 0
    %3396 = vmatpush1.bf16.msra.mxu0 %v3085
    %3397 = vmatprep.subr.bf16.mxu0 0
    %3398 = vmatpush1.bf16.msra.mxu0 %v3086
    %3399 = vmatprep.subr.bf16.mxu0 0
    %3400 = vmatpush1.bf16.msra.mxu0 %v3087
    %3401 = vmatprep.subr.bf16.mxu0 0
    %3402 = vmatpush1.bf16.msra.mxu0 %v3088
    %3403 = vmatprep.subr.bf16.mxu0 0
    %3404 = vmatpush1.bf16.msra.mxu0 %v3089
    %3405 = vmatprep.subr.bf16.mxu0 0
    %3406 = vmatpush1.bf16.msra.mxu0 %v3090
    %3407 = vmatprep.subr.bf16.mxu0 0
    %3408 = vmatpush1.bf16.msra.mxu0 %v3091
    %3409 = vmatprep.subr.bf16.mxu0 0
    %3410 = vmatpush1.bf16.msra.mxu0 %v3092
    %3411 = vmatprep.subr.bf16.mxu0 0
    %3412 = vmatpush1.bf16.msra.mxu0 %v3093
    %3413 = vmatprep.subr.bf16.mxu0 0
    %3414 = vmatpush1.bf16.msra.mxu0 %v3094
    %3415 = vmatprep.subr.bf16.mxu0 0
    %3416 = vmatpush1.bf16.msra.mxu0 %v3095
    %3417 = vmatprep.subr.bf16.mxu0 0
    %3418 = vmatpush1.bf16.msra.mxu0 %v3096
    %3419 = vmatprep.mubr.bf16.mxu0 %v2550
    %3420 = vmatmul.mubr.bf16.gmra.mrb[0].mxu0 %v2549
    %v3421 = vpop.f32.mrb[0].mxu0
    %v3422 = vadd.f32 %v3325, %v3421
    %v3423 = vpop.f32.mrb[0].mxu0
    %v3424 = vpop.f32.mrb[0].mxu0
    %v3425 = vadd.f32 %v3328, %v3424
    %v3426 = vpop.f32.mrb[0].mxu0
    %3427 = vmatprep.mubr.bf16.mxu0 %v2559
    %3428 = vmatmul.mubr.bf16.gmra.mrb[0].mxu0 %v2558
    %v3429 = vpop.f32.mrb[0].mxu0
    %v3430 = vadd.f32 %v3333, %v3429
    %v3431 = vpop.f32.mrb[0].mxu0
    %v3432 = vpop.f32.mrb[0].mxu0
    %v3433 = vadd.f32 %v3336, %v3432
    %v3434 = vpop.f32.mrb[0].mxu0
    %3435 = vmatprep.mubr.bf16.mxu0 %v2568
    %3436 = vmatmul.mubr.bf16.gmra.mrb[0].mxu0 %v2567
    %v3437 = vpop.f32.mrb[0].mxu0
    %v3438 = vadd.f32 %v3341, %v3437
    %v3439 = vpop.f32.mrb[0].mxu0
    %v3440 = vpop.f32.mrb[0].mxu0
    %v3441 = vadd.f32 %v3344, %v3440
    %v3442 = vpop.f32.mrb[0].mxu0
    %3443 = vmatprep.mubr.bf16.mxu0 %v2577
    %3444 = vmatmul.mubr.bf16.gmra.mrb[0].mxu0 %v2576
    %v3445 = vpop.f32.mrb[0].mxu0
    %v3446 = vadd.f32 %v3349, %v3445
    %v3447 = vpop.f32.mrb[0].mxu0
    %v3448 = vpop.f32.mrb[0].mxu0
    %v3449 = vadd.f32 %v3352, %v3448
    %v3450 = vpop.f32.mrb[0].mxu0
    %3451 = vmatprep.mubr.bf16.mxu0 %v2586
    %3452 = vmatmul.mubr.bf16.gmra.mrb[0].mxu0 %v2585
    %v3453 = vpop.f32.mrb[0].mxu0
    %v3454 = vadd.f32 %v3357, %v3453
    %v3455 = vpop.f32.mrb[0].mxu0
    %v3456 = vpop.f32.mrb[0].mxu0
    %v3457 = vadd.f32 %v3360, %v3456
    %v3458 = vpop.f32.mrb[0].mxu0
    %3459 = vmatprep.mubr.bf16.mxu0 %v2595
    %3460 = vmatmul.mubr.bf16.gmra.mrb[0].mxu0 %v2594
    %v3461 = vpop.f32.mrb[0].mxu0
    %v3462 = vadd.f32 %v3365, %v3461
    %v3463 = vpop.f32.mrb[0].mxu0
    %v3464 = vpop.f32.mrb[0].mxu0
    %v3465 = vadd.f32 %v3368, %v3464
    %v3466 = vpop.f32.mrb[0].mxu0
    %3467 = vmatprep.mubr.bf16.mxu0 %v2604
    %3468 = vmatmul.mubr.bf16.gmra.mrb[0].mxu0 %v2603
    %v3469 = vpop.f32.mrb[0].mxu0
    %v3470 = vadd.f32 %v3373, %v3469
    %v3471 = vpop.f32.mrb[0].mxu0
    %v3472 = vpop.f32.mrb[0].mxu0
    %v3473 = vadd.f32 %v3376, %v3472
    %v3474 = vpop.f32.mrb[0].mxu0
    %3475 = vmatprep.mubr.bf16.mxu0 %v2613
    %3476 = vmatmul.mubr.bf16.gmra.mrb[0].mxu0 %v2612
    %v3477 = vpop.f32.mrb[0].mxu0
    %v3478 = vadd.f32 %v3381, %v3477
    %v3479 = vpop.f32.mrb[0].mxu0
    %v3480 = vpop.f32.mrb[0].mxu0
    %v3481 = vadd.f32 %v3384, %v3480
    %v3482 = vpop.f32.mrb[0].mxu0
    %3483 = vdwg.mxu0
    %3484 = vmatprep.subr.bf16.mxu0 0
    %3485 = vmatpush1.bf16.msra.mxu0 %v3097
    %3486 = vmatprep.subr.bf16.mxu0 0
    %3487 = vmatpush1.bf16.msra.mxu0 %v3098
    %3488 = vmatprep.subr.bf16.mxu0 0
    %3489 = vmatpush1.bf16.msra.mxu0 %v3099
    %3490 = vmatprep.subr.bf16.mxu0 0
    %3491 = vmatpush1.bf16.msra.mxu0 %v3100
    %3492 = vmatprep.subr.bf16.mxu0 0
    %3493 = vmatpush1.bf16.msra.mxu0 %v3101
    %3494 = vmatprep.subr.bf16.mxu0 0
    %3495 = vmatpush1.bf16.msra.mxu0 %v3102
    %3496 = vmatprep.subr.bf16.mxu0 0
    %3497 = vmatpush1.bf16.msra.mxu0 %v3103
    %3498 = vmatprep.subr.bf16.mxu0 0
    %3499 = vmatpush1.bf16.msra.mxu0 %v3104
    %3500 = vmatprep.subr.bf16.mxu0 0
    %3501 = vmatpush1.bf16.msra.mxu0 %v3105
    %3502 = vmatprep.subr.bf16.mxu0 0
    %3503 = vmatpush1.bf16.msra.mxu0 %v3106
    %3504 = vmatprep.subr.bf16.mxu0 0
    %3505 = vmatpush1.bf16.msra.mxu0 %v3107
    %3506 = vmatprep.subr.bf16.mxu0 0
    %3507 = vmatpush1.bf16.msra.mxu0 %v3108
    %3508 = vmatprep.subr.bf16.mxu0 0
    %3509 = vmatpush1.bf16.msra.mxu0 %v3109
    %3510 = vmatprep.subr.bf16.mxu0 0
    %3511 = vmatpush1.bf16.msra.mxu0 %v3110
    %3512 = vmatprep.subr.bf16.mxu0 0
    %3513 = vmatpush1.bf16.msra.mxu0 %v3111
    %3514 = vmatprep.subr.bf16.mxu0 0
    %3515 = vmatpush1.bf16.msra.mxu0 %v3112
    %3516 = vmatprep.mubr.bf16.mxu0 %v2552
    %3517 = vmatmul.mubr.bf16.gmra.mrb[0].mxu0 %v2551
    %v3518 = vpop.f32.mrb[0].mxu0
    %v3519 = vadd.f32 %v3422, %v3518
    %v3520 = vpop.f32.mrb[0].mxu0
    %v3521 = vpop.f32.mrb[0].mxu0
    %v3522 = vadd.f32 %v3425, %v3521
    %v3523 = vpop.f32.mrb[0].mxu0
    %3524 = vmatprep.mubr.bf16.mxu0 %v2561
    %3525 = vmatmul.mubr.bf16.gmra.mrb[0].mxu0 %v2560
    %v3526 = vpop.f32.mrb[0].mxu0
    %v3527 = vadd.f32 %v3430, %v3526
    %v3528 = vpop.f32.mrb[0].mxu0
    %v3529 = vpop.f32.mrb[0].mxu0
    %v3530 = vadd.f32 %v3433, %v3529
    %v3531 = vpop.f32.mrb[0].mxu0
    %3532 = vmatprep.mubr.bf16.mxu0 %v2570
    %3533 = vmatmul.mubr.bf16.gmra.mrb[0].mxu0 %v2569
    %v3534 = vpop.f32.mrb[0].mxu0
    %v3535 = vadd.f32 %v3438, %v3534
    %v3536 = vpop.f32.mrb[0].mxu0
    %v3537 = vpop.f32.mrb[0].mxu0
    %v3538 = vadd.f32 %v3441, %v3537
    %v3539 = vpop.f32.mrb[0].mxu0
    %3540 = vmatprep.mubr.bf16.mxu0 %v2579
    %3541 = vmatmul.mubr.bf16.gmra.mrb[0].mxu0 %v2578
    %v3542 = vpop.f32.mrb[0].mxu0
    %v3543 = vadd.f32 %v3446, %v3542
    %v3544 = vpop.f32.mrb[0].mxu0
    %v3545 = vpop.f32.mrb[0].mxu0
    %v3546 = vadd.f32 %v3449, %v3545
    %v3547 = vpop.f32.mrb[0].mxu0
    %3548 = vmatprep.mubr.bf16.mxu0 %v2588
    %3549 = vmatmul.mubr.bf16.gmra.mrb[0].mxu0 %v2587
    %v3550 = vpop.f32.mrb[0].mxu0
    %v3551 = vadd.f32 %v3454, %v3550
    %v3552 = vpop.f32.mrb[0].mxu0
    %v3553 = vpop.f32.mrb[0].mxu0
    %v3554 = vadd.f32 %v3457, %v3553
    %v3555 = vpop.f32.mrb[0].mxu0
    %3556 = vmatprep.mubr.bf16.mxu0 %v2597
    %3557 = vmatmul.mubr.bf16.gmra.mrb[0].mxu0 %v2596
    %v3558 = vpop.f32.mrb[0].mxu0
    %v3559 = vadd.f32 %v3462, %v3558
    %v3560 = vpop.f32.mrb[0].mxu0
    %v3561 = vpop.f32.mrb[0].mxu0
    %v3562 = vadd.f32 %v3465, %v3561
    %v3563 = vpop.f32.mrb[0].mxu0
    %3564 = vmatprep.mubr.bf16.mxu0 %v2606
    %3565 = vmatmul.mubr.bf16.gmra.mrb[0].mxu0 %v2605
    %v3566 = vpop.f32.mrb[0].mxu0
    %v3567 = vadd.f32 %v3470, %v3566
    %v3568 = vpop.f32.mrb[0].mxu0
    %v3569 = vpop.f32.mrb[0].mxu0
    %v3570 = vadd.f32 %v3473, %v3569
    %v3571 = vpop.f32.mrb[0].mxu0
    %3572 = vmatprep.mubr.bf16.mxu0 %v2615
    %3573 = vmatmul.mubr.bf16.gmra.mrb[0].mxu0 %v2614
    %v3574 = vpop.f32.mrb[0].mxu0
    %v3575 = vadd.f32 %v3478, %v3574
    %v3576 = vpop.f32.mrb[0].mxu0
    %v3577 = vpop.f32.mrb[0].mxu0
    %v3578 = vadd.f32 %v3481, %v3577
    %v3579 = vpop.f32.mrb[0].mxu0
    %3580 = vdwg.mxu0
    %3581 = vmatprep.subr.bf16.mxu0 0
    %3582 = vmatpush1.bf16.msra.mxu0 %v3113
    %3583 = vmatprep.subr.bf16.mxu0 0
    %3584 = vmatpush1.bf16.msra.mxu0 %v3114
    %3585 = vmatprep.subr.bf16.mxu0 0
    %3586 = vmatpush1.bf16.msra.mxu0 %v3115
    %3587 = vmatprep.subr.bf16.mxu0 0
    %3588 = vmatpush1.bf16.msra.mxu0 %v3116
    %3589 = vmatprep.subr.bf16.mxu0 0
    %3590 = vmatpush1.bf16.msra.mxu0 %v3117
    %3591 = vmatprep.subr.bf16.mxu0 0
    %3592 = vmatpush1.bf16.msra.mxu0 %v3118
    %3593 = vmatprep.subr.bf16.mxu0 0
    %3594 = vmatpush1.bf16.msra.mxu0 %v3119
    %3595 = vmatprep.subr.bf16.mxu0 0
    %3596 = vmatpush1.bf16.msra.mxu0 %v3120
    %3597 = vmatprep.subr.bf16.mxu0 0
    %3598 = vmatpush1.bf16.msra.mxu0 0
    %3599 = vmatprep.subr.bf16.mxu0 0
    %3600 = vmatpush1.bf16.msra.mxu0 0
    %3601 = vmatprep.subr.bf16.mxu0 0
    %3602 = vmatpush1.bf16.msra.mxu0 0
    %3603 = vmatprep.subr.bf16.mxu0 0
    %3604 = vmatpush1.bf16.msra.mxu0 0
    %3605 = vmatprep.subr.bf16.mxu0 0
    %3606 = vmatpush1.bf16.msra.mxu0 0
    %3607 = vmatprep.subr.bf16.mxu0 0
    %3608 = vmatpush1.bf16.msra.mxu0 0
    %3609 = vmatprep.subr.bf16.mxu0 0
    %3610 = vmatpush1.bf16.msra.mxu0 0
    %3611 = vmatprep.subr.bf16.mxu0 0
    %3612 = vmatpush1.bf16.msra.mxu0 0
    %3613 = vmatprep.mubr.bf16.mxu0 0
    %3614 = vmatmul.mubr.bf16.gmra.mrb[0].mxu0 %v2553
    %v3615 = vpop.f32.mrb[0].mxu0
    %v3616 = vadd.f32 %v3519, %v3615
    %v3617 = vpop.f32.mrb[0].mxu0
    %v3618 = vpop.f32.mrb[0].mxu0
    %v3619 = vadd.f32 %v3522, %v3618
    %v3620 = vpop.f32.mrb[0].mxu0
    %3621 = vmatprep.mubr.bf16.mxu0 0
    %3622 = vmatmul.mubr.bf16.gmra.mrb[0].mxu0 %v2562
    %v3623 = vpop.f32.mrb[0].mxu0
    %v3624 = vadd.f32 %v3527, %v3623
    %v3625 = vpop.f32.mrb[0].mxu0
    %v3626 = vpop.f32.mrb[0].mxu0
    %v3627 = vadd.f32 %v3530, %v3626
    %v3628 = vpop.f32.mrb[0].mxu0
    %3629 = vmatprep.mubr.bf16.mxu0 0
    %3630 = vmatmul.mubr.bf16.gmra.mrb[0].mxu0 %v2571
    %v3631 = vpop.f32.mrb[0].mxu0
    %v3632 = vadd.f32 %v3535, %v3631
    %v3633 = vpop.f32.mrb[0].mxu0
    %v3634 = vpop.f32.mrb[0].mxu0
    %v3635 = vadd.f32 %v3538, %v3634
    %v3636 = vpop.f32.mrb[0].mxu0
    %3637 = vmatprep.mubr.bf16.mxu0 0
    %3638 = vmatmul.mubr.bf16.gmra.mrb[0].mxu0 %v2580
    %v3639 = vpop.f32.mrb[0].mxu0
    %v3640 = vadd.f32 %v3543, %v3639
    %v3641 = vpop.f32.mrb[0].mxu0
    %v3642 = vpop.f32.mrb[0].mxu0
    %v3643 = vadd.f32 %v3546, %v3642
    %v3644 = vpop.f32.mrb[0].mxu0
    %3645 = vmatprep.mubr.bf16.mxu0 0
    %3646 = vmatmul.mubr.bf16.gmra.mrb[0].mxu0 %v2589
    %v3647 = vpop.f32.mrb[0].mxu0
    %v3648 = vadd.f32 %v3551, %v3647
    %v3649 = vpop.f32.mrb[0].mxu0
    %v3650 = vpop.f32.mrb[0].mxu0
    %v3651 = vadd.f32 %v3554, %v3650
    %v3652 = vpop.f32.mrb[0].mxu0
    %3653 = vmatprep.mubr.bf16.mxu0 0
    %3654 = vmatmul.mubr.bf16.gmra.mrb[0].mxu0 %v2598
    %v3655 = vpop.f32.mrb[0].mxu0
    %v3656 = vadd.f32 %v3559, %v3655
    %v3657 = vpop.f32.mrb[0].mxu0
    %v3658 = vpop.f32.mrb[0].mxu0
    %v3659 = vadd.f32 %v3562, %v3658
    %v3660 = vpop.f32.mrb[0].mxu0
    %3661 = vmatprep.mubr.bf16.mxu0 0
    %3662 = vmatmul.mubr.bf16.gmra.mrb[0].mxu0 %v2607
    %v3663 = vpop.f32.mrb[0].mxu0
    %v3664 = vadd.f32 %v3567, %v3663
    %v3665 = vpop.f32.mrb[0].mxu0
    %v3666 = vpop.f32.mrb[0].mxu0
    %v3667 = vadd.f32 %v3570, %v3666
    %v3668 = vpop.f32.mrb[0].mxu0
    %3669 = vmatprep.mubr.bf16.mxu0 0
    %3670 = vmatmul.mubr.bf16.gmra.mrb[0].mxu0 %v2616
    %v3671 = vpop.f32.mrb[0].mxu0
    %v3672 = vadd.f32 %v3575, %v3671
    %v3673 = vpop.f32.mrb[0].mxu0
    %v3674 = vpop.f32.mrb[0].mxu0
    %v3675 = vadd.f32 %v3578, %v3674
    %v3676 = vpop.f32.mrb[0].mxu0
    %3677 = vdwg.mxu0
    %v3678 = vld [vmem:[%s804] ss:$2 sm:$0xff]
    %v3679 = vld [vmem:[%s806] ss:$2 sm:$0xff]
    %v3680 = vld [vmem:[%s808] ss:$2 sm:$0xff]
    %v3681 = vld [vmem:[%s810] ss:$2 sm:$0xff]
    %v3682 = vld [vmem:[%s812] ss:$2 sm:$0xff]
    %v3683 = vld [vmem:[%s814] ss:$2 sm:$0xff]
    %v3684 = vld [vmem:[%s816] ss:$2 sm:$0xff]
    %v3685 = vld [vmem:[%s818] ss:$2 sm:$0xff]
    %v3686 = vld [vmem:[%s820] ss:$2 sm:$0xff]
    %v3687 = vld [vmem:[%s822] ss:$2 sm:$0xff]
    %v3688 = vld [vmem:[%s824] ss:$2 sm:$0xff]
    %v3689 = vld [vmem:[%s826] ss:$2 sm:$0xff]
    %v3690 = vld [vmem:[%s828] ss:$2 sm:$0xff]
    %v3691 = vld [vmem:[%s830] ss:$2 sm:$0xff]
    %v3692 = vld [vmem:[%s832] ss:$2 sm:$0xff]
    %v3693 = vld [vmem:[%s834] ss:$2 sm:$0xff]
    %v3694 = vpack.c.bf16 %v3679, %v3678
    %v3695 = vpack.c.bf16 %v3681, %v3680
    %v3696 = vpack.c.bf16 %v3683, %v3682
    %v3697 = vpack.c.bf16 %v3685, %v3684
    %v3698 = vpack.c.bf16 %v3687, %v3686
    %v3699 = vpack.c.bf16 %v3689, %v3688
    %v3700 = vpack.c.bf16 %v3691, %v3690
    %v3701 = vpack.c.bf16 %v3693, %v3692
    %v3702 = vld [vmem:[#allocation11] sm:$0xf]
    %v3703 = vld [vmem:[#allocation11 + $0x4] sm:$0xf]
    %v3704 = vld [vmem:[#allocation11 + $0x8] sm:$0xf]
    %v3705 = vld [vmem:[#allocation11 + $0xc] sm:$0xf]
    %v3706 = vld [vmem:[#allocation11 + $0x10] sm:$0xf]
    %v3707 = vld [vmem:[#allocation11 + $0x14] sm:$0xf]
    %v3708 = vld [vmem:[#allocation11 + $0x18] sm:$0xf]
    %v3709 = vld [vmem:[#allocation11 + $0x1c] sm:$0xf]
    %v3710 = vld [vmem:[#allocation11 + $0x20] sm:$0xf]
    %v3711 = vld [vmem:[#allocation11 + $0x24] sm:$0xf]
    %v3712 = vld [vmem:[#allocation11 + $0x28] sm:$0xf]
    %v3713 = vld [vmem:[#allocation11 + $0x2c] sm:$0xf]
    %v3714 = vld [vmem:[#allocation11 + $0x30] sm:$0xf]
    %v3715 = vld [vmem:[#allocation11 + $0x34] sm:$0xf]
    %v3716 = vld [vmem:[#allocation11 + $0x38] sm:$0xf]
    %v3717 = vld [vmem:[#allocation11 + $0x3c] sm:$0xf]
    %v3734 = vunpack.c.l.b16 %v3702
    %v3735 = vunpack.c.l.b16 %v3703
    %v3736 = vunpack.c.l.b16 %v3704
    %v3737 = vunpack.c.l.b16 %v3705
    %v3738 = vunpack.c.l.b16 %v3706
    %v3739 = vunpack.c.l.b16 %v3707
    %v3740 = vunpack.c.l.b16 %v3708
    %v3741 = vunpack.c.l.b16 %v3709
    %v3742 = vunpack.c.l.b16 %v3710
    %v3743 = vunpack.c.l.b16 %v3711
    %v3744 = vunpack.c.l.b16 %v3712
    %v3745 = vunpack.c.l.b16 %v3713
    %v3746 = vunpack.c.l.b16 %v3714
    %v3747 = vunpack.c.l.b16 %v3715
    %v3748 = vunpack.c.l.b16 %v3716
    %v3749 = vunpack.c.l.b16 %v3717
    %v3750 = vpack.c.b16 %v3735, %v3734
    %v3751 = vpack.c.b16 %v3737, %v3736
    %v3752 = vpack.c.b16 %v3739, %v3738
    %v3753 = vpack.c.b16 %v3741, %v3740
    %v3754 = vpack.c.b16 %v3743, %v3742
    %v3755 = vpack.c.b16 %v3745, %v3744
    %v3756 = vpack.c.b16 %v3747, %v3746
    %v3757 = vpack.c.b16 %v3749, %v3748
    %3766 = vmatprep.subr.bf16.mxu0 0
    %3767 = vmatpush1.bf16.msra.mxu0 %v3750
    %3768 = vmatprep.subr.bf16.mxu0 0
    %3769 = vmatpush1.bf16.msra.mxu0 %v3751
    %3770 = vmatprep.subr.bf16.mxu0 0
    %3771 = vmatpush1.bf16.msra.mxu0 %v3752
    %3772 = vmatprep.subr.bf16.mxu0 0
    %3773 = vmatpush1.bf16.msra.mxu0 %v3753
    %3774 = vmatprep.subr.bf16.mxu0 0
    %3775 = vmatpush1.bf16.msra.mxu0 %v3754
    %3776 = vmatprep.subr.bf16.mxu0 0
    %3777 = vmatpush1.bf16.msra.mxu0 %v3755
    %3778 = vmatprep.subr.bf16.mxu0 0
    %3779 = vmatpush1.bf16.msra.mxu0 %v3756
    %3780 = vmatprep.subr.bf16.mxu0 0
    %3781 = vmatpush1.bf16.msra.mxu0 %v3757
    %3782 = vmatprep.subr.bf16.mxu0 0
    %3783 = vmatpush1.bf16.msra.mxu0 0
    %3784 = vmatprep.subr.bf16.mxu0 0
    %3785 = vmatpush1.bf16.msra.mxu0 0
    %3786 = vmatprep.subr.bf16.mxu0 0
    %3787 = vmatpush1.bf16.msra.mxu0 0
    %3788 = vmatprep.subr.bf16.mxu0 0
    %3789 = vmatpush1.bf16.msra.mxu0 0
    %3790 = vmatprep.subr.bf16.mxu0 0
    %3791 = vmatpush1.bf16.msra.mxu0 0
    %3792 = vmatprep.subr.bf16.mxu0 0
    %3793 = vmatpush1.bf16.msra.mxu0 0
    %3794 = vmatprep.subr.bf16.mxu0 0
    %3795 = vmatpush1.bf16.msra.mxu0 0
    %3796 = vmatprep.subr.bf16.mxu0 0
    %3797 = vmatpush1.bf16.msra.mxu0 0
    %3798 = vmatprep.mubr.bf16.mxu0 0
    %3799 = vmatmul.mubr.bf16.gmra.mrb[0].mxu0 %v3694
    %v3800 = vpop.f32.mrb[0].mxu0
    %v3801 = vadd.f32 %v3616, %v3800
    %v3802 = vpop.f32.mrb[0].mxu0
    %v3803 = vpop.f32.mrb[0].mxu0
    %v3804 = vadd.f32 %v3619, %v3803
    %v3805 = vpop.f32.mrb[0].mxu0
    %3806 = vmatprep.mubr.bf16.mxu0 0
    %3807 = vmatmul.mubr.bf16.gmra.mrb[0].mxu0 %v3695
    %v3808 = vpop.f32.mrb[0].mxu0
    %v3809 = vadd.f32 %v3624, %v3808
    %v3810 = vpop.f32.mrb[0].mxu0
    %v3811 = vpop.f32.mrb[0].mxu0
    %v3812 = vadd.f32 %v3627, %v3811
    %v3813 = vpop.f32.mrb[0].mxu0
    %3814 = vmatprep.mubr.bf16.mxu0 0
    %3815 = vmatmul.mubr.bf16.gmra.mrb[0].mxu0 %v3696
    %v3816 = vpop.f32.mrb[0].mxu0
    %v3817 = vadd.f32 %v3632, %v3816
    %v3818 = vpop.f32.mrb[0].mxu0
    %v3819 = vpop.f32.mrb[0].mxu0
    %v3820 = vadd.f32 %v3635, %v3819
    %v3821 = vpop.f32.mrb[0].mxu0
    %3822 = vmatprep.mubr.bf16.mxu0 0
    %3823 = vmatmul.mubr.bf16.gmra.mrb[0].mxu0 %v3697
    %v3824 = vpop.f32.mrb[0].mxu0
    %v3825 = vadd.f32 %v3640, %v3824
    %v3826 = vpop.f32.mrb[0].mxu0
    %v3827 = vpop.f32.mrb[0].mxu0
    %v3828 = vadd.f32 %v3643, %v3827
    %v3829 = vpop.f32.mrb[0].mxu0
    %3830 = vmatprep.mubr.bf16.mxu0 0
    %3831 = vmatmul.mubr.bf16.gmra.mrb[0].mxu0 %v3698
    %v3832 = vpop.f32.mrb[0].mxu0
    %v3833 = vadd.f32 %v3648, %v3832
    %v3834 = vpop.f32.mrb[0].mxu0
    %v3835 = vpop.f32.mrb[0].mxu0
    %v3836 = vadd.f32 %v3651, %v3835
    %v3837 = vpop.f32.mrb[0].mxu0
    %3838 = vmatprep.mubr.bf16.mxu0 0
    %3839 = vmatmul.mubr.bf16.gmra.mrb[0].mxu0 %v3699
    %v3840 = vpop.f32.mrb[0].mxu0
    %v3841 = vadd.f32 %v3656, %v3840
    %v3842 = vpop.f32.mrb[0].mxu0
    %v3843 = vpop.f32.mrb[0].mxu0
    %v3844 = vadd.f32 %v3659, %v3843
    %v3845 = vpop.f32.mrb[0].mxu0
    %3846 = vmatprep.mubr.bf16.mxu0 0
    %3847 = vmatmul.mubr.bf16.gmra.mrb[0].mxu0 %v3700
    %v3848 = vpop.f32.mrb[0].mxu0
    %v3849 = vadd.f32 %v3664, %v3848
    %v3850 = vpop.f32.mrb[0].mxu0
    %v3851 = vpop.f32.mrb[0].mxu0
    %v3852 = vadd.f32 %v3667, %v3851
    %v3853 = vpop.f32.mrb[0].mxu0
    %3854 = vmatprep.mubr.bf16.mxu0 0
    %3855 = vmatmul.mubr.bf16.gmra.mrb[0].mxu0 %v3701
    %v3856 = vpop.f32.mrb[0].mxu0
    %v3857 = vadd.f32 %v3672, %v3856
    %v3858 = vpop.f32.mrb[0].mxu0
    %v3859 = vpop.f32.mrb[0].mxu0
    %v3860 = vadd.f32 %v3675, %v3859
    %v3861 = vpop.f32.mrb[0].mxu0
    %3862 = vdwg.mxu0
    %v3863 = vld [vmem:[%s8] sm:$0x1]
    %v3865 = vlaneseq
    %v3866 = vshrl.u32 %v3865, 7
    %v3867 = vsub.s32 0, %v3866
    %v3868 = vrot.slane %v3863, %v3867
    %v3870 = vmul.f32 %v3801, %v3868
    %v3871 = vmul.f32 %v3804, %v3868
    %v3872 = vmul.f32 %v3809, %v3868
    %v3873 = vmul.f32 %v3812, %v3868
    %v3874 = vmul.f32 %v3817, %v3868
    %v3875 = vmul.f32 %v3820, %v3868
    %v3876 = vmul.f32 %v3825, %v3868
    %v3877 = vmul.f32 %v3828, %v3868
    %v3878 = vmul.f32 %v3833, %v3868
    %v3879 = vmul.f32 %v3836, %v3868
    %v3880 = vmul.f32 %v3841, %v3868
    %v3881 = vmul.f32 %v3844, %v3868
    %v3882 = vmul.f32 %v3849, %v3868
    %v3883 = vmul.f32 %v3852, %v3868
    %v3884 = vmul.f32 %v3857, %v3868
    %v3885 = vmul.f32 %v3860, %v3868
    %v3886 = vld [vmem:[%s9] sm:$0x1]
    %v3888 = vlaneseq
    %v3889 = vshrl.u32 %v3888, 7
    %v3890 = vsub.s32 0, %v3889
    %v3891 = vrot.slane %v3886, %v3890
    %v3893 = vadd.f32 %v3870, %v3891
    %v3894 = vadd.f32 %v3871, %v3891
    %v3895 = vadd.f32 %v3872, %v3891
    %v3896 = vadd.f32 %v3873, %v3891
    %v3897 = vadd.f32 %v3874, %v3891
    %v3898 = vadd.f32 %v3875, %v3891
    %v3899 = vadd.f32 %v3876, %v3891
    %v3900 = vadd.f32 %v3877, %v3891
    %v3901 = vadd.f32 %v3878, %v3891
    %v3902 = vadd.f32 %v3879, %v3891
    %v3903 = vadd.f32 %v3880, %v3891
    %v3904 = vadd.f32 %v3881, %v3891
    %v3905 = vadd.f32 %v3882, %v3891
    %v3906 = vadd.f32 %v3883, %v3891
    %v3907 = vadd.f32 %v3884, %v3891
    %v3908 = vadd.f32 %v3885, %v3891
    %v3909 = vmax.f32 %v3893, 0.0
    %v3910 = vmax.f32 %v3894, 0.0
    %v3911 = vmax.f32 %v3895, 0.0
    %v3912 = vmax.f32 %v3896, 0.0
    %v3913 = vmax.f32 %v3897, 0.0
    %v3914 = vmax.f32 %v3898, 0.0
    %v3915 = vmax.f32 %v3899, 0.0
    %v3916 = vmax.f32 %v3900, 0.0
    %v3917 = vmax.f32 %v3901, 0.0
    %v3918 = vmax.f32 %v3902, 0.0
    %v3919 = vmax.f32 %v3903, 0.0
    %v3920 = vmax.f32 %v3904, 0.0
    %v3921 = vmax.f32 %v3905, 0.0
    %v3922 = vmax.f32 %v3906, 0.0
    %v3923 = vmax.f32 %v3907, 0.0
    %v3924 = vmax.f32 %v3908, 0.0
    %3925 = vst [vmem:[%s2239 + $0x1] sm:$0xff] %v3909
    %3926 = vst [vmem:[%s2239 + $0x11] sm:$0xff] %v3910
    %3927 = vst [vmem:[%s2239 + $0x21] sm:$0xff] %v3911
    %3928 = vst [vmem:[%s2239 + $0x31] sm:$0xff] %v3912
    %3929 = vst [vmem:[%s2239 + $0x41] sm:$0xff] %v3913
    %3930 = vst [vmem:[%s2239 + $0x51] sm:$0xff] %v3914
    %3931 = vst [vmem:[%s2239 + $0x61] sm:$0xff] %v3915
    %3932 = vst [vmem:[%s2239 + $0x71] sm:$0xff] %v3916
    %3933 = vst [vmem:[%s2239 + $0xa1] sm:$0xff] %v3917
    %3934 = vst [vmem:[%s2239 + $0xb1] sm:$0xff] %v3918
    %3935 = vst [vmem:[%s2239 + $0xc1] sm:$0xff] %v3919
    %3936 = vst [vmem:[%s2239 + $0xd1] sm:$0xff] %v3920
    %3937 = vst [vmem:[%s2239 + $0xe1] sm:$0xff] %v3921
    %3938 = vst [vmem:[%s2239 + $0xf1] sm:$0xff] %v3922
    %3939 = vst [vmem:[%s2239 + $0x101] sm:$0xff] %v3923
    %3940 = vst [vmem:[%s2239 + $0x111] sm:$0xff] %v3924
    %v3941 = vld [vmem:[#allocation3] sm:$0xff]
    %v3942 = vld [vmem:[#allocation3 + $0x10] sm:$0xff]
    %v3943 = vld [vmem:[#allocation3 + $0x20] sm:$0xff]
    %v3944 = vld [vmem:[#allocation3 + $0x30] sm:$0xff]
    %v3945 = vld [vmem:[#allocation3 + $0x40] sm:$0xff]
    %v3946 = vld [vmem:[#allocation3 + $0x50] sm:$0xff]
    %v3947 = vld [vmem:[#allocation3 + $0x60] sm:$0xff]
    %v3948 = vld [vmem:[#allocation3 + $0x70] sm:$0xff]
    %v3949 = vld [vmem:[#allocation3 + $0xa0] sm:$0xff]
    %v3950 = vld [vmem:[#allocation3 + $0xb0] sm:$0xff]
    %v3951 = vld [vmem:[#allocation3 + $0xc0] sm:$0xff]
    %v3952 = vld [vmem:[#allocation3 + $0xd0] sm:$0xff]
    %v3953 = vld [vmem:[#allocation3 + $0xe0] sm:$0xff]
    %v3954 = vld [vmem:[#allocation3 + $0xf0] sm:$0xff]
    %v3955 = vld [vmem:[#allocation3 + $0x100] sm:$0xff]
    %v3956 = vld [vmem:[#allocation3 + $0x110] sm:$0xff]
    %v3957 = vpack.c.bf16 %v3942, %v3941
    %v3958 = vpack.c.bf16 %v3944, %v3943
    %v3959 = vpack.c.bf16 %v3946, %v3945
    %v3960 = vpack.c.bf16 %v3948, %v3947
    %v3961 = vpack.c.bf16 %v3950, %v3949
    %v3962 = vpack.c.bf16 %v3952, %v3951
    %v3963 = vpack.c.bf16 %v3954, %v3953
    %v3964 = vpack.c.bf16 %v3956, %v3955
    %3965 = vst [vmem:[#allocation4] sm:$0xff] %v3957
    %3966 = vst [vmem:[#allocation4 + $0x48] sm:$0xff] %v3958
    %3967 = vst [vmem:[#allocation4 + $0x90] sm:$0xff] %v3959
    %3968 = vst [vmem:[#allocation4 + $0xd8] sm:$0xff] %v3960
    %3969 = vst [vmem:[#allocation4 + $0x120] sm:$0xff] %v3961
    %3970 = vst [vmem:[#allocation4 + $0x168] sm:$0xff] %v3962
    %3971 = vst [vmem:[#allocation4 + $0x1b0] sm:$0xff] %v3963
    %3972 = vst [vmem:[#allocation4 + $0x1f8] sm:$0xff] %v3964
    %v3973 = vld [vmem:[#allocation3 + $0x1] sm:$0xff]
    %v3974 = vld [vmem:[#allocation3 + $0x11] sm:$0xff]
    %v3975 = vld [vmem:[#allocation3 + $0x21] sm:$0xff]
    %v3976 = vld [vmem:[#allocation3 + $0x31] sm:$0xff]
    %v3977 = vld [vmem:[#allocation3 + $0x41] sm:$0xff]
    %v3978 = vld [vmem:[#allocation3 + $0x51] sm:$0xff]
    %v3979 = vld [vmem:[#allocation3 + $0x61] sm:$0xff]
    %v3980 = vld [vmem:[#allocation3 + $0x71] sm:$0xff]
    %v3981 = vld [vmem:[#allocation3 + $0xa1] sm:$0xff]
    %v3982 = vld [vmem:[#allocation3 + $0xb1] sm:$0xff]
    %v3983 = vld [vmem:[#allocation3 + $0xc1] sm:$0xff]
    %v3984 = vld [vmem:[#allocation3 + $0xd1] sm:$0xff]
    %v3985 = vld [vmem:[#allocation3 + $0xe1] sm:$0xff]
    %v3986 = vld [vmem:[#allocation3 + $0xf1] sm:$0xff]
    %v3987 = vld [vmem:[#allocation3 + $0x101] sm:$0xff]
    %v3988 = vld [vmem:[#allocation3 + $0x111] sm:$0xff]
    %v3989 = vpack.c.bf16 %v3974, %v3973
    %v3990 = vpack.c.bf16 %v3976, %v3975
    %v3991 = vpack.c.bf16 %v3978, %v3977
    %v3992 = vpack.c.bf16 %v3980, %v3979
    %v3993 = vpack.c.bf16 %v3982, %v3981
    %v3994 = vpack.c.bf16 %v3984, %v3983
    %v3995 = vpack.c.bf16 %v3986, %v3985
    %v3996 = vpack.c.bf16 %v3988, %v3987
    %3997 = vst [vmem:[#allocation4 + $0x8] sm:$0xff] %v3989
    %3998 = vst [vmem:[#allocation4 + $0x50] sm:$0xff] %v3990
    %3999 = vst [vmem:[#allocation4 + $0x98] sm:$0xff] %v3991
    %4000 = vst [vmem:[#allocation4 + $0xe0] sm:$0xff] %v3992
    %4001 = vst [vmem:[#allocation4 + $0x128] sm:$0xff] %v3993
    %4002 = vst [vmem:[#allocation4 + $0x170] sm:$0xff] %v3994
    %4003 = vst [vmem:[#allocation4 + $0x1b8] sm:$0xff] %v3995
    %4004 = vst [vmem:[#allocation4 + $0x200] sm:$0xff] %v3996
    %v4005 = vld [vmem:[#allocation3 + $0x2] sm:$0xff]
    %v4006 = vld [vmem:[#allocation3 + $0x12] sm:$0xff]
    %v4007 = vld [vmem:[#allocation3 + $0x22] sm:$0xff]
    %v4008 = vld [vmem:[#allocation3 + $0x32] sm:$0xff]
    %v4009 = vld [vmem:[#allocation3 + $0x42] sm:$0xff]
    %v4010 = vld [vmem:[#allocation3 + $0x52] sm:$0xff]
    %v4011 = vld [vmem:[#allocation3 + $0x62] sm:$0xff]
    %v4012 = vld [vmem:[#allocation3 + $0x72] sm:$0xff]
    %v4013 = vld [vmem:[#allocation3 + $0xa2] sm:$0xff]
    %v4014 = vld [vmem:[#allocation3 + $0xb2] sm:$0xff]
    %v4015 = vld [vmem:[#allocation3 + $0xc2] sm:$0xff]
    %v4016 = vld [vmem:[#allocation3 + $0xd2] sm:$0xff]
    %v4017 = vld [vmem:[#allocation3 + $0xe2] sm:$0xff]
    %v4018 = vld [vmem:[#allocation3 + $0xf2] sm:$0xff]
    %v4019 = vld [vmem:[#allocation3 + $0x102] sm:$0xff]
    %v4020 = vld [vmem:[#allocation3 + $0x112] sm:$0xff]
    %v4021 = vpack.c.bf16 %v4006, %v4005
    %v4022 = vpack.c.bf16 %v4008, %v4007
    %v4023 = vpack.c.bf16 %v4010, %v4009
    %v4024 = vpack.c.bf16 %v4012, %v4011
    %v4025 = vpack.c.bf16 %v4014, %v4013
    %v4026 = vpack.c.bf16 %v4016, %v4015
    %v4027 = vpack.c.bf16 %v4018, %v4017
    %v4028 = vpack.c.bf16 %v4020, %v4019
    %4029 = vst [vmem:[#allocation4 + $0x10] sm:$0xff] %v4021
    %4030 = vst [vmem:[#allocation4 + $0x58] sm:$0xff] %v4022
    %4031 = vst [vmem:[#allocation4 + $0xa0] sm:$0xff] %v4023
    %4032 = vst [vmem:[#allocation4 + $0xe8] sm:$0xff] %v4024
    %4033 = vst [vmem:[#allocation4 + $0x130] sm:$0xff] %v4025
    %4034 = vst [vmem:[#allocation4 + $0x178] sm:$0xff] %v4026
    %4035 = vst [vmem:[#allocation4 + $0x1c0] sm:$0xff] %v4027
    %4036 = vst [vmem:[#allocation4 + $0x208] sm:$0xff] %v4028
    %v4037 = vld [vmem:[%s2239] sm:$0xff]
    %v4038 = vld [vmem:[%s2239 + $0x10] sm:$0xff]
    %v4039 = vld [vmem:[%s2239 + $0x20] sm:$0xff]
    %v4040 = vld [vmem:[%s2239 + $0x30] sm:$0xff]
    %v4041 = vld [vmem:[%s2239 + $0x40] sm:$0xff]
    %v4042 = vld [vmem:[%s2239 + $0x50] sm:$0xff]
    %v4043 = vld [vmem:[%s2239 + $0x60] sm:$0xff]
    %v4044 = vld [vmem:[%s2239 + $0x70] sm:$0xff]
    %v4045 = vld [vmem:[%s2239 + $0xa0] sm:$0xff]
    %v4046 = vld [vmem:[%s2239 + $0xb0] sm:$0xff]
    %v4047 = vld [vmem:[%s2239 + $0xc0] sm:$0xff]
    %v4048 = vld [vmem:[%s2239 + $0xd0] sm:$0xff]
    %v4049 = vld [vmem:[%s2239 + $0xe0] sm:$0xff]
    %v4050 = vld [vmem:[%s2239 + $0xf0] sm:$0xff]
    %v4051 = vld [vmem:[%s2239 + $0x100] sm:$0xff]
    %v4052 = vld [vmem:[%s2239 + $0x110] sm:$0xff]
    %v4053 = vpack.c.bf16 %v4038, %v4037
    %v4054 = vpack.c.bf16 %v4040, %v4039
    %v4055 = vpack.c.bf16 %v4042, %v4041
    %v4056 = vpack.c.bf16 %v4044, %v4043
    %v4057 = vpack.c.bf16 %v4046, %v4045
    %v4058 = vpack.c.bf16 %v4048, %v4047
    %v4059 = vpack.c.bf16 %v4050, %v4049
    %v4060 = vpack.c.bf16 %v4052, %v4051
    %4061 = vst [vmem:[#allocation4 + $0x18] sm:$0xff] %v4053
    %4062 = vst [vmem:[#allocation4 + $0x60] sm:$0xff] %v4054
    %4063 = vst [vmem:[#allocation4 + $0xa8] sm:$0xff] %v4055
    %4064 = vst [vmem:[#allocation4 + $0xf0] sm:$0xff] %v4056
    %4065 = vst [vmem:[#allocation4 + $0x138] sm:$0xff] %v4057
    %4066 = vst [vmem:[#allocation4 + $0x180] sm:$0xff] %v4058
    %4067 = vst [vmem:[#allocation4 + $0x1c8] sm:$0xff] %v4059
    %4068 = vst [vmem:[#allocation4 + $0x210] sm:$0xff] %v4060
    %v4069 = vld [vmem:[%s2239 + $0x1] sm:$0xff]
    %v4070 = vld [vmem:[%s2239 + $0x11] sm:$0xff]
    %v4071 = vld [vmem:[%s2239 + $0x21] sm:$0xff]
    %v4072 = vld [vmem:[%s2239 + $0x31] sm:$0xff]
    %v4073 = vld [vmem:[%s2239 + $0x41] sm:$0xff]
    %v4074 = vld [vmem:[%s2239 + $0x51] sm:$0xff]
    %v4075 = vld [vmem:[%s2239 + $0x61] sm:$0xff]
    %v4076 = vld [vmem:[%s2239 + $0x71] sm:$0xff]
    %v4077 = vld [vmem:[%s2239 + $0xa1] sm:$0xff]
    %v4078 = vld [vmem:[%s2239 + $0xb1] sm:$0xff]
    %v4079 = vld [vmem:[%s2239 + $0xc1] sm:$0xff]
    %v4080 = vld [vmem:[%s2239 + $0xd1] sm:$0xff]
    %v4081 = vld [vmem:[%s2239 + $0xe1] sm:$0xff]
    %v4082 = vld [vmem:[%s2239 + $0xf1] sm:$0xff]
    %v4083 = vld [vmem:[%s2239 + $0x101] sm:$0xff]
    %v4084 = vld [vmem:[%s2239 + $0x111] sm:$0xff]
    %v4085 = vpack.c.bf16 %v4070, %v4069
    %v4086 = vpack.c.bf16 %v4072, %v4071
    %v4087 = vpack.c.bf16 %v4074, %v4073
    %v4088 = vpack.c.bf16 %v4076, %v4075
    %v4089 = vpack.c.bf16 %v4078, %v4077
    %v4090 = vpack.c.bf16 %v4080, %v4079
    %v4091 = vpack.c.bf16 %v4082, %v4081
    %v4092 = vpack.c.bf16 %v4084, %v4083
    %4093 = vst [vmem:[#allocation4 + $0x20] sm:$0xff] %v4085
    %4094 = vst [vmem:[#allocation4 + $0x68] sm:$0xff] %v4086
    %4095 = vst [vmem:[#allocation4 + $0xb0] sm:$0xff] %v4087
    %4096 = vst [vmem:[#allocation4 + $0xf8] sm:$0xff] %v4088
    %4097 = vst [vmem:[#allocation4 + $0x140] sm:$0xff] %v4089
    %4098 = vst [vmem:[#allocation4 + $0x188] sm:$0xff] %v4090
    %4099 = vst [vmem:[#allocation4 + $0x1d0] sm:$0xff] %v4091
    %4100 = vst [vmem:[#allocation4 + $0x218] sm:$0xff] %v4092
    %v4101 = vld [vmem:[%s2239 + $0x2] sm:$0xff]
    %v4102 = vld [vmem:[%s2239 + $0x12] sm:$0xff]
    %v4103 = vld [vmem:[%s2239 + $0x22] sm:$0xff]
    %v4104 = vld [vmem:[%s2239 + $0x32] sm:$0xff]
    %v4105 = vld [vmem:[%s2239 + $0x42] sm:$0xff]
    %v4106 = vld [vmem:[%s2239 + $0x52] sm:$0xff]
    %v4107 = vld [vmem:[%s2239 + $0x62] sm:$0xff]
    %v4108 = vld [vmem:[%s2239 + $0x72] sm:$0xff]
    %v4109 = vld [vmem:[%s2239 + $0xa2] sm:$0xff]
    %v4110 = vld [vmem:[%s2239 + $0xb2] sm:$0xff]
    %v4111 = vld [vmem:[%s2239 + $0xc2] sm:$0xff]
    %v4112 = vld [vmem:[%s2239 + $0xd2] sm:$0xff]
    %v4113 = vld [vmem:[%s2239 + $0xe2] sm:$0xff]
    %v4114 = vld [vmem:[%s2239 + $0xf2] sm:$0xff]
    %v4115 = vld [vmem:[%s2239 + $0x102] sm:$0xff]
    %v4116 = vld [vmem:[%s2239 + $0x112] sm:$0xff]
    %v4117 = vpack.c.bf16 %v4102, %v4101
    %v4118 = vpack.c.bf16 %v4104, %v4103
    %v4119 = vpack.c.bf16 %v4106, %v4105
    %v4120 = vpack.c.bf16 %v4108, %v4107
    %v4121 = vpack.c.bf16 %v4110, %v4109
    %v4122 = vpack.c.bf16 %v4112, %v4111
    %v4123 = vpack.c.bf16 %v4114, %v4113
    %v4124 = vpack.c.bf16 %v4116, %v4115
    %4125 = vst [vmem:[#allocation4 + $0x28] sm:$0xff] %v4117
    %4126 = vst [vmem:[#allocation4 + $0x70] sm:$0xff] %v4118
    %4127 = vst [vmem:[#allocation4 + $0xb8] sm:$0xff] %v4119
    %4128 = vst [vmem:[#allocation4 + $0x100] sm:$0xff] %v4120
    %4129 = vst [vmem:[#allocation4 + $0x148] sm:$0xff] %v4121
    %4130 = vst [vmem:[#allocation4 + $0x190] sm:$0xff] %v4122
    %4131 = vst [vmem:[#allocation4 + $0x1d8] sm:$0xff] %v4123
    %4132 = vst [vmem:[#allocation4 + $0x220] sm:$0xff] %v4124
    %v4133 = vld [vmem:[%s2448] sm:$0xff]
    %v4134 = vld [vmem:[%s2448 + $0x10] sm:$0xff]
    %v4135 = vld [vmem:[%s2448 + $0x20] sm:$0xff]
    %v4136 = vld [vmem:[%s2448 + $0x30] sm:$0xff]
    %v4137 = vld [vmem:[%s2448 + $0x40] sm:$0xff]
    %v4138 = vld [vmem:[%s2448 + $0x50] sm:$0xff]
    %v4139 = vld [vmem:[%s2448 + $0x60] sm:$0xff]
    %v4140 = vld [vmem:[%s2448 + $0x70] sm:$0xff]
    %v4141 = vld [vmem:[%s2448 + $0xa0] sm:$0xff]
    %v4142 = vld [vmem:[%s2448 + $0xb0] sm:$0xff]
    %v4143 = vld [vmem:[%s2448 + $0xc0] sm:$0xff]
    %v4144 = vld [vmem:[%s2448 + $0xd0] sm:$0xff]
    %v4145 = vld [vmem:[%s2448 + $0xe0] sm:$0xff]
    %v4146 = vld [vmem:[%s2448 + $0xf0] sm:$0xff]
    %v4147 = vld [vmem:[%s2448 + $0x100] sm:$0xff]
    %v4148 = vld [vmem:[%s2448 + $0x110] sm:$0xff]
    %v4149 = vpack.c.bf16 %v4134, %v4133
    %v4150 = vpack.c.bf16 %v4136, %v4135
    %v4151 = vpack.c.bf16 %v4138, %v4137
    %v4152 = vpack.c.bf16 %v4140, %v4139
    %v4153 = vpack.c.bf16 %v4142, %v4141
    %v4154 = vpack.c.bf16 %v4144, %v4143
    %v4155 = vpack.c.bf16 %v4146, %v4145
    %v4156 = vpack.c.bf16 %v4148, %v4147
    %4157 = vst [vmem:[#allocation4 + $0x30] sm:$0xff] %v4149
    %4158 = vst [vmem:[#allocation4 + $0x78] sm:$0xff] %v4150
    %4159 = vst [vmem:[#allocation4 + $0xc0] sm:$0xff] %v4151
    %4160 = vst [vmem:[#allocation4 + $0x108] sm:$0xff] %v4152
    %4161 = vst [vmem:[#allocation4 + $0x150] sm:$0xff] %v4153
    %4162 = vst [vmem:[#allocation4 + $0x198] sm:$0xff] %v4154
    %4163 = vst [vmem:[#allocation4 + $0x1e0] sm:$0xff] %v4155
    %4164 = vst [vmem:[#allocation4 + $0x228] sm:$0xff] %v4156
    %v4165 = vld [vmem:[%s2448 + $0x1] sm:$0xff]
    %v4166 = vld [vmem:[%s2448 + $0x11] sm:$0xff]
    %v4167 = vld [vmem:[%s2448 + $0x21] sm:$0xff]
    %v4168 = vld [vmem:[%s2448 + $0x31] sm:$0xff]
    %v4169 = vld [vmem:[%s2448 + $0x41] sm:$0xff]
    %v4170 = vld [vmem:[%s2448 + $0x51] sm:$0xff]
    %v4171 = vld [vmem:[%s2448 + $0x61] sm:$0xff]
    %v4172 = vld [vmem:[%s2448 + $0x71] sm:$0xff]
    %v4173 = vld [vmem:[%s2448 + $0xa1] sm:$0xff]
    %v4174 = vld [vmem:[%s2448 + $0xb1] sm:$0xff]
    %v4175 = vld [vmem:[%s2448 + $0xc1] sm:$0xff]
    %v4176 = vld [vmem:[%s2448 + $0xd1] sm:$0xff]
    %v4177 = vld [vmem:[%s2448 + $0xe1] sm:$0xff]
    %v4178 = vld [vmem:[%s2448 + $0xf1] sm:$0xff]
    %v4179 = vld [vmem:[%s2448 + $0x101] sm:$0xff]
    %v4180 = vld [vmem:[%s2448 + $0x111] sm:$0xff]
    %v4181 = vpack.c.bf16 %v4166, %v4165
    %v4182 = vpack.c.bf16 %v4168, %v4167
    %v4183 = vpack.c.bf16 %v4170, %v4169
    %v4184 = vpack.c.bf16 %v4172, %v4171
    %v4185 = vpack.c.bf16 %v4174, %v4173
    %v4186 = vpack.c.bf16 %v4176, %v4175
    %v4187 = vpack.c.bf16 %v4178, %v4177
    %v4188 = vpack.c.bf16 %v4180, %v4179
    %4189 = vst [vmem:[#allocation4 + $0x38] sm:$0xff] %v4181
    %4190 = vst [vmem:[#allocation4 + $0x80] sm:$0xff] %v4182
    %4191 = vst [vmem:[#allocation4 + $0xc8] sm:$0xff] %v4183
    %4192 = vst [vmem:[#allocation4 + $0x110] sm:$0xff] %v4184
    %4193 = vst [vmem:[#allocation4 + $0x158] sm:$0xff] %v4185
    %4194 = vst [vmem:[#allocation4 + $0x1a0] sm:$0xff] %v4186
    %4195 = vst [vmem:[#allocation4 + $0x1e8] sm:$0xff] %v4187
    %4196 = vst [vmem:[#allocation4 + $0x230] sm:$0xff] %v4188
    %v4197 = vld [vmem:[%s2448 + $0x2] sm:$0xff]
    %v4198 = vld [vmem:[%s2448 + $0x12] sm:$0xff]
    %v4199 = vld [vmem:[%s2448 + $0x22] sm:$0xff]
    %v4200 = vld [vmem:[%s2448 + $0x32] sm:$0xff]
    %v4201 = vld [vmem:[%s2448 + $0x42] sm:$0xff]
    %v4202 = vld [vmem:[%s2448 + $0x52] sm:$0xff]
    %v4203 = vld [vmem:[%s2448 + $0x62] sm:$0xff]
    %v4204 = vld [vmem:[%s2448 + $0x72] sm:$0xff]
    %v4205 = vld [vmem:[%s2448 + $0xa2] sm:$0xff]
    %v4206 = vld [vmem:[%s2448 + $0xb2] sm:$0xff]
    %v4207 = vld [vmem:[%s2448 + $0xc2] sm:$0xff]
    %v4208 = vld [vmem:[%s2448 + $0xd2] sm:$0xff]
    %v4209 = vld [vmem:[%s2448 + $0xe2] sm:$0xff]
    %v4210 = vld [vmem:[%s2448 + $0xf2] sm:$0xff]
    %v4211 = vld [vmem:[%s2448 + $0x102] sm:$0xff]
    %v4212 = vld [vmem:[%s2448 + $0x112] sm:$0xff]
    %v4213 = vpack.c.bf16 %v4198, %v4197
    %v4214 = vpack.c.bf16 %v4200, %v4199
    %v4215 = vpack.c.bf16 %v4202, %v4201
    %v4216 = vpack.c.bf16 %v4204, %v4203
    %v4217 = vpack.c.bf16 %v4206, %v4205
    %v4218 = vpack.c.bf16 %v4208, %v4207
    %v4219 = vpack.c.bf16 %v4210, %v4209
    %v4220 = vpack.c.bf16 %v4212, %v4211
    %4221 = vst [vmem:[#allocation4 + $0x40] sm:$0xff] %v4213
    %4222 = vst [vmem:[#allocation4 + $0x88] sm:$0xff] %v4214
    %4223 = vst [vmem:[#allocation4 + $0xd0] sm:$0xff] %v4215
    %4224 = vst [vmem:[#allocation4 + $0x118] sm:$0xff] %v4216
    %4225 = vst [vmem:[#allocation4 + $0x160] sm:$0xff] %v4217
    %4226 = vst [vmem:[#allocation4 + $0x1a8] sm:$0xff] %v4218
    %4227 = vst [vmem:[#allocation4 + $0x1f0] sm:$0xff] %v4219
    %4228 = vst [vmem:[#allocation4 + $0x238] sm:$0xff] %v4220
    %v4229 = vld [vmem:[#allocation4] sm:$0xff]
    %v4230 = vld [vmem:[#allocation4 + $0x8] sm:$0xff]
    %v4231 = vld [vmem:[#allocation4 + $0x10] sm:$0xff]
    %v4232 = vld [vmem:[#allocation4 + $0x18] sm:$0xff]
    %v4233 = vld [vmem:[#allocation4 + $0x20] sm:$0xff]
    %v4234 = vld [vmem:[#allocation4 + $0x28] sm:$0xff]
    %v4235 = vld [vmem:[#allocation4 + $0x30] sm:$0xff]
    %v4236 = vld [vmem:[#allocation4 + $0x38] sm:$0xff]
    %v4237 = vld [vmem:[#allocation4 + $0x40] sm:$0xff]
    %v4238 = vld [vmem:[#allocation4 + $0x48] sm:$0xff]
    %v4239 = vld [vmem:[#allocation4 + $0x50] sm:$0xff]
    %v4240 = vld [vmem:[#allocation4 + $0x58] sm:$0xff]
    %v4241 = vld [vmem:[#allocation4 + $0x60] sm:$0xff]
    %v4242 = vld [vmem:[#allocation4 + $0x68] sm:$0xff]
    %v4243 = vld [vmem:[#allocation4 + $0x70] sm:$0xff]
    %v4244 = vld [vmem:[#allocation4 + $0x78] sm:$0xff]
    %v4245 = vld [vmem:[#allocation4 + $0x80] sm:$0xff]
    %v4246 = vld [vmem:[#allocation4 + $0x88] sm:$0xff]
    %v4247 = vld [vmem:[#allocation4 + $0x90] sm:$0xff]
    %v4248 = vld [vmem:[#allocation4 + $0x98] sm:$0xff]
    %v4249 = vld [vmem:[#allocation4 + $0xa0] sm:$0xff]
    %v4250 = vld [vmem:[#allocation4 + $0xa8] sm:$0xff]
    %v4251 = vld [vmem:[#allocation4 + $0xb0] sm:$0xff]
    %v4252 = vld [vmem:[#allocation4 + $0xb8] sm:$0xff]
    %v4253 = vld [vmem:[#allocation4 + $0xc0] sm:$0xff]
    %v4254 = vld [vmem:[#allocation4 + $0xc8] sm:$0xff]
    %v4255 = vld [vmem:[#allocation4 + $0xd0] sm:$0xff]
    %v4256 = vld [vmem:[#allocation4 + $0xd8] sm:$0xff]
    %v4257 = vld [vmem:[#allocation4 + $0xe0] sm:$0xff]
    %v4258 = vld [vmem:[#allocation4 + $0xe8] sm:$0xff]
    %v4259 = vld [vmem:[#allocation4 + $0xf0] sm:$0xff]
    %v4260 = vld [vmem:[#allocation4 + $0xf8] sm:$0xff]
    %v4261 = vld [vmem:[#allocation4 + $0x100] sm:$0xff]
    %v4262 = vld [vmem:[#allocation4 + $0x108] sm:$0xff]
    %v4263 = vld [vmem:[#allocation4 + $0x110] sm:$0xff]
    %v4264 = vld [vmem:[#allocation4 + $0x118] sm:$0xff]
    %v4265 = vld [vmem:[#allocation4 + $0x120] sm:$0xff]
    %v4266 = vld [vmem:[#allocation4 + $0x128] sm:$0xff]
    %v4267 = vld [vmem:[#allocation4 + $0x130] sm:$0xff]
    %v4268 = vld [vmem:[#allocation4 + $0x138] sm:$0xff]
    %v4269 = vld [vmem:[#allocation4 + $0x140] sm:$0xff]
    %v4270 = vld [vmem:[#allocation4 + $0x148] sm:$0xff]
    %v4271 = vld [vmem:[#allocation4 + $0x150] sm:$0xff]
    %v4272 = vld [vmem:[#allocation4 + $0x158] sm:$0xff]
    %v4273 = vld [vmem:[#allocation4 + $0x160] sm:$0xff]
    %v4274 = vld [vmem:[#allocation4 + $0x168] sm:$0xff]
    %v4275 = vld [vmem:[#allocation4 + $0x170] sm:$0xff]
    %v4276 = vld [vmem:[#allocation4 + $0x178] sm:$0xff]
    %v4277 = vld [vmem:[#allocation4 + $0x180] sm:$0xff]
    %v4278 = vld [vmem:[#allocation4 + $0x188] sm:$0xff]
    %v4279 = vld [vmem:[#allocation4 + $0x190] sm:$0xff]
    %v4280 = vld [vmem:[#allocation4 + $0x198] sm:$0xff]
    %v4281 = vld [vmem:[#allocation4 + $0x1a0] sm:$0xff]
    %v4282 = vld [vmem:[#allocation4 + $0x1a8] sm:$0xff]
    %v4283 = vld [vmem:[#allocation4 + $0x1b0] sm:$0xff]
    %v4284 = vld [vmem:[#allocation4 + $0x1b8] sm:$0xff]
    %v4285 = vld [vmem:[#allocation4 + $0x1c0] sm:$0xff]
    %v4286 = vld [vmem:[#allocation4 + $0x1c8] sm:$0xff]
    %v4287 = vld [vmem:[#allocation4 + $0x1d0] sm:$0xff]
    %v4288 = vld [vmem:[#allocation4 + $0x1d8] sm:$0xff]
    %v4289 = vld [vmem:[#allocation4 + $0x1e0] sm:$0xff]
    %v4290 = vld [vmem:[#allocation4 + $0x1e8] sm:$0xff]
    %v4291 = vld [vmem:[#allocation4 + $0x1f0] sm:$0xff]
    %v4292 = vld [vmem:[#allocation4 + $0x1f8] sm:$0xff]
    %v4293 = vld [vmem:[#allocation4 + $0x200] sm:$0xff]
    %v4294 = vld [vmem:[#allocation4 + $0x208] sm:$0xff]
    %v4295 = vld [vmem:[#allocation4 + $0x210] sm:$0xff]
    %v4296 = vld [vmem:[#allocation4 + $0x218] sm:$0xff]
    %v4297 = vld [vmem:[#allocation4 + $0x220] sm:$0xff]
    %v4298 = vld [vmem:[#allocation4 + $0x228] sm:$0xff]
    %v4299 = vld [vmem:[#allocation4 + $0x230] sm:$0xff]
    %v4300 = vld [vmem:[#allocation4 + $0x238] sm:$0xff]
    %v4301 = vld [vmem:[#allocation13] sm:$0xf]
    %v4302 = vld [vmem:[#allocation13 + $0x4] sm:$0xf]
    %v4303 = vld [vmem:[#allocation13 + $0x8] sm:$0xf]
    %v4304 = vld [vmem:[#allocation13 + $0xc] sm:$0xf]
    %v4305 = vld [vmem:[#allocation13 + $0x10] sm:$0xf]
    %v4306 = vld [vmem:[#allocation13 + $0x14] sm:$0xf]
    %v4307 = vld [vmem:[#allocation13 + $0x18] sm:$0xf]
    %v4308 = vld [vmem:[#allocation13 + $0x1c] sm:$0xf]
    %v4309 = vld [vmem:[#allocation13 + $0x20] sm:$0xf]
    %v4310 = vld [vmem:[#allocation13 + $0x24] sm:$0xf]
    %v4311 = vld [vmem:[#allocation13 + $0x28] sm:$0xf]
    %v4312 = vld [vmem:[#allocation13 + $0x2c] sm:$0xf]
    %v4313 = vld [vmem:[#allocation13 + $0x30] sm:$0xf]
    %v4314 = vld [vmem:[#allocation13 + $0x34] sm:$0xf]
    %v4315 = vld [vmem:[#allocation13 + $0x38] sm:$0xf]
    %v4316 = vld [vmem:[#allocation13 + $0x3c] sm:$0xf]
    %v4317 = vld [vmem:[#allocation13 + $0x40] sm:$0xf]
    %v4318 = vld [vmem:[#allocation13 + $0x44] sm:$0xf]
    %v4319 = vld [vmem:[#allocation13 + $0x48] sm:$0xf]
    %v4320 = vld [vmem:[#allocation13 + $0x4c] sm:$0xf]
    %v4321 = vld [vmem:[#allocation13 + $0x50] sm:$0xf]
    %v4322 = vld [vmem:[#allocation13 + $0x54] sm:$0xf]
    %v4323 = vld [vmem:[#allocation13 + $0x58] sm:$0xf]
    %v4324 = vld [vmem:[#allocation13 + $0x5c] sm:$0xf]
    %v4325 = vld [vmem:[#allocation13 + $0x60] sm:$0xf]
    %v4326 = vld [vmem:[#allocation13 + $0x64] sm:$0xf]
    %v4327 = vld [vmem:[#allocation13 + $0x68] sm:$0xf]
    %v4328 = vld [vmem:[#allocation13 + $0x6c] sm:$0xf]
    %v4329 = vld [vmem:[#allocation13 + $0x70] sm:$0xf]
    %v4330 = vld [vmem:[#allocation13 + $0x74] sm:$0xf]
    %v4331 = vld [vmem:[#allocation13 + $0x78] sm:$0xf]
    %v4332 = vld [vmem:[#allocation13 + $0x7c] sm:$0xf]
    %v4333 = vld [vmem:[#allocation13 + $0x80] sm:$0xf]
    %v4334 = vld [vmem:[#allocation13 + $0x84] sm:$0xf]
    %v4335 = vld [vmem:[#allocation13 + $0x88] sm:$0xf]
    %v4336 = vld [vmem:[#allocation13 + $0x8c] sm:$0xf]
    %v4337 = vld [vmem:[#allocation13 + $0x90] sm:$0xf]
    %v4338 = vld [vmem:[#allocation13 + $0x94] sm:$0xf]
    %v4339 = vld [vmem:[#allocation13 + $0x98] sm:$0xf]
    %v4340 = vld [vmem:[#allocation13 + $0x9c] sm:$0xf]
    %v4341 = vld [vmem:[#allocation13 + $0xa0] sm:$0xf]
    %v4342 = vld [vmem:[#allocation13 + $0xa4] sm:$0xf]
    %v4343 = vld [vmem:[#allocation13 + $0xa8] sm:$0xf]
    %v4344 = vld [vmem:[#allocation13 + $0xac] sm:$0xf]
    %v4345 = vld [vmem:[#allocation13 + $0xb0] sm:$0xf]
    %v4346 = vld [vmem:[#allocation13 + $0xb4] sm:$0xf]
    %v4347 = vld [vmem:[#allocation13 + $0xb8] sm:$0xf]
    %v4348 = vld [vmem:[#allocation13 + $0xbc] sm:$0xf]
    %v4349 = vld [vmem:[#allocation13 + $0xc0] sm:$0xf]
    %v4350 = vld [vmem:[#allocation13 + $0xc4] sm:$0xf]
    %v4351 = vld [vmem:[#allocation13 + $0xc8] sm:$0xf]
    %v4352 = vld [vmem:[#allocation13 + $0xcc] sm:$0xf]
    %v4353 = vld [vmem:[#allocation13 + $0xd0] sm:$0xf]
    %v4354 = vld [vmem:[#allocation13 + $0xd4] sm:$0xf]
    %v4355 = vld [vmem:[#allocation13 + $0xd8] sm:$0xf]
    %v4356 = vld [vmem:[#allocation13 + $0xdc] sm:$0xf]
    %v4357 = vld [vmem:[#allocation13 + $0xe0] sm:$0xf]
    %v4358 = vld [vmem:[#allocation13 + $0xe4] sm:$0xf]
    %v4359 = vld [vmem:[#allocation13 + $0xe8] sm:$0xf]
    %v4360 = vld [vmem:[#allocation13 + $0xec] sm:$0xf]
    %v4361 = vld [vmem:[#allocation13 + $0xf0] sm:$0xf]
    %v4362 = vld [vmem:[#allocation13 + $0xf4] sm:$0xf]
    %v4363 = vld [vmem:[#allocation13 + $0xf8] sm:$0xf]
    %v4364 = vld [vmem:[#allocation13 + $0xfc] sm:$0xf]
    %v4365 = vld [vmem:[#allocation13 + $0x100] sm:$0xf]
    %v4366 = vld [vmem:[#allocation13 + $0x104] sm:$0xf]
    %v4367 = vld [vmem:[#allocation13 + $0x108] sm:$0xf]
    %v4368 = vld [vmem:[#allocation13 + $0x10c] sm:$0xf]
    %v4369 = vld [vmem:[#allocation13 + $0x110] sm:$0xf]
    %v4370 = vld [vmem:[#allocation13 + $0x114] sm:$0xf]
    %v4371 = vld [vmem:[#allocation13 + $0x118] sm:$0xf]
    %v4372 = vld [vmem:[#allocation13 + $0x11c] sm:$0xf]
    %v4373 = vld [vmem:[#allocation13 + $0x120] sm:$0xf]
    %v4374 = vld [vmem:[#allocation13 + $0x124] sm:$0xf]
    %v4375 = vld [vmem:[#allocation13 + $0x128] sm:$0xf]
    %v4376 = vld [vmem:[#allocation13 + $0x12c] sm:$0xf]
    %v4377 = vld [vmem:[#allocation13 + $0x130] sm:$0xf]
    %v4378 = vld [vmem:[#allocation13 + $0x134] sm:$0xf]
    %v4379 = vld [vmem:[#allocation13 + $0x138] sm:$0xf]
    %v4380 = vld [vmem:[#allocation13 + $0x13c] sm:$0xf]
    %v4381 = vld [vmem:[#allocation13 + $0x140] sm:$0xf]
    %v4382 = vld [vmem:[#allocation13 + $0x144] sm:$0xf]
    %v4383 = vld [vmem:[#allocation13 + $0x148] sm:$0xf]
    %v4384 = vld [vmem:[#allocation13 + $0x14c] sm:$0xf]
    %v4385 = vld [vmem:[#allocation13 + $0x150] sm:$0xf]
    %v4386 = vld [vmem:[#allocation13 + $0x154] sm:$0xf]
    %v4387 = vld [vmem:[#allocation13 + $0x158] sm:$0xf]
    %v4388 = vld [vmem:[#allocation13 + $0x15c] sm:$0xf]
    %v4389 = vld [vmem:[#allocation13 + $0x160] sm:$0xf]
    %v4390 = vld [vmem:[#allocation13 + $0x164] sm:$0xf]
    %v4391 = vld [vmem:[#allocation13 + $0x168] sm:$0xf]
    %v4392 = vld [vmem:[#allocation13 + $0x16c] sm:$0xf]
    %v4393 = vld [vmem:[#allocation13 + $0x170] sm:$0xf]
    %v4394 = vld [vmem:[#allocation13 + $0x174] sm:$0xf]
    %v4395 = vld [vmem:[#allocation13 + $0x178] sm:$0xf]
    %v4396 = vld [vmem:[#allocation13 + $0x17c] sm:$0xf]
    %v4397 = vld [vmem:[#allocation13 + $0x180] sm:$0xf]
    %v4398 = vld [vmem:[#allocation13 + $0x184] sm:$0xf]
    %v4399 = vld [vmem:[#allocation13 + $0x188] sm:$0xf]
    %v4400 = vld [vmem:[#allocation13 + $0x18c] sm:$0xf]
    %v4401 = vld [vmem:[#allocation13 + $0x190] sm:$0xf]
    %v4402 = vld [vmem:[#allocation13 + $0x194] sm:$0xf]
    %v4403 = vld [vmem:[#allocation13 + $0x198] sm:$0xf]
    %v4404 = vld [vmem:[#allocation13 + $0x19c] sm:$0xf]
    %v4405 = vld [vmem:[#allocation13 + $0x1a0] sm:$0xf]
    %v4406 = vld [vmem:[#allocation13 + $0x1a4] sm:$0xf]
    %v4407 = vld [vmem:[#allocation13 + $0x1a8] sm:$0xf]
    %v4408 = vld [vmem:[#allocation13 + $0x1ac] sm:$0xf]
    %v4409 = vld [vmem:[#allocation13 + $0x1b0] sm:$0xf]
    %v4410 = vld [vmem:[#allocation13 + $0x1b4] sm:$0xf]
    %v4411 = vld [vmem:[#allocation13 + $0x1b8] sm:$0xf]
    %v4412 = vld [vmem:[#allocation13 + $0x1bc] sm:$0xf]
    %v4413 = vld [vmem:[#allocation13 + $0x1c0] sm:$0xf]
    %v4414 = vld [vmem:[#allocation13 + $0x1c4] sm:$0xf]
    %v4415 = vld [vmem:[#allocation13 + $0x1c8] sm:$0xf]
    %v4416 = vld [vmem:[#allocation13 + $0x1cc] sm:$0xf]
    %v4417 = vld [vmem:[#allocation13 + $0x1d0] sm:$0xf]
    %v4418 = vld [vmem:[#allocation13 + $0x1d4] sm:$0xf]
    %v4419 = vld [vmem:[#allocation13 + $0x1d8] sm:$0xf]
    %v4420 = vld [vmem:[#allocation13 + $0x1dc] sm:$0xf]
    %v4421 = vld [vmem:[#allocation13 + $0x1e0] sm:$0xf]
    %v4422 = vld [vmem:[#allocation13 + $0x1e4] sm:$0xf]
    %v4423 = vld [vmem:[#allocation13 + $0x1e8] sm:$0xf]
    %v4424 = vld [vmem:[#allocation13 + $0x1ec] sm:$0xf]
    %v4425 = vld [vmem:[#allocation13 + $0x1f0] sm:$0xf]
    %v4426 = vld [vmem:[#allocation13 + $0x1f4] sm:$0xf]
    %v4427 = vld [vmem:[#allocation13 + $0x1f8] sm:$0xf]
    %v4428 = vld [vmem:[#allocation13 + $0x1fc] sm:$0xf]
    %v4429 = vld [vmem:[#allocation13 + $0x200] sm:$0xf]
    %v4430 = vld [vmem:[#allocation13 + $0x204] sm:$0xf]
    %v4431 = vld [vmem:[#allocation13 + $0x208] sm:$0xf]
    %v4432 = vld [vmem:[#allocation13 + $0x20c] sm:$0xf]
    %v4433 = vld [vmem:[#allocation13 + $0x210] sm:$0xf]
    %v4434 = vld [vmem:[#allocation13 + $0x214] sm:$0xf]
    %v4435 = vld [vmem:[#allocation13 + $0x218] sm:$0xf]
    %v4436 = vld [vmem:[#allocation13 + $0x21c] sm:$0xf]
    %v4437 = vld [vmem:[#allocation13 + $0x220] sm:$0xf]
    %v4438 = vld [vmem:[#allocation13 + $0x224] sm:$0xf]
    %v4439 = vld [vmem:[#allocation13 + $0x228] sm:$0xf]
    %v4440 = vld [vmem:[#allocation13 + $0x22c] sm:$0xf]
    %v4441 = vld [vmem:[#allocation13 + $0x230] sm:$0xf]
    %v4442 = vld [vmem:[#allocation13 + $0x234] sm:$0xf]
    %v4443 = vld [vmem:[#allocation13 + $0x238] sm:$0xf]
    %v4444 = vld [vmem:[#allocation13 + $0x23c] sm:$0xf]
    %v4589 = vunpack.c.l.b16 %v4301
    %v4590 = vunpack.c.l.b16 %v4302
    %v4591 = vunpack.c.l.b16 %v4303
    %v4592 = vunpack.c.l.b16 %v4304
    %v4593 = vunpack.c.l.b16 %v4305
    %v4594 = vunpack.c.l.b16 %v4306
    %v4595 = vunpack.c.l.b16 %v4307
    %v4596 = vunpack.c.l.b16 %v4308
    %v4597 = vunpack.c.l.b16 %v4309
    %v4598 = vunpack.c.l.b16 %v4310
    %v4599 = vunpack.c.l.b16 %v4311
    %v4600 = vunpack.c.l.b16 %v4312
    %v4601 = vunpack.c.l.b16 %v4313
    %v4602 = vunpack.c.l.b16 %v4314
    %v4603 = vunpack.c.l.b16 %v4315
    %v4604 = vunpack.c.l.b16 %v4316
    %v4605 = vunpack.c.l.b16 %v4317
    %v4606 = vunpack.c.l.b16 %v4318
    %v4607 = vunpack.c.l.b16 %v4319
    %v4608 = vunpack.c.l.b16 %v4320
    %v4609 = vunpack.c.l.b16 %v4321
    %v4610 = vunpack.c.l.b16 %v4322
    %v4611 = vunpack.c.l.b16 %v4323
    %v4612 = vunpack.c.l.b16 %v4324
    %v4613 = vunpack.c.l.b16 %v4325
    %v4614 = vunpack.c.l.b16 %v4326
    %v4615 = vunpack.c.l.b16 %v4327
    %v4616 = vunpack.c.l.b16 %v4328
    %v4617 = vunpack.c.l.b16 %v4329
    %v4618 = vunpack.c.l.b16 %v4330
    %v4619 = vunpack.c.l.b16 %v4331
    %v4620 = vunpack.c.l.b16 %v4332
    %v4621 = vunpack.c.l.b16 %v4333
    %v4622 = vunpack.c.l.b16 %v4334
    %v4623 = vunpack.c.l.b16 %v4335
    %v4624 = vunpack.c.l.b16 %v4336
    %v4625 = vunpack.c.l.b16 %v4337
    %v4626 = vunpack.c.l.b16 %v4338
    %v4627 = vunpack.c.l.b16 %v4339
    %v4628 = vunpack.c.l.b16 %v4340
    %v4629 = vunpack.c.l.b16 %v4341
    %v4630 = vunpack.c.l.b16 %v4342
    %v4631 = vunpack.c.l.b16 %v4343
    %v4632 = vunpack.c.l.b16 %v4344
    %v4633 = vunpack.c.l.b16 %v4345
    %v4634 = vunpack.c.l.b16 %v4346
    %v4635 = vunpack.c.l.b16 %v4347
    %v4636 = vunpack.c.l.b16 %v4348
    %v4637 = vunpack.c.l.b16 %v4349
    %v4638 = vunpack.c.l.b16 %v4350
    %v4639 = vunpack.c.l.b16 %v4351
    %v4640 = vunpack.c.l.b16 %v4352
    %v4641 = vunpack.c.l.b16 %v4353
    %v4642 = vunpack.c.l.b16 %v4354
    %v4643 = vunpack.c.l.b16 %v4355
    %v4644 = vunpack.c.l.b16 %v4356
    %v4645 = vunpack.c.l.b16 %v4357
    %v4646 = vunpack.c.l.b16 %v4358
    %v4647 = vunpack.c.l.b16 %v4359
    %v4648 = vunpack.c.l.b16 %v4360
    %v4649 = vunpack.c.l.b16 %v4361
    %v4650 = vunpack.c.l.b16 %v4362
    %v4651 = vunpack.c.l.b16 %v4363
    %v4652 = vunpack.c.l.b16 %v4364
    %v4653 = vunpack.c.l.b16 %v4365
    %v4654 = vunpack.c.l.b16 %v4366
    %v4655 = vunpack.c.l.b16 %v4367
    %v4656 = vunpack.c.l.b16 %v4368
    %v4657 = vunpack.c.l.b16 %v4369
    %v4658 = vunpack.c.l.b16 %v4370
    %v4659 = vunpack.c.l.b16 %v4371
    %v4660 = vunpack.c.l.b16 %v4372
    %v4661 = vunpack.c.l.b16 %v4373
    %v4662 = vunpack.c.l.b16 %v4374
    %v4663 = vunpack.c.l.b16 %v4375
    %v4664 = vunpack.c.l.b16 %v4376
    %v4665 = vunpack.c.l.b16 %v4377
    %v4666 = vunpack.c.l.b16 %v4378
    %v4667 = vunpack.c.l.b16 %v4379
    %v4668 = vunpack.c.l.b16 %v4380
    %v4669 = vunpack.c.l.b16 %v4381
    %v4670 = vunpack.c.l.b16 %v4382
    %v4671 = vunpack.c.l.b16 %v4383
    %v4672 = vunpack.c.l.b16 %v4384
    %v4673 = vunpack.c.l.b16 %v4385
    %v4674 = vunpack.c.l.b16 %v4386
    %v4675 = vunpack.c.l.b16 %v4387
    %v4676 = vunpack.c.l.b16 %v4388
    %v4677 = vunpack.c.l.b16 %v4389
    %v4678 = vunpack.c.l.b16 %v4390
    %v4679 = vunpack.c.l.b16 %v4391
    %v4680 = vunpack.c.l.b16 %v4392
    %v4681 = vunpack.c.l.b16 %v4393
    %v4682 = vunpack.c.l.b16 %v4394
    %v4683 = vunpack.c.l.b16 %v4395
    %v4684 = vunpack.c.l.b16 %v4396
    %v4685 = vunpack.c.l.b16 %v4397
    %v4686 = vunpack.c.l.b16 %v4398
    %v4687 = vunpack.c.l.b16 %v4399
    %v4688 = vunpack.c.l.b16 %v4400
    %v4689 = vunpack.c.l.b16 %v4401
    %v4690 = vunpack.c.l.b16 %v4402
    %v4691 = vunpack.c.l.b16 %v4403
    %v4692 = vunpack.c.l.b16 %v4404
    %v4693 = vunpack.c.l.b16 %v4405
    %v4694 = vunpack.c.l.b16 %v4406
    %v4695 = vunpack.c.l.b16 %v4407
    %v4696 = vunpack.c.l.b16 %v4408
    %v4697 = vunpack.c.l.b16 %v4409
    %v4698 = vunpack.c.l.b16 %v4410
    %v4699 = vunpack.c.l.b16 %v4411
    %v4700 = vunpack.c.l.b16 %v4412
    %v4701 = vunpack.c.l.b16 %v4413
    %v4702 = vunpack.c.l.b16 %v4414
    %v4703 = vunpack.c.l.b16 %v4415
    %v4704 = vunpack.c.l.b16 %v4416
    %v4705 = vunpack.c.l.b16 %v4417
    %v4706 = vunpack.c.l.b16 %v4418
    %v4707 = vunpack.c.l.b16 %v4419
    %v4708 = vunpack.c.l.b16 %v4420
    %v4709 = vunpack.c.l.b16 %v4421
    %v4710 = vunpack.c.l.b16 %v4422
    %v4711 = vunpack.c.l.b16 %v4423
    %v4712 = vunpack.c.l.b16 %v4424
    %v4713 = vunpack.c.l.b16 %v4425
    %v4714 = vunpack.c.l.b16 %v4426
    %v4715 = vunpack.c.l.b16 %v4427
    %v4716 = vunpack.c.l.b16 %v4428
    %v4717 = vunpack.c.l.b16 %v4429
    %v4718 = vunpack.c.l.b16 %v4430
    %v4719 = vunpack.c.l.b16 %v4431
    %v4720 = vunpack.c.l.b16 %v4432
    %v4721 = vunpack.c.l.b16 %v4433
    %v4722 = vunpack.c.l.b16 %v4434
    %v4723 = vunpack.c.l.b16 %v4435
    %v4724 = vunpack.c.l.b16 %v4436
    %v4725 = vunpack.c.l.b16 %v4437
    %v4726 = vunpack.c.l.b16 %v4438
    %v4727 = vunpack.c.l.b16 %v4439
    %v4728 = vunpack.c.l.b16 %v4440
    %v4729 = vunpack.c.l.b16 %v4441
    %v4730 = vunpack.c.l.b16 %v4442
    %v4731 = vunpack.c.l.b16 %v4443
    %v4732 = vunpack.c.l.b16 %v4444
    %v4733 = vpack.c.b16 %v4590, %v4589
    %v4734 = vpack.c.b16 %v4592, %v4591
    %v4735 = vpack.c.b16 %v4594, %v4593
    %v4736 = vpack.c.b16 %v4596, %v4595
    %v4737 = vpack.c.b16 %v4598, %v4597
    %v4738 = vpack.c.b16 %v4600, %v4599
    %v4739 = vpack.c.b16 %v4602, %v4601
    %v4740 = vpack.c.b16 %v4604, %v4603
    %v4741 = vpack.c.b16 %v4606, %v4605
    %v4742 = vpack.c.b16 %v4608, %v4607
    %v4743 = vpack.c.b16 %v4610, %v4609
    %v4744 = vpack.c.b16 %v4612, %v4611
    %v4745 = vpack.c.b16 %v4614, %v4613
    %v4746 = vpack.c.b16 %v4616, %v4615
    %v4747 = vpack.c.b16 %v4618, %v4617
    %v4748 = vpack.c.b16 %v4620, %v4619
    %v4749 = vpack.c.b16 %v4622, %v4621
    %v4750 = vpack.c.b16 %v4624, %v4623
    %v4751 = vpack.c.b16 %v4626, %v4625
    %v4752 = vpack.c.b16 %v4628, %v4627
    %v4753 = vpack.c.b16 %v4630, %v4629
    %v4754 = vpack.c.b16 %v4632, %v4631
    %v4755 = vpack.c.b16 %v4634, %v4633
    %v4756 = vpack.c.b16 %v4636, %v4635
    %v4757 = vpack.c.b16 %v4638, %v4637
    %v4758 = vpack.c.b16 %v4640, %v4639
    %v4759 = vpack.c.b16 %v4642, %v4641
    %v4760 = vpack.c.b16 %v4644, %v4643
    %v4761 = vpack.c.b16 %v4646, %v4645
    %v4762 = vpack.c.b16 %v4648, %v4647
    %v4763 = vpack.c.b16 %v4650, %v4649
    %v4764 = vpack.c.b16 %v4652, %v4651
    %v4765 = vpack.c.b16 %v4654, %v4653
    %v4766 = vpack.c.b16 %v4656, %v4655
    %v4767 = vpack.c.b16 %v4658, %v4657
    %v4768 = vpack.c.b16 %v4660, %v4659
    %v4769 = vpack.c.b16 %v4662, %v4661
    %v4770 = vpack.c.b16 %v4664, %v4663
    %v4771 = vpack.c.b16 %v4666, %v4665
    %v4772 = vpack.c.b16 %v4668, %v4667
    %v4773 = vpack.c.b16 %v4670, %v4669
    %v4774 = vpack.c.b16 %v4672, %v4671
    %v4775 = vpack.c.b16 %v4674, %v4673
    %v4776 = vpack.c.b16 %v4676, %v4675
    %v4777 = vpack.c.b16 %v4678, %v4677
    %v4778 = vpack.c.b16 %v4680, %v4679
    %v4779 = vpack.c.b16 %v4682, %v4681
    %v4780 = vpack.c.b16 %v4684, %v4683
    %v4781 = vpack.c.b16 %v4686, %v4685
    %v4782 = vpack.c.b16 %v4688, %v4687
    %v4783 = vpack.c.b16 %v4690, %v4689
    %v4784 = vpack.c.b16 %v4692, %v4691
    %v4785 = vpack.c.b16 %v4694, %v4693
    %v4786 = vpack.c.b16 %v4696, %v4695
    %v4787 = vpack.c.b16 %v4698, %v4697
    %v4788 = vpack.c.b16 %v4700, %v4699
    %v4789 = vpack.c.b16 %v4702, %v4701
    %v4790 = vpack.c.b16 %v4704, %v4703
    %v4791 = vpack.c.b16 %v4706, %v4705
    %v4792 = vpack.c.b16 %v4708, %v4707
    %v4793 = vpack.c.b16 %v4710, %v4709
    %v4794 = vpack.c.b16 %v4712, %v4711
    %v4795 = vpack.c.b16 %v4714, %v4713
    %v4796 = vpack.c.b16 %v4716, %v4715
    %v4797 = vpack.c.b16 %v4718, %v4717
    %v4798 = vpack.c.b16 %v4720, %v4719
    %v4799 = vpack.c.b16 %v4722, %v4721
    %v4800 = vpack.c.b16 %v4724, %v4723
    %v4801 = vpack.c.b16 %v4726, %v4725
    %v4802 = vpack.c.b16 %v4728, %v4727
    %v4803 = vpack.c.b16 %v4730, %v4729
    %v4804 = vpack.c.b16 %v4732, %v4731
    %4877 = vmatprep.subr.bf16.mxu0 0
    %4878 = vmatpush1.bf16.msra.mxu0 %v4733
    %4879 = vmatprep.subr.bf16.mxu0 0
    %4880 = vmatpush1.bf16.msra.mxu0 %v4734
    %4881 = vmatprep.subr.bf16.mxu0 0
    %4882 = vmatpush1.bf16.msra.mxu0 %v4735
    %4883 = vmatprep.subr.bf16.mxu0 0
    %4884 = vmatpush1.bf16.msra.mxu0 %v4736
    %4885 = vmatprep.subr.bf16.mxu0 0
    %4886 = vmatpush1.bf16.msra.mxu0 %v4737
    %4887 = vmatprep.subr.bf16.mxu0 0
    %4888 = vmatpush1.bf16.msra.mxu0 %v4738
    %4889 = vmatprep.subr.bf16.mxu0 0
    %4890 = vmatpush1.bf16.msra.mxu0 %v4739
    %4891 = vmatprep.subr.bf16.mxu0 0
    %4892 = vmatpush1.bf16.msra.mxu0 %v4740
    %4893 = vmatprep.subr.bf16.mxu0 0
    %4894 = vmatpush1.bf16.msra.mxu0 %v4741
    %4895 = vmatprep.subr.bf16.mxu0 0
    %4896 = vmatpush1.bf16.msra.mxu0 %v4742
    %4897 = vmatprep.subr.bf16.mxu0 0
    %4898 = vmatpush1.bf16.msra.mxu0 %v4743
    %4899 = vmatprep.subr.bf16.mxu0 0
    %4900 = vmatpush1.bf16.msra.mxu0 %v4744
    %4901 = vmatprep.subr.bf16.mxu0 0
    %4902 = vmatpush1.bf16.msra.mxu0 %v4745
    %4903 = vmatprep.subr.bf16.mxu0 0
    %4904 = vmatpush1.bf16.msra.mxu0 %v4746
    %4905 = vmatprep.subr.bf16.mxu0 0
    %4906 = vmatpush1.bf16.msra.mxu0 %v4747
    %4907 = vmatprep.subr.bf16.mxu0 0
    %4908 = vmatpush1.bf16.msra.mxu0 %v4748
    %4909 = vmatprep.mubr.bf16.mxu0 %v4230
    %4910 = vmatmul.mubr.bf16.gmra.mrb[0].mxu0 %v4229
    %v4911 = vpop.f32.mrb[0].mxu0
    %v4912 = vadd.f32 0.0, %v4911
    %v4913 = vpop.f32.mrb[0].mxu0
    %v4914 = vpop.f32.mrb[0].mxu0
    %v4915 = vadd.f32 0.0, %v4914
    %v4916 = vpop.f32.mrb[0].mxu0
    %4917 = vmatprep.mubr.bf16.mxu0 %v4239
    %4918 = vmatmul.mubr.bf16.gmra.mrb[0].mxu0 %v4238
    %v4919 = vpop.f32.mrb[0].mxu0
    %v4920 = vadd.f32 0.0, %v4919
    %v4921 = vpop.f32.mrb[0].mxu0
    %v4922 = vpop.f32.mrb[0].mxu0
    %v4923 = vadd.f32 0.0, %v4922
    %v4924 = vpop.f32.mrb[0].mxu0
    %4925 = vmatprep.mubr.bf16.mxu0 %v4248
    %4926 = vmatmul.mubr.bf16.gmra.mrb[0].mxu0 %v4247
    %v4927 = vpop.f32.mrb[0].mxu0
    %v4928 = vadd.f32 0.0, %v4927
    %v4929 = vpop.f32.mrb[0].mxu0
    %v4930 = vpop.f32.mrb[0].mxu0
    %v4931 = vadd.f32 0.0, %v4930
    %v4932 = vpop.f32.mrb[0].mxu0
    %4933 = vmatprep.mubr.bf16.mxu0 %v4257
    %4934 = vmatmul.mubr.bf16.gmra.mrb[0].mxu0 %v4256
    %v4935 = vpop.f32.mrb[0].mxu0
    %v4936 = vadd.f32 0.0, %v4935
    %v4937 = vpop.f32.mrb[0].mxu0
    %v4938 = vpop.f32.mrb[0].mxu0
    %v4939 = vadd.f32 0.0, %v4938
    %v4940 = vpop.f32.mrb[0].mxu0
    %4941 = vmatprep.mubr.bf16.mxu0 %v4266
    %4942 = vmatmul.mubr.bf16.gmra.mrb[0].mxu0 %v4265
    %v4943 = vpop.f32.mrb[0].mxu0
    %v4944 = vadd.f32 0.0, %v4943
    %v4945 = vpop.f32.mrb[0].mxu0
    %v4946 = vpop.f32.mrb[0].mxu0
    %v4947 = vadd.f32 0.0, %v4946
    %v4948 = vpop.f32.mrb[0].mxu0
    %4949 = vmatprep.mubr.bf16.mxu0 %v4275
    %4950 = vmatmul.mubr.bf16.gmra.mrb[0].mxu0 %v4274
    %v4951 = vpop.f32.mrb[0].mxu0
    %v4952 = vadd.f32 0.0, %v4951
    %v4953 = vpop.f32.mrb[0].mxu0
    %v4954 = vpop.f32.mrb[0].mxu0
    %v4955 = vadd.f32 0.0, %v4954
    %v4956 = vpop.f32.mrb[0].mxu0
    %4957 = vmatprep.mubr.bf16.mxu0 %v4284
    %4958 = vmatmul.mubr.bf16.gmra.mrb[0].mxu0 %v4283
    %v4959 = vpop.f32.mrb[0].mxu0
    %v4960 = vadd.f32 0.0, %v4959
    %v4961 = vpop.f32.mrb[0].mxu0
    %v4962 = vpop.f32.mrb[0].mxu0
    %v4963 = vadd.f32 0.0, %v4962
    %v4964 = vpop.f32.mrb[0].mxu0
    %4965 = vmatprep.mubr.bf16.mxu0 %v4293
    %4966 = vmatmul.mubr.bf16.gmra.mrb[0].mxu0 %v4292
    %v4967 = vpop.f32.mrb[0].mxu0
    %v4968 = vadd.f32 0.0, %v4967
    %v4969 = vpop.f32.mrb[0].mxu0
    %v4970 = vpop.f32.mrb[0].mxu0
    %v4971 = vadd.f32 0.0, %v4970
    %v4972 = vpop.f32.mrb[0].mxu0
    %4973 = vdwg.mxu0
    %4974 = vmatprep.subr.bf16.mxu0 0
    %4975 = vmatpush1.bf16.msra.mxu0 %v4749
    %4976 = vmatprep.subr.bf16.mxu0 0
    %4977 = vmatpush1.bf16.msra.mxu0 %v4750
    %4978 = vmatprep.subr.bf16.mxu0 0
    %4979 = vmatpush1.bf16.msra.mxu0 %v4751
    %4980 = vmatprep.subr.bf16.mxu0 0
    %4981 = vmatpush1.bf16.msra.mxu0 %v4752
    %4982 = vmatprep.subr.bf16.mxu0 0
    %4983 = vmatpush1.bf16.msra.mxu0 %v4753
    %4984 = vmatprep.subr.bf16.mxu0 0
    %4985 = vmatpush1.bf16.msra.mxu0 %v4754
    %4986 = vmatprep.subr.bf16.mxu0 0
    %4987 = vmatpush1.bf16.msra.mxu0 %v4755
    %4988 = vmatprep.subr.bf16.mxu0 0
    %4989 = vmatpush1.bf16.msra.mxu0 %v4756
    %4990 = vmatprep.subr.bf16.mxu0 0
    %4991 = vmatpush1.bf16.msra.mxu0 %v4757
    %4992 = vmatprep.subr.bf16.mxu0 0
    %4993 = vmatpush1.bf16.msra.mxu0 %v4758
    %4994 = vmatprep.subr.bf16.mxu0 0
    %4995 = vmatpush1.bf16.msra.mxu0 %v4759
    %4996 = vmatprep.subr.bf16.mxu0 0
    %4997 = vmatpush1.bf16.msra.mxu0 %v4760
    %4998 = vmatprep.subr.bf16.mxu0 0
    %4999 = vmatpush1.bf16.msra.mxu0 %v4761
    %5000 = vmatprep.subr.bf16.mxu0 0
    %5001 = vmatpush1.bf16.msra.mxu0 %v4762
    %5002 = vmatprep.subr.bf16.mxu0 0
    %5003 = vmatpush1.bf16.msra.mxu0 %v4763
    %5004 = vmatprep.subr.bf16.mxu0 0
    %5005 = vmatpush1.bf16.msra.mxu0 %v4764
    %5006 = vmatprep.mubr.bf16.mxu0 %v4232
    %5007 = vmatmul.mubr.bf16.gmra.mrb[0].mxu0 %v4231
    %v5008 = vpop.f32.mrb[0].mxu0
    %v5009 = vadd.f32 %v4912, %v5008
    %v5010 = vpop.f32.mrb[0].mxu0
    %v5011 = vpop.f32.mrb[0].mxu0
    %v5012 = vadd.f32 %v4915, %v5011
    %v5013 = vpop.f32.mrb[0].mxu0
    %5014 = vmatprep.mubr.bf16.mxu0 %v4241
    %5015 = vmatmul.mubr.bf16.gmra.mrb[0].mxu0 %v4240
    %v5016 = vpop.f32.mrb[0].mxu0
    %v5017 = vadd.f32 %v4920, %v5016
    %v5018 = vpop.f32.mrb[0].mxu0
    %v5019 = vpop.f32.mrb[0].mxu0
    %v5020 = vadd.f32 %v4923, %v5019
    %v5021 = vpop.f32.mrb[0].mxu0
    %5022 = vmatprep.mubr.bf16.mxu0 %v4250
    %5023 = vmatmul.mubr.bf16.gmra.mrb[0].mxu0 %v4249
    %v5024 = vpop.f32.mrb[0].mxu0
    %v5025 = vadd.f32 %v4928, %v5024
    %v5026 = vpop.f32.mrb[0].mxu0
    %v5027 = vpop.f32.mrb[0].mxu0
    %v5028 = vadd.f32 %v4931, %v5027
    %v5029 = vpop.f32.mrb[0].mxu0
    %5030 = vmatprep.mubr.bf16.mxu0 %v4259
    %5031 = vmatmul.mubr.bf16.gmra.mrb[0].mxu0 %v4258
    %v5032 = vpop.f32.mrb[0].mxu0
    %v5033 = vadd.f32 %v4936, %v5032
    %v5034 = vpop.f32.mrb[0].mxu0
    %v5035 = vpop.f32.mrb[0].mxu0
    %v5036 = vadd.f32 %v4939, %v5035
    %v5037 = vpop.f32.mrb[0].mxu0
    %5038 = vmatprep.mubr.bf16.mxu0 %v4268
    %5039 = vmatmul.mubr.bf16.gmra.mrb[0].mxu0 %v4267
    %v5040 = vpop.f32.mrb[0].mxu0
    %v5041 = vadd.f32 %v4944, %v5040
    %v5042 = vpop.f32.mrb[0].mxu0
    %v5043 = vpop.f32.mrb[0].mxu0
    %v5044 = vadd.f32 %v4947, %v5043
    %v5045 = vpop.f32.mrb[0].mxu0
    %5046 = vmatprep.mubr.bf16.mxu0 %v4277
    %5047 = vmatmul.mubr.bf16.gmra.mrb[0].mxu0 %v4276
    %v5048 = vpop.f32.mrb[0].mxu0
    %v5049 = vadd.f32 %v4952, %v5048
    %v5050 = vpop.f32.mrb[0].mxu0
    %v5051 = vpop.f32.mrb[0].mxu0
    %v5052 = vadd.f32 %v4955, %v5051
    %v5053 = vpop.f32.mrb[0].mxu0
    %5054 = vmatprep.mubr.bf16.mxu0 %v4286
    %5055 = vmatmul.mubr.bf16.gmra.mrb[0].mxu0 %v4285
    %v5056 = vpop.f32.mrb[0].mxu0
    %v5057 = vadd.f32 %v4960, %v5056
    %v5058 = vpop.f32.mrb[0].mxu0
    %v5059 = vpop.f32.mrb[0].mxu0
    %v5060 = vadd.f32 %v4963, %v5059
    %v5061 = vpop.f32.mrb[0].mxu0
    %5062 = vmatprep.mubr.bf16.mxu0 %v4295
    %5063 = vmatmul.mubr.bf16.gmra.mrb[0].mxu0 %v4294
    %v5064 = vpop.f32.mrb[0].mxu0
    %v5065 = vadd.f32 %v4968, %v5064
    %v5066 = vpop.f32.mrb[0].mxu0
    %v5067 = vpop.f32.mrb[0].mxu0
    %v5068 = vadd.f32 %v4971, %v5067
    %v5069 = vpop.f32.mrb[0].mxu0
    %5070 = vdwg.mxu0
    %5071 = vmatprep.subr.bf16.mxu0 0
    %5072 = vmatpush1.bf16.msra.mxu0 %v4765
    %5073 = vmatprep.subr.bf16.mxu0 0
    %5074 = vmatpush1.bf16.msra.mxu0 %v4766
    %5075 = vmatprep.subr.bf16.mxu0 0
    %5076 = vmatpush1.bf16.msra.mxu0 %v4767
    %5077 = vmatprep.subr.bf16.mxu0 0
    %5078 = vmatpush1.bf16.msra.mxu0 %v4768
    %5079 = vmatprep.subr.bf16.mxu0 0
    %5080 = vmatpush1.bf16.msra.mxu0 %v4769
    %5081 = vmatprep.subr.bf16.mxu0 0
    %5082 = vmatpush1.bf16.msra.mxu0 %v4770
    %5083 = vmatprep.subr.bf16.mxu0 0
    %5084 = vmatpush1.bf16.msra.mxu0 %v4771
    %5085 = vmatprep.subr.bf16.mxu0 0
    %5086 = vmatpush1.bf16.msra.mxu0 %v4772
    %5087 = vmatprep.subr.bf16.mxu0 0
    %5088 = vmatpush1.bf16.msra.mxu0 %v4773
    %5089 = vmatprep.subr.bf16.mxu0 0
    %5090 = vmatpush1.bf16.msra.mxu0 %v4774
    %5091 = vmatprep.subr.bf16.mxu0 0
    %5092 = vmatpush1.bf16.msra.mxu0 %v4775
    %5093 = vmatprep.subr.bf16.mxu0 0
    %5094 = vmatpush1.bf16.msra.mxu0 %v4776
    %5095 = vmatprep.subr.bf16.mxu0 0
    %5096 = vmatpush1.bf16.msra.mxu0 %v4777
    %5097 = vmatprep.subr.bf16.mxu0 0
    %5098 = vmatpush1.bf16.msra.mxu0 %v4778
    %5099 = vmatprep.subr.bf16.mxu0 0
    %5100 = vmatpush1.bf16.msra.mxu0 %v4779
    %5101 = vmatprep.subr.bf16.mxu0 0
    %5102 = vmatpush1.bf16.msra.mxu0 %v4780
    %5103 = vmatprep.mubr.bf16.mxu0 %v4234
    %5104 = vmatmul.mubr.bf16.gmra.mrb[0].mxu0 %v4233
    %v5105 = vpop.f32.mrb[0].mxu0
    %v5106 = vadd.f32 %v5009, %v5105
    %v5107 = vpop.f32.mrb[0].mxu0
    %v5108 = vpop.f32.mrb[0].mxu0
    %v5109 = vadd.f32 %v5012, %v5108
    %v5110 = vpop.f32.mrb[0].mxu0
    %5111 = vmatprep.mubr.bf16.mxu0 %v4243
    %5112 = vmatmul.mubr.bf16.gmra.mrb[0].mxu0 %v4242
    %v5113 = vpop.f32.mrb[0].mxu0
    %v5114 = vadd.f32 %v5017, %v5113
    %v5115 = vpop.f32.mrb[0].mxu0
    %v5116 = vpop.f32.mrb[0].mxu0
    %v5117 = vadd.f32 %v5020, %v5116
    %v5118 = vpop.f32.mrb[0].mxu0
    %5119 = vmatprep.mubr.bf16.mxu0 %v4252
    %5120 = vmatmul.mubr.bf16.gmra.mrb[0].mxu0 %v4251
    %v5121 = vpop.f32.mrb[0].mxu0
    %v5122 = vadd.f32 %v5025, %v5121
    %v5123 = vpop.f32.mrb[0].mxu0
    %v5124 = vpop.f32.mrb[0].mxu0
    %v5125 = vadd.f32 %v5028, %v5124
    %v5126 = vpop.f32.mrb[0].mxu0
    %5127 = vmatprep.mubr.bf16.mxu0 %v4261
    %5128 = vmatmul.mubr.bf16.gmra.mrb[0].mxu0 %v4260
    %v5129 = vpop.f32.mrb[0].mxu0
    %v5130 = vadd.f32 %v5033, %v5129
    %v5131 = vpop.f32.mrb[0].mxu0
    %v5132 = vpop.f32.mrb[0].mxu0
    %v5133 = vadd.f32 %v5036, %v5132
    %v5134 = vpop.f32.mrb[0].mxu0
    %5135 = vmatprep.mubr.bf16.mxu0 %v4270
    %5136 = vmatmul.mubr.bf16.gmra.mrb[0].mxu0 %v4269
    %v5137 = vpop.f32.mrb[0].mxu0
    %v5138 = vadd.f32 %v5041, %v5137
    %v5139 = vpop.f32.mrb[0].mxu0
    %v5140 = vpop.f32.mrb[0].mxu0
    %v5141 = vadd.f32 %v5044, %v5140
    %v5142 = vpop.f32.mrb[0].mxu0
    %5143 = vmatprep.mubr.bf16.mxu0 %v4279
    %5144 = vmatmul.mubr.bf16.gmra.mrb[0].mxu0 %v4278
    %v5145 = vpop.f32.mrb[0].mxu0
    %v5146 = vadd.f32 %v5049, %v5145
    %v5147 = vpop.f32.mrb[0].mxu0
    %v5148 = vpop.f32.mrb[0].mxu0
    %v5149 = vadd.f32 %v5052, %v5148
    %v5150 = vpop.f32.mrb[0].mxu0
    %5151 = vmatprep.mubr.bf16.mxu0 %v4288
    %5152 = vmatmul.mubr.bf16.gmra.mrb[0].mxu0 %v4287
    %v5153 = vpop.f32.mrb[0].mxu0
    %v5154 = vadd.f32 %v5057, %v5153
    %v5155 = vpop.f32.mrb[0].mxu0
    %v5156 = vpop.f32.mrb[0].mxu0
    %v5157 = vadd.f32 %v5060, %v5156
    %v5158 = vpop.f32.mrb[0].mxu0
    %5159 = vmatprep.mubr.bf16.mxu0 %v4297
    %5160 = vmatmul.mubr.bf16.gmra.mrb[0].mxu0 %v4296
    %v5161 = vpop.f32.mrb[0].mxu0
    %v5162 = vadd.f32 %v5065, %v5161
    %v5163 = vpop.f32.mrb[0].mxu0
    %v5164 = vpop.f32.mrb[0].mxu0
    %v5165 = vadd.f32 %v5068, %v5164
    %v5166 = vpop.f32.mrb[0].mxu0
    %5167 = vdwg.mxu0
    %5168 = vmatprep.subr.bf16.mxu0 0
    %5169 = vmatpush1.bf16.msra.mxu0 %v4781
    %5170 = vmatprep.subr.bf16.mxu0 0
    %5171 = vmatpush1.bf16.msra.mxu0 %v4782
    %5172 = vmatprep.subr.bf16.mxu0 0
    %5173 = vmatpush1.bf16.msra.mxu0 %v4783
    %5174 = vmatprep.subr.bf16.mxu0 0
    %5175 = vmatpush1.bf16.msra.mxu0 %v4784
    %5176 = vmatprep.subr.bf16.mxu0 0
    %5177 = vmatpush1.bf16.msra.mxu0 %v4785
    %5178 = vmatprep.subr.bf16.mxu0 0
    %5179 = vmatpush1.bf16.msra.mxu0 %v4786
    %5180 = vmatprep.subr.bf16.mxu0 0
    %5181 = vmatpush1.bf16.msra.mxu0 %v4787
    %5182 = vmatprep.subr.bf16.mxu0 0
    %5183 = vmatpush1.bf16.msra.mxu0 %v4788
    %5184 = vmatprep.subr.bf16.mxu0 0
    %5185 = vmatpush1.bf16.msra.mxu0 %v4789
    %5186 = vmatprep.subr.bf16.mxu0 0
    %5187 = vmatpush1.bf16.msra.mxu0 %v4790
    %5188 = vmatprep.subr.bf16.mxu0 0
    %5189 = vmatpush1.bf16.msra.mxu0 %v4791
    %5190 = vmatprep.subr.bf16.mxu0 0
    %5191 = vmatpush1.bf16.msra.mxu0 %v4792
    %5192 = vmatprep.subr.bf16.mxu0 0
    %5193 = vmatpush1.bf16.msra.mxu0 %v4793
    %5194 = vmatprep.subr.bf16.mxu0 0
    %5195 = vmatpush1.bf16.msra.mxu0 %v4794
    %5196 = vmatprep.subr.bf16.mxu0 0
    %5197 = vmatpush1.bf16.msra.mxu0 %v4795
    %5198 = vmatprep.subr.bf16.mxu0 0
    %5199 = vmatpush1.bf16.msra.mxu0 %v4796
    %5200 = vmatprep.mubr.bf16.mxu0 %v4236
    %5201 = vmatmul.mubr.bf16.gmra.mrb[0].mxu0 %v4235
    %v5202 = vpop.f32.mrb[0].mxu0
    %v5203 = vadd.f32 %v5106, %v5202
    %v5204 = vpop.f32.mrb[0].mxu0
    %v5205 = vpop.f32.mrb[0].mxu0
    %v5206 = vadd.f32 %v5109, %v5205
    %v5207 = vpop.f32.mrb[0].mxu0
    %5208 = vmatprep.mubr.bf16.mxu0 %v4245
    %5209 = vmatmul.mubr.bf16.gmra.mrb[0].mxu0 %v4244
    %v5210 = vpop.f32.mrb[0].mxu0
    %v5211 = vadd.f32 %v5114, %v5210
    %v5212 = vpop.f32.mrb[0].mxu0
    %v5213 = vpop.f32.mrb[0].mxu0
    %v5214 = vadd.f32 %v5117, %v5213
    %v5215 = vpop.f32.mrb[0].mxu0
    %5216 = vmatprep.mubr.bf16.mxu0 %v4254
    %5217 = vmatmul.mubr.bf16.gmra.mrb[0].mxu0 %v4253
    %v5218 = vpop.f32.mrb[0].mxu0
    %v5219 = vadd.f32 %v5122, %v5218
    %v5220 = vpop.f32.mrb[0].mxu0
    %v5221 = vpop.f32.mrb[0].mxu0
    %v5222 = vadd.f32 %v5125, %v5221
    %v5223 = vpop.f32.mrb[0].mxu0
    %5224 = vmatprep.mubr.bf16.mxu0 %v4263
    %5225 = vmatmul.mubr.bf16.gmra.mrb[0].mxu0 %v4262
    %v5226 = vpop.f32.mrb[0].mxu0
    %v5227 = vadd.f32 %v5130, %v5226
    %v5228 = vpop.f32.mrb[0].mxu0
    %v5229 = vpop.f32.mrb[0].mxu0
    %v5230 = vadd.f32 %v5133, %v5229
    %v5231 = vpop.f32.mrb[0].mxu0
    %5232 = vmatprep.mubr.bf16.mxu0 %v4272
    %5233 = vmatmul.mubr.bf16.gmra.mrb[0].mxu0 %v4271
    %v5234 = vpop.f32.mrb[0].mxu0
    %v5235 = vadd.f32 %v5138, %v5234
    %v5236 = vpop.f32.mrb[0].mxu0
    %v5237 = vpop.f32.mrb[0].mxu0
    %v5238 = vadd.f32 %v5141, %v5237
    %v5239 = vpop.f32.mrb[0].mxu0
    %5240 = vmatprep.mubr.bf16.mxu0 %v4281
    %5241 = vmatmul.mubr.bf16.gmra.mrb[0].mxu0 %v4280
    %v5242 = vpop.f32.mrb[0].mxu0
    %v5243 = vadd.f32 %v5146, %v5242
    %v5244 = vpop.f32.mrb[0].mxu0
    %v5245 = vpop.f32.mrb[0].mxu0
    %v5246 = vadd.f32 %v5149, %v5245
    %v5247 = vpop.f32.mrb[0].mxu0
    %5248 = vmatprep.mubr.bf16.mxu0 %v4290
    %5249 = vmatmul.mubr.bf16.gmra.mrb[0].mxu0 %v4289
    %v5250 = vpop.f32.mrb[0].mxu0
    %v5251 = vadd.f32 %v5154, %v5250
    %v5252 = vpop.f32.mrb[0].mxu0
    %v5253 = vpop.f32.mrb[0].mxu0
    %v5254 = vadd.f32 %v5157, %v5253
    %v5255 = vpop.f32.mrb[0].mxu0
    %5256 = vmatprep.mubr.bf16.mxu0 %v4299
    %5257 = vmatmul.mubr.bf16.gmra.mrb[0].mxu0 %v4298
    %v5258 = vpop.f32.mrb[0].mxu0
    %v5259 = vadd.f32 %v5162, %v5258
    %v5260 = vpop.f32.mrb[0].mxu0
    %v5261 = vpop.f32.mrb[0].mxu0
    %v5262 = vadd.f32 %v5165, %v5261
    %v5263 = vpop.f32.mrb[0].mxu0
    %5264 = vdwg.mxu0
    %5265 = vmatprep.subr.bf16.mxu0 0
    %5266 = vmatpush1.bf16.msra.mxu0 %v4797
    %5267 = vmatprep.subr.bf16.mxu0 0
    %5268 = vmatpush1.bf16.msra.mxu0 %v4798
    %5269 = vmatprep.subr.bf16.mxu0 0
    %5270 = vmatpush1.bf16.msra.mxu0 %v4799
    %5271 = vmatprep.subr.bf16.mxu0 0
    %5272 = vmatpush1.bf16.msra.mxu0 %v4800
    %5273 = vmatprep.subr.bf16.mxu0 0
    %5274 = vmatpush1.bf16.msra.mxu0 %v4801
    %5275 = vmatprep.subr.bf16.mxu0 0
    %5276 = vmatpush1.bf16.msra.mxu0 %v4802
    %5277 = vmatprep.subr.bf16.mxu0 0
    %5278 = vmatpush1.bf16.msra.mxu0 %v4803
    %5279 = vmatprep.subr.bf16.mxu0 0
    %5280 = vmatpush1.bf16.msra.mxu0 %v4804
    %5281 = vmatprep.subr.bf16.mxu0 0
    %5282 = vmatpush1.bf16.msra.mxu0 0
    %5283 = vmatprep.subr.bf16.mxu0 0
    %5284 = vmatpush1.bf16.msra.mxu0 0
    %5285 = vmatprep.subr.bf16.mxu0 0
    %5286 = vmatpush1.bf16.msra.mxu0 0
    %5287 = vmatprep.subr.bf16.mxu0 0
    %5288 = vmatpush1.bf16.msra.mxu0 0
    %5289 = vmatprep.subr.bf16.mxu0 0
    %5290 = vmatpush1.bf16.msra.mxu0 0
    %5291 = vmatprep.subr.bf16.mxu0 0
    %5292 = vmatpush1.bf16.msra.mxu0 0
    %5293 = vmatprep.subr.bf16.mxu0 0
    %5294 = vmatpush1.bf16.msra.mxu0 0
    %5295 = vmatprep.subr.bf16.mxu0 0
    %5296 = vmatpush1.bf16.msra.mxu0 0
    %5297 = vmatprep.mubr.bf16.mxu0 0
    %5298 = vmatmul.mubr.bf16.gmra.mrb[0].mxu0 %v4237
    %v5299 = vpop.f32.mrb[0].mxu0
    %v5300 = vadd.f32 %v5203, %v5299
    %v5301 = vpop.f32.mrb[0].mxu0
    %v5302 = vpop.f32.mrb[0].mxu0
    %v5303 = vadd.f32 %v5206, %v5302
    %v5304 = vpop.f32.mrb[0].mxu0
    %5305 = vmatprep.mubr.bf16.mxu0 0
    %5306 = vmatmul.mubr.bf16.gmra.mrb[0].mxu0 %v4246
    %v5307 = vpop.f32.mrb[0].mxu0
    %v5308 = vadd.f32 %v5211, %v5307
    %v5309 = vpop.f32.mrb[0].mxu0
    %v5310 = vpop.f32.mrb[0].mxu0
    %v5311 = vadd.f32 %v5214, %v5310
    %v5312 = vpop.f32.mrb[0].mxu0
    %5313 = vmatprep.mubr.bf16.mxu0 0
    %5314 = vmatmul.mubr.bf16.gmra.mrb[0].mxu0 %v4255
    %v5315 = vpop.f32.mrb[0].mxu0
    %v5316 = vadd.f32 %v5219, %v5315
    %v5317 = vpop.f32.mrb[0].mxu0
    %v5318 = vpop.f32.mrb[0].mxu0
    %v5319 = vadd.f32 %v5222, %v5318
    %v5320 = vpop.f32.mrb[0].mxu0
    %5321 = vmatprep.mubr.bf16.mxu0 0
    %5322 = vmatmul.mubr.bf16.gmra.mrb[0].mxu0 %v4264
    %v5323 = vpop.f32.mrb[0].mxu0
    %v5324 = vadd.f32 %v5227, %v5323
    %v5325 = vpop.f32.mrb[0].mxu0
    %v5326 = vpop.f32.mrb[0].mxu0
    %v5327 = vadd.f32 %v5230, %v5326
    %v5328 = vpop.f32.mrb[0].mxu0
    %5329 = vmatprep.mubr.bf16.mxu0 0
    %5330 = vmatmul.mubr.bf16.gmra.mrb[0].mxu0 %v4273
    %v5331 = vpop.f32.mrb[0].mxu0
    %v5332 = vadd.f32 %v5235, %v5331
    %v5333 = vpop.f32.mrb[0].mxu0
    %v5334 = vpop.f32.mrb[0].mxu0
    %v5335 = vadd.f32 %v5238, %v5334
    %v5336 = vpop.f32.mrb[0].mxu0
    %5337 = vmatprep.mubr.bf16.mxu0 0
    %5338 = vmatmul.mubr.bf16.gmra.mrb[0].mxu0 %v4282
    %v5339 = vpop.f32.mrb[0].mxu0
    %v5340 = vadd.f32 %v5243, %v5339
    %v5341 = vpop.f32.mrb[0].mxu0
    %v5342 = vpop.f32.mrb[0].mxu0
    %v5343 = vadd.f32 %v5246, %v5342
    %v5344 = vpop.f32.mrb[0].mxu0
    %5345 = vmatprep.mubr.bf16.mxu0 0
    %5346 = vmatmul.mubr.bf16.gmra.mrb[0].mxu0 %v4291
    %v5347 = vpop.f32.mrb[0].mxu0
    %v5348 = vadd.f32 %v5251, %v5347
    %v5349 = vpop.f32.mrb[0].mxu0
    %v5350 = vpop.f32.mrb[0].mxu0
    %v5351 = vadd.f32 %v5254, %v5350
    %v5352 = vpop.f32.mrb[0].mxu0
    %5353 = vmatprep.mubr.bf16.mxu0 0
    %5354 = vmatmul.mubr.bf16.gmra.mrb[0].mxu0 %v4300
    %v5355 = vpop.f32.mrb[0].mxu0
    %v5356 = vadd.f32 %v5259, %v5355
    %v5357 = vpop.f32.mrb[0].mxu0
    %v5358 = vpop.f32.mrb[0].mxu0
    %v5359 = vadd.f32 %v5262, %v5358
    %v5360 = vpop.f32.mrb[0].mxu0
    %5361 = vdwg.mxu0
    %v5362 = vld [vmem:[%s11] sm:$0x1]
    %v5364 = vlaneseq
    %v5365 = vshrl.u32 %v5364, 7
    %v5366 = vsub.s32 0, %v5365
    %v5367 = vrot.slane %v5362, %v5366
    %v5369 = vmul.f32 %v5300, %v5367
    %v5370 = vmul.f32 %v5303, %v5367
    %v5371 = vmul.f32 %v5308, %v5367
    %v5372 = vmul.f32 %v5311, %v5367
    %v5373 = vmul.f32 %v5316, %v5367
    %v5374 = vmul.f32 %v5319, %v5367
    %v5375 = vmul.f32 %v5324, %v5367
    %v5376 = vmul.f32 %v5327, %v5367
    %v5377 = vmul.f32 %v5332, %v5367
    %v5378 = vmul.f32 %v5335, %v5367
    %v5379 = vmul.f32 %v5340, %v5367
    %v5380 = vmul.f32 %v5343, %v5367
    %v5381 = vmul.f32 %v5348, %v5367
    %v5382 = vmul.f32 %v5351, %v5367
    %v5383 = vmul.f32 %v5356, %v5367
    %v5384 = vmul.f32 %v5359, %v5367
    %v5385 = vld [vmem:[%s12] sm:$0x1]
    %v5387 = vlaneseq
    %v5388 = vshrl.u32 %v5387, 7
    %v5389 = vsub.s32 0, %v5388
    %v5390 = vrot.slane %v5385, %v5389
    %v5392 = vadd.f32 %v5369, %v5390
    %v5393 = vadd.f32 %v5370, %v5390
    %v5394 = vadd.f32 %v5371, %v5390
    %v5395 = vadd.f32 %v5372, %v5390
    %v5396 = vadd.f32 %v5373, %v5390
    %v5397 = vadd.f32 %v5374, %v5390
    %v5398 = vadd.f32 %v5375, %v5390
    %v5399 = vadd.f32 %v5376, %v5390
    %v5400 = vadd.f32 %v5377, %v5390
    %v5401 = vadd.f32 %v5378, %v5390
    %v5402 = vadd.f32 %v5379, %v5390
    %v5403 = vadd.f32 %v5380, %v5390
    %v5404 = vadd.f32 %v5381, %v5390
    %v5405 = vadd.f32 %v5382, %v5390
    %v5406 = vadd.f32 %v5383, %v5390
    %v5407 = vadd.f32 %v5384, %v5390
    %v5408 = vmax.f32 %v5392, 0.0
    %v5409 = vmax.f32 %v5393, 0.0
    %v5410 = vmax.f32 %v5394, 0.0
    %v5411 = vmax.f32 %v5395, 0.0
    %v5412 = vmax.f32 %v5396, 0.0
    %v5413 = vmax.f32 %v5397, 0.0
    %v5414 = vmax.f32 %v5398, 0.0
    %v5415 = vmax.f32 %v5399, 0.0
    %v5416 = vmax.f32 %v5400, 0.0
    %v5417 = vmax.f32 %v5401, 0.0
    %v5418 = vmax.f32 %v5402, 0.0
    %v5419 = vmax.f32 %v5403, 0.0
    %v5420 = vmax.f32 %v5404, 0.0
    %v5421 = vmax.f32 %v5405, 0.0
    %v5422 = vmax.f32 %v5406, 0.0
    %v5423 = vmax.f32 %v5407, 0.0
    %5424 = vst [vmem:[%s2239 + $0x1] sm:$0xff] %v5408
    %5425 = vst [vmem:[%s2239 + $0x11] sm:$0xff] %v5409
    %5426 = vst [vmem:[%s2239 + $0x21] sm:$0xff] %v5410
    %5427 = vst [vmem:[%s2239 + $0x31] sm:$0xff] %v5411
    %5428 = vst [vmem:[%s2239 + $0x41] sm:$0xff] %v5412
    %5429 = vst [vmem:[%s2239 + $0x51] sm:$0xff] %v5413
    %5430 = vst [vmem:[%s2239 + $0x61] sm:$0xff] %v5414
    %5431 = vst [vmem:[%s2239 + $0x71] sm:$0xff] %v5415
    %5432 = vst [vmem:[%s2239 + $0xa1] sm:$0xff] %v5416
    %5433 = vst [vmem:[%s2239 + $0xb1] sm:$0xff] %v5417
    %5434 = vst [vmem:[%s2239 + $0xc1] sm:$0xff] %v5418
    %5435 = vst [vmem:[%s2239 + $0xd1] sm:$0xff] %v5419
    %5436 = vst [vmem:[%s2239 + $0xe1] sm:$0xff] %v5420
    %5437 = vst [vmem:[%s2239 + $0xf1] sm:$0xff] %v5421
    %5438 = vst [vmem:[%s2239 + $0x101] sm:$0xff] %v5422
    %5439 = vst [vmem:[%s2239 + $0x111] sm:$0xff] %v5423
    %v5440 = vld [vmem:[#allocation3] sm:$0xff]
    %v5441 = vld [vmem:[#allocation3 + $0x10] sm:$0xff]
    %v5442 = vld [vmem:[#allocation3 + $0x20] sm:$0xff]
    %v5443 = vld [vmem:[#allocation3 + $0x30] sm:$0xff]
    %v5444 = vld [vmem:[#allocation3 + $0x40] sm:$0xff]
    %v5445 = vld [vmem:[#allocation3 + $0x50] sm:$0xff]
    %v5446 = vld [vmem:[#allocation3 + $0x60] sm:$0xff]
    %v5447 = vld [vmem:[#allocation3 + $0x70] sm:$0xff]
    %v5448 = vld [vmem:[#allocation3 + $0xa0] sm:$0xff]
    %v5449 = vld [vmem:[#allocation3 + $0xb0] sm:$0xff]
    %v5450 = vld [vmem:[#allocation3 + $0xc0] sm:$0xff]
    %v5451 = vld [vmem:[#allocation3 + $0xd0] sm:$0xff]
    %v5452 = vld [vmem:[#allocation3 + $0xe0] sm:$0xff]
    %v5453 = vld [vmem:[#allocation3 + $0xf0] sm:$0xff]
    %v5454 = vld [vmem:[#allocation3 + $0x100] sm:$0xff]
    %v5455 = vld [vmem:[#allocation3 + $0x110] sm:$0xff]
    %v5456 = vpack.c.bf16 %v5441, %v5440
    %v5457 = vpack.c.bf16 %v5443, %v5442
    %v5458 = vpack.c.bf16 %v5445, %v5444
    %v5459 = vpack.c.bf16 %v5447, %v5446
    %v5460 = vpack.c.bf16 %v5449, %v5448
    %v5461 = vpack.c.bf16 %v5451, %v5450
    %v5462 = vpack.c.bf16 %v5453, %v5452
    %v5463 = vpack.c.bf16 %v5455, %v5454
    %5464 = vst [vmem:[#allocation4] sm:$0xff] %v5456
    %5465 = vst [vmem:[#allocation4 + $0x48] sm:$0xff] %v5457
    %5466 = vst [vmem:[#allocation4 + $0x90] sm:$0xff] %v5458
    %5467 = vst [vmem:[#allocation4 + $0xd8] sm:$0xff] %v5459
    %5468 = vst [vmem:[#allocation4 + $0x120] sm:$0xff] %v5460
    %5469 = vst [vmem:[#allocation4 + $0x168] sm:$0xff] %v5461
    %5470 = vst [vmem:[#allocation4 + $0x1b0] sm:$0xff] %v5462
    %5471 = vst [vmem:[#allocation4 + $0x1f8] sm:$0xff] %v5463
    %v5472 = vld [vmem:[#allocation3 + $0x1] sm:$0xff]
    %v5473 = vld [vmem:[#allocation3 + $0x11] sm:$0xff]
    %v5474 = vld [vmem:[#allocation3 + $0x21] sm:$0xff]
    %v5475 = vld [vmem:[#allocation3 + $0x31] sm:$0xff]
    %v5476 = vld [vmem:[#allocation3 + $0x41] sm:$0xff]
    %v5477 = vld [vmem:[#allocation3 + $0x51] sm:$0xff]
    %v5478 = vld [vmem:[#allocation3 + $0x61] sm:$0xff]
    %v5479 = vld [vmem:[#allocation3 + $0x71] sm:$0xff]
    %v5480 = vld [vmem:[#allocation3 + $0xa1] sm:$0xff]
    %v5481 = vld [vmem:[#allocation3 + $0xb1] sm:$0xff]
    %v5482 = vld [vmem:[#allocation3 + $0xc1] sm:$0xff]
    %v5483 = vld [vmem:[#allocation3 + $0xd1] sm:$0xff]
    %v5484 = vld [vmem:[#allocation3 + $0xe1] sm:$0xff]
    %v5485 = vld [vmem:[#allocation3 + $0xf1] sm:$0xff]
    %v5486 = vld [vmem:[#allocation3 + $0x101] sm:$0xff]
    %v5487 = vld [vmem:[#allocation3 + $0x111] sm:$0xff]
    %v5488 = vpack.c.bf16 %v5473, %v5472
    %v5489 = vpack.c.bf16 %v5475, %v5474
    %v5490 = vpack.c.bf16 %v5477, %v5476
    %v5491 = vpack.c.bf16 %v5479, %v5478
    %v5492 = vpack.c.bf16 %v5481, %v5480
    %v5493 = vpack.c.bf16 %v5483, %v5482
    %v5494 = vpack.c.bf16 %v5485, %v5484
    %v5495 = vpack.c.bf16 %v5487, %v5486
    %5496 = vst [vmem:[#allocation4 + $0x8] sm:$0xff] %v5488
    %5497 = vst [vmem:[#allocation4 + $0x50] sm:$0xff] %v5489
    %5498 = vst [vmem:[#allocation4 + $0x98] sm:$0xff] %v5490
    %5499 = vst [vmem:[#allocation4 + $0xe0] sm:$0xff] %v5491
    %5500 = vst [vmem:[#allocation4 + $0x128] sm:$0xff] %v5492
    %5501 = vst [vmem:[#allocation4 + $0x170] sm:$0xff] %v5493
    %5502 = vst [vmem:[#allocation4 + $0x1b8] sm:$0xff] %v5494
    %5503 = vst [vmem:[#allocation4 + $0x200] sm:$0xff] %v5495
    %v5504 = vld [vmem:[#allocation3 + $0x2] sm:$0xff]
    %v5505 = vld [vmem:[#allocation3 + $0x12] sm:$0xff]
    %v5506 = vld [vmem:[#allocation3 + $0x22] sm:$0xff]
    %v5507 = vld [vmem:[#allocation3 + $0x32] sm:$0xff]
    %v5508 = vld [vmem:[#allocation3 + $0x42] sm:$0xff]
    %v5509 = vld [vmem:[#allocation3 + $0x52] sm:$0xff]
    %v5510 = vld [vmem:[#allocation3 + $0x62] sm:$0xff]
    %v5511 = vld [vmem:[#allocation3 + $0x72] sm:$0xff]
    %v5512 = vld [vmem:[#allocation3 + $0xa2] sm:$0xff]
    %v5513 = vld [vmem:[#allocation3 + $0xb2] sm:$0xff]
    %v5514 = vld [vmem:[#allocation3 + $0xc2] sm:$0xff]
    %v5515 = vld [vmem:[#allocation3 + $0xd2] sm:$0xff]
    %v5516 = vld [vmem:[#allocation3 + $0xe2] sm:$0xff]
    %v5517 = vld [vmem:[#allocation3 + $0xf2] sm:$0xff]
    %v5518 = vld [vmem:[#allocation3 + $0x102] sm:$0xff]
    %v5519 = vld [vmem:[#allocation3 + $0x112] sm:$0xff]
    %v5520 = vpack.c.bf16 %v5505, %v5504
    %v5521 = vpack.c.bf16 %v5507, %v5506
    %v5522 = vpack.c.bf16 %v5509, %v5508
    %v5523 = vpack.c.bf16 %v5511, %v5510
    %v5524 = vpack.c.bf16 %v5513, %v5512
    %v5525 = vpack.c.bf16 %v5515, %v5514
    %v5526 = vpack.c.bf16 %v5517, %v5516
    %v5527 = vpack.c.bf16 %v5519, %v5518
    %5528 = vst [vmem:[#allocation4 + $0x10] sm:$0xff] %v5520
    %5529 = vst [vmem:[#allocation4 + $0x58] sm:$0xff] %v5521
    %5530 = vst [vmem:[#allocation4 + $0xa0] sm:$0xff] %v5522
    %5531 = vst [vmem:[#allocation4 + $0xe8] sm:$0xff] %v5523
    %5532 = vst [vmem:[#allocation4 + $0x130] sm:$0xff] %v5524
    %5533 = vst [vmem:[#allocation4 + $0x178] sm:$0xff] %v5525
    %5534 = vst [vmem:[#allocation4 + $0x1c0] sm:$0xff] %v5526
    %5535 = vst [vmem:[#allocation4 + $0x208] sm:$0xff] %v5527
    %v5536 = vld [vmem:[%s2239] sm:$0xff]
    %v5537 = vld [vmem:[%s2239 + $0x10] sm:$0xff]
    %v5538 = vld [vmem:[%s2239 + $0x20] sm:$0xff]
    %v5539 = vld [vmem:[%s2239 + $0x30] sm:$0xff]
    %v5540 = vld [vmem:[%s2239 + $0x40] sm:$0xff]
    %v5541 = vld [vmem:[%s2239 + $0x50] sm:$0xff]
    %v5542 = vld [vmem:[%s2239 + $0x60] sm:$0xff]
    %v5543 = vld [vmem:[%s2239 + $0x70] sm:$0xff]
    %v5544 = vld [vmem:[%s2239 + $0xa0] sm:$0xff]
    %v5545 = vld [vmem:[%s2239 + $0xb0] sm:$0xff]
    %v5546 = vld [vmem:[%s2239 + $0xc0] sm:$0xff]
    %v5547 = vld [vmem:[%s2239 + $0xd0] sm:$0xff]
    %v5548 = vld [vmem:[%s2239 + $0xe0] sm:$0xff]
    %v5549 = vld [vmem:[%s2239 + $0xf0] sm:$0xff]
    %v5550 = vld [vmem:[%s2239 + $0x100] sm:$0xff]
    %v5551 = vld [vmem:[%s2239 + $0x110] sm:$0xff]
    %v5552 = vpack.c.bf16 %v5537, %v5536
    %v5553 = vpack.c.bf16 %v5539, %v5538
    %v5554 = vpack.c.bf16 %v5541, %v5540
    %v5555 = vpack.c.bf16 %v5543, %v5542
    %v5556 = vpack.c.bf16 %v5545, %v5544
    %v5557 = vpack.c.bf16 %v5547, %v5546
    %v5558 = vpack.c.bf16 %v5549, %v5548
    %v5559 = vpack.c.bf16 %v5551, %v5550
    %5560 = vst [vmem:[#allocation4 + $0x18] sm:$0xff] %v5552
    %5561 = vst [vmem:[#allocation4 + $0x60] sm:$0xff] %v5553
    %5562 = vst [vmem:[#allocation4 + $0xa8] sm:$0xff] %v5554
    %5563 = vst [vmem:[#allocation4 + $0xf0] sm:$0xff] %v5555
    %5564 = vst [vmem:[#allocation4 + $0x138] sm:$0xff] %v5556
    %5565 = vst [vmem:[#allocation4 + $0x180] sm:$0xff] %v5557
    %5566 = vst [vmem:[#allocation4 + $0x1c8] sm:$0xff] %v5558
    %5567 = vst [vmem:[#allocation4 + $0x210] sm:$0xff] %v5559
    %v5568 = vld [vmem:[%s2239 + $0x1] sm:$0xff]
    %v5569 = vld [vmem:[%s2239 + $0x11] sm:$0xff]
    %v5570 = vld [vmem:[%s2239 + $0x21] sm:$0xff]
    %v5571 = vld [vmem:[%s2239 + $0x31] sm:$0xff]
    %v5572 = vld [vmem:[%s2239 + $0x41] sm:$0xff]
    %v5573 = vld [vmem:[%s2239 + $0x51] sm:$0xff]
    %v5574 = vld [vmem:[%s2239 + $0x61] sm:$0xff]
    %v5575 = vld [vmem:[%s2239 + $0x71] sm:$0xff]
    %v5576 = vld [vmem:[%s2239 + $0xa1] sm:$0xff]
    %v5577 = vld [vmem:[%s2239 + $0xb1] sm:$0xff]
    %v5578 = vld [vmem:[%s2239 + $0xc1] sm:$0xff]
    %v5579 = vld [vmem:[%s2239 + $0xd1] sm:$0xff]
    %v5580 = vld [vmem:[%s2239 + $0xe1] sm:$0xff]
    %v5581 = vld [vmem:[%s2239 + $0xf1] sm:$0xff]
    %v5582 = vld [vmem:[%s2239 + $0x101] sm:$0xff]
    %v5583 = vld [vmem:[%s2239 + $0x111] sm:$0xff]
    %v5584 = vpack.c.bf16 %v5569, %v5568
    %v5585 = vpack.c.bf16 %v5571, %v5570
    %v5586 = vpack.c.bf16 %v5573, %v5572
    %v5587 = vpack.c.bf16 %v5575, %v5574
    %v5588 = vpack.c.bf16 %v5577, %v5576
    %v5589 = vpack.c.bf16 %v5579, %v5578
    %v5590 = vpack.c.bf16 %v5581, %v5580
    %v5591 = vpack.c.bf16 %v5583, %v5582
    %5592 = vst [vmem:[#allocation4 + $0x20] sm:$0xff] %v5584
    %5593 = vst [vmem:[#allocation4 + $0x68] sm:$0xff] %v5585
    %5594 = vst [vmem:[#allocation4 + $0xb0] sm:$0xff] %v5586
    %5595 = vst [vmem:[#allocation4 + $0xf8] sm:$0xff] %v5587
    %5596 = vst [vmem:[#allocation4 + $0x140] sm:$0xff] %v5588
    %5597 = vst [vmem:[#allocation4 + $0x188] sm:$0xff] %v5589
    %5598 = vst [vmem:[#allocation4 + $0x1d0] sm:$0xff] %v5590
    %5599 = vst [vmem:[#allocation4 + $0x218] sm:$0xff] %v5591
    %v5600 = vld [vmem:[%s2239 + $0x2] sm:$0xff]
    %v5601 = vld [vmem:[%s2239 + $0x12] sm:$0xff]
    %v5602 = vld [vmem:[%s2239 + $0x22] sm:$0xff]
    %v5603 = vld [vmem:[%s2239 + $0x32] sm:$0xff]
    %v5604 = vld [vmem:[%s2239 + $0x42] sm:$0xff]
    %v5605 = vld [vmem:[%s2239 + $0x52] sm:$0xff]
    %v5606 = vld [vmem:[%s2239 + $0x62] sm:$0xff]
    %v5607 = vld [vmem:[%s2239 + $0x72] sm:$0xff]
    %v5608 = vld [vmem:[%s2239 + $0xa2] sm:$0xff]
    %v5609 = vld [vmem:[%s2239 + $0xb2] sm:$0xff]
    %v5610 = vld [vmem:[%s2239 + $0xc2] sm:$0xff]
    %v5611 = vld [vmem:[%s2239 + $0xd2] sm:$0xff]
    %v5612 = vld [vmem:[%s2239 + $0xe2] sm:$0xff]
    %v5613 = vld [vmem:[%s2239 + $0xf2] sm:$0xff]
    %v5614 = vld [vmem:[%s2239 + $0x102] sm:$0xff]
    %v5615 = vld [vmem:[%s2239 + $0x112] sm:$0xff]
    %v5616 = vpack.c.bf16 %v5601, %v5600
    %v5617 = vpack.c.bf16 %v5603, %v5602
    %v5618 = vpack.c.bf16 %v5605, %v5604
    %v5619 = vpack.c.bf16 %v5607, %v5606
    %v5620 = vpack.c.bf16 %v5609, %v5608
    %v5621 = vpack.c.bf16 %v5611, %v5610
    %v5622 = vpack.c.bf16 %v5613, %v5612
    %v5623 = vpack.c.bf16 %v5615, %v5614
    %5624 = vst [vmem:[#allocation4 + $0x28] sm:$0xff] %v5616
    %5625 = vst [vmem:[#allocation4 + $0x70] sm:$0xff] %v5617
    %5626 = vst [vmem:[#allocation4 + $0xb8] sm:$0xff] %v5618
    %5627 = vst [vmem:[#allocation4 + $0x100] sm:$0xff] %v5619
    %5628 = vst [vmem:[#allocation4 + $0x148] sm:$0xff] %v5620
    %5629 = vst [vmem:[#allocation4 + $0x190] sm:$0xff] %v5621
    %5630 = vst [vmem:[#allocation4 + $0x1d8] sm:$0xff] %v5622
    %5631 = vst [vmem:[#allocation4 + $0x220] sm:$0xff] %v5623
    %v5632 = vld [vmem:[%s2448] sm:$0xff]
    %v5633 = vld [vmem:[%s2448 + $0x10] sm:$0xff]
    %v5634 = vld [vmem:[%s2448 + $0x20] sm:$0xff]
    %v5635 = vld [vmem:[%s2448 + $0x30] sm:$0xff]
    %v5636 = vld [vmem:[%s2448 + $0x40] sm:$0xff]
    %v5637 = vld [vmem:[%s2448 + $0x50] sm:$0xff]
    %v5638 = vld [vmem:[%s2448 + $0x60] sm:$0xff]
    %v5639 = vld [vmem:[%s2448 + $0x70] sm:$0xff]
    %v5640 = vld [vmem:[%s2448 + $0xa0] sm:$0xff]
    %v5641 = vld [vmem:[%s2448 + $0xb0] sm:$0xff]
    %v5642 = vld [vmem:[%s2448 + $0xc0] sm:$0xff]
    %v5643 = vld [vmem:[%s2448 + $0xd0] sm:$0xff]
    %v5644 = vld [vmem:[%s2448 + $0xe0] sm:$0xff]
    %v5645 = vld [vmem:[%s2448 + $0xf0] sm:$0xff]
    %v5646 = vld [vmem:[%s2448 + $0x100] sm:$0xff]
    %v5647 = vld [vmem:[%s2448 + $0x110] sm:$0xff]
    %v5648 = vpack.c.bf16 %v5633, %v5632
    %v5649 = vpack.c.bf16 %v5635, %v5634
    %v5650 = vpack.c.bf16 %v5637, %v5636
    %v5651 = vpack.c.bf16 %v5639, %v5638
    %v5652 = vpack.c.bf16 %v5641, %v5640
    %v5653 = vpack.c.bf16 %v5643, %v5642
    %v5654 = vpack.c.bf16 %v5645, %v5644
    %v5655 = vpack.c.bf16 %v5647, %v5646
    %5656 = vst [vmem:[#allocation4 + $0x30] sm:$0xff] %v5648
    %5657 = vst [vmem:[#allocation4 + $0x78] sm:$0xff] %v5649
    %5658 = vst [vmem:[#allocation4 + $0xc0] sm:$0xff] %v5650
    %5659 = vst [vmem:[#allocation4 + $0x108] sm:$0xff] %v5651
    %5660 = vst [vmem:[#allocation4 + $0x150] sm:$0xff] %v5652
    %5661 = vst [vmem:[#allocation4 + $0x198] sm:$0xff] %v5653
    %5662 = vst [vmem:[#allocation4 + $0x1e0] sm:$0xff] %v5654
    %5663 = vst [vmem:[#allocation4 + $0x228] sm:$0xff] %v5655
    %v5664 = vld [vmem:[%s2448 + $0x1] sm:$0xff]
    %v5665 = vld [vmem:[%s2448 + $0x11] sm:$0xff]
    %v5666 = vld [vmem:[%s2448 + $0x21] sm:$0xff]
    %v5667 = vld [vmem:[%s2448 + $0x31] sm:$0xff]
    %v5668 = vld [vmem:[%s2448 + $0x41] sm:$0xff]
    %v5669 = vld [vmem:[%s2448 + $0x51] sm:$0xff]
    %v5670 = vld [vmem:[%s2448 + $0x61] sm:$0xff]
    %v5671 = vld [vmem:[%s2448 + $0x71] sm:$0xff]
    %v5672 = vld [vmem:[%s2448 + $0xa1] sm:$0xff]
    %v5673 = vld [vmem:[%s2448 + $0xb1] sm:$0xff]
    %v5674 = vld [vmem:[%s2448 + $0xc1] sm:$0xff]
    %v5675 = vld [vmem:[%s2448 + $0xd1] sm:$0xff]
    %v5676 = vld [vmem:[%s2448 + $0xe1] sm:$0xff]
    %v5677 = vld [vmem:[%s2448 + $0xf1] sm:$0xff]
    %v5678 = vld [vmem:[%s2448 + $0x101] sm:$0xff]
    %v5679 = vld [vmem:[%s2448 + $0x111] sm:$0xff]
    %v5680 = vpack.c.bf16 %v5665, %v5664
    %v5681 = vpack.c.bf16 %v5667, %v5666
    %v5682 = vpack.c.bf16 %v5669, %v5668
    %v5683 = vpack.c.bf16 %v5671, %v5670
    %v5684 = vpack.c.bf16 %v5673, %v5672
    %v5685 = vpack.c.bf16 %v5675, %v5674
    %v5686 = vpack.c.bf16 %v5677, %v5676
    %v5687 = vpack.c.bf16 %v5679, %v5678
    %5688 = vst [vmem:[#allocation4 + $0x38] sm:$0xff] %v5680
    %5689 = vst [vmem:[#allocation4 + $0x80] sm:$0xff] %v5681
    %5690 = vst [vmem:[#allocation4 + $0xc8] sm:$0xff] %v5682
    %5691 = vst [vmem:[#allocation4 + $0x110] sm:$0xff] %v5683
    %5692 = vst [vmem:[#allocation4 + $0x158] sm:$0xff] %v5684
    %5693 = vst [vmem:[#allocation4 + $0x1a0] sm:$0xff] %v5685
    %5694 = vst [vmem:[#allocation4 + $0x1e8] sm:$0xff] %v5686
    %5695 = vst [vmem:[#allocation4 + $0x230] sm:$0xff] %v5687
    %v5696 = vld [vmem:[%s2448 + $0x2] sm:$0xff]
    %v5697 = vld [vmem:[%s2448 + $0x12] sm:$0xff]
    %v5698 = vld [vmem:[%s2448 + $0x22] sm:$0xff]
    %v5699 = vld [vmem:[%s2448 + $0x32] sm:$0xff]
    %v5700 = vld [vmem:[%s2448 + $0x42] sm:$0xff]
    %v5701 = vld [vmem:[%s2448 + $0x52] sm:$0xff]
    %v5702 = vld [vmem:[%s2448 + $0x62] sm:$0xff]
    %v5703 = vld [vmem:[%s2448 + $0x72] sm:$0xff]
    %v5704 = vld [vmem:[%s2448 + $0xa2] sm:$0xff]
    %v5705 = vld [vmem:[%s2448 + $0xb2] sm:$0xff]
    %v5706 = vld [vmem:[%s2448 + $0xc2] sm:$0xff]
    %v5707 = vld [vmem:[%s2448 + $0xd2] sm:$0xff]
    %v5708 = vld [vmem:[%s2448 + $0xe2] sm:$0xff]
    %v5709 = vld [vmem:[%s2448 + $0xf2] sm:$0xff]
    %v5710 = vld [vmem:[%s2448 + $0x102] sm:$0xff]
    %v5711 = vld [vmem:[%s2448 + $0x112] sm:$0xff]
    %v5712 = vpack.c.bf16 %v5697, %v5696
    %v5713 = vpack.c.bf16 %v5699, %v5698
    %v5714 = vpack.c.bf16 %v5701, %v5700
    %v5715 = vpack.c.bf16 %v5703, %v5702
    %v5716 = vpack.c.bf16 %v5705, %v5704
    %v5717 = vpack.c.bf16 %v5707, %v5706
    %v5718 = vpack.c.bf16 %v5709, %v5708
    %v5719 = vpack.c.bf16 %v5711, %v5710
    %5720 = vst [vmem:[#allocation4 + $0x40] sm:$0xff] %v5712
    %5721 = vst [vmem:[#allocation4 + $0x88] sm:$0xff] %v5713
    %5722 = vst [vmem:[#allocation4 + $0xd0] sm:$0xff] %v5714
    %5723 = vst [vmem:[#allocation4 + $0x118] sm:$0xff] %v5715
    %5724 = vst [vmem:[#allocation4 + $0x160] sm:$0xff] %v5716
    %5725 = vst [vmem:[#allocation4 + $0x1a8] sm:$0xff] %v5717
    %5726 = vst [vmem:[#allocation4 + $0x1f0] sm:$0xff] %v5718
    %5727 = vst [vmem:[#allocation4 + $0x238] sm:$0xff] %v5719
    %v5728 = vld [vmem:[#allocation4] sm:$0xff]
    %v5729 = vld [vmem:[#allocation4 + $0x8] sm:$0xff]
    %v5730 = vld [vmem:[#allocation4 + $0x10] sm:$0xff]
    %v5731 = vld [vmem:[#allocation4 + $0x18] sm:$0xff]
    %v5732 = vld [vmem:[#allocation4 + $0x20] sm:$0xff]
    %v5733 = vld [vmem:[#allocation4 + $0x28] sm:$0xff]
    %v5734 = vld [vmem:[#allocation4 + $0x30] sm:$0xff]
    %v5735 = vld [vmem:[#allocation4 + $0x38] sm:$0xff]
    %v5736 = vld [vmem:[#allocation4 + $0x40] sm:$0xff]
    %v5737 = vld [vmem:[#allocation4 + $0x48] sm:$0xff]
    %v5738 = vld [vmem:[#allocation4 + $0x50] sm:$0xff]
    %v5739 = vld [vmem:[#allocation4 + $0x58] sm:$0xff]
    %v5740 = vld [vmem:[#allocation4 + $0x60] sm:$0xff]
    %v5741 = vld [vmem:[#allocation4 + $0x68] sm:$0xff]
    %v5742 = vld [vmem:[#allocation4 + $0x70] sm:$0xff]
    %v5743 = vld [vmem:[#allocation4 + $0x78] sm:$0xff]
    %v5744 = vld [vmem:[#allocation4 + $0x80] sm:$0xff]
    %v5745 = vld [vmem:[#allocation4 + $0x88] sm:$0xff]
    %v5746 = vld [vmem:[#allocation4 + $0x90] sm:$0xff]
    %v5747 = vld [vmem:[#allocation4 + $0x98] sm:$0xff]
    %v5748 = vld [vmem:[#allocation4 + $0xa0] sm:$0xff]
    %v5749 = vld [vmem:[#allocation4 + $0xa8] sm:$0xff]
    %v5750 = vld [vmem:[#allocation4 + $0xb0] sm:$0xff]
    %v5751 = vld [vmem:[#allocation4 + $0xb8] sm:$0xff]
    %v5752 = vld [vmem:[#allocation4 + $0xc0] sm:$0xff]
    %v5753 = vld [vmem:[#allocation4 + $0xc8] sm:$0xff]
    %v5754 = vld [vmem:[#allocation4 + $0xd0] sm:$0xff]
    %v5755 = vld [vmem:[#allocation4 + $0xd8] sm:$0xff]
    %v5756 = vld [vmem:[#allocation4 + $0xe0] sm:$0xff]
    %v5757 = vld [vmem:[#allocation4 + $0xe8] sm:$0xff]
    %v5758 = vld [vmem:[#allocation4 + $0xf0] sm:$0xff]
    %v5759 = vld [vmem:[#allocation4 + $0xf8] sm:$0xff]
    %v5760 = vld [vmem:[#allocation4 + $0x100] sm:$0xff]
    %v5761 = vld [vmem:[#allocation4 + $0x108] sm:$0xff]
    %v5762 = vld [vmem:[#allocation4 + $0x110] sm:$0xff]
    %v5763 = vld [vmem:[#allocation4 + $0x118] sm:$0xff]
    %v5764 = vld [vmem:[#allocation4 + $0x120] sm:$0xff]
    %v5765 = vld [vmem:[#allocation4 + $0x128] sm:$0xff]
    %v5766 = vld [vmem:[#allocation4 + $0x130] sm:$0xff]
    %v5767 = vld [vmem:[#allocation4 + $0x138] sm:$0xff]
    %v5768 = vld [vmem:[#allocation4 + $0x140] sm:$0xff]
    %v5769 = vld [vmem:[#allocation4 + $0x148] sm:$0xff]
    %v5770 = vld [vmem:[#allocation4 + $0x150] sm:$0xff]
    %v5771 = vld [vmem:[#allocation4 + $0x158] sm:$0xff]
    %v5772 = vld [vmem:[#allocation4 + $0x160] sm:$0xff]
    %v5773 = vld [vmem:[#allocation4 + $0x168] sm:$0xff]
    %v5774 = vld [vmem:[#allocation4 + $0x170] sm:$0xff]
    %v5775 = vld [vmem:[#allocation4 + $0x178] sm:$0xff]
    %v5776 = vld [vmem:[#allocation4 + $0x180] sm:$0xff]
    %v5777 = vld [vmem:[#allocation4 + $0x188] sm:$0xff]
    %v5778 = vld [vmem:[#allocation4 + $0x190] sm:$0xff]
    %v5779 = vld [vmem:[#allocation4 + $0x198] sm:$0xff]
    %v5780 = vld [vmem:[#allocation4 + $0x1a0] sm:$0xff]
    %v5781 = vld [vmem:[#allocation4 + $0x1a8] sm:$0xff]
    %v5782 = vld [vmem:[#allocation4 + $0x1b0] sm:$0xff]
    %v5783 = vld [vmem:[#allocation4 + $0x1b8] sm:$0xff]
    %v5784 = vld [vmem:[#allocation4 + $0x1c0] sm:$0xff]
    %v5785 = vld [vmem:[#allocation4 + $0x1c8] sm:$0xff]
    %v5786 = vld [vmem:[#allocation4 + $0x1d0] sm:$0xff]
    %v5787 = vld [vmem:[#allocation4 + $0x1d8] sm:$0xff]
    %v5788 = vld [vmem:[#allocation4 + $0x1e0] sm:$0xff]
    %v5789 = vld [vmem:[#allocation4 + $0x1e8] sm:$0xff]
    %v5790 = vld [vmem:[#allocation4 + $0x1f0] sm:$0xff]
    %v5791 = vld [vmem:[#allocation4 + $0x1f8] sm:$0xff]
    %v5792 = vld [vmem:[#allocation4 + $0x200] sm:$0xff]
    %v5793 = vld [vmem:[#allocation4 + $0x208] sm:$0xff]
    %v5794 = vld [vmem:[#allocation4 + $0x210] sm:$0xff]
    %v5795 = vld [vmem:[#allocation4 + $0x218] sm:$0xff]
    %v5796 = vld [vmem:[#allocation4 + $0x220] sm:$0xff]
    %v5797 = vld [vmem:[#allocation4 + $0x228] sm:$0xff]
    %v5798 = vld [vmem:[#allocation4 + $0x230] sm:$0xff]
    %v5799 = vld [vmem:[#allocation4 + $0x238] sm:$0xff]
    %v5800 = vld [vmem:[#allocation14] sm:$0xf]
    %v5801 = vld [vmem:[#allocation14 + $0x4] sm:$0xf]
    %v5802 = vld [vmem:[#allocation14 + $0x8] sm:$0xf]
    %v5803 = vld [vmem:[#allocation14 + $0xc] sm:$0xf]
    %v5804 = vld [vmem:[#allocation14 + $0x10] sm:$0xf]
    %v5805 = vld [vmem:[#allocation14 + $0x14] sm:$0xf]
    %v5806 = vld [vmem:[#allocation14 + $0x18] sm:$0xf]
    %v5807 = vld [vmem:[#allocation14 + $0x1c] sm:$0xf]
    %v5808 = vld [vmem:[#allocation14 + $0x20] sm:$0xf]
    %v5809 = vld [vmem:[#allocation14 + $0x24] sm:$0xf]
    %v5810 = vld [vmem:[#allocation14 + $0x28] sm:$0xf]
    %v5811 = vld [vmem:[#allocation14 + $0x2c] sm:$0xf]
    %v5812 = vld [vmem:[#allocation14 + $0x30] sm:$0xf]
    %v5813 = vld [vmem:[#allocation14 + $0x34] sm:$0xf]
    %v5814 = vld [vmem:[#allocation14 + $0x38] sm:$0xf]
    %v5815 = vld [vmem:[#allocation14 + $0x3c] sm:$0xf]
    %v5816 = vld [vmem:[#allocation14 + $0x40] sm:$0xf]
    %v5817 = vld [vmem:[#allocation14 + $0x44] sm:$0xf]
    %v5818 = vld [vmem:[#allocation14 + $0x48] sm:$0xf]
    %v5819 = vld [vmem:[#allocation14 + $0x4c] sm:$0xf]
    %v5820 = vld [vmem:[#allocation14 + $0x50] sm:$0xf]
    %v5821 = vld [vmem:[#allocation14 + $0x54] sm:$0xf]
    %v5822 = vld [vmem:[#allocation14 + $0x58] sm:$0xf]
    %v5823 = vld [vmem:[#allocation14 + $0x5c] sm:$0xf]
    %v5824 = vld [vmem:[#allocation14 + $0x60] sm:$0xf]
    %v5825 = vld [vmem:[#allocation14 + $0x64] sm:$0xf]
    %v5826 = vld [vmem:[#allocation14 + $0x68] sm:$0xf]
    %v5827 = vld [vmem:[#allocation14 + $0x6c] sm:$0xf]
    %v5828 = vld [vmem:[#allocation14 + $0x70] sm:$0xf]
    %v5829 = vld [vmem:[#allocation14 + $0x74] sm:$0xf]
    %v5830 = vld [vmem:[#allocation14 + $0x78] sm:$0xf]
    %v5831 = vld [vmem:[#allocation14 + $0x7c] sm:$0xf]
    %v5832 = vld [vmem:[#allocation14 + $0x80] sm:$0xf]
    %v5833 = vld [vmem:[#allocation14 + $0x84] sm:$0xf]
    %v5834 = vld [vmem:[#allocation14 + $0x88] sm:$0xf]
    %v5835 = vld [vmem:[#allocation14 + $0x8c] sm:$0xf]
    %v5836 = vld [vmem:[#allocation14 + $0x90] sm:$0xf]
    %v5837 = vld [vmem:[#allocation14 + $0x94] sm:$0xf]
    %v5838 = vld [vmem:[#allocation14 + $0x98] sm:$0xf]
    %v5839 = vld [vmem:[#allocation14 + $0x9c] sm:$0xf]
    %v5840 = vld [vmem:[#allocation14 + $0xa0] sm:$0xf]
    %v5841 = vld [vmem:[#allocation14 + $0xa4] sm:$0xf]
    %v5842 = vld [vmem:[#allocation14 + $0xa8] sm:$0xf]
    %v5843 = vld [vmem:[#allocation14 + $0xac] sm:$0xf]
    %v5844 = vld [vmem:[#allocation14 + $0xb0] sm:$0xf]
    %v5845 = vld [vmem:[#allocation14 + $0xb4] sm:$0xf]
    %v5846 = vld [vmem:[#allocation14 + $0xb8] sm:$0xf]
    %v5847 = vld [vmem:[#allocation14 + $0xbc] sm:$0xf]
    %v5848 = vld [vmem:[#allocation14 + $0xc0] sm:$0xf]
    %v5849 = vld [vmem:[#allocation14 + $0xc4] sm:$0xf]
    %v5850 = vld [vmem:[#allocation14 + $0xc8] sm:$0xf]
    %v5851 = vld [vmem:[#allocation14 + $0xcc] sm:$0xf]
    %v5852 = vld [vmem:[#allocation14 + $0xd0] sm:$0xf]
    %v5853 = vld [vmem:[#allocation14 + $0xd4] sm:$0xf]
    %v5854 = vld [vmem:[#allocation14 + $0xd8] sm:$0xf]
    %v5855 = vld [vmem:[#allocation14 + $0xdc] sm:$0xf]
    %v5856 = vld [vmem:[#allocation14 + $0xe0] sm:$0xf]
    %v5857 = vld [vmem:[#allocation14 + $0xe4] sm:$0xf]
    %v5858 = vld [vmem:[#allocation14 + $0xe8] sm:$0xf]
    %v5859 = vld [vmem:[#allocation14 + $0xec] sm:$0xf]
    %v5860 = vld [vmem:[#allocation14 + $0xf0] sm:$0xf]
    %v5861 = vld [vmem:[#allocation14 + $0xf4] sm:$0xf]
    %v5862 = vld [vmem:[#allocation14 + $0xf8] sm:$0xf]
    %v5863 = vld [vmem:[#allocation14 + $0xfc] sm:$0xf]
    %v5864 = vld [vmem:[#allocation14 + $0x100] sm:$0xf]
    %v5865 = vld [vmem:[#allocation14 + $0x104] sm:$0xf]
    %v5866 = vld [vmem:[#allocation14 + $0x108] sm:$0xf]
    %v5867 = vld [vmem:[#allocation14 + $0x10c] sm:$0xf]
    %v5868 = vld [vmem:[#allocation14 + $0x110] sm:$0xf]
    %v5869 = vld [vmem:[#allocation14 + $0x114] sm:$0xf]
    %v5870 = vld [vmem:[#allocation14 + $0x118] sm:$0xf]
    %v5871 = vld [vmem:[#allocation14 + $0x11c] sm:$0xf]
    %v5872 = vld [vmem:[#allocation14 + $0x120] sm:$0xf]
    %v5873 = vld [vmem:[#allocation14 + $0x124] sm:$0xf]
    %v5874 = vld [vmem:[#allocation14 + $0x128] sm:$0xf]
    %v5875 = vld [vmem:[#allocation14 + $0x12c] sm:$0xf]
    %v5876 = vld [vmem:[#allocation14 + $0x130] sm:$0xf]
    %v5877 = vld [vmem:[#allocation14 + $0x134] sm:$0xf]
    %v5878 = vld [vmem:[#allocation14 + $0x138] sm:$0xf]
    %v5879 = vld [vmem:[#allocation14 + $0x13c] sm:$0xf]
    %v5880 = vld [vmem:[#allocation14 + $0x140] sm:$0xf]
    %v5881 = vld [vmem:[#allocation14 + $0x144] sm:$0xf]
    %v5882 = vld [vmem:[#allocation14 + $0x148] sm:$0xf]
    %v5883 = vld [vmem:[#allocation14 + $0x14c] sm:$0xf]
    %v5884 = vld [vmem:[#allocation14 + $0x150] sm:$0xf]
    %v5885 = vld [vmem:[#allocation14 + $0x154] sm:$0xf]
    %v5886 = vld [vmem:[#allocation14 + $0x158] sm:$0xf]
    %v5887 = vld [vmem:[#allocation14 + $0x15c] sm:$0xf]
    %v5888 = vld [vmem:[#allocation14 + $0x160] sm:$0xf]
    %v5889 = vld [vmem:[#allocation14 + $0x164] sm:$0xf]
    %v5890 = vld [vmem:[#allocation14 + $0x168] sm:$0xf]
    %v5891 = vld [vmem:[#allocation14 + $0x16c] sm:$0xf]
    %v5892 = vld [vmem:[#allocation14 + $0x170] sm:$0xf]
    %v5893 = vld [vmem:[#allocation14 + $0x174] sm:$0xf]
    %v5894 = vld [vmem:[#allocation14 + $0x178] sm:$0xf]
    %v5895 = vld [vmem:[#allocation14 + $0x17c] sm:$0xf]
    %v5896 = vld [vmem:[#allocation14 + $0x180] sm:$0xf]
    %v5897 = vld [vmem:[#allocation14 + $0x184] sm:$0xf]
    %v5898 = vld [vmem:[#allocation14 + $0x188] sm:$0xf]
    %v5899 = vld [vmem:[#allocation14 + $0x18c] sm:$0xf]
    %v5900 = vld [vmem:[#allocation14 + $0x190] sm:$0xf]
    %v5901 = vld [vmem:[#allocation14 + $0x194] sm:$0xf]
    %v5902 = vld [vmem:[#allocation14 + $0x198] sm:$0xf]
    %v5903 = vld [vmem:[#allocation14 + $0x19c] sm:$0xf]
    %v5904 = vld [vmem:[#allocation14 + $0x1a0] sm:$0xf]
    %v5905 = vld [vmem:[#allocation14 + $0x1a4] sm:$0xf]
    %v5906 = vld [vmem:[#allocation14 + $0x1a8] sm:$0xf]
    %v5907 = vld [vmem:[#allocation14 + $0x1ac] sm:$0xf]
    %v5908 = vld [vmem:[#allocation14 + $0x1b0] sm:$0xf]
    %v5909 = vld [vmem:[#allocation14 + $0x1b4] sm:$0xf]
    %v5910 = vld [vmem:[#allocation14 + $0x1b8] sm:$0xf]
    %v5911 = vld [vmem:[#allocation14 + $0x1bc] sm:$0xf]
    %v5912 = vld [vmem:[#allocation14 + $0x1c0] sm:$0xf]
    %v5913 = vld [vmem:[#allocation14 + $0x1c4] sm:$0xf]
    %v5914 = vld [vmem:[#allocation14 + $0x1c8] sm:$0xf]
    %v5915 = vld [vmem:[#allocation14 + $0x1cc] sm:$0xf]
    %v5916 = vld [vmem:[#allocation14 + $0x1d0] sm:$0xf]
    %v5917 = vld [vmem:[#allocation14 + $0x1d4] sm:$0xf]
    %v5918 = vld [vmem:[#allocation14 + $0x1d8] sm:$0xf]
    %v5919 = vld [vmem:[#allocation14 + $0x1dc] sm:$0xf]
    %v5920 = vld [vmem:[#allocation14 + $0x1e0] sm:$0xf]
    %v5921 = vld [vmem:[#allocation14 + $0x1e4] sm:$0xf]
    %v5922 = vld [vmem:[#allocation14 + $0x1e8] sm:$0xf]
    %v5923 = vld [vmem:[#allocation14 + $0x1ec] sm:$0xf]
    %v5924 = vld [vmem:[#allocation14 + $0x1f0] sm:$0xf]
    %v5925 = vld [vmem:[#allocation14 + $0x1f4] sm:$0xf]
    %v5926 = vld [vmem:[#allocation14 + $0x1f8] sm:$0xf]
    %v5927 = vld [vmem:[#allocation14 + $0x1fc] sm:$0xf]
    %v5928 = vld [vmem:[#allocation14 + $0x200] sm:$0xf]
    %v5929 = vld [vmem:[#allocation14 + $0x204] sm:$0xf]
    %v5930 = vld [vmem:[#allocation14 + $0x208] sm:$0xf]
    %v5931 = vld [vmem:[#allocation14 + $0x20c] sm:$0xf]
    %v5932 = vld [vmem:[#allocation14 + $0x210] sm:$0xf]
    %v5933 = vld [vmem:[#allocation14 + $0x214] sm:$0xf]
    %v5934 = vld [vmem:[#allocation14 + $0x218] sm:$0xf]
    %v5935 = vld [vmem:[#allocation14 + $0x21c] sm:$0xf]
    %v5936 = vld [vmem:[#allocation14 + $0x220] sm:$0xf]
    %v5937 = vld [vmem:[#allocation14 + $0x224] sm:$0xf]
    %v5938 = vld [vmem:[#allocation14 + $0x228] sm:$0xf]
    %v5939 = vld [vmem:[#allocation14 + $0x22c] sm:$0xf]
    %v5940 = vld [vmem:[#allocation14 + $0x230] sm:$0xf]
    %v5941 = vld [vmem:[#allocation14 + $0x234] sm:$0xf]
    %v5942 = vld [vmem:[#allocation14 + $0x238] sm:$0xf]
    %v5943 = vld [vmem:[#allocation14 + $0x23c] sm:$0xf]
    %v6088 = vunpack.c.l.b16 %v5800
    %v6089 = vunpack.c.l.b16 %v5801
    %v6090 = vunpack.c.l.b16 %v5802
    %v6091 = vunpack.c.l.b16 %v5803
    %v6092 = vunpack.c.l.b16 %v5804
    %v6093 = vunpack.c.l.b16 %v5805
    %v6094 = vunpack.c.l.b16 %v5806
    %v6095 = vunpack.c.l.b16 %v5807
    %v6096 = vunpack.c.l.b16 %v5808
    %v6097 = vunpack.c.l.b16 %v5809
    %v6098 = vunpack.c.l.b16 %v5810
    %v6099 = vunpack.c.l.b16 %v5811
    %v6100 = vunpack.c.l.b16 %v5812
    %v6101 = vunpack.c.l.b16 %v5813
    %v6102 = vunpack.c.l.b16 %v5814
    %v6103 = vunpack.c.l.b16 %v5815
    %v6104 = vunpack.c.l.b16 %v5816
    %v6105 = vunpack.c.l.b16 %v5817
    %v6106 = vunpack.c.l.b16 %v5818
    %v6107 = vunpack.c.l.b16 %v5819
    %v6108 = vunpack.c.l.b16 %v5820
    %v6109 = vunpack.c.l.b16 %v5821
    %v6110 = vunpack.c.l.b16 %v5822
    %v6111 = vunpack.c.l.b16 %v5823
    %v6112 = vunpack.c.l.b16 %v5824
    %v6113 = vunpack.c.l.b16 %v5825
    %v6114 = vunpack.c.l.b16 %v5826
    %v6115 = vunpack.c.l.b16 %v5827
    %v6116 = vunpack.c.l.b16 %v5828
    %v6117 = vunpack.c.l.b16 %v5829
    %v6118 = vunpack.c.l.b16 %v5830
    %v6119 = vunpack.c.l.b16 %v5831
    %v6120 = vunpack.c.l.b16 %v5832
    %v6121 = vunpack.c.l.b16 %v5833
    %v6122 = vunpack.c.l.b16 %v5834
    %v6123 = vunpack.c.l.b16 %v5835
    %v6124 = vunpack.c.l.b16 %v5836
    %v6125 = vunpack.c.l.b16 %v5837
    %v6126 = vunpack.c.l.b16 %v5838
    %v6127 = vunpack.c.l.b16 %v5839
    %v6128 = vunpack.c.l.b16 %v5840
    %v6129 = vunpack.c.l.b16 %v5841
    %v6130 = vunpack.c.l.b16 %v5842
    %v6131 = vunpack.c.l.b16 %v5843
    %v6132 = vunpack.c.l.b16 %v5844
    %v6133 = vunpack.c.l.b16 %v5845
    %v6134 = vunpack.c.l.b16 %v5846
    %v6135 = vunpack.c.l.b16 %v5847
    %v6136 = vunpack.c.l.b16 %v5848
    %v6137 = vunpack.c.l.b16 %v5849
    %v6138 = vunpack.c.l.b16 %v5850
    %v6139 = vunpack.c.l.b16 %v5851
    %v6140 = vunpack.c.l.b16 %v5852
    %v6141 = vunpack.c.l.b16 %v5853
    %v6142 = vunpack.c.l.b16 %v5854
    %v6143 = vunpack.c.l.b16 %v5855
    %v6144 = vunpack.c.l.b16 %v5856
    %v6145 = vunpack.c.l.b16 %v5857
    %v6146 = vunpack.c.l.b16 %v5858
    %v6147 = vunpack.c.l.b16 %v5859
    %v6148 = vunpack.c.l.b16 %v5860
    %v6149 = vunpack.c.l.b16 %v5861
    %v6150 = vunpack.c.l.b16 %v5862
    %v6151 = vunpack.c.l.b16 %v5863
    %v6152 = vunpack.c.l.b16 %v5864
    %v6153 = vunpack.c.l.b16 %v5865
    %v6154 = vunpack.c.l.b16 %v5866
    %v6155 = vunpack.c.l.b16 %v5867
    %v6156 = vunpack.c.l.b16 %v5868
    %v6157 = vunpack.c.l.b16 %v5869
    %v6158 = vunpack.c.l.b16 %v5870
    %v6159 = vunpack.c.l.b16 %v5871
    %v6160 = vunpack.c.l.b16 %v5872
    %v6161 = vunpack.c.l.b16 %v5873
    %v6162 = vunpack.c.l.b16 %v5874
    %v6163 = vunpack.c.l.b16 %v5875
    %v6164 = vunpack.c.l.b16 %v5876
    %v6165 = vunpack.c.l.b16 %v5877
    %v6166 = vunpack.c.l.b16 %v5878
    %v6167 = vunpack.c.l.b16 %v5879
    %v6168 = vunpack.c.l.b16 %v5880
    %v6169 = vunpack.c.l.b16 %v5881
    %v6170 = vunpack.c.l.b16 %v5882
    %v6171 = vunpack.c.l.b16 %v5883
    %v6172 = vunpack.c.l.b16 %v5884
    %v6173 = vunpack.c.l.b16 %v5885
    %v6174 = vunpack.c.l.b16 %v5886
    %v6175 = vunpack.c.l.b16 %v5887
    %v6176 = vunpack.c.l.b16 %v5888
    %v6177 = vunpack.c.l.b16 %v5889
    %v6178 = vunpack.c.l.b16 %v5890
    %v6179 = vunpack.c.l.b16 %v5891
    %v6180 = vunpack.c.l.b16 %v5892
    %v6181 = vunpack.c.l.b16 %v5893
    %v6182 = vunpack.c.l.b16 %v5894
    %v6183 = vunpack.c.l.b16 %v5895
    %v6184 = vunpack.c.l.b16 %v5896
    %v6185 = vunpack.c.l.b16 %v5897
    %v6186 = vunpack.c.l.b16 %v5898
    %v6187 = vunpack.c.l.b16 %v5899
    %v6188 = vunpack.c.l.b16 %v5900
    %v6189 = vunpack.c.l.b16 %v5901
    %v6190 = vunpack.c.l.b16 %v5902
    %v6191 = vunpack.c.l.b16 %v5903
    %v6192 = vunpack.c.l.b16 %v5904
    %v6193 = vunpack.c.l.b16 %v5905
    %v6194 = vunpack.c.l.b16 %v5906
    %v6195 = vunpack.c.l.b16 %v5907
    %v6196 = vunpack.c.l.b16 %v5908
    %v6197 = vunpack.c.l.b16 %v5909
    %v6198 = vunpack.c.l.b16 %v5910
    %v6199 = vunpack.c.l.b16 %v5911
    %v6200 = vunpack.c.l.b16 %v5912
    %v6201 = vunpack.c.l.b16 %v5913
    %v6202 = vunpack.c.l.b16 %v5914
    %v6203 = vunpack.c.l.b16 %v5915
    %v6204 = vunpack.c.l.b16 %v5916
    %v6205 = vunpack.c.l.b16 %v5917
    %v6206 = vunpack.c.l.b16 %v5918
    %v6207 = vunpack.c.l.b16 %v5919
    %v6208 = vunpack.c.l.b16 %v5920
    %v6209 = vunpack.c.l.b16 %v5921
    %v6210 = vunpack.c.l.b16 %v5922
    %v6211 = vunpack.c.l.b16 %v5923
    %v6212 = vunpack.c.l.b16 %v5924
    %v6213 = vunpack.c.l.b16 %v5925
    %v6214 = vunpack.c.l.b16 %v5926
    %v6215 = vunpack.c.l.b16 %v5927
    %v6216 = vunpack.c.l.b16 %v5928
    %v6217 = vunpack.c.l.b16 %v5929
    %v6218 = vunpack.c.l.b16 %v5930
    %v6219 = vunpack.c.l.b16 %v5931
    %v6220 = vunpack.c.l.b16 %v5932
    %v6221 = vunpack.c.l.b16 %v5933
    %v6222 = vunpack.c.l.b16 %v5934
    %v6223 = vunpack.c.l.b16 %v5935
    %v6224 = vunpack.c.l.b16 %v5936
    %v6225 = vunpack.c.l.b16 %v5937
    %v6226 = vunpack.c.l.b16 %v5938
    %v6227 = vunpack.c.l.b16 %v5939
    %v6228 = vunpack.c.l.b16 %v5940
    %v6229 = vunpack.c.l.b16 %v5941
    %v6230 = vunpack.c.l.b16 %v5942
    %v6231 = vunpack.c.l.b16 %v5943
    %v6232 = vpack.c.b16 %v6089, %v6088
    %v6233 = vpack.c.b16 %v6091, %v6090
    %v6234 = vpack.c.b16 %v6093, %v6092
    %v6235 = vpack.c.b16 %v6095, %v6094
    %v6236 = vpack.c.b16 %v6097, %v6096
    %v6237 = vpack.c.b16 %v6099, %v6098
    %v6238 = vpack.c.b16 %v6101, %v6100
    %v6239 = vpack.c.b16 %v6103, %v6102
    %v6240 = vpack.c.b16 %v6105, %v6104
    %v6241 = vpack.c.b16 %v6107, %v6106
    %v6242 = vpack.c.b16 %v6109, %v6108
    %v6243 = vpack.c.b16 %v6111, %v6110
    %v6244 = vpack.c.b16 %v6113, %v6112
    %v6245 = vpack.c.b16 %v6115, %v6114
    %v6246 = vpack.c.b16 %v6117, %v6116
    %v6247 = vpack.c.b16 %v6119, %v6118
    %v6248 = vpack.c.b16 %v6121, %v6120
    %v6249 = vpack.c.b16 %v6123, %v6122
    %v6250 = vpack.c.b16 %v6125, %v6124
    %v6251 = vpack.c.b16 %v6127, %v6126
    %v6252 = vpack.c.b16 %v6129, %v6128
    %v6253 = vpack.c.b16 %v6131, %v6130
    %v6254 = vpack.c.b16 %v6133, %v6132
    %v6255 = vpack.c.b16 %v6135, %v6134
    %v6256 = vpack.c.b16 %v6137, %v6136
    %v6257 = vpack.c.b16 %v6139, %v6138
    %v6258 = vpack.c.b16 %v6141, %v6140
    %v6259 = vpack.c.b16 %v6143, %v6142
    %v6260 = vpack.c.b16 %v6145, %v6144
    %v6261 = vpack.c.b16 %v6147, %v6146
    %v6262 = vpack.c.b16 %v6149, %v6148
    %v6263 = vpack.c.b16 %v6151, %v6150
    %v6264 = vpack.c.b16 %v6153, %v6152
    %v6265 = vpack.c.b16 %v6155, %v6154
    %v6266 = vpack.c.b16 %v6157, %v6156
    %v6267 = vpack.c.b16 %v6159, %v6158
    %v6268 = vpack.c.b16 %v6161, %v6160
    %v6269 = vpack.c.b16 %v6163, %v6162
    %v6270 = vpack.c.b16 %v6165, %v6164
    %v6271 = vpack.c.b16 %v6167, %v6166
    %v6272 = vpack.c.b16 %v6169, %v6168
    %v6273 = vpack.c.b16 %v6171, %v6170
    %v6274 = vpack.c.b16 %v6173, %v6172
    %v6275 = vpack.c.b16 %v6175, %v6174
    %v6276 = vpack.c.b16 %v6177, %v6176
    %v6277 = vpack.c.b16 %v6179, %v6178
    %v6278 = vpack.c.b16 %v6181, %v6180
    %v6279 = vpack.c.b16 %v6183, %v6182
    %v6280 = vpack.c.b16 %v6185, %v6184
    %v6281 = vpack.c.b16 %v6187, %v6186
    %v6282 = vpack.c.b16 %v6189, %v6188
    %v6283 = vpack.c.b16 %v6191, %v6190
    %v6284 = vpack.c.b16 %v6193, %v6192
    %v6285 = vpack.c.b16 %v6195, %v6194
    %v6286 = vpack.c.b16 %v6197, %v6196
    %v6287 = vpack.c.b16 %v6199, %v6198
    %v6288 = vpack.c.b16 %v6201, %v6200
    %v6289 = vpack.c.b16 %v6203, %v6202
    %v6290 = vpack.c.b16 %v6205, %v6204
    %v6291 = vpack.c.b16 %v6207, %v6206
    %v6292 = vpack.c.b16 %v6209, %v6208
    %v6293 = vpack.c.b16 %v6211, %v6210
    %v6294 = vpack.c.b16 %v6213, %v6212
    %v6295 = vpack.c.b16 %v6215, %v6214
    %v6296 = vpack.c.b16 %v6217, %v6216
    %v6297 = vpack.c.b16 %v6219, %v6218
    %v6298 = vpack.c.b16 %v6221, %v6220
    %v6299 = vpack.c.b16 %v6223, %v6222
    %v6300 = vpack.c.b16 %v6225, %v6224
    %v6301 = vpack.c.b16 %v6227, %v6226
    %v6302 = vpack.c.b16 %v6229, %v6228
    %v6303 = vpack.c.b16 %v6231, %v6230
    %6376 = vmatprep.subr.bf16.mxu0 0
    %6377 = vmatpush1.bf16.msra.mxu0 %v6232
    %6378 = vmatprep.subr.bf16.mxu0 0
    %6379 = vmatpush1.bf16.msra.mxu0 %v6233
    %6380 = vmatprep.subr.bf16.mxu0 0
    %6381 = vmatpush1.bf16.msra.mxu0 %v6234
    %6382 = vmatprep.subr.bf16.mxu0 0
    %6383 = vmatpush1.bf16.msra.mxu0 %v6235
    %6384 = vmatprep.subr.bf16.mxu0 0
    %6385 = vmatpush1.bf16.msra.mxu0 %v6236
    %6386 = vmatprep.subr.bf16.mxu0 0
    %6387 = vmatpush1.bf16.msra.mxu0 %v6237
    %6388 = vmatprep.subr.bf16.mxu0 0
    %6389 = vmatpush1.bf16.msra.mxu0 %v6238
    %6390 = vmatprep.subr.bf16.mxu0 0
    %6391 = vmatpush1.bf16.msra.mxu0 %v6239
    %6392 = vmatprep.subr.bf16.mxu0 0
    %6393 = vmatpush1.bf16.msra.mxu0 %v6240
    %6394 = vmatprep.subr.bf16.mxu0 0
    %6395 = vmatpush1.bf16.msra.mxu0 %v6241
    %6396 = vmatprep.subr.bf16.mxu0 0
    %6397 = vmatpush1.bf16.msra.mxu0 %v6242
    %6398 = vmatprep.subr.bf16.mxu0 0
    %6399 = vmatpush1.bf16.msra.mxu0 %v6243
    %6400 = vmatprep.subr.bf16.mxu0 0
    %6401 = vmatpush1.bf16.msra.mxu0 %v6244
    %6402 = vmatprep.subr.bf16.mxu0 0
    %6403 = vmatpush1.bf16.msra.mxu0 %v6245
    %6404 = vmatprep.subr.bf16.mxu0 0
    %6405 = vmatpush1.bf16.msra.mxu0 %v6246
    %6406 = vmatprep.subr.bf16.mxu0 0
    %6407 = vmatpush1.bf16.msra.mxu0 %v6247
    %6408 = vmatprep.mubr.bf16.mxu0 %v5729
    %6409 = vmatmul.mubr.bf16.gmra.mrb[0].mxu0 %v5728
    %v6410 = vpop.f32.mrb[0].mxu0
    %v6411 = vadd.f32 0.0, %v6410
    %v6412 = vpop.f32.mrb[0].mxu0
    %v6413 = vpop.f32.mrb[0].mxu0
    %v6414 = vadd.f32 0.0, %v6413
    %v6415 = vpop.f32.mrb[0].mxu0
    %6416 = vmatprep.mubr.bf16.mxu0 %v5738
    %6417 = vmatmul.mubr.bf16.gmra.mrb[0].mxu0 %v5737
    %v6418 = vpop.f32.mrb[0].mxu0
    %v6419 = vadd.f32 0.0, %v6418
    %v6420 = vpop.f32.mrb[0].mxu0
    %v6421 = vpop.f32.mrb[0].mxu0
    %v6422 = vadd.f32 0.0, %v6421
    %v6423 = vpop.f32.mrb[0].mxu0
    %6424 = vmatprep.mubr.bf16.mxu0 %v5747
    %6425 = vmatmul.mubr.bf16.gmra.mrb[0].mxu0 %v5746
    %v6426 = vpop.f32.mrb[0].mxu0
    %v6427 = vadd.f32 0.0, %v6426
    %v6428 = vpop.f32.mrb[0].mxu0
    %v6429 = vpop.f32.mrb[0].mxu0
    %v6430 = vadd.f32 0.0, %v6429
    %v6431 = vpop.f32.mrb[0].mxu0
    %6432 = vmatprep.mubr.bf16.mxu0 %v5756
    %6433 = vmatmul.mubr.bf16.gmra.mrb[0].mxu0 %v5755
    %v6434 = vpop.f32.mrb[0].mxu0
    %v6435 = vadd.f32 0.0, %v6434
    %v6436 = vpop.f32.mrb[0].mxu0
    %v6437 = vpop.f32.mrb[0].mxu0
    %v6438 = vadd.f32 0.0, %v6437
    %v6439 = vpop.f32.mrb[0].mxu0
    %6440 = vmatprep.mubr.bf16.mxu0 %v5765
    %6441 = vmatmul.mubr.bf16.gmra.mrb[0].mxu0 %v5764
    %v6442 = vpop.f32.mrb[0].mxu0
    %v6443 = vadd.f32 0.0, %v6442
    %v6444 = vpop.f32.mrb[0].mxu0
    %v6445 = vpop.f32.mrb[0].mxu0
    %v6446 = vadd.f32 0.0, %v6445
    %v6447 = vpop.f32.mrb[0].mxu0
    %6448 = vmatprep.mubr.bf16.mxu0 %v5774
    %6449 = vmatmul.mubr.bf16.gmra.mrb[0].mxu0 %v5773
    %v6450 = vpop.f32.mrb[0].mxu0
    %v6451 = vadd.f32 0.0, %v6450
    %v6452 = vpop.f32.mrb[0].mxu0
    %v6453 = vpop.f32.mrb[0].mxu0
    %v6454 = vadd.f32 0.0, %v6453
    %v6455 = vpop.f32.mrb[0].mxu0
    %6456 = vmatprep.mubr.bf16.mxu0 %v5783
    %6457 = vmatmul.mubr.bf16.gmra.mrb[0].mxu0 %v5782
    %v6458 = vpop.f32.mrb[0].mxu0
    %v6459 = vadd.f32 0.0, %v6458
    %v6460 = vpop.f32.mrb[0].mxu0
    %v6461 = vpop.f32.mrb[0].mxu0
    %v6462 = vadd.f32 0.0, %v6461
    %v6463 = vpop.f32.mrb[0].mxu0
    %6464 = vmatprep.mubr.bf16.mxu0 %v5792
    %6465 = vmatmul.mubr.bf16.gmra.mrb[0].mxu0 %v5791
    %v6466 = vpop.f32.mrb[0].mxu0
    %v6467 = vadd.f32 0.0, %v6466
    %v6468 = vpop.f32.mrb[0].mxu0
    %v6469 = vpop.f32.mrb[0].mxu0
    %v6470 = vadd.f32 0.0, %v6469
    %v6471 = vpop.f32.mrb[0].mxu0
    %6472 = vdwg.mxu0
    %6473 = vmatprep.subr.bf16.mxu0 0
    %6474 = vmatpush1.bf16.msra.mxu0 %v6248
    %6475 = vmatprep.subr.bf16.mxu0 0
    %6476 = vmatpush1.bf16.msra.mxu0 %v6249
    %6477 = vmatprep.subr.bf16.mxu0 0
    %6478 = vmatpush1.bf16.msra.mxu0 %v6250
    %6479 = vmatprep.subr.bf16.mxu0 0
    %6480 = vmatpush1.bf16.msra.mxu0 %v6251
    %6481 = vmatprep.subr.bf16.mxu0 0
    %6482 = vmatpush1.bf16.msra.mxu0 %v6252
    %6483 = vmatprep.subr.bf16.mxu0 0
    %6484 = vmatpush1.bf16.msra.mxu0 %v6253
    %6485 = vmatprep.subr.bf16.mxu0 0
    %6486 = vmatpush1.bf16.msra.mxu0 %v6254
    %6487 = vmatprep.subr.bf16.mxu0 0
    %6488 = vmatpush1.bf16.msra.mxu0 %v6255
    %6489 = vmatprep.subr.bf16.mxu0 0
    %6490 = vmatpush1.bf16.msra.mxu0 %v6256
    %6491 = vmatprep.subr.bf16.mxu0 0
    %6492 = vmatpush1.bf16.msra.mxu0 %v6257
    %6493 = vmatprep.subr.bf16.mxu0 0
    %6494 = vmatpush1.bf16.msra.mxu0 %v6258
    %6495 = vmatprep.subr.bf16.mxu0 0
    %6496 = vmatpush1.bf16.msra.mxu0 %v6259
    %6497 = vmatprep.subr.bf16.mxu0 0
    %6498 = vmatpush1.bf16.msra.mxu0 %v6260
    %6499 = vmatprep.subr.bf16.mxu0 0
    %6500 = vmatpush1.bf16.msra.mxu0 %v6261
    %6501 = vmatprep.subr.bf16.mxu0 0
    %6502 = vmatpush1.bf16.msra.mxu0 %v6262
    %6503 = vmatprep.subr.bf16.mxu0 0
    %6504 = vmatpush1.bf16.msra.mxu0 %v6263
    %6505 = vmatprep.mubr.bf16.mxu0 %v5731
    %6506 = vmatmul.mubr.bf16.gmra.mrb[0].mxu0 %v5730
    %v6507 = vpop.f32.mrb[0].mxu0
    %v6508 = vadd.f32 %v6411, %v6507
    %v6509 = vpop.f32.mrb[0].mxu0
    %v6510 = vpop.f32.mrb[0].mxu0
    %v6511 = vadd.f32 %v6414, %v6510
    %v6512 = vpop.f32.mrb[0].mxu0
    %6513 = vmatprep.mubr.bf16.mxu0 %v5740
    %6514 = vmatmul.mubr.bf16.gmra.mrb[0].mxu0 %v5739
    %v6515 = vpop.f32.mrb[0].mxu0
    %v6516 = vadd.f32 %v6419, %v6515
    %v6517 = vpop.f32.mrb[0].mxu0
    %v6518 = vpop.f32.mrb[0].mxu0
    %v6519 = vadd.f32 %v6422, %v6518
    %v6520 = vpop.f32.mrb[0].mxu0
    %6521 = vmatprep.mubr.bf16.mxu0 %v5749
    %6522 = vmatmul.mubr.bf16.gmra.mrb[0].mxu0 %v5748
    %v6523 = vpop.f32.mrb[0].mxu0
    %v6524 = vadd.f32 %v6427, %v6523
    %v6525 = vpop.f32.mrb[0].mxu0
    %v6526 = vpop.f32.mrb[0].mxu0
    %v6527 = vadd.f32 %v6430, %v6526
    %v6528 = vpop.f32.mrb[0].mxu0
    %6529 = vmatprep.mubr.bf16.mxu0 %v5758
    %6530 = vmatmul.mubr.bf16.gmra.mrb[0].mxu0 %v5757
    %v6531 = vpop.f32.mrb[0].mxu0
    %v6532 = vadd.f32 %v6435, %v6531
    %v6533 = vpop.f32.mrb[0].mxu0
    %v6534 = vpop.f32.mrb[0].mxu0
    %v6535 = vadd.f32 %v6438, %v6534
    %v6536 = vpop.f32.mrb[0].mxu0
    %6537 = vmatprep.mubr.bf16.mxu0 %v5767
    %6538 = vmatmul.mubr.bf16.gmra.mrb[0].mxu0 %v5766
    %v6539 = vpop.f32.mrb[0].mxu0
    %v6540 = vadd.f32 %v6443, %v6539
    %v6541 = vpop.f32.mrb[0].mxu0
    %v6542 = vpop.f32.mrb[0].mxu0
    %v6543 = vadd.f32 %v6446, %v6542
    %v6544 = vpop.f32.mrb[0].mxu0
    %6545 = vmatprep.mubr.bf16.mxu0 %v5776
    %6546 = vmatmul.mubr.bf16.gmra.mrb[0].mxu0 %v5775
    %v6547 = vpop.f32.mrb[0].mxu0
    %v6548 = vadd.f32 %v6451, %v6547
    %v6549 = vpop.f32.mrb[0].mxu0
    %v6550 = vpop.f32.mrb[0].mxu0
    %v6551 = vadd.f32 %v6454, %v6550
    %v6552 = vpop.f32.mrb[0].mxu0
    %6553 = vmatprep.mubr.bf16.mxu0 %v5785
    %6554 = vmatmul.mubr.bf16.gmra.mrb[0].mxu0 %v5784
    %v6555 = vpop.f32.mrb[0].mxu0
    %v6556 = vadd.f32 %v6459, %v6555
    %v6557 = vpop.f32.mrb[0].mxu0
    %v6558 = vpop.f32.mrb[0].mxu0
    %v6559 = vadd.f32 %v6462, %v6558
    %v6560 = vpop.f32.mrb[0].mxu0
    %6561 = vmatprep.mubr.bf16.mxu0 %v5794
    %6562 = vmatmul.mubr.bf16.gmra.mrb[0].mxu0 %v5793
    %v6563 = vpop.f32.mrb[0].mxu0
    %v6564 = vadd.f32 %v6467, %v6563
    %v6565 = vpop.f32.mrb[0].mxu0
    %v6566 = vpop.f32.mrb[0].mxu0
    %v6567 = vadd.f32 %v6470, %v6566
    %v6568 = vpop.f32.mrb[0].mxu0
    %6569 = vdwg.mxu0
    %6570 = vmatprep.subr.bf16.mxu0 0
    %6571 = vmatpush1.bf16.msra.mxu0 %v6264
    %6572 = vmatprep.subr.bf16.mxu0 0
    %6573 = vmatpush1.bf16.msra.mxu0 %v6265
    %6574 = vmatprep.subr.bf16.mxu0 0
    %6575 = vmatpush1.bf16.msra.mxu0 %v6266
    %6576 = vmatprep.subr.bf16.mxu0 0
    %6577 = vmatpush1.bf16.msra.mxu0 %v6267
    %6578 = vmatprep.subr.bf16.mxu0 0
    %6579 = vmatpush1.bf16.msra.mxu0 %v6268
    %6580 = vmatprep.subr.bf16.mxu0 0
    %6581 = vmatpush1.bf16.msra.mxu0 %v6269
    %6582 = vmatprep.subr.bf16.mxu0 0
    %6583 = vmatpush1.bf16.msra.mxu0 %v6270
    %6584 = vmatprep.subr.bf16.mxu0 0
    %6585 = vmatpush1.bf16.msra.mxu0 %v6271
    %6586 = vmatprep.subr.bf16.mxu0 0
    %6587 = vmatpush1.bf16.msra.mxu0 %v6272
    %6588 = vmatprep.subr.bf16.mxu0 0
    %6589 = vmatpush1.bf16.msra.mxu0 %v6273
    %6590 = vmatprep.subr.bf16.mxu0 0
    %6591 = vmatpush1.bf16.msra.mxu0 %v6274
    %6592 = vmatprep.subr.bf16.mxu0 0
    %6593 = vmatpush1.bf16.msra.mxu0 %v6275
    %6594 = vmatprep.subr.bf16.mxu0 0
    %6595 = vmatpush1.bf16.msra.mxu0 %v6276
    %6596 = vmatprep.subr.bf16.mxu0 0
    %6597 = vmatpush1.bf16.msra.mxu0 %v6277
    %6598 = vmatprep.subr.bf16.mxu0 0
    %6599 = vmatpush1.bf16.msra.mxu0 %v6278
    %6600 = vmatprep.subr.bf16.mxu0 0
    %6601 = vmatpush1.bf16.msra.mxu0 %v6279
    %6602 = vmatprep.mubr.bf16.mxu0 %v5733
    %6603 = vmatmul.mubr.bf16.gmra.mrb[0].mxu0 %v5732
    %v6604 = vpop.f32.mrb[0].mxu0
    %v6605 = vadd.f32 %v6508, %v6604
    %v6606 = vpop.f32.mrb[0].mxu0
    %v6607 = vpop.f32.mrb[0].mxu0
    %v6608 = vadd.f32 %v6511, %v6607
    %v6609 = vpop.f32.mrb[0].mxu0
    %6610 = vmatprep.mubr.bf16.mxu0 %v5742
    %6611 = vmatmul.mubr.bf16.gmra.mrb[0].mxu0 %v5741
    %v6612 = vpop.f32.mrb[0].mxu0
    %v6613 = vadd.f32 %v6516, %v6612
    %v6614 = vpop.f32.mrb[0].mxu0
    %v6615 = vpop.f32.mrb[0].mxu0
    %v6616 = vadd.f32 %v6519, %v6615
    %v6617 = vpop.f32.mrb[0].mxu0
    %6618 = vmatprep.mubr.bf16.mxu0 %v5751
    %6619 = vmatmul.mubr.bf16.gmra.mrb[0].mxu0 %v5750
    %v6620 = vpop.f32.mrb[0].mxu0
    %v6621 = vadd.f32 %v6524, %v6620
    %v6622 = vpop.f32.mrb[0].mxu0
    %v6623 = vpop.f32.mrb[0].mxu0
    %v6624 = vadd.f32 %v6527, %v6623
    %v6625 = vpop.f32.mrb[0].mxu0
    %6626 = vmatprep.mubr.bf16.mxu0 %v5760
    %6627 = vmatmul.mubr.bf16.gmra.mrb[0].mxu0 %v5759
    %v6628 = vpop.f32.mrb[0].mxu0
    %v6629 = vadd.f32 %v6532, %v6628
    %v6630 = vpop.f32.mrb[0].mxu0
    %v6631 = vpop.f32.mrb[0].mxu0
    %v6632 = vadd.f32 %v6535, %v6631
    %v6633 = vpop.f32.mrb[0].mxu0
    %6634 = vmatprep.mubr.bf16.mxu0 %v5769
    %6635 = vmatmul.mubr.bf16.gmra.mrb[0].mxu0 %v5768
    %v6636 = vpop.f32.mrb[0].mxu0
    %v6637 = vadd.f32 %v6540, %v6636
    %v6638 = vpop.f32.mrb[0].mxu0
    %v6639 = vpop.f32.mrb[0].mxu0
    %v6640 = vadd.f32 %v6543, %v6639
    %v6641 = vpop.f32.mrb[0].mxu0
    %6642 = vmatprep.mubr.bf16.mxu0 %v5778
    %6643 = vmatmul.mubr.bf16.gmra.mrb[0].mxu0 %v5777
    %v6644 = vpop.f32.mrb[0].mxu0
    %v6645 = vadd.f32 %v6548, %v6644
    %v6646 = vpop.f32.mrb[0].mxu0
    %v6647 = vpop.f32.mrb[0].mxu0
    %v6648 = vadd.f32 %v6551, %v6647
    %v6649 = vpop.f32.mrb[0].mxu0
    %6650 = vmatprep.mubr.bf16.mxu0 %v5787
    %6651 = vmatmul.mubr.bf16.gmra.mrb[0].mxu0 %v5786
    %v6652 = vpop.f32.mrb[0].mxu0
    %v6653 = vadd.f32 %v6556, %v6652
    %v6654 = vpop.f32.mrb[0].mxu0
    %v6655 = vpop.f32.mrb[0].mxu0
    %v6656 = vadd.f32 %v6559, %v6655
    %v6657 = vpop.f32.mrb[0].mxu0
    %6658 = vmatprep.mubr.bf16.mxu0 %v5796
    %6659 = vmatmul.mubr.bf16.gmra.mrb[0].mxu0 %v5795
    %v6660 = vpop.f32.mrb[0].mxu0
    %v6661 = vadd.f32 %v6564, %v6660
    %v6662 = vpop.f32.mrb[0].mxu0
    %v6663 = vpop.f32.mrb[0].mxu0
    %v6664 = vadd.f32 %v6567, %v6663
    %v6665 = vpop.f32.mrb[0].mxu0
    %6666 = vdwg.mxu0
    %6667 = vmatprep.subr.bf16.mxu0 0
    %6668 = vmatpush1.bf16.msra.mxu0 %v6280
    %6669 = vmatprep.subr.bf16.mxu0 0
    %6670 = vmatpush1.bf16.msra.mxu0 %v6281
    %6671 = vmatprep.subr.bf16.mxu0 0
    %6672 = vmatpush1.bf16.msra.mxu0 %v6282
    %6673 = vmatprep.subr.bf16.mxu0 0
    %6674 = vmatpush1.bf16.msra.mxu0 %v6283
    %6675 = vmatprep.subr.bf16.mxu0 0
    %6676 = vmatpush1.bf16.msra.mxu0 %v6284
    %6677 = vmatprep.subr.bf16.mxu0 0
    %6678 = vmatpush1.bf16.msra.mxu0 %v6285
    %6679 = vmatprep.subr.bf16.mxu0 0
    %6680 = vmatpush1.bf16.msra.mxu0 %v6286
    %6681 = vmatprep.subr.bf16.mxu0 0
    %6682 = vmatpush1.bf16.msra.mxu0 %v6287
    %6683 = vmatprep.subr.bf16.mxu0 0
    %6684 = vmatpush1.bf16.msra.mxu0 %v6288
    %6685 = vmatprep.subr.bf16.mxu0 0
    %6686 = vmatpush1.bf16.msra.mxu0 %v6289
    %6687 = vmatprep.subr.bf16.mxu0 0
    %6688 = vmatpush1.bf16.msra.mxu0 %v6290
    %6689 = vmatprep.subr.bf16.mxu0 0
    %6690 = vmatpush1.bf16.msra.mxu0 %v6291
    %6691 = vmatprep.subr.bf16.mxu0 0
    %6692 = vmatpush1.bf16.msra.mxu0 %v6292
    %6693 = vmatprep.subr.bf16.mxu0 0
    %6694 = vmatpush1.bf16.msra.mxu0 %v6293
    %6695 = vmatprep.subr.bf16.mxu0 0
    %6696 = vmatpush1.bf16.msra.mxu0 %v6294
    %6697 = vmatprep.subr.bf16.mxu0 0
    %6698 = vmatpush1.bf16.msra.mxu0 %v6295
    %6699 = vmatprep.mubr.bf16.mxu0 %v5735
    %6700 = vmatmul.mubr.bf16.gmra.mrb[0].mxu0 %v5734
    %v6701 = vpop.f32.mrb[0].mxu0
    %v6702 = vadd.f32 %v6605, %v6701
    %v6703 = vpop.f32.mrb[0].mxu0
    %v6704 = vpop.f32.mrb[0].mxu0
    %v6705 = vadd.f32 %v6608, %v6704
    %v6706 = vpop.f32.mrb[0].mxu0
    %6707 = vmatprep.mubr.bf16.mxu0 %v5744
    %6708 = vmatmul.mubr.bf16.gmra.mrb[0].mxu0 %v5743
    %v6709 = vpop.f32.mrb[0].mxu0
    %v6710 = vadd.f32 %v6613, %v6709
    %v6711 = vpop.f32.mrb[0].mxu0
    %v6712 = vpop.f32.mrb[0].mxu0
    %v6713 = vadd.f32 %v6616, %v6712
    %v6714 = vpop.f32.mrb[0].mxu0
    %6715 = vmatprep.mubr.bf16.mxu0 %v5753
    %6716 = vmatmul.mubr.bf16.gmra.mrb[0].mxu0 %v5752
    %v6717 = vpop.f32.mrb[0].mxu0
    %v6718 = vadd.f32 %v6621, %v6717
    %v6719 = vpop.f32.mrb[0].mxu0
    %v6720 = vpop.f32.mrb[0].mxu0
    %v6721 = vadd.f32 %v6624, %v6720
    %v6722 = vpop.f32.mrb[0].mxu0
    %6723 = vmatprep.mubr.bf16.mxu0 %v5762
    %6724 = vmatmul.mubr.bf16.gmra.mrb[0].mxu0 %v5761
    %v6725 = vpop.f32.mrb[0].mxu0
    %v6726 = vadd.f32 %v6629, %v6725
    %v6727 = vpop.f32.mrb[0].mxu0
    %v6728 = vpop.f32.mrb[0].mxu0
    %v6729 = vadd.f32 %v6632, %v6728
    %v6730 = vpop.f32.mrb[0].mxu0
    %6731 = vmatprep.mubr.bf16.mxu0 %v5771
    %6732 = vmatmul.mubr.bf16.gmra.mrb[0].mxu0 %v5770
    %v6733 = vpop.f32.mrb[0].mxu0
    %v6734 = vadd.f32 %v6637, %v6733
    %v6735 = vpop.f32.mrb[0].mxu0
    %v6736 = vpop.f32.mrb[0].mxu0
    %v6737 = vadd.f32 %v6640, %v6736
    %v6738 = vpop.f32.mrb[0].mxu0
    %6739 = vmatprep.mubr.bf16.mxu0 %v5780
    %6740 = vmatmul.mubr.bf16.gmra.mrb[0].mxu0 %v5779
    %v6741 = vpop.f32.mrb[0].mxu0
    %v6742 = vadd.f32 %v6645, %v6741
    %v6743 = vpop.f32.mrb[0].mxu0
    %v6744 = vpop.f32.mrb[0].mxu0
    %v6745 = vadd.f32 %v6648, %v6744
    %v6746 = vpop.f32.mrb[0].mxu0
    %6747 = vmatprep.mubr.bf16.mxu0 %v5789
    %6748 = vmatmul.mubr.bf16.gmra.mrb[0].mxu0 %v5788
    %v6749 = vpop.f32.mrb[0].mxu0
    %v6750 = vadd.f32 %v6653, %v6749
    %v6751 = vpop.f32.mrb[0].mxu0
    %v6752 = vpop.f32.mrb[0].mxu0
    %v6753 = vadd.f32 %v6656, %v6752
    %v6754 = vpop.f32.mrb[0].mxu0
    %6755 = vmatprep.mubr.bf16.mxu0 %v5798
    %6756 = vmatmul.mubr.bf16.gmra.mrb[0].mxu0 %v5797
    %v6757 = vpop.f32.mrb[0].mxu0
    %v6758 = vadd.f32 %v6661, %v6757
    %v6759 = vpop.f32.mrb[0].mxu0
    %v6760 = vpop.f32.mrb[0].mxu0
    %v6761 = vadd.f32 %v6664, %v6760
    %v6762 = vpop.f32.mrb[0].mxu0
    %6763 = vdwg.mxu0
    %6764 = vmatprep.subr.bf16.mxu0 0
    %6765 = vmatpush1.bf16.msra.mxu0 %v6296
    %6766 = vmatprep.subr.bf16.mxu0 0
    %6767 = vmatpush1.bf16.msra.mxu0 %v6297
    %6768 = vmatprep.subr.bf16.mxu0 0
    %6769 = vmatpush1.bf16.msra.mxu0 %v6298
    %6770 = vmatprep.subr.bf16.mxu0 0
    %6771 = vmatpush1.bf16.msra.mxu0 %v6299
    %6772 = vmatprep.subr.bf16.mxu0 0
    %6773 = vmatpush1.bf16.msra.mxu0 %v6300
    %6774 = vmatprep.subr.bf16.mxu0 0
    %6775 = vmatpush1.bf16.msra.mxu0 %v6301
    %6776 = vmatprep.subr.bf16.mxu0 0
    %6777 = vmatpush1.bf16.msra.mxu0 %v6302
    %6778 = vmatprep.subr.bf16.mxu0 0
    %6779 = vmatpush1.bf16.msra.mxu0 %v6303
    %6780 = vmatprep.subr.bf16.mxu0 0
    %6781 = vmatpush1.bf16.msra.mxu0 0
    %6782 = vmatprep.subr.bf16.mxu0 0
    %6783 = vmatpush1.bf16.msra.mxu0 0
    %6784 = vmatprep.subr.bf16.mxu0 0
    %6785 = vmatpush1.bf16.msra.mxu0 0
    %6786 = vmatprep.subr.bf16.mxu0 0
    %6787 = vmatpush1.bf16.msra.mxu0 0
    %6788 = vmatprep.subr.bf16.mxu0 0
    %6789 = vmatpush1.bf16.msra.mxu0 0
    %6790 = vmatprep.subr.bf16.mxu0 0
    %6791 = vmatpush1.bf16.msra.mxu0 0
    %6792 = vmatprep.subr.bf16.mxu0 0
    %6793 = vmatpush1.bf16.msra.mxu0 0
    %6794 = vmatprep.subr.bf16.mxu0 0
    %6795 = vmatpush1.bf16.msra.mxu0 0
    %6796 = vmatprep.mubr.bf16.mxu0 0
    %6797 = vmatmul.mubr.bf16.gmra.mrb[0].mxu0 %v5736
    %v6798 = vpop.f32.mrb[0].mxu0
    %v6799 = vadd.f32 %v6702, %v6798
    %v6800 = vpop.f32.mrb[0].mxu0
    %v6801 = vpop.f32.mrb[0].mxu0
    %v6802 = vadd.f32 %v6705, %v6801
    %v6803 = vpop.f32.mrb[0].mxu0
    %6804 = vmatprep.mubr.bf16.mxu0 0
    %6805 = vmatmul.mubr.bf16.gmra.mrb[0].mxu0 %v5745
    %v6806 = vpop.f32.mrb[0].mxu0
    %v6807 = vadd.f32 %v6710, %v6806
    %v6808 = vpop.f32.mrb[0].mxu0
    %v6809 = vpop.f32.mrb[0].mxu0
    %v6810 = vadd.f32 %v6713, %v6809
    %v6811 = vpop.f32.mrb[0].mxu0
    %6812 = vmatprep.mubr.bf16.mxu0 0
    %6813 = vmatmul.mubr.bf16.gmra.mrb[0].mxu0 %v5754
    %v6814 = vpop.f32.mrb[0].mxu0
    %v6815 = vadd.f32 %v6718, %v6814
    %v6816 = vpop.f32.mrb[0].mxu0
    %v6817 = vpop.f32.mrb[0].mxu0
    %v6818 = vadd.f32 %v6721, %v6817
    %v6819 = vpop.f32.mrb[0].mxu0
    %6820 = vmatprep.mubr.bf16.mxu0 0
    %6821 = vmatmul.mubr.bf16.gmra.mrb[0].mxu0 %v5763
    %v6822 = vpop.f32.mrb[0].mxu0
    %v6823 = vadd.f32 %v6726, %v6822
    %v6824 = vpop.f32.mrb[0].mxu0
    %v6825 = vpop.f32.mrb[0].mxu0
    %v6826 = vadd.f32 %v6729, %v6825
    %v6827 = vpop.f32.mrb[0].mxu0
    %6828 = vmatprep.mubr.bf16.mxu0 0
    %6829 = vmatmul.mubr.bf16.gmra.mrb[0].mxu0 %v5772
    %v6830 = vpop.f32.mrb[0].mxu0
    %v6831 = vadd.f32 %v6734, %v6830
    %v6832 = vpop.f32.mrb[0].mxu0
    %v6833 = vpop.f32.mrb[0].mxu0
    %v6834 = vadd.f32 %v6737, %v6833
    %v6835 = vpop.f32.mrb[0].mxu0
    %6836 = vmatprep.mubr.bf16.mxu0 0
    %6837 = vmatmul.mubr.bf16.gmra.mrb[0].mxu0 %v5781
    %v6838 = vpop.f32.mrb[0].mxu0
    %v6839 = vadd.f32 %v6742, %v6838
    %v6840 = vpop.f32.mrb[0].mxu0
    %v6841 = vpop.f32.mrb[0].mxu0
    %v6842 = vadd.f32 %v6745, %v6841
    %v6843 = vpop.f32.mrb[0].mxu0
    %6844 = vmatprep.mubr.bf16.mxu0 0
    %6845 = vmatmul.mubr.bf16.gmra.mrb[0].mxu0 %v5790
    %v6846 = vpop.f32.mrb[0].mxu0
    %v6847 = vadd.f32 %v6750, %v6846
    %v6848 = vpop.f32.mrb[0].mxu0
    %v6849 = vpop.f32.mrb[0].mxu0
    %v6850 = vadd.f32 %v6753, %v6849
    %v6851 = vpop.f32.mrb[0].mxu0
    %6852 = vmatprep.mubr.bf16.mxu0 0
    %6853 = vmatmul.mubr.bf16.gmra.mrb[0].mxu0 %v5799
    %v6854 = vpop.f32.mrb[0].mxu0
    %v6855 = vadd.f32 %v6758, %v6854
    %v6856 = vpop.f32.mrb[0].mxu0
    %v6857 = vpop.f32.mrb[0].mxu0
    %v6858 = vadd.f32 %v6761, %v6857
    %v6859 = vpop.f32.mrb[0].mxu0
    %6860 = vdwg.mxu0
    %v6861 = vadd.f32 %v3801, %v6799
    %v6862 = vadd.f32 %v3804, %v6802
    %v6863 = vadd.f32 %v3809, %v6807
    %v6864 = vadd.f32 %v3812, %v6810
    %v6865 = vadd.f32 %v3817, %v6815
    %v6866 = vadd.f32 %v3820, %v6818
    %v6867 = vadd.f32 %v3825, %v6823
    %v6868 = vadd.f32 %v3828, %v6826
    %v6869 = vadd.f32 %v3833, %v6831
    %v6870 = vadd.f32 %v3836, %v6834
    %v6871 = vadd.f32 %v3841, %v6839
    %v6872 = vadd.f32 %v3844, %v6842
    %v6873 = vadd.f32 %v3849, %v6847
    %v6874 = vadd.f32 %v3852, %v6850
    %v6875 = vadd.f32 %v3857, %v6855
    %v6876 = vadd.f32 %v3860, %v6858
    %6877 = vst [vmem:[#allocation16] sm:$0xff] %v6861
    %6878 = vst [vmem:[#allocation16 + $0x8] sm:$0xff] %v6862
    %6879 = vst [vmem:[#allocation16 + $0x10] sm:$0xff] %v6863
    %6880 = vst [vmem:[#allocation16 + $0x18] sm:$0xff] %v6864
    %6881 = vst [vmem:[#allocation16 + $0x20] sm:$0xff] %v6865
    %6882 = vst [vmem:[#allocation16 + $0x28] sm:$0xff] %v6866
    %6883 = vst [vmem:[#allocation16 + $0x30] sm:$0xff] %v6867
    %6884 = vst [vmem:[#allocation16 + $0x38] sm:$0xff] %v6868
    %6885 = vst [vmem:[#allocation16 + $0x40] sm:$0xff] %v6869
    %6886 = vst [vmem:[#allocation16 + $0x48] sm:$0xff] %v6870
    %6887 = vst [vmem:[#allocation16 + $0x50] sm:$0xff] %v6871
    %6888 = vst [vmem:[#allocation16 + $0x58] sm:$0xff] %v6872
    %6889 = vst [vmem:[#allocation16 + $0x60] sm:$0xff] %v6873
    %6890 = vst [vmem:[#allocation16 + $0x68] sm:$0xff] %v6874
    %6891 = vst [vmem:[#allocation16 + $0x70] sm:$0xff] %v6875
    %6892 = vst [vmem:[#allocation16 + $0x78] sm:$0xff] %v6876
    // Predicated region
    $region82: #{tpu_custom_call.1} parent=1 // pred_check
      _
    $region83: #{tpu_custom_call.1} parent=1 // pred_check_branch
      %6894 = sbr.rel (0) target = $region85
    $region84: #{tpu_custom_call.1} parent=1 // pred_region
      %s6896 = ssub.s32 2048, 2048
      %6897 = vsyncadd [#allocation7], %s6896
      %s6898 = sshll.u32 [#allocation16], 4
      %s6899 = int_to_ptr.vmem [resolvable:$true] %s6898
      %6904 = dma.vmem_to_hbm [thread:$0]  %s6899, 2048, %s14, [#allocation7], 128, 128, 8
    $region85: #{tpu_custom_call.1} parent=1 // pred_fallthru
      _
    // Predicated region
    $region86: #{tpu_custom_call.1} parent=1 // pred_check
      _
    $region87: #{tpu_custom_call.1} parent=1 // pred_check_branch
      %6906 = sbr.rel (0) target = $region89
    $region88: #{tpu_custom_call.1} parent=1 // pred_region
      %6907 = dma.done [#allocation7], 2048
    $region89: #{tpu_custom_call.1} parent=1 // pred_fallthru
      _
    %6908 = vsyncpa [#allocation6], 1
    %6909 = vsyncpa [#allocation9], 1
    %6910 = vsyncpa [#allocation12], 1
    %6911 = vsyncpa [#allocation15], 1
    %6912 = vsyncpa [#allocation7], 1

</llo_original>
